<compile_context>
chip_gen: v5e
topology: v5e:2x2
jax: 0.10.0
libtpu: 0.0.40
codegen_flags: <defaults>
</compile_context>

<pallas_src>
import functools

import numpy as np

import jax
import jax.numpy as jnp
from jax import lax
from jax.experimental import pallas as pl
from jax.experimental.pallas import tpu as pltpu


# ----------------------------------------------------------------------------
# build_grid (identical to the PyTorch helper, returns a jnp array)
# ----------------------------------------------------------------------------
def build_grid(resolution):
    ranges = [np.linspace(0.0, 1.0, num=res) for res in resolution]
    grid = np.meshgrid(*ranges, sparse=False, indexing="ij")
    grid = np.stack(grid, axis=-1)
    grid = np.reshape(grid, [resolution[0], resolution[1], -1])
    grid = np.expand_dims(grid, axis=0).astype(np.float32)
    return jnp.asarray(np.concatenate([grid, 1.0 - grid], axis=-1))  # (1,H,W,4)


# ----------------------------------------------------------------------------
# fused decoder kernel: pos-embed + conv1..conv4, roll-based taps, no scratch
# ----------------------------------------------------------------------------
def _decoder_kernel(x_ref, emb_ref, mask_ref,
                    w1_ref, b1_ref, w2_ref, b2_ref,
                    w3_ref, b3_ref, w4_ref, b4_ref,
                    o_ref, *, wp):
    np_ = x_ref.shape[-1]            # lane-dense canvas size (multiple of 128)
    mask = mask_ref[...]             # (1, NP): 1 at interior pixels, 0 at halo

    def conv(act, w_ref, b_ref, k, pad, relu, apply_mask):
        """k*k taps; each tap = lane roll (XLU) + (cout,cin)@(cin,NP) matmul."""
        cout = w_ref.shape[1]
        acc = jnp.zeros((cout, np_), jnp.float32)
        for kh in range(k):                                   # static unroll
            for kw in range(k):
                s = (kh - pad) * wp + (kw - pad)              # canvas shift
                taps = act if s == 0 else pltpu.roll(act, (-s) % np_, axis=1)
                acc = acc + jnp.dot(w_ref[kh * k + kw], taps,
                                    preferred_element_type=jnp.float32)
        acc = acc + b_ref[...]                                # (cout, 1) bcast
        if relu:
            acc = jnp.maximum(acc, 0.0)
        if apply_mask:                                        # re-zero halos
            acc = acc * mask
        return acc                                            # (cout, NP) f32

    # stage 0: soft position embedding (both operands have zero halos)
    act = x_ref[0] + emb_ref[...]                             # (D, NP)

    act = conv(act, w1_ref, b1_ref, k=5, pad=2, relu=True, apply_mask=True)
    act = conv(act, w2_ref, b2_ref, k=5, pad=2, relu=True, apply_mask=True)
    act = conv(act, w3_ref, b3_ref, k=5, pad=2, relu=True, apply_mask=True)
    act = conv(act, w4_ref, b4_ref, k=3, pad=1, relu=False, apply_mask=False)

    o_ref[0] = act.astype(o_ref.dtype)                        # (8, NP) store


def decoder_forward(xc, emb, mask, w1, b1, w2, b2, w3, b3, w4, b4, *, wp):
    """Single fused pallas_call; grid over batch (parallel)."""
    B, D, NP = xc.shape
    Co = w4.shape[1]                                          # padded cout (8)

    kernel = functools.partial(_decoder_kernel, wp=wp)
    inputs = (xc, emb, mask, w1, b1, w2, b2, w3, b3, w4, b4)

    tap_flops = sum(int(w.shape[0]) * int(w.shape[1]) * int(w.shape[2])
                    for w in (w1, w2, w3, w4))
    flops = 2 * B * NP * tap_flops
    bytes_accessed = (sum(int(a.size) * a.dtype.itemsize for a in inputs)
                      + B * Co * NP * xc.dtype.itemsize)

    return pl.pallas_call(
        kernel,
        out_shape=jax.ShapeDtypeStruct((B, Co, NP), xc.dtype),
        grid=(B,),
        in_specs=[
            pl.BlockSpec((1, D, NP), lambda b: (b, 0, 0)),    # x canvas (per b)
            pl.BlockSpec(emb.shape, lambda b: (0, 0)),        # pos-embed canvas
            pl.BlockSpec(mask.shape, lambda b: (0, 0)),       # interior mask
            pl.BlockSpec(w1.shape, lambda b: (0, 0, 0)),      # (25, Ch, D)
            pl.BlockSpec(b1.shape, lambda b: (0, 0)),
            pl.BlockSpec(w2.shape, lambda b: (0, 0, 0)),      # (25, Ch, Ch)
            pl.BlockSpec(b2.shape, lambda b: (0, 0)),
            pl.BlockSpec(w3.shape, lambda b: (0, 0, 0)),      # (25, Ch, Ch)
            pl.BlockSpec(b3.shape, lambda b: (0, 0)),
            pl.BlockSpec(w4.shape, lambda b: (0, 0, 0)),      # (9, 8, Ch)
            pl.BlockSpec(b4.shape, lambda b: (0, 0)),
        ],
        out_specs=pl.BlockSpec((1, Co, NP), lambda b: (b, 0, 0)),
        compiler_params=pltpu.CompilerParams(
            dimension_semantics=("parallel",)),
        cost_estimate=pl.CostEstimate(flops=flops, transcendentals=0,
                                      bytes_accessed=bytes_accessed),
    )(*inputs)


# ----------------------------------------------------------------------------
# Decoder (small_arch=True)
# ----------------------------------------------------------------------------
class Decoder:
    def __init__(self, hid_dim, slots_dim, resolution, small_arch, key):
        assert small_arch, "only small_arch=True is implemented"
        # TODO(synk): small_arch=False path (stride-2, output_padding=1
        # ConvTranspose2d stack) is not implemented in this synthetic kernel.
        self.resolution = resolution
        self.decoder_initial_size = resolution
        H, W = resolution
        ks = jax.random.split(key, 10)

        def w(k, shape, scale=0.1):
            return (scale * jax.random.normal(k, shape)).astype(jnp.float32)

        # ConvTranspose2d weights in PyTorch layout (Cin, Cout, KH, KW)
        self.w1_pt, self.b1 = w(ks[0], (slots_dim, hid_dim, 5, 5)), w(ks[1], (hid_dim,))
        self.w2_pt, self.b2 = w(ks[2], (hid_dim, hid_dim, 5, 5)), w(ks[3], (hid_dim,))
        self.w3_pt, self.b3 = w(ks[4], (hid_dim, hid_dim, 5, 5)), w(ks[5], (hid_dim,))
        self.w4_pt, self.b4 = w(ks[6], (hid_dim, 4, 3, 3)), w(ks[7], (4,))
        # SoftPositionEmbed: Linear(4, slots_dim)
        self.emb_w = w(ks[8], (4, slots_dim))
        self.emb_b = w(ks[9], (1, slots_dim))
        self.grid = build_grid(self.decoder_initial_size)      # (1, H, W, 4)

        # ---- one-time precompute (hoisted out of the forward path) ----------
        pad = 2                                    # max conv halo (5x5, pad 2)
        self.pad = pad
        self.Hp, self.Wp = H + 2 * pad, W + 2 * pad
        # lane-dense canvas: round flattened padded image up to multiple of 128
        self.NP = 128 * pl.cdiv(self.Hp * self.Wp, 128)

        def conv_taps(w_pt):
            # ConvTranspose2d(stride=1, pad p) == direct conv with spatially
            # flipped kernel and conv pad (k-1-p); taps laid out (k*k, cout,
            # cin) so the kernel does W_tap @ act_canvas per tap.
            cin, cout, kh, kw = w_pt.shape
            taps = jnp.transpose(w_pt[:, :, ::-1, ::-1], (2, 3, 1, 0))
            return taps.reshape(kh * kw, cout, cin)

        self.k1 = conv_taps(self.w1_pt)                        # (25, hid, slots)
        self.k2 = conv_taps(self.w2_pt)                        # (25, hid, hid)
        self.k3 = conv_taps(self.w3_pt)                        # (25, hid, hid)
        # pad last layer cout 4 -> 8 so the final store is sublane-full
        k4 = conv_taps(self.w4_pt)                             # (9, 4, hid)
        self.k4 = jnp.zeros((9, 8, hid_dim), jnp.float32).at[:, :4, :].set(k4)
        self.b1r = self.b1.reshape(-1, 1)
        self.b2r = self.b2.reshape(-1, 1)
        self.b3r = self.b3.reshape(-1, 1)
        self.b4r = jnp.zeros((8, 1), jnp.float32).at[:4, 0].set(self.b4)

        # SoftPositionEmbed output is input-independent: precompute once in
        # channels-on-sublanes canvas layout with zero halos.
        g = self.grid[0].reshape(H * W, 4)
        emb = (g @ self.emb_w + self.emb_b).reshape(H, W, slots_dim)
        emb = jnp.transpose(emb, (2, 0, 1))                    # (D, H, W)
        emb = jnp.pad(emb, ((0, 0), (pad, pad), (pad, pad)))
        emb = emb.reshape(slots_dim, self.Hp * self.Wp)
        self.emb_c = jnp.pad(emb, ((0, 0), (0, self.NP - self.Hp * self.Wp)))

        # halo mask: 1 at interior canvas lanes, 0 at halo / dead lanes
        m = np.zeros((1, self.NP), np.float32)
        for h in range(H):
            base = (h + pad) * self.Wp + pad
            m[0, base:base + W] = 1.0
        self.mask = jnp.asarray(m)

    def __call__(self, x):                      # x: (B, H, W, slots_dim) NHWC
        B, H, W, D = x.shape
        pad, Hp, Wp, NP = self.pad, self.Hp, self.Wp, self.NP

        # layout plumbing only (NHWC -> zero-haloed, lane-dense canvas)
        xc = jnp.transpose(x, (0, 3, 1, 2))                    # (B, D, H, W)
        xc = jnp.pad(xc, ((0, 0), (0, 0), (pad, pad), (pad, pad)))
        xc = xc.reshape(B, D, Hp * Wp)
        xc = jnp.pad(xc, ((0, 0), (0, 0), (0, NP - Hp * Wp)))  # (B, D, NP)

        out = decoder_forward(xc, self.emb_c, self.mask,
                              self.k1, self.b1r, self.k2, self.b2r,
                              self.k3, self.b3r, self.k4, self.b4r, wp=Wp)

        # canvas -> NHWC (layout plumbing), drop padded channels & halo
        out = out[:, :4, :Hp * Wp].reshape(B, 4, Hp, Wp)
        out = out[:, :, pad:pad + H, pad:pad + W]
        out = jnp.transpose(out, (0, 2, 3, 1))                 # (B, H, W, 4)
        return out[:, :self.resolution[0], :self.resolution[1], :]


# ----------------------------------------------------------------------------
# pure-JAX reference (lax conv on the raw PyTorch-layout weights)
# ----------------------------------------------------------------------------
def ref_forward(dec, x):
    H, W = dec.decoder_initial_size
    g = dec.grid[0].reshape(-1, 4)
    emb = (g @ dec.emb_w + dec.emb_b).reshape(H, W, -1)
    x = x + emb[None]

    def ct(x, w_pt, b, pad, relu):
        k = w_pt.shape[2]
        w_conv = jnp.transpose(w_pt[:, :, ::-1, ::-1], (2, 3, 0, 1))
        p = k - 1 - pad
        y = lax.conv_general_dilated(
            x, w_conv, window_strides=(1, 1), padding=[(p, p), (p, p)],
            dimension_numbers=("NHWC", "HWIO", "NHWC"),
            precision=lax.Precision.HIGHEST)
        y = y + b
        return jnp.maximum(y, 0.0) if relu else y

    x = ct(x, dec.w1_pt, dec.b1, 2, True)
    x = ct(x, dec.w2_pt, dec.b2, 2, True)
    x = ct(x, dec.w3_pt, dec.b3, 2, True)
    x = ct(x, dec.w4_pt, dec.b4, 1, False)
    return x[:, :dec.resolution[0], :dec.resolution[1], :]


if __name__ == "__main__":
    B, H, W = 2, 8, 8
    slots_dim, hid_dim = 8, 32
    resolution = (H, W)

    key = jax.random.PRNGKey(0)
    k_params, k_x = jax.random.split(key)
    dec = Decoder(hid_dim, slots_dim, resolution, small_arch=True, key=k_params)

    x = jax.random.normal(k_x, (B, H, W, slots_dim), dtype=jnp.float32)

    out = jax.block_until_ready(dec(x))
    assert out.shape == (B, H, W, 4), out.shape

    ref = jax.block_until_ready(ref_forward(dec, x))
    np.testing.assert_allclose(np.asarray(out), np.asarray(ref),
                               rtol=2e-4, atol=2e-4)
    print("KERNEL_OK")
</pallas_src>

<mosaic_0001>
module attributes {stable_mosaic.version = 11 : i64} {
  func.func @_decoder_kernel(%arg0: i32, %arg1: memref<1x8x256xf32, #tpu.memory_space<vmem>>, %arg2: memref<8x256xf32, #tpu.memory_space<vmem>>, %arg3: memref<1x256xf32, #tpu.memory_space<vmem>>, %arg4: memref<25x32x8xf32, #tpu.memory_space<vmem>>, %arg5: memref<32x1xf32, #tpu.memory_space<vmem>>, %arg6: memref<25x32x32xf32, #tpu.memory_space<vmem>>, %arg7: memref<32x1xf32, #tpu.memory_space<vmem>>, %arg8: memref<25x32x32xf32, #tpu.memory_space<vmem>>, %arg9: memref<32x1xf32, #tpu.memory_space<vmem>>, %arg10: memref<9x8x32xf32, #tpu.memory_space<vmem>>, %arg11: memref<8x1xf32, #tpu.memory_space<vmem>>, %arg12: memref<1x8x256xf32, #tpu.memory_space<vmem>>) attributes {dimension_semantics = [#tpu.dimension_semantics<parallel>], iteration_bounds = array<i64: 2>, scalar_prefetch = 0 : i64, scratch_operands = 0 : i64, tpu.core_type = #tpu.core_type<tc>, window_params = [{transform_indices = @transform_0, window_bounds = array<i64: 1, 8, 256>}, {pipeline_mode = #tpu.pipeline_mode<synchronous>, transform_indices = @transform_1, window_bounds = array<i64: 8, 256>}, {pipeline_mode = #tpu.pipeline_mode<synchronous>, transform_indices = @transform_2, window_bounds = array<i64: 1, 256>}, {pipeline_mode = #tpu.pipeline_mode<synchronous>, transform_indices = @transform_3, window_bounds = array<i64: 25, 32, 8>}, {pipeline_mode = #tpu.pipeline_mode<synchronous>, transform_indices = @transform_4, window_bounds = array<i64: 32, 1>}, {pipeline_mode = #tpu.pipeline_mode<synchronous>, transform_indices = @transform_5, window_bounds = array<i64: 25, 32, 32>}, {pipeline_mode = #tpu.pipeline_mode<synchronous>, transform_indices = @transform_6, window_bounds = array<i64: 32, 1>}, {pipeline_mode = #tpu.pipeline_mode<synchronous>, transform_indices = @transform_7, window_bounds = array<i64: 25, 32, 32>}, {pipeline_mode = #tpu.pipeline_mode<synchronous>, transform_indices = @transform_8, window_bounds = array<i64: 32, 1>}, {pipeline_mode = #tpu.pipeline_mode<synchronous>, transform_indices = @transform_9, window_bounds = array<i64: 9, 8, 32>}, {pipeline_mode = #tpu.pipeline_mode<synchronous>, transform_indices = @transform_10, window_bounds = array<i64: 8, 1>}, {transform_indices = @transform_11, window_bounds = array<i64: 1, 8, 256>}]} {
    %c0 = arith.constant 0 : index
    %c0_0 = arith.constant 0 : index
    %0 = vector.load %arg3[%c0, %c0_0] : memref<1x256xf32, #tpu.memory_space<vmem>>, vector<1x256xf32>
    %c0_1 = arith.constant 0 : index
    %c0_2 = arith.constant 0 : index
    %c0_3 = arith.constant 0 : index
    %1 = vector.load %arg1[%c0_1, %c0_2, %c0_3] : memref<1x8x256xf32, #tpu.memory_space<vmem>>, vector<1x8x256xf32>
    %2 = vector.shape_cast %1 : vector<1x8x256xf32> to vector<8x256xf32>
    %c0_4 = arith.constant 0 : index
    %c0_5 = arith.constant 0 : index
    %3 = vector.load %arg2[%c0_4, %c0_5] : memref<8x256xf32, #tpu.memory_space<vmem>>, vector<8x256xf32>
    %4 = arith.addf %2, %3 : vector<8x256xf32>
    %cst = arith.constant 0.000000e+00 : f32
    %5 = vector.broadcast %cst : f32 to vector<32x256xf32>
    %c26_i32 = arith.constant 26 : i32
    %6 = tpu.dynamic_rotate %4 by %c26_i32 dim 1 : vector<8x256xf32>, i32 -> vector<8x256xf32>
    %c0_6 = arith.constant 0 : index
    %c0_7 = arith.constant 0 : index
    %c0_8 = arith.constant 0 : index
    %7 = vector.load %arg4[%c0_6, %c0_7, %c0_8] : memref<25x32x8xf32, #tpu.memory_space<vmem>>, vector<1x32x8xf32>
    %8 = vector.shape_cast %7 : vector<1x32x8xf32> to vector<32x8xf32>
    %cst_9 = arith.constant dense<0.000000e+00> : vector<32x256xf32>
    %9 = tpu.matmul %8, %6, %cst_9 {dimension_numbers = #tpu.dot_dimension_numbers<[1], [0], [0], [1], [0, 0, 1, 1], [], []>} : vector<32x8xf32>, vector<8x256xf32>, vector<32x256xf32> -> vector<32x256xf32>
    %10 = arith.addf %5, %9 : vector<32x256xf32>
    %c25_i32 = arith.constant 25 : i32
    %11 = tpu.dynamic_rotate %4 by %c25_i32 dim 1 : vector<8x256xf32>, i32 -> vector<8x256xf32>
    %c1 = arith.constant 1 : index
    %c0_10 = arith.constant 0 : index
    %c0_11 = arith.constant 0 : index
    %12 = vector.load %arg4[%c1, %c0_10, %c0_11] : memref<25x32x8xf32, #tpu.memory_space<vmem>>, vector<1x32x8xf32>
    %13 = vector.shape_cast %12 : vector<1x32x8xf32> to vector<32x8xf32>
    %cst_12 = arith.constant dense<0.000000e+00> : vector<32x256xf32>
    %14 = tpu.matmul %13, %11, %cst_12 {dimension_numbers = #tpu.dot_dimension_numbers<[1], [0], [0], [1], [0, 0, 1, 1], [], []>} : vector<32x8xf32>, vector<8x256xf32>, vector<32x256xf32> -> vector<32x256xf32>
    %15 = arith.addf %10, %14 : vector<32x256xf32>
    %c24_i32 = arith.constant 24 : i32
    %16 = tpu.dynamic_rotate %4 by %c24_i32 dim 1 : vector<8x256xf32>, i32 -> vector<8x256xf32>
    %c2 = arith.constant 2 : index
    %c0_13 = arith.constant 0 : index
    %c0_14 = arith.constant 0 : index
    %17 = vector.load %arg4[%c2, %c0_13, %c0_14] : memref<25x32x8xf32, #tpu.memory_space<vmem>>, vector<1x32x8xf32>
    %18 = vector.shape_cast %17 : vector<1x32x8xf32> to vector<32x8xf32>
    %cst_15 = arith.constant dense<0.000000e+00> : vector<32x256xf32>
    %19 = tpu.matmul %18, %16, %cst_15 {dimension_numbers = #tpu.dot_dimension_numbers<[1], [0], [0], [1], [0, 0, 1, 1], [], []>} : vector<32x8xf32>, vector<8x256xf32>, vector<32x256xf32> -> vector<32x256xf32>
    %20 = arith.addf %15, %19 : vector<32x256xf32>
    %c23_i32 = arith.constant 23 : i32
    %21 = tpu.dynamic_rotate %4 by %c23_i32 dim 1 : vector<8x256xf32>, i32 -> vector<8x256xf32>
    %c3 = arith.constant 3 : index
    %c0_16 = arith.constant 0 : index
    %c0_17 = arith.constant 0 : index
    %22 = vector.load %arg4[%c3, %c0_16, %c0_17] : memref<25x32x8xf32, #tpu.memory_space<vmem>>, vector<1x32x8xf32>
    %23 = vector.shape_cast %22 : vector<1x32x8xf32> to vector<32x8xf32>
    %cst_18 = arith.constant dense<0.000000e+00> : vector<32x256xf32>
    %24 = tpu.matmul %23, %21, %cst_18 {dimension_numbers = #tpu.dot_dimension_numbers<[1], [0], [0], [1], [0, 0, 1, 1], [], []>} : vector<32x8xf32>, vector<8x256xf32>, vector<32x256xf32> -> vector<32x256xf32>
    %25 = arith.addf %20, %24 : vector<32x256xf32>
    %c22_i32 = arith.constant 22 : i32
    %26 = tpu.dynamic_rotate %4 by %c22_i32 dim 1 : vector<8x256xf32>, i32 -> vector<8x256xf32>
    %c4 = arith.constant 4 : index
    %c0_19 = arith.constant 0 : index
    %c0_20 = arith.constant 0 : index
    %27 = vector.load %arg4[%c4, %c0_19, %c0_20] : memref<25x32x8xf32, #tpu.memory_space<vmem>>, vector<1x32x8xf32>
    %28 = vector.shape_cast %27 : vector<1x32x8xf32> to vector<32x8xf32>
    %cst_21 = arith.constant dense<0.000000e+00> : vector<32x256xf32>
    %29 = tpu.matmul %28, %26, %cst_21 {dimension_numbers = #tpu.dot_dimension_numbers<[1], [0], [0], [1], [0, 0, 1, 1], [], []>} : vector<32x8xf32>, vector<8x256xf32>, vector<32x256xf32> -> vector<32x256xf32>
    %30 = arith.addf %25, %29 : vector<32x256xf32>
    %c14_i32 = arith.constant 14 : i32
    %31 = tpu.dynamic_rotate %4 by %c14_i32 dim 1 : vector<8x256xf32>, i32 -> vector<8x256xf32>
    %c5 = arith.constant 5 : index
    %c0_22 = arith.constant 0 : index
    %c0_23 = arith.constant 0 : index
    %32 = vector.load %arg4[%c5, %c0_22, %c0_23] : memref<25x32x8xf32, #tpu.memory_space<vmem>>, vector<1x32x8xf32>
    %33 = vector.shape_cast %32 : vector<1x32x8xf32> to vector<32x8xf32>
    %cst_24 = arith.constant dense<0.000000e+00> : vector<32x256xf32>
    %34 = tpu.matmul %33, %31, %cst_24 {dimension_numbers = #tpu.dot_dimension_numbers<[1], [0], [0], [1], [0, 0, 1, 1], [], []>} : vector<32x8xf32>, vector<8x256xf32>, vector<32x256xf32> -> vector<32x256xf32>
    %35 = arith.addf %30, %34 : vector<32x256xf32>
    %c13_i32 = arith.constant 13 : i32
    %36 = tpu.dynamic_rotate %4 by %c13_i32 dim 1 : vector<8x256xf32>, i32 -> vector<8x256xf32>
    %c6 = arith.constant 6 : index
    %c0_25 = arith.constant 0 : index
    %c0_26 = arith.constant 0 : index
    %37 = vector.load %arg4[%c6, %c0_25, %c0_26] : memref<25x32x8xf32, #tpu.memory_space<vmem>>, vector<1x32x8xf32>
    %38 = vector.shape_cast %37 : vector<1x32x8xf32> to vector<32x8xf32>
    %cst_27 = arith.constant dense<0.000000e+00> : vector<32x256xf32>
    %39 = tpu.matmul %38, %36, %cst_27 {dimension_numbers = #tpu.dot_dimension_numbers<[1], [0], [0], [1], [0, 0, 1, 1], [], []>} : vector<32x8xf32>, vector<8x256xf32>, vector<32x256xf32> -> vector<32x256xf32>
    %40 = arith.addf %35, %39 : vector<32x256xf32>
    %c12_i32 = arith.constant 12 : i32
    %41 = tpu.dynamic_rotate %4 by %c12_i32 dim 1 : vector<8x256xf32>, i32 -> vector<8x256xf32>
    %c7 = arith.constant 7 : index
    %c0_28 = arith.constant 0 : index
    %c0_29 = arith.constant 0 : index
    %42 = vector.load %arg4[%c7, %c0_28, %c0_29] : memref<25x32x8xf32, #tpu.memory_space<vmem>>, vector<1x32x8xf32>
    %43 = vector.shape_cast %42 : vector<1x32x8xf32> to vector<32x8xf32>
    %cst_30 = arith.constant dense<0.000000e+00> : vector<32x256xf32>
    %44 = tpu.matmul %43, %41, %cst_30 {dimension_numbers = #tpu.dot_dimension_numbers<[1], [0], [0], [1], [0, 0, 1, 1], [], []>} : vector<32x8xf32>, vector<8x256xf32>, vector<32x256xf32> -> vector<32x256xf32>
    %45 = arith.addf %40, %44 : vector<32x256xf32>
    %c11_i32 = arith.constant 11 : i32
    %46 = tpu.dynamic_rotate %4 by %c11_i32 dim 1 : vector<8x256xf32>, i32 -> vector<8x256xf32>
    %c8 = arith.constant 8 : index
    %c0_31 = arith.constant 0 : index
    %c0_32 = arith.constant 0 : index
    %47 = vector.load %arg4[%c8, %c0_31, %c0_32] : memref<25x32x8xf32, #tpu.memory_space<vmem>>, vector<1x32x8xf32>
    %48 = vector.shape_cast %47 : vector<1x32x8xf32> to vector<32x8xf32>
    %cst_33 = arith.constant dense<0.000000e+00> : vector<32x256xf32>
    %49 = tpu.matmul %48, %46, %cst_33 {dimension_numbers = #tpu.dot_dimension_numbers<[1], [0], [0], [1], [0, 0, 1, 1], [], []>} : vector<32x8xf32>, vector<8x256xf32>, vector<32x256xf32> -> vector<32x256xf32>
    %50 = arith.addf %45, %49 : vector<32x256xf32>
    %c10_i32 = arith.constant 10 : i32
    %51 = tpu.dynamic_rotate %4 by %c10_i32 dim 1 : vector<8x256xf32>, i32 -> vector<8x256xf32>
    %c9 = arith.constant 9 : index
    %c0_34 = arith.constant 0 : index
    %c0_35 = arith.constant 0 : index
    %52 = vector.load %arg4[%c9, %c0_34, %c0_35] : memref<25x32x8xf32, #tpu.memory_space<vmem>>, vector<1x32x8xf32>
    %53 = vector.shape_cast %52 : vector<1x32x8xf32> to vector<32x8xf32>
    %cst_36 = arith.constant dense<0.000000e+00> : vector<32x256xf32>
    %54 = tpu.matmul %53, %51, %cst_36 {dimension_numbers = #tpu.dot_dimension_numbers<[1], [0], [0], [1], [0, 0, 1, 1], [], []>} : vector<32x8xf32>, vector<8x256xf32>, vector<32x256xf32> -> vector<32x256xf32>
    %55 = arith.addf %50, %54 : vector<32x256xf32>
    %c2_i32 = arith.constant 2 : i32
    %56 = tpu.dynamic_rotate %4 by %c2_i32 dim 1 : vector<8x256xf32>, i32 -> vector<8x256xf32>
    %c10 = arith.constant 10 : index
    %c0_37 = arith.constant 0 : index
    %c0_38 = arith.constant 0 : index
    %57 = vector.load %arg4[%c10, %c0_37, %c0_38] : memref<25x32x8xf32, #tpu.memory_space<vmem>>, vector<1x32x8xf32>
    %58 = vector.shape_cast %57 : vector<1x32x8xf32> to vector<32x8xf32>
    %cst_39 = arith.constant dense<0.000000e+00> : vector<32x256xf32>
    %59 = tpu.matmul %58, %56, %cst_39 {dimension_numbers = #tpu.dot_dimension_numbers<[1], [0], [0], [1], [0, 0, 1, 1], [], []>} : vector<32x8xf32>, vector<8x256xf32>, vector<32x256xf32> -> vector<32x256xf32>
    %60 = arith.addf %55, %59 : vector<32x256xf32>
    %c1_i32 = arith.constant 1 : i32
    %61 = tpu.dynamic_rotate %4 by %c1_i32 dim 1 : vector<8x256xf32>, i32 -> vector<8x256xf32>
    %c11 = arith.constant 11 : index
    %c0_40 = arith.constant 0 : index
    %c0_41 = arith.constant 0 : index
    %62 = vector.load %arg4[%c11, %c0_40, %c0_41] : memref<25x32x8xf32, #tpu.memory_space<vmem>>, vector<1x32x8xf32>
    %63 = vector.shape_cast %62 : vector<1x32x8xf32> to vector<32x8xf32>
    %cst_42 = arith.constant dense<0.000000e+00> : vector<32x256xf32>
    %64 = tpu.matmul %63, %61, %cst_42 {dimension_numbers = #tpu.dot_dimension_numbers<[1], [0], [0], [1], [0, 0, 1, 1], [], []>} : vector<32x8xf32>, vector<8x256xf32>, vector<32x256xf32> -> vector<32x256xf32>
    %65 = arith.addf %60, %64 : vector<32x256xf32>
    %c12 = arith.constant 12 : index
    %c0_43 = arith.constant 0 : index
    %c0_44 = arith.constant 0 : index
    %66 = vector.load %arg4[%c12, %c0_43, %c0_44] : memref<25x32x8xf32, #tpu.memory_space<vmem>>, vector<1x32x8xf32>
    %67 = vector.shape_cast %66 : vector<1x32x8xf32> to vector<32x8xf32>
    %cst_45 = arith.constant dense<0.000000e+00> : vector<32x256xf32>
    %68 = tpu.matmul %67, %4, %cst_45 {dimension_numbers = #tpu.dot_dimension_numbers<[1], [0], [0], [1], [0, 0, 1, 1], [], []>} : vector<32x8xf32>, vector<8x256xf32>, vector<32x256xf32> -> vector<32x256xf32>
    %69 = arith.addf %65, %68 : vector<32x256xf32>
    %c255_i32 = arith.constant 255 : i32
    %70 = tpu.dynamic_rotate %4 by %c255_i32 dim 1 : vector<8x256xf32>, i32 -> vector<8x256xf32>
    %c13 = arith.constant 13 : index
    %c0_46 = arith.constant 0 : index
    %c0_47 = arith.constant 0 : index
    %71 = vector.load %arg4[%c13, %c0_46, %c0_47] : memref<25x32x8xf32, #tpu.memory_space<vmem>>, vector<1x32x8xf32>
    %72 = vector.shape_cast %71 : vector<1x32x8xf32> to vector<32x8xf32>
    %cst_48 = arith.constant dense<0.000000e+00> : vector<32x256xf32>
    %73 = tpu.matmul %72, %70, %cst_48 {dimension_numbers = #tpu.dot_dimension_numbers<[1], [0], [0], [1], [0, 0, 1, 1], [], []>} : vector<32x8xf32>, vector<8x256xf32>, vector<32x256xf32> -> vector<32x256xf32>
    %74 = arith.addf %69, %73 : vector<32x256xf32>
    %c254_i32 = arith.constant 254 : i32
    %75 = tpu.dynamic_rotate %4 by %c254_i32 dim 1 : vector<8x256xf32>, i32 -> vector<8x256xf32>
    %c14 = arith.constant 14 : index
    %c0_49 = arith.constant 0 : index
    %c0_50 = arith.constant 0 : index
    %76 = vector.load %arg4[%c14, %c0_49, %c0_50] : memref<25x32x8xf32, #tpu.memory_space<vmem>>, vector<1x32x8xf32>
    %77 = vector.shape_cast %76 : vector<1x32x8xf32> to vector<32x8xf32>
    %cst_51 = arith.constant dense<0.000000e+00> : vector<32x256xf32>
    %78 = tpu.matmul %77, %75, %cst_51 {dimension_numbers = #tpu.dot_dimension_numbers<[1], [0], [0], [1], [0, 0, 1, 1], [], []>} : vector<32x8xf32>, vector<8x256xf32>, vector<32x256xf32> -> vector<32x256xf32>
    %79 = arith.addf %74, %78 : vector<32x256xf32>
    %c246_i32 = arith.constant 246 : i32
    %80 = tpu.dynamic_rotate %4 by %c246_i32 dim 1 : vector<8x256xf32>, i32 -> vector<8x256xf32>
    %c15 = arith.constant 15 : index
    %c0_52 = arith.constant 0 : index
    %c0_53 = arith.constant 0 : index
    %81 = vector.load %arg4[%c15, %c0_52, %c0_53] : memref<25x32x8xf32, #tpu.memory_space<vmem>>, vector<1x32x8xf32>
    %82 = vector.shape_cast %81 : vector<1x32x8xf32> to vector<32x8xf32>
    %cst_54 = arith.constant dense<0.000000e+00> : vector<32x256xf32>
    %83 = tpu.matmul %82, %80, %cst_54 {dimension_numbers = #tpu.dot_dimension_numbers<[1], [0], [0], [1], [0, 0, 1, 1], [], []>} : vector<32x8xf32>, vector<8x256xf32>, vector<32x256xf32> -> vector<32x256xf32>
    %84 = arith.addf %79, %83 : vector<32x256xf32>
    %c245_i32 = arith.constant 245 : i32
    %85 = tpu.dynamic_rotate %4 by %c245_i32 dim 1 : vector<8x256xf32>, i32 -> vector<8x256xf32>
    %c16 = arith.constant 16 : index
    %c0_55 = arith.constant 0 : index
    %c0_56 = arith.constant 0 : index
    %86 = vector.load %arg4[%c16, %c0_55, %c0_56] : memref<25x32x8xf32, #tpu.memory_space<vmem>>, vector<1x32x8xf32>
    %87 = vector.shape_cast %86 : vector<1x32x8xf32> to vector<32x8xf32>
    %cst_57 = arith.constant dense<0.000000e+00> : vector<32x256xf32>
    %88 = tpu.matmul %87, %85, %cst_57 {dimension_numbers = #tpu.dot_dimension_numbers<[1], [0], [0], [1], [0, 0, 1, 1], [], []>} : vector<32x8xf32>, vector<8x256xf32>, vector<32x256xf32> -> vector<32x256xf32>
    %89 = arith.addf %84, %88 : vector<32x256xf32>
    %c244_i32 = arith.constant 244 : i32
    %90 = tpu.dynamic_rotate %4 by %c244_i32 dim 1 : vector<8x256xf32>, i32 -> vector<8x256xf32>
    %c17 = arith.constant 17 : index
    %c0_58 = arith.constant 0 : index
    %c0_59 = arith.constant 0 : index
    %91 = vector.load %arg4[%c17, %c0_58, %c0_59] : memref<25x32x8xf32, #tpu.memory_space<vmem>>, vector<1x32x8xf32>
    %92 = vector.shape_cast %91 : vector<1x32x8xf32> to vector<32x8xf32>
    %cst_60 = arith.constant dense<0.000000e+00> : vector<32x256xf32>
    %93 = tpu.matmul %92, %90, %cst_60 {dimension_numbers = #tpu.dot_dimension_numbers<[1], [0], [0], [1], [0, 0, 1, 1], [], []>} : vector<32x8xf32>, vector<8x256xf32>, vector<32x256xf32> -> vector<32x256xf32>
    %94 = arith.addf %89, %93 : vector<32x256xf32>
    %c243_i32 = arith.constant 243 : i32
    %95 = tpu.dynamic_rotate %4 by %c243_i32 dim 1 : vector<8x256xf32>, i32 -> vector<8x256xf32>
    %c18 = arith.constant 18 : index
    %c0_61 = arith.constant 0 : index
    %c0_62 = arith.constant 0 : index
    %96 = vector.load %arg4[%c18, %c0_61, %c0_62] : memref<25x32x8xf32, #tpu.memory_space<vmem>>, vector<1x32x8xf32>
    %97 = vector.shape_cast %96 : vector<1x32x8xf32> to vector<32x8xf32>
    %cst_63 = arith.constant dense<0.000000e+00> : vector<32x256xf32>
    %98 = tpu.matmul %97, %95, %cst_63 {dimension_numbers = #tpu.dot_dimension_numbers<[1], [0], [0], [1], [0, 0, 1, 1], [], []>} : vector<32x8xf32>, vector<8x256xf32>, vector<32x256xf32> -> vector<32x256xf32>
    %99 = arith.addf %94, %98 : vector<32x256xf32>
    %c242_i32 = arith.constant 242 : i32
    %100 = tpu.dynamic_rotate %4 by %c242_i32 dim 1 : vector<8x256xf32>, i32 -> vector<8x256xf32>
    %c19 = arith.constant 19 : index
    %c0_64 = arith.constant 0 : index
    %c0_65 = arith.constant 0 : index
    %101 = vector.load %arg4[%c19, %c0_64, %c0_65] : memref<25x32x8xf32, #tpu.memory_space<vmem>>, vector<1x32x8xf32>
    %102 = vector.shape_cast %101 : vector<1x32x8xf32> to vector<32x8xf32>
    %cst_66 = arith.constant dense<0.000000e+00> : vector<32x256xf32>
    %103 = tpu.matmul %102, %100, %cst_66 {dimension_numbers = #tpu.dot_dimension_numbers<[1], [0], [0], [1], [0, 0, 1, 1], [], []>} : vector<32x8xf32>, vector<8x256xf32>, vector<32x256xf32> -> vector<32x256xf32>
    %104 = arith.addf %99, %103 : vector<32x256xf32>
    %c234_i32 = arith.constant 234 : i32
    %105 = tpu.dynamic_rotate %4 by %c234_i32 dim 1 : vector<8x256xf32>, i32 -> vector<8x256xf32>
    %c20 = arith.constant 20 : index
    %c0_67 = arith.constant 0 : index
    %c0_68 = arith.constant 0 : index
    %106 = vector.load %arg4[%c20, %c0_67, %c0_68] : memref<25x32x8xf32, #tpu.memory_space<vmem>>, vector<1x32x8xf32>
    %107 = vector.shape_cast %106 : vector<1x32x8xf32> to vector<32x8xf32>
    %cst_69 = arith.constant dense<0.000000e+00> : vector<32x256xf32>
    %108 = tpu.matmul %107, %105, %cst_69 {dimension_numbers = #tpu.dot_dimension_numbers<[1], [0], [0], [1], [0, 0, 1, 1], [], []>} : vector<32x8xf32>, vector<8x256xf32>, vector<32x256xf32> -> vector<32x256xf32>
    %109 = arith.addf %104, %108 : vector<32x256xf32>
    %c233_i32 = arith.constant 233 : i32
    %110 = tpu.dynamic_rotate %4 by %c233_i32 dim 1 : vector<8x256xf32>, i32 -> vector<8x256xf32>
    %c21 = arith.constant 21 : index
    %c0_70 = arith.constant 0 : index
    %c0_71 = arith.constant 0 : index
    %111 = vector.load %arg4[%c21, %c0_70, %c0_71] : memref<25x32x8xf32, #tpu.memory_space<vmem>>, vector<1x32x8xf32>
    %112 = vector.shape_cast %111 : vector<1x32x8xf32> to vector<32x8xf32>
    %cst_72 = arith.constant dense<0.000000e+00> : vector<32x256xf32>
    %113 = tpu.matmul %112, %110, %cst_72 {dimension_numbers = #tpu.dot_dimension_numbers<[1], [0], [0], [1], [0, 0, 1, 1], [], []>} : vector<32x8xf32>, vector<8x256xf32>, vector<32x256xf32> -> vector<32x256xf32>
    %114 = arith.addf %109, %113 : vector<32x256xf32>
    %c232_i32 = arith.constant 232 : i32
    %115 = tpu.dynamic_rotate %4 by %c232_i32 dim 1 : vector<8x256xf32>, i32 -> vector<8x256xf32>
    %c22 = arith.constant 22 : index
    %c0_73 = arith.constant 0 : index
    %c0_74 = arith.constant 0 : index
    %116 = vector.load %arg4[%c22, %c0_73, %c0_74] : memref<25x32x8xf32, #tpu.memory_space<vmem>>, vector<1x32x8xf32>
    %117 = vector.shape_cast %116 : vector<1x32x8xf32> to vector<32x8xf32>
    %cst_75 = arith.constant dense<0.000000e+00> : vector<32x256xf32>
    %118 = tpu.matmul %117, %115, %cst_75 {dimension_numbers = #tpu.dot_dimension_numbers<[1], [0], [0], [1], [0, 0, 1, 1], [], []>} : vector<32x8xf32>, vector<8x256xf32>, vector<32x256xf32> -> vector<32x256xf32>
    %119 = arith.addf %114, %118 : vector<32x256xf32>
    %c231_i32 = arith.constant 231 : i32
    %120 = tpu.dynamic_rotate %4 by %c231_i32 dim 1 : vector<8x256xf32>, i32 -> vector<8x256xf32>
    %c23 = arith.constant 23 : index
    %c0_76 = arith.constant 0 : index
    %c0_77 = arith.constant 0 : index
    %121 = vector.load %arg4[%c23, %c0_76, %c0_77] : memref<25x32x8xf32, #tpu.memory_space<vmem>>, vector<1x32x8xf32>
    %122 = vector.shape_cast %121 : vector<1x32x8xf32> to vector<32x8xf32>
    %cst_78 = arith.constant dense<0.000000e+00> : vector<32x256xf32>
    %123 = tpu.matmul %122, %120, %cst_78 {dimension_numbers = #tpu.dot_dimension_numbers<[1], [0], [0], [1], [0, 0, 1, 1], [], []>} : vector<32x8xf32>, vector<8x256xf32>, vector<32x256xf32> -> vector<32x256xf32>
    %124 = arith.addf %119, %123 : vector<32x256xf32>
    %c230_i32 = arith.constant 230 : i32
    %125 = tpu.dynamic_rotate %4 by %c230_i32 dim 1 : vector<8x256xf32>, i32 -> vector<8x256xf32>
    %c24 = arith.constant 24 : index
    %c0_79 = arith.constant 0 : index
    %c0_80 = arith.constant 0 : index
    %126 = vector.load %arg4[%c24, %c0_79, %c0_80] : memref<25x32x8xf32, #tpu.memory_space<vmem>>, vector<1x32x8xf32>
    %127 = vector.shape_cast %126 : vector<1x32x8xf32> to vector<32x8xf32>
    %cst_81 = arith.constant dense<0.000000e+00> : vector<32x256xf32>
    %128 = tpu.matmul %127, %125, %cst_81 {dimension_numbers = #tpu.dot_dimension_numbers<[1], [0], [0], [1], [0, 0, 1, 1], [], []>} : vector<32x8xf32>, vector<8x256xf32>, vector<32x256xf32> -> vector<32x256xf32>
    %129 = arith.addf %124, %128 : vector<32x256xf32>
    %c0_82 = arith.constant 0 : index
    %c0_83 = arith.constant 0 : index
    %130 = vector.load %arg5[%c0_82, %c0_83] : memref<32x1xf32, #tpu.memory_space<vmem>>, vector<32x1xf32>
    %131 = vector.broadcast %130 : vector<32x1xf32> to vector<32x256xf32>
    %132 = arith.addf %129, %131 : vector<32x256xf32>
    %cst_84 = arith.constant 0.000000e+00 : f32
    %133 = vector.broadcast %cst_84 : f32 to vector<32x256xf32>
    %134 = arith.maximumf %132, %133 : vector<32x256xf32>
    %135 = vector.broadcast %0 : vector<1x256xf32> to vector<32x256xf32>
    %136 = arith.mulf %134, %135 : vector<32x256xf32>
    %cst_85 = arith.constant 0.000000e+00 : f32
    %137 = vector.broadcast %cst_85 : f32 to vector<32x256xf32>
    %c26_i32_86 = arith.constant 26 : i32
    %138 = tpu.dynamic_rotate %136 by %c26_i32_86 dim 1 : vector<32x256xf32>, i32 -> vector<32x256xf32>
    %c0_87 = arith.constant 0 : index
    %c0_88 = arith.constant 0 : index
    %c0_89 = arith.constant 0 : index
    %139 = vector.load %arg6[%c0_87, %c0_88, %c0_89] : memref<25x32x32xf32, #tpu.memory_space<vmem>>, vector<1x32x32xf32>
    %140 = vector.shape_cast %139 : vector<1x32x32xf32> to vector<32x32xf32>
    %cst_90 = arith.constant dense<0.000000e+00> : vector<32x256xf32>
    %141 = tpu.matmul %140, %138, %cst_90 {dimension_numbers = #tpu.dot_dimension_numbers<[1], [0], [0], [1], [0, 0, 1, 1], [], []>} : vector<32x32xf32>, vector<32x256xf32>, vector<32x256xf32> -> vector<32x256xf32>
    %142 = arith.addf %137, %141 : vector<32x256xf32>
    %c25_i32_91 = arith.constant 25 : i32
    %143 = tpu.dynamic_rotate %136 by %c25_i32_91 dim 1 : vector<32x256xf32>, i32 -> vector<32x256xf32>
    %c1_92 = arith.constant 1 : index
    %c0_93 = arith.constant 0 : index
    %c0_94 = arith.constant 0 : index
    %144 = vector.load %arg6[%c1_92, %c0_93, %c0_94] : memref<25x32x32xf32, #tpu.memory_space<vmem>>, vector<1x32x32xf32>
    %145 = vector.shape_cast %144 : vector<1x32x32xf32> to vector<32x32xf32>
    %cst_95 = arith.constant dense<0.000000e+00> : vector<32x256xf32>
    %146 = tpu.matmul %145, %143, %cst_95 {dimension_numbers = #tpu.dot_dimension_numbers<[1], [0], [0], [1], [0, 0, 1, 1], [], []>} : vector<32x32xf32>, vector<32x256xf32>, vector<32x256xf32> -> vector<32x256xf32>
    %147 = arith.addf %142, %146 : vector<32x256xf32>
    %c24_i32_96 = arith.constant 24 : i32
    %148 = tpu.dynamic_rotate %136 by %c24_i32_96 dim 1 : vector<32x256xf32>, i32 -> vector<32x256xf32>
    %c2_97 = arith.constant 2 : index
    %c0_98 = arith.constant 0 : index
    %c0_99 = arith.constant 0 : index
    %149 = vector.load %arg6[%c2_97, %c0_98, %c0_99] : memref<25x32x32xf32, #tpu.memory_space<vmem>>, vector<1x32x32xf32>
    %150 = vector.shape_cast %149 : vector<1x32x32xf32> to vector<32x32xf32>
    %cst_100 = arith.constant dense<0.000000e+00> : vector<32x256xf32>
    %151 = tpu.matmul %150, %148, %cst_100 {dimension_numbers = #tpu.dot_dimension_numbers<[1], [0], [0], [1], [0, 0, 1, 1], [], []>} : vector<32x32xf32>, vector<32x256xf32>, vector<32x256xf32> -> vector<32x256xf32>
    %152 = arith.addf %147, %151 : vector<32x256xf32>
    %c23_i32_101 = arith.constant 23 : i32
    %153 = tpu.dynamic_rotate %136 by %c23_i32_101 dim 1 : vector<32x256xf32>, i32 -> vector<32x256xf32>
    %c3_102 = arith.constant 3 : index
    %c0_103 = arith.constant 0 : index
    %c0_104 = arith.constant 0 : index
    %154 = vector.load %arg6[%c3_102, %c0_103, %c0_104] : memref<25x32x32xf32, #tpu.memory_space<vmem>>, vector<1x32x32xf32>
    %155 = vector.shape_cast %154 : vector<1x32x32xf32> to vector<32x32xf32>
    %cst_105 = arith.constant dense<0.000000e+00> : vector<32x256xf32>
    %156 = tpu.matmul %155, %153, %cst_105 {dimension_numbers = #tpu.dot_dimension_numbers<[1], [0], [0], [1], [0, 0, 1, 1], [], []>} : vector<32x32xf32>, vector<32x256xf32>, vector<32x256xf32> -> vector<32x256xf32>
    %157 = arith.addf %152, %156 : vector<32x256xf32>
    %c22_i32_106 = arith.constant 22 : i32
    %158 = tpu.dynamic_rotate %136 by %c22_i32_106 dim 1 : vector<32x256xf32>, i32 -> vector<32x256xf32>
    %c4_107 = arith.constant 4 : index
    %c0_108 = arith.constant 0 : index
    %c0_109 = arith.constant 0 : index
    %159 = vector.load %arg6[%c4_107, %c0_108, %c0_109] : memref<25x32x32xf32, #tpu.memory_space<vmem>>, vector<1x32x32xf32>
    %160 = vector.shape_cast %159 : vector<1x32x32xf32> to vector<32x32xf32>
    %cst_110 = arith.constant dense<0.000000e+00> : vector<32x256xf32>
    %161 = tpu.matmul %160, %158, %cst_110 {dimension_numbers = #tpu.dot_dimension_numbers<[1], [0], [0], [1], [0, 0, 1, 1], [], []>} : vector<32x32xf32>, vector<32x256xf32>, vector<32x256xf32> -> vector<32x256xf32>
    %162 = arith.addf %157, %161 : vector<32x256xf32>
    %c14_i32_111 = arith.constant 14 : i32
    %163 = tpu.dynamic_rotate %136 by %c14_i32_111 dim 1 : vector<32x256xf32>, i32 -> vector<32x256xf32>
    %c5_112 = arith.constant 5 : index
    %c0_113 = arith.constant 0 : index
    %c0_114 = arith.constant 0 : index
    %164 = vector.load %arg6[%c5_112, %c0_113, %c0_114] : memref<25x32x32xf32, #tpu.memory_space<vmem>>, vector<1x32x32xf32>
    %165 = vector.shape_cast %164 : vector<1x32x32xf32> to vector<32x32xf32>
    %cst_115 = arith.constant dense<0.000000e+00> : vector<32x256xf32>
    %166 = tpu.matmul %165, %163, %cst_115 {dimension_numbers = #tpu.dot_dimension_numbers<[1], [0], [0], [1], [0, 0, 1, 1], [], []>} : vector<32x32xf32>, vector<32x256xf32>, vector<32x256xf32> -> vector<32x256xf32>
    %167 = arith.addf %162, %166 : vector<32x256xf32>
    %c13_i32_116 = arith.constant 13 : i32
    %168 = tpu.dynamic_rotate %136 by %c13_i32_116 dim 1 : vector<32x256xf32>, i32 -> vector<32x256xf32>
    %c6_117 = arith.constant 6 : index
    %c0_118 = arith.constant 0 : index
    %c0_119 = arith.constant 0 : index
    %169 = vector.load %arg6[%c6_117, %c0_118, %c0_119] : memref<25x32x32xf32, #tpu.memory_space<vmem>>, vector<1x32x32xf32>
    %170 = vector.shape_cast %169 : vector<1x32x32xf32> to vector<32x32xf32>
    %cst_120 = arith.constant dense<0.000000e+00> : vector<32x256xf32>
    %171 = tpu.matmul %170, %168, %cst_120 {dimension_numbers = #tpu.dot_dimension_numbers<[1], [0], [0], [1], [0, 0, 1, 1], [], []>} : vector<32x32xf32>, vector<32x256xf32>, vector<32x256xf32> -> vector<32x256xf32>
    %172 = arith.addf %167, %171 : vector<32x256xf32>
    %c12_i32_121 = arith.constant 12 : i32
    %173 = tpu.dynamic_rotate %136 by %c12_i32_121 dim 1 : vector<32x256xf32>, i32 -> vector<32x256xf32>
    %c7_122 = arith.constant 7 : index
    %c0_123 = arith.constant 0 : index
    %c0_124 = arith.constant 0 : index
    %174 = vector.load %arg6[%c7_122, %c0_123, %c0_124] : memref<25x32x32xf32, #tpu.memory_space<vmem>>, vector<1x32x32xf32>
    %175 = vector.shape_cast %174 : vector<1x32x32xf32> to vector<32x32xf32>
    %cst_125 = arith.constant dense<0.000000e+00> : vector<32x256xf32>
    %176 = tpu.matmul %175, %173, %cst_125 {dimension_numbers = #tpu.dot_dimension_numbers<[1], [0], [0], [1], [0, 0, 1, 1], [], []>} : vector<32x32xf32>, vector<32x256xf32>, vector<32x256xf32> -> vector<32x256xf32>
    %177 = arith.addf %172, %176 : vector<32x256xf32>
    %c11_i32_126 = arith.constant 11 : i32
    %178 = tpu.dynamic_rotate %136 by %c11_i32_126 dim 1 : vector<32x256xf32>, i32 -> vector<32x256xf32>
    %c8_127 = arith.constant 8 : index
    %c0_128 = arith.constant 0 : index
    %c0_129 = arith.constant 0 : index
    %179 = vector.load %arg6[%c8_127, %c0_128, %c0_129] : memref<25x32x32xf32, #tpu.memory_space<vmem>>, vector<1x32x32xf32>
    %180 = vector.shape_cast %179 : vector<1x32x32xf32> to vector<32x32xf32>
    %cst_130 = arith.constant dense<0.000000e+00> : vector<32x256xf32>
    %181 = tpu.matmul %180, %178, %cst_130 {dimension_numbers = #tpu.dot_dimension_numbers<[1], [0], [0], [1], [0, 0, 1, 1], [], []>} : vector<32x32xf32>, vector<32x256xf32>, vector<32x256xf32> -> vector<32x256xf32>
    %182 = arith.addf %177, %181 : vector<32x256xf32>
    %c10_i32_131 = arith.constant 10 : i32
    %183 = tpu.dynamic_rotate %136 by %c10_i32_131 dim 1 : vector<32x256xf32>, i32 -> vector<32x256xf32>
    %c9_132 = arith.constant 9 : index
    %c0_133 = arith.constant 0 : index
    %c0_134 = arith.constant 0 : index
    %184 = vector.load %arg6[%c9_132, %c0_133, %c0_134] : memref<25x32x32xf32, #tpu.memory_space<vmem>>, vector<1x32x32xf32>
    %185 = vector.shape_cast %184 : vector<1x32x32xf32> to vector<32x32xf32>
    %cst_135 = arith.constant dense<0.000000e+00> : vector<32x256xf32>
    %186 = tpu.matmul %185, %183, %cst_135 {dimension_numbers = #tpu.dot_dimension_numbers<[1], [0], [0], [1], [0, 0, 1, 1], [], []>} : vector<32x32xf32>, vector<32x256xf32>, vector<32x256xf32> -> vector<32x256xf32>
    %187 = arith.addf %182, %186 : vector<32x256xf32>
    %c2_i32_136 = arith.constant 2 : i32
    %188 = tpu.dynamic_rotate %136 by %c2_i32_136 dim 1 : vector<32x256xf32>, i32 -> vector<32x256xf32>
    %c10_137 = arith.constant 10 : index
    %c0_138 = arith.constant 0 : index
    %c0_139 = arith.constant 0 : index
    %189 = vector.load %arg6[%c10_137, %c0_138, %c0_139] : memref<25x32x32xf32, #tpu.memory_space<vmem>>, vector<1x32x32xf32>
    %190 = vector.shape_cast %189 : vector<1x32x32xf32> to vector<32x32xf32>
    %cst_140 = arith.constant dense<0.000000e+00> : vector<32x256xf32>
    %191 = tpu.matmul %190, %188, %cst_140 {dimension_numbers = #tpu.dot_dimension_numbers<[1], [0], [0], [1], [0, 0, 1, 1], [], []>} : vector<32x32xf32>, vector<32x256xf32>, vector<32x256xf32> -> vector<32x256xf32>
    %192 = arith.addf %187, %191 : vector<32x256xf32>
    %c1_i32_141 = arith.constant 1 : i32
    %193 = tpu.dynamic_rotate %136 by %c1_i32_141 dim 1 : vector<32x256xf32>, i32 -> vector<32x256xf32>
    %c11_142 = arith.constant 11 : index
    %c0_143 = arith.constant 0 : index
    %c0_144 = arith.constant 0 : index
    %194 = vector.load %arg6[%c11_142, %c0_143, %c0_144] : memref<25x32x32xf32, #tpu.memory_space<vmem>>, vector<1x32x32xf32>
    %195 = vector.shape_cast %194 : vector<1x32x32xf32> to vector<32x32xf32>
    %cst_145 = arith.constant dense<0.000000e+00> : vector<32x256xf32>
    %196 = tpu.matmul %195, %193, %cst_145 {dimension_numbers = #tpu.dot_dimension_numbers<[1], [0], [0], [1], [0, 0, 1, 1], [], []>} : vector<32x32xf32>, vector<32x256xf32>, vector<32x256xf32> -> vector<32x256xf32>
    %197 = arith.addf %192, %196 : vector<32x256xf32>
    %c12_146 = arith.constant 12 : index
    %c0_147 = arith.constant 0 : index
    %c0_148 = arith.constant 0 : index
    %198 = vector.load %arg6[%c12_146, %c0_147, %c0_148] : memref<25x32x32xf32, #tpu.memory_space<vmem>>, vector<1x32x32xf32>
    %199 = vector.shape_cast %198 : vector<1x32x32xf32> to vector<32x32xf32>
    %cst_149 = arith.constant dense<0.000000e+00> : vector<32x256xf32>
    %200 = tpu.matmul %199, %136, %cst_149 {dimension_numbers = #tpu.dot_dimension_numbers<[1], [0], [0], [1], [0, 0, 1, 1], [], []>} : vector<32x32xf32>, vector<32x256xf32>, vector<32x256xf32> -> vector<32x256xf32>
    %201 = arith.addf %197, %200 : vector<32x256xf32>
    %c255_i32_150 = arith.constant 255 : i32
    %202 = tpu.dynamic_rotate %136 by %c255_i32_150 dim 1 : vector<32x256xf32>, i32 -> vector<32x256xf32>
    %c13_151 = arith.constant 13 : index
    %c0_152 = arith.constant 0 : index
    %c0_153 = arith.constant 0 : index
    %203 = vector.load %arg6[%c13_151, %c0_152, %c0_153] : memref<25x32x32xf32, #tpu.memory_space<vmem>>, vector<1x32x32xf32>
    %204 = vector.shape_cast %203 : vector<1x32x32xf32> to vector<32x32xf32>
    %cst_154 = arith.constant dense<0.000000e+00> : vector<32x256xf32>
    %205 = tpu.matmul %204, %202, %cst_154 {dimension_numbers = #tpu.dot_dimension_numbers<[1], [0], [0], [1], [0, 0, 1, 1], [], []>} : vector<32x32xf32>, vector<32x256xf32>, vector<32x256xf32> -> vector<32x256xf32>
    %206 = arith.addf %201, %205 : vector<32x256xf32>
    %c254_i32_155 = arith.constant 254 : i32
    %207 = tpu.dynamic_rotate %136 by %c254_i32_155 dim 1 : vector<32x256xf32>, i32 -> vector<32x256xf32>
    %c14_156 = arith.constant 14 : index
    %c0_157 = arith.constant 0 : index
    %c0_158 = arith.constant 0 : index
    %208 = vector.load %arg6[%c14_156, %c0_157, %c0_158] : memref<25x32x32xf32, #tpu.memory_space<vmem>>, vector<1x32x32xf32>
    %209 = vector.shape_cast %208 : vector<1x32x32xf32> to vector<32x32xf32>
    %cst_159 = arith.constant dense<0.000000e+00> : vector<32x256xf32>
    %210 = tpu.matmul %209, %207, %cst_159 {dimension_numbers = #tpu.dot_dimension_numbers<[1], [0], [0], [1], [0, 0, 1, 1], [], []>} : vector<32x32xf32>, vector<32x256xf32>, vector<32x256xf32> -> vector<32x256xf32>
    %211 = arith.addf %206, %210 : vector<32x256xf32>
    %c246_i32_160 = arith.constant 246 : i32
    %212 = tpu.dynamic_rotate %136 by %c246_i32_160 dim 1 : vector<32x256xf32>, i32 -> vector<32x256xf32>
    %c15_161 = arith.constant 15 : index
    %c0_162 = arith.constant 0 : index
    %c0_163 = arith.constant 0 : index
    %213 = vector.load %arg6[%c15_161, %c0_162, %c0_163] : memref<25x32x32xf32, #tpu.memory_space<vmem>>, vector<1x32x32xf32>
    %214 = vector.shape_cast %213 : vector<1x32x32xf32> to vector<32x32xf32>
    %cst_164 = arith.constant dense<0.000000e+00> : vector<32x256xf32>
    %215 = tpu.matmul %214, %212, %cst_164 {dimension_numbers = #tpu.dot_dimension_numbers<[1], [0], [0], [1], [0, 0, 1, 1], [], []>} : vector<32x32xf32>, vector<32x256xf32>, vector<32x256xf32> -> vector<32x256xf32>
    %216 = arith.addf %211, %215 : vector<32x256xf32>
    %c245_i32_165 = arith.constant 245 : i32
    %217 = tpu.dynamic_rotate %136 by %c245_i32_165 dim 1 : vector<32x256xf32>, i32 -> vector<32x256xf32>
    %c16_166 = arith.constant 16 : index
    %c0_167 = arith.constant 0 : index
    %c0_168 = arith.constant 0 : index
    %218 = vector.load %arg6[%c16_166, %c0_167, %c0_168] : memref<25x32x32xf32, #tpu.memory_space<vmem>>, vector<1x32x32xf32>
    %219 = vector.shape_cast %218 : vector<1x32x32xf32> to vector<32x32xf32>
    %cst_169 = arith.constant dense<0.000000e+00> : vector<32x256xf32>
    %220 = tpu.matmul %219, %217, %cst_169 {dimension_numbers = #tpu.dot_dimension_numbers<[1], [0], [0], [1], [0, 0, 1, 1], [], []>} : vector<32x32xf32>, vector<32x256xf32>, vector<32x256xf32> -> vector<32x256xf32>
    %221 = arith.addf %216, %220 : vector<32x256xf32>
    %c244_i32_170 = arith.constant 244 : i32
    %222 = tpu.dynamic_rotate %136 by %c244_i32_170 dim 1 : vector<32x256xf32>, i32 -> vector<32x256xf32>
    %c17_171 = arith.constant 17 : index
    %c0_172 = arith.constant 0 : index
    %c0_173 = arith.constant 0 : index
    %223 = vector.load %arg6[%c17_171, %c0_172, %c0_173] : memref<25x32x32xf32, #tpu.memory_space<vmem>>, vector<1x32x32xf32>
    %224 = vector.shape_cast %223 : vector<1x32x32xf32> to vector<32x32xf32>
    %cst_174 = arith.constant dense<0.000000e+00> : vector<32x256xf32>
    %225 = tpu.matmul %224, %222, %cst_174 {dimension_numbers = #tpu.dot_dimension_numbers<[1], [0], [0], [1], [0, 0, 1, 1], [], []>} : vector<32x32xf32>, vector<32x256xf32>, vector<32x256xf32> -> vector<32x256xf32>
    %226 = arith.addf %221, %225 : vector<32x256xf32>
    %c243_i32_175 = arith.constant 243 : i32
    %227 = tpu.dynamic_rotate %136 by %c243_i32_175 dim 1 : vector<32x256xf32>, i32 -> vector<32x256xf32>
    %c18_176 = arith.constant 18 : index
    %c0_177 = arith.constant 0 : index
    %c0_178 = arith.constant 0 : index
    %228 = vector.load %arg6[%c18_176, %c0_177, %c0_178] : memref<25x32x32xf32, #tpu.memory_space<vmem>>, vector<1x32x32xf32>
    %229 = vector.shape_cast %228 : vector<1x32x32xf32> to vector<32x32xf32>
    %cst_179 = arith.constant dense<0.000000e+00> : vector<32x256xf32>
    %230 = tpu.matmul %229, %227, %cst_179 {dimension_numbers = #tpu.dot_dimension_numbers<[1], [0], [0], [1], [0, 0, 1, 1], [], []>} : vector<32x32xf32>, vector<32x256xf32>, vector<32x256xf32> -> vector<32x256xf32>
    %231 = arith.addf %226, %230 : vector<32x256xf32>
    %c242_i32_180 = arith.constant 242 : i32
    %232 = tpu.dynamic_rotate %136 by %c242_i32_180 dim 1 : vector<32x256xf32>, i32 -> vector<32x256xf32>
    %c19_181 = arith.constant 19 : index
    %c0_182 = arith.constant 0 : index
    %c0_183 = arith.constant 0 : index
    %233 = vector.load %arg6[%c19_181, %c0_182, %c0_183] : memref<25x32x32xf32, #tpu.memory_space<vmem>>, vector<1x32x32xf32>
    %234 = vector.shape_cast %233 : vector<1x32x32xf32> to vector<32x32xf32>
    %cst_184 = arith.constant dense<0.000000e+00> : vector<32x256xf32>
    %235 = tpu.matmul %234, %232, %cst_184 {dimension_numbers = #tpu.dot_dimension_numbers<[1], [0], [0], [1], [0, 0, 1, 1], [], []>} : vector<32x32xf32>, vector<32x256xf32>, vector<32x256xf32> -> vector<32x256xf32>
    %236 = arith.addf %231, %235 : vector<32x256xf32>
    %c234_i32_185 = arith.constant 234 : i32
    %237 = tpu.dynamic_rotate %136 by %c234_i32_185 dim 1 : vector<32x256xf32>, i32 -> vector<32x256xf32>
    %c20_186 = arith.constant 20 : index
    %c0_187 = arith.constant 0 : index
    %c0_188 = arith.constant 0 : index
    %238 = vector.load %arg6[%c20_186, %c0_187, %c0_188] : memref<25x32x32xf32, #tpu.memory_space<vmem>>, vector<1x32x32xf32>
    %239 = vector.shape_cast %238 : vector<1x32x32xf32> to vector<32x32xf32>
    %cst_189 = arith.constant dense<0.000000e+00> : vector<32x256xf32>
    %240 = tpu.matmul %239, %237, %cst_189 {dimension_numbers = #tpu.dot_dimension_numbers<[1], [0], [0], [1], [0, 0, 1, 1], [], []>} : vector<32x32xf32>, vector<32x256xf32>, vector<32x256xf32> -> vector<32x256xf32>
    %241 = arith.addf %236, %240 : vector<32x256xf32>
    %c233_i32_190 = arith.constant 233 : i32
    %242 = tpu.dynamic_rotate %136 by %c233_i32_190 dim 1 : vector<32x256xf32>, i32 -> vector<32x256xf32>
    %c21_191 = arith.constant 21 : index
    %c0_192 = arith.constant 0 : index
    %c0_193 = arith.constant 0 : index
    %243 = vector.load %arg6[%c21_191, %c0_192, %c0_193] : memref<25x32x32xf32, #tpu.memory_space<vmem>>, vector<1x32x32xf32>
    %244 = vector.shape_cast %243 : vector<1x32x32xf32> to vector<32x32xf32>
    %cst_194 = arith.constant dense<0.000000e+00> : vector<32x256xf32>
    %245 = tpu.matmul %244, %242, %cst_194 {dimension_numbers = #tpu.dot_dimension_numbers<[1], [0], [0], [1], [0, 0, 1, 1], [], []>} : vector<32x32xf32>, vector<32x256xf32>, vector<32x256xf32> -> vector<32x256xf32>
    %246 = arith.addf %241, %245 : vector<32x256xf32>
    %c232_i32_195 = arith.constant 232 : i32
    %247 = tpu.dynamic_rotate %136 by %c232_i32_195 dim 1 : vector<32x256xf32>, i32 -> vector<32x256xf32>
    %c22_196 = arith.constant 22 : index
    %c0_197 = arith.constant 0 : index
    %c0_198 = arith.constant 0 : index
    %248 = vector.load %arg6[%c22_196, %c0_197, %c0_198] : memref<25x32x32xf32, #tpu.memory_space<vmem>>, vector<1x32x32xf32>
    %249 = vector.shape_cast %248 : vector<1x32x32xf32> to vector<32x32xf32>
    %cst_199 = arith.constant dense<0.000000e+00> : vector<32x256xf32>
    %250 = tpu.matmul %249, %247, %cst_199 {dimension_numbers = #tpu.dot_dimension_numbers<[1], [0], [0], [1], [0, 0, 1, 1], [], []>} : vector<32x32xf32>, vector<32x256xf32>, vector<32x256xf32> -> vector<32x256xf32>
    %251 = arith.addf %246, %250 : vector<32x256xf32>
    %c231_i32_200 = arith.constant 231 : i32
    %252 = tpu.dynamic_rotate %136 by %c231_i32_200 dim 1 : vector<32x256xf32>, i32 -> vector<32x256xf32>
    %c23_201 = arith.constant 23 : index
    %c0_202 = arith.constant 0 : index
    %c0_203 = arith.constant 0 : index
    %253 = vector.load %arg6[%c23_201, %c0_202, %c0_203] : memref<25x32x32xf32, #tpu.memory_space<vmem>>, vector<1x32x32xf32>
    %254 = vector.shape_cast %253 : vector<1x32x32xf32> to vector<32x32xf32>
    %cst_204 = arith.constant dense<0.000000e+00> : vector<32x256xf32>
    %255 = tpu.matmul %254, %252, %cst_204 {dimension_numbers = #tpu.dot_dimension_numbers<[1], [0], [0], [1], [0, 0, 1, 1], [], []>} : vector<32x32xf32>, vector<32x256xf32>, vector<32x256xf32> -> vector<32x256xf32>
    %256 = arith.addf %251, %255 : vector<32x256xf32>
    %c230_i32_205 = arith.constant 230 : i32
    %257 = tpu.dynamic_rotate %136 by %c230_i32_205 dim 1 : vector<32x256xf32>, i32 -> vector<32x256xf32>
    %c24_206 = arith.constant 24 : index
    %c0_207 = arith.constant 0 : index
    %c0_208 = arith.constant 0 : index
    %258 = vector.load %arg6[%c24_206, %c0_207, %c0_208] : memref<25x32x32xf32, #tpu.memory_space<vmem>>, vector<1x32x32xf32>
    %259 = vector.shape_cast %258 : vector<1x32x32xf32> to vector<32x32xf32>
    %cst_209 = arith.constant dense<0.000000e+00> : vector<32x256xf32>
    %260 = tpu.matmul %259, %257, %cst_209 {dimension_numbers = #tpu.dot_dimension_numbers<[1], [0], [0], [1], [0, 0, 1, 1], [], []>} : vector<32x32xf32>, vector<32x256xf32>, vector<32x256xf32> -> vector<32x256xf32>
    %261 = arith.addf %256, %260 : vector<32x256xf32>
    %c0_210 = arith.constant 0 : index
    %c0_211 = arith.constant 0 : index
    %262 = vector.load %arg7[%c0_210, %c0_211] : memref<32x1xf32, #tpu.memory_space<vmem>>, vector<32x1xf32>
    %263 = vector.broadcast %262 : vector<32x1xf32> to vector<32x256xf32>
    %264 = arith.addf %261, %263 : vector<32x256xf32>
    %cst_212 = arith.constant 0.000000e+00 : f32
    %265 = vector.broadcast %cst_212 : f32 to vector<32x256xf32>
    %266 = arith.maximumf %264, %265 : vector<32x256xf32>
    %267 = vector.broadcast %0 : vector<1x256xf32> to vector<32x256xf32>
    %268 = arith.mulf %266, %267 : vector<32x256xf32>
    %cst_213 = arith.constant 0.000000e+00 : f32
    %269 = vector.broadcast %cst_213 : f32 to vector<32x256xf32>
    %c26_i32_214 = arith.constant 26 : i32
    %270 = tpu.dynamic_rotate %268 by %c26_i32_214 dim 1 : vector<32x256xf32>, i32 -> vector<32x256xf32>
    %c0_215 = arith.constant 0 : index
    %c0_216 = arith.constant 0 : index
    %c0_217 = arith.constant 0 : index
    %271 = vector.load %arg8[%c0_215, %c0_216, %c0_217] : memref<25x32x32xf32, #tpu.memory_space<vmem>>, vector<1x32x32xf32>
    %272 = vector.shape_cast %271 : vector<1x32x32xf32> to vector<32x32xf32>
    %cst_218 = arith.constant dense<0.000000e+00> : vector<32x256xf32>
    %273 = tpu.matmul %272, %270, %cst_218 {dimension_numbers = #tpu.dot_dimension_numbers<[1], [0], [0], [1], [0, 0, 1, 1], [], []>} : vector<32x32xf32>, vector<32x256xf32>, vector<32x256xf32> -> vector<32x256xf32>
    %274 = arith.addf %269, %273 : vector<32x256xf32>
    %c25_i32_219 = arith.constant 25 : i32
    %275 = tpu.dynamic_rotate %268 by %c25_i32_219 dim 1 : vector<32x256xf32>, i32 -> vector<32x256xf32>
    %c1_220 = arith.constant 1 : index
    %c0_221 = arith.constant 0 : index
    %c0_222 = arith.constant 0 : index
    %276 = vector.load %arg8[%c1_220, %c0_221, %c0_222] : memref<25x32x32xf32, #tpu.memory_space<vmem>>, vector<1x32x32xf32>
    %277 = vector.shape_cast %276 : vector<1x32x32xf32> to vector<32x32xf32>
    %cst_223 = arith.constant dense<0.000000e+00> : vector<32x256xf32>
    %278 = tpu.matmul %277, %275, %cst_223 {dimension_numbers = #tpu.dot_dimension_numbers<[1], [0], [0], [1], [0, 0, 1, 1], [], []>} : vector<32x32xf32>, vector<32x256xf32>, vector<32x256xf32> -> vector<32x256xf32>
    %279 = arith.addf %274, %278 : vector<32x256xf32>
    %c24_i32_224 = arith.constant 24 : i32
    %280 = tpu.dynamic_rotate %268 by %c24_i32_224 dim 1 : vector<32x256xf32>, i32 -> vector<32x256xf32>
    %c2_225 = arith.constant 2 : index
    %c0_226 = arith.constant 0 : index
    %c0_227 = arith.constant 0 : index
    %281 = vector.load %arg8[%c2_225, %c0_226, %c0_227] : memref<25x32x32xf32, #tpu.memory_space<vmem>>, vector<1x32x32xf32>
    %282 = vector.shape_cast %281 : vector<1x32x32xf32> to vector<32x32xf32>
    %cst_228 = arith.constant dense<0.000000e+00> : vector<32x256xf32>
    %283 = tpu.matmul %282, %280, %cst_228 {dimension_numbers = #tpu.dot_dimension_numbers<[1], [0], [0], [1], [0, 0, 1, 1], [], []>} : vector<32x32xf32>, vector<32x256xf32>, vector<32x256xf32> -> vector<32x256xf32>
    %284 = arith.addf %279, %283 : vector<32x256xf32>
    %c23_i32_229 = arith.constant 23 : i32
    %285 = tpu.dynamic_rotate %268 by %c23_i32_229 dim 1 : vector<32x256xf32>, i32 -> vector<32x256xf32>
    %c3_230 = arith.constant 3 : index
    %c0_231 = arith.constant 0 : index
    %c0_232 = arith.constant 0 : index
    %286 = vector.load %arg8[%c3_230, %c0_231, %c0_232] : memref<25x32x32xf32, #tpu.memory_space<vmem>>, vector<1x32x32xf32>
    %287 = vector.shape_cast %286 : vector<1x32x32xf32> to vector<32x32xf32>
    %cst_233 = arith.constant dense<0.000000e+00> : vector<32x256xf32>
    %288 = tpu.matmul %287, %285, %cst_233 {dimension_numbers = #tpu.dot_dimension_numbers<[1], [0], [0], [1], [0, 0, 1, 1], [], []>} : vector<32x32xf32>, vector<32x256xf32>, vector<32x256xf32> -> vector<32x256xf32>
    %289 = arith.addf %284, %288 : vector<32x256xf32>
    %c22_i32_234 = arith.constant 22 : i32
    %290 = tpu.dynamic_rotate %268 by %c22_i32_234 dim 1 : vector<32x256xf32>, i32 -> vector<32x256xf32>
    %c4_235 = arith.constant 4 : index
    %c0_236 = arith.constant 0 : index
    %c0_237 = arith.constant 0 : index
    %291 = vector.load %arg8[%c4_235, %c0_236, %c0_237] : memref<25x32x32xf32, #tpu.memory_space<vmem>>, vector<1x32x32xf32>
    %292 = vector.shape_cast %291 : vector<1x32x32xf32> to vector<32x32xf32>
    %cst_238 = arith.constant dense<0.000000e+00> : vector<32x256xf32>
    %293 = tpu.matmul %292, %290, %cst_238 {dimension_numbers = #tpu.dot_dimension_numbers<[1], [0], [0], [1], [0, 0, 1, 1], [], []>} : vector<32x32xf32>, vector<32x256xf32>, vector<32x256xf32> -> vector<32x256xf32>
    %294 = arith.addf %289, %293 : vector<32x256xf32>
    %c14_i32_239 = arith.constant 14 : i32
    %295 = tpu.dynamic_rotate %268 by %c14_i32_239 dim 1 : vector<32x256xf32>, i32 -> vector<32x256xf32>
    %c5_240 = arith.constant 5 : index
    %c0_241 = arith.constant 0 : index
    %c0_242 = arith.constant 0 : index
    %296 = vector.load %arg8[%c5_240, %c0_241, %c0_242] : memref<25x32x32xf32, #tpu.memory_space<vmem>>, vector<1x32x32xf32>
    %297 = vector.shape_cast %296 : vector<1x32x32xf32> to vector<32x32xf32>
    %cst_243 = arith.constant dense<0.000000e+00> : vector<32x256xf32>
    %298 = tpu.matmul %297, %295, %cst_243 {dimension_numbers = #tpu.dot_dimension_numbers<[1], [0], [0], [1], [0, 0, 1, 1], [], []>} : vector<32x32xf32>, vector<32x256xf32>, vector<32x256xf32> -> vector<32x256xf32>
    %299 = arith.addf %294, %298 : vector<32x256xf32>
    %c13_i32_244 = arith.constant 13 : i32
    %300 = tpu.dynamic_rotate %268 by %c13_i32_244 dim 1 : vector<32x256xf32>, i32 -> vector<32x256xf32>
    %c6_245 = arith.constant 6 : index
    %c0_246 = arith.constant 0 : index
    %c0_247 = arith.constant 0 : index
    %301 = vector.load %arg8[%c6_245, %c0_246, %c0_247] : memref<25x32x32xf32, #tpu.memory_space<vmem>>, vector<1x32x32xf32>
    %302 = vector.shape_cast %301 : vector<1x32x32xf32> to vector<32x32xf32>
    %cst_248 = arith.constant dense<0.000000e+00> : vector<32x256xf32>
    %303 = tpu.matmul %302, %300, %cst_248 {dimension_numbers = #tpu.dot_dimension_numbers<[1], [0], [0], [1], [0, 0, 1, 1], [], []>} : vector<32x32xf32>, vector<32x256xf32>, vector<32x256xf32> -> vector<32x256xf32>
    %304 = arith.addf %299, %303 : vector<32x256xf32>
    %c12_i32_249 = arith.constant 12 : i32
    %305 = tpu.dynamic_rotate %268 by %c12_i32_249 dim 1 : vector<32x256xf32>, i32 -> vector<32x256xf32>
    %c7_250 = arith.constant 7 : index
    %c0_251 = arith.constant 0 : index
    %c0_252 = arith.constant 0 : index
    %306 = vector.load %arg8[%c7_250, %c0_251, %c0_252] : memref<25x32x32xf32, #tpu.memory_space<vmem>>, vector<1x32x32xf32>
    %307 = vector.shape_cast %306 : vector<1x32x32xf32> to vector<32x32xf32>
    %cst_253 = arith.constant dense<0.000000e+00> : vector<32x256xf32>
    %308 = tpu.matmul %307, %305, %cst_253 {dimension_numbers = #tpu.dot_dimension_numbers<[1], [0], [0], [1], [0, 0, 1, 1], [], []>} : vector<32x32xf32>, vector<32x256xf32>, vector<32x256xf32> -> vector<32x256xf32>
    %309 = arith.addf %304, %308 : vector<32x256xf32>
    %c11_i32_254 = arith.constant 11 : i32
    %310 = tpu.dynamic_rotate %268 by %c11_i32_254 dim 1 : vector<32x256xf32>, i32 -> vector<32x256xf32>
    %c8_255 = arith.constant 8 : index
    %c0_256 = arith.constant 0 : index
    %c0_257 = arith.constant 0 : index
    %311 = vector.load %arg8[%c8_255, %c0_256, %c0_257] : memref<25x32x32xf32, #tpu.memory_space<vmem>>, vector<1x32x32xf32>
    %312 = vector.shape_cast %311 : vector<1x32x32xf32> to vector<32x32xf32>
    %cst_258 = arith.constant dense<0.000000e+00> : vector<32x256xf32>
    %313 = tpu.matmul %312, %310, %cst_258 {dimension_numbers = #tpu.dot_dimension_numbers<[1], [0], [0], [1], [0, 0, 1, 1], [], []>} : vector<32x32xf32>, vector<32x256xf32>, vector<32x256xf32> -> vector<32x256xf32>
    %314 = arith.addf %309, %313 : vector<32x256xf32>
    %c10_i32_259 = arith.constant 10 : i32
    %315 = tpu.dynamic_rotate %268 by %c10_i32_259 dim 1 : vector<32x256xf32>, i32 -> vector<32x256xf32>
    %c9_260 = arith.constant 9 : index
    %c0_261 = arith.constant 0 : index
    %c0_262 = arith.constant 0 : index
    %316 = vector.load %arg8[%c9_260, %c0_261, %c0_262] : memref<25x32x32xf32, #tpu.memory_space<vmem>>, vector<1x32x32xf32>
    %317 = vector.shape_cast %316 : vector<1x32x32xf32> to vector<32x32xf32>
    %cst_263 = arith.constant dense<0.000000e+00> : vector<32x256xf32>
    %318 = tpu.matmul %317, %315, %cst_263 {dimension_numbers = #tpu.dot_dimension_numbers<[1], [0], [0], [1], [0, 0, 1, 1], [], []>} : vector<32x32xf32>, vector<32x256xf32>, vector<32x256xf32> -> vector<32x256xf32>
    %319 = arith.addf %314, %318 : vector<32x256xf32>
    %c2_i32_264 = arith.constant 2 : i32
    %320 = tpu.dynamic_rotate %268 by %c2_i32_264 dim 1 : vector<32x256xf32>, i32 -> vector<32x256xf32>
    %c10_265 = arith.constant 10 : index
    %c0_266 = arith.constant 0 : index
    %c0_267 = arith.constant 0 : index
    %321 = vector.load %arg8[%c10_265, %c0_266, %c0_267] : memref<25x32x32xf32, #tpu.memory_space<vmem>>, vector<1x32x32xf32>
    %322 = vector.shape_cast %321 : vector<1x32x32xf32> to vector<32x32xf32>
    %cst_268 = arith.constant dense<0.000000e+00> : vector<32x256xf32>
    %323 = tpu.matmul %322, %320, %cst_268 {dimension_numbers = #tpu.dot_dimension_numbers<[1], [0], [0], [1], [0, 0, 1, 1], [], []>} : vector<32x32xf32>, vector<32x256xf32>, vector<32x256xf32> -> vector<32x256xf32>
    %324 = arith.addf %319, %323 : vector<32x256xf32>
    %c1_i32_269 = arith.constant 1 : i32
    %325 = tpu.dynamic_rotate %268 by %c1_i32_269 dim 1 : vector<32x256xf32>, i32 -> vector<32x256xf32>
    %c11_270 = arith.constant 11 : index
    %c0_271 = arith.constant 0 : index
    %c0_272 = arith.constant 0 : index
    %326 = vector.load %arg8[%c11_270, %c0_271, %c0_272] : memref<25x32x32xf32, #tpu.memory_space<vmem>>, vector<1x32x32xf32>
    %327 = vector.shape_cast %326 : vector<1x32x32xf32> to vector<32x32xf32>
    %cst_273 = arith.constant dense<0.000000e+00> : vector<32x256xf32>
    %328 = tpu.matmul %327, %325, %cst_273 {dimension_numbers = #tpu.dot_dimension_numbers<[1], [0], [0], [1], [0, 0, 1, 1], [], []>} : vector<32x32xf32>, vector<32x256xf32>, vector<32x256xf32> -> vector<32x256xf32>
    %329 = arith.addf %324, %328 : vector<32x256xf32>
    %c12_274 = arith.constant 12 : index
    %c0_275 = arith.constant 0 : index
    %c0_276 = arith.constant 0 : index
    %330 = vector.load %arg8[%c12_274, %c0_275, %c0_276] : memref<25x32x32xf32, #tpu.memory_space<vmem>>, vector<1x32x32xf32>
    %331 = vector.shape_cast %330 : vector<1x32x32xf32> to vector<32x32xf32>
    %cst_277 = arith.constant dense<0.000000e+00> : vector<32x256xf32>
    %332 = tpu.matmul %331, %268, %cst_277 {dimension_numbers = #tpu.dot_dimension_numbers<[1], [0], [0], [1], [0, 0, 1, 1], [], []>} : vector<32x32xf32>, vector<32x256xf32>, vector<32x256xf32> -> vector<32x256xf32>
    %333 = arith.addf %329, %332 : vector<32x256xf32>
    %c255_i32_278 = arith.constant 255 : i32
    %334 = tpu.dynamic_rotate %268 by %c255_i32_278 dim 1 : vector<32x256xf32>, i32 -> vector<32x256xf32>
    %c13_279 = arith.constant 13 : index
    %c0_280 = arith.constant 0 : index
    %c0_281 = arith.constant 0 : index
    %335 = vector.load %arg8[%c13_279, %c0_280, %c0_281] : memref<25x32x32xf32, #tpu.memory_space<vmem>>, vector<1x32x32xf32>
    %336 = vector.shape_cast %335 : vector<1x32x32xf32> to vector<32x32xf32>
    %cst_282 = arith.constant dense<0.000000e+00> : vector<32x256xf32>
    %337 = tpu.matmul %336, %334, %cst_282 {dimension_numbers = #tpu.dot_dimension_numbers<[1], [0], [0], [1], [0, 0, 1, 1], [], []>} : vector<32x32xf32>, vector<32x256xf32>, vector<32x256xf32> -> vector<32x256xf32>
    %338 = arith.addf %333, %337 : vector<32x256xf32>
    %c254_i32_283 = arith.constant 254 : i32
    %339 = tpu.dynamic_rotate %268 by %c254_i32_283 dim 1 : vector<32x256xf32>, i32 -> vector<32x256xf32>
    %c14_284 = arith.constant 14 : index
    %c0_285 = arith.constant 0 : index
    %c0_286 = arith.constant 0 : index
    %340 = vector.load %arg8[%c14_284, %c0_285, %c0_286] : memref<25x32x32xf32, #tpu.memory_space<vmem>>, vector<1x32x32xf32>
    %341 = vector.shape_cast %340 : vector<1x32x32xf32> to vector<32x32xf32>
    %cst_287 = arith.constant dense<0.000000e+00> : vector<32x256xf32>
    %342 = tpu.matmul %341, %339, %cst_287 {dimension_numbers = #tpu.dot_dimension_numbers<[1], [0], [0], [1], [0, 0, 1, 1], [], []>} : vector<32x32xf32>, vector<32x256xf32>, vector<32x256xf32> -> vector<32x256xf32>
    %343 = arith.addf %338, %342 : vector<32x256xf32>
    %c246_i32_288 = arith.constant 246 : i32
    %344 = tpu.dynamic_rotate %268 by %c246_i32_288 dim 1 : vector<32x256xf32>, i32 -> vector<32x256xf32>
    %c15_289 = arith.constant 15 : index
    %c0_290 = arith.constant 0 : index
    %c0_291 = arith.constant 0 : index
    %345 = vector.load %arg8[%c15_289, %c0_290, %c0_291] : memref<25x32x32xf32, #tpu.memory_space<vmem>>, vector<1x32x32xf32>
    %346 = vector.shape_cast %345 : vector<1x32x32xf32> to vector<32x32xf32>
    %cst_292 = arith.constant dense<0.000000e+00> : vector<32x256xf32>
    %347 = tpu.matmul %346, %344, %cst_292 {dimension_numbers = #tpu.dot_dimension_numbers<[1], [0], [0], [1], [0, 0, 1, 1], [], []>} : vector<32x32xf32>, vector<32x256xf32>, vector<32x256xf32> -> vector<32x256xf32>
    %348 = arith.addf %343, %347 : vector<32x256xf32>
    %c245_i32_293 = arith.constant 245 : i32
    %349 = tpu.dynamic_rotate %268 by %c245_i32_293 dim 1 : vector<32x256xf32>, i32 -> vector<32x256xf32>
    %c16_294 = arith.constant 16 : index
    %c0_295 = arith.constant 0 : index
    %c0_296 = arith.constant 0 : index
    %350 = vector.load %arg8[%c16_294, %c0_295, %c0_296] : memref<25x32x32xf32, #tpu.memory_space<vmem>>, vector<1x32x32xf32>
    %351 = vector.shape_cast %350 : vector<1x32x32xf32> to vector<32x32xf32>
    %cst_297 = arith.constant dense<0.000000e+00> : vector<32x256xf32>
    %352 = tpu.matmul %351, %349, %cst_297 {dimension_numbers = #tpu.dot_dimension_numbers<[1], [0], [0], [1], [0, 0, 1, 1], [], []>} : vector<32x32xf32>, vector<32x256xf32>, vector<32x256xf32> -> vector<32x256xf32>
    %353 = arith.addf %348, %352 : vector<32x256xf32>
    %c244_i32_298 = arith.constant 244 : i32
    %354 = tpu.dynamic_rotate %268 by %c244_i32_298 dim 1 : vector<32x256xf32>, i32 -> vector<32x256xf32>
    %c17_299 = arith.constant 17 : index
    %c0_300 = arith.constant 0 : index
    %c0_301 = arith.constant 0 : index
    %355 = vector.load %arg8[%c17_299, %c0_300, %c0_301] : memref<25x32x32xf32, #tpu.memory_space<vmem>>, vector<1x32x32xf32>
    %356 = vector.shape_cast %355 : vector<1x32x32xf32> to vector<32x32xf32>
    %cst_302 = arith.constant dense<0.000000e+00> : vector<32x256xf32>
    %357 = tpu.matmul %356, %354, %cst_302 {dimension_numbers = #tpu.dot_dimension_numbers<[1], [0], [0], [1], [0, 0, 1, 1], [], []>} : vector<32x32xf32>, vector<32x256xf32>, vector<32x256xf32> -> vector<32x256xf32>
    %358 = arith.addf %353, %357 : vector<32x256xf32>
    %c243_i32_303 = arith.constant 243 : i32
    %359 = tpu.dynamic_rotate %268 by %c243_i32_303 dim 1 : vector<32x256xf32>, i32 -> vector<32x256xf32>
    %c18_304 = arith.constant 18 : index
    %c0_305 = arith.constant 0 : index
    %c0_306 = arith.constant 0 : index
    %360 = vector.load %arg8[%c18_304, %c0_305, %c0_306] : memref<25x32x32xf32, #tpu.memory_space<vmem>>, vector<1x32x32xf32>
    %361 = vector.shape_cast %360 : vector<1x32x32xf32> to vector<32x32xf32>
    %cst_307 = arith.constant dense<0.000000e+00> : vector<32x256xf32>
    %362 = tpu.matmul %361, %359, %cst_307 {dimension_numbers = #tpu.dot_dimension_numbers<[1], [0], [0], [1], [0, 0, 1, 1], [], []>} : vector<32x32xf32>, vector<32x256xf32>, vector<32x256xf32> -> vector<32x256xf32>
    %363 = arith.addf %358, %362 : vector<32x256xf32>
    %c242_i32_308 = arith.constant 242 : i32
    %364 = tpu.dynamic_rotate %268 by %c242_i32_308 dim 1 : vector<32x256xf32>, i32 -> vector<32x256xf32>
    %c19_309 = arith.constant 19 : index
    %c0_310 = arith.constant 0 : index
    %c0_311 = arith.constant 0 : index
    %365 = vector.load %arg8[%c19_309, %c0_310, %c0_311] : memref<25x32x32xf32, #tpu.memory_space<vmem>>, vector<1x32x32xf32>
    %366 = vector.shape_cast %365 : vector<1x32x32xf32> to vector<32x32xf32>
    %cst_312 = arith.constant dense<0.000000e+00> : vector<32x256xf32>
    %367 = tpu.matmul %366, %364, %cst_312 {dimension_numbers = #tpu.dot_dimension_numbers<[1], [0], [0], [1], [0, 0, 1, 1], [], []>} : vector<32x32xf32>, vector<32x256xf32>, vector<32x256xf32> -> vector<32x256xf32>
    %368 = arith.addf %363, %367 : vector<32x256xf32>
    %c234_i32_313 = arith.constant 234 : i32
    %369 = tpu.dynamic_rotate %268 by %c234_i32_313 dim 1 : vector<32x256xf32>, i32 -> vector<32x256xf32>
    %c20_314 = arith.constant 20 : index
    %c0_315 = arith.constant 0 : index
    %c0_316 = arith.constant 0 : index
    %370 = vector.load %arg8[%c20_314, %c0_315, %c0_316] : memref<25x32x32xf32, #tpu.memory_space<vmem>>, vector<1x32x32xf32>
    %371 = vector.shape_cast %370 : vector<1x32x32xf32> to vector<32x32xf32>
    %cst_317 = arith.constant dense<0.000000e+00> : vector<32x256xf32>
    %372 = tpu.matmul %371, %369, %cst_317 {dimension_numbers = #tpu.dot_dimension_numbers<[1], [0], [0], [1], [0, 0, 1, 1], [], []>} : vector<32x32xf32>, vector<32x256xf32>, vector<32x256xf32> -> vector<32x256xf32>
    %373 = arith.addf %368, %372 : vector<32x256xf32>
    %c233_i32_318 = arith.constant 233 : i32
    %374 = tpu.dynamic_rotate %268 by %c233_i32_318 dim 1 : vector<32x256xf32>, i32 -> vector<32x256xf32>
    %c21_319 = arith.constant 21 : index
    %c0_320 = arith.constant 0 : index
    %c0_321 = arith.constant 0 : index
    %375 = vector.load %arg8[%c21_319, %c0_320, %c0_321] : memref<25x32x32xf32, #tpu.memory_space<vmem>>, vector<1x32x32xf32>
    %376 = vector.shape_cast %375 : vector<1x32x32xf32> to vector<32x32xf32>
    %cst_322 = arith.constant dense<0.000000e+00> : vector<32x256xf32>
    %377 = tpu.matmul %376, %374, %cst_322 {dimension_numbers = #tpu.dot_dimension_numbers<[1], [0], [0], [1], [0, 0, 1, 1], [], []>} : vector<32x32xf32>, vector<32x256xf32>, vector<32x256xf32> -> vector<32x256xf32>
    %378 = arith.addf %373, %377 : vector<32x256xf32>
    %c232_i32_323 = arith.constant 232 : i32
    %379 = tpu.dynamic_rotate %268 by %c232_i32_323 dim 1 : vector<32x256xf32>, i32 -> vector<32x256xf32>
    %c22_324 = arith.constant 22 : index
    %c0_325 = arith.constant 0 : index
    %c0_326 = arith.constant 0 : index
    %380 = vector.load %arg8[%c22_324, %c0_325, %c0_326] : memref<25x32x32xf32, #tpu.memory_space<vmem>>, vector<1x32x32xf32>
    %381 = vector.shape_cast %380 : vector<1x32x32xf32> to vector<32x32xf32>
    %cst_327 = arith.constant dense<0.000000e+00> : vector<32x256xf32>
    %382 = tpu.matmul %381, %379, %cst_327 {dimension_numbers = #tpu.dot_dimension_numbers<[1], [0], [0], [1], [0, 0, 1, 1], [], []>} : vector<32x32xf32>, vector<32x256xf32>, vector<32x256xf32> -> vector<32x256xf32>
    %383 = arith.addf %378, %382 : vector<32x256xf32>
    %c231_i32_328 = arith.constant 231 : i32
    %384 = tpu.dynamic_rotate %268 by %c231_i32_328 dim 1 : vector<32x256xf32>, i32 -> vector<32x256xf32>
    %c23_329 = arith.constant 23 : index
    %c0_330 = arith.constant 0 : index
    %c0_331 = arith.constant 0 : index
    %385 = vector.load %arg8[%c23_329, %c0_330, %c0_331] : memref<25x32x32xf32, #tpu.memory_space<vmem>>, vector<1x32x32xf32>
    %386 = vector.shape_cast %385 : vector<1x32x32xf32> to vector<32x32xf32>
    %cst_332 = arith.constant dense<0.000000e+00> : vector<32x256xf32>
    %387 = tpu.matmul %386, %384, %cst_332 {dimension_numbers = #tpu.dot_dimension_numbers<[1], [0], [0], [1], [0, 0, 1, 1], [], []>} : vector<32x32xf32>, vector<32x256xf32>, vector<32x256xf32> -> vector<32x256xf32>
    %388 = arith.addf %383, %387 : vector<32x256xf32>
    %c230_i32_333 = arith.constant 230 : i32
    %389 = tpu.dynamic_rotate %268 by %c230_i32_333 dim 1 : vector<32x256xf32>, i32 -> vector<32x256xf32>
    %c24_334 = arith.constant 24 : index
    %c0_335 = arith.constant 0 : index
    %c0_336 = arith.constant 0 : index
    %390 = vector.load %arg8[%c24_334, %c0_335, %c0_336] : memref<25x32x32xf32, #tpu.memory_space<vmem>>, vector<1x32x32xf32>
    %391 = vector.shape_cast %390 : vector<1x32x32xf32> to vector<32x32xf32>
    %cst_337 = arith.constant dense<0.000000e+00> : vector<32x256xf32>
    %392 = tpu.matmul %391, %389, %cst_337 {dimension_numbers = #tpu.dot_dimension_numbers<[1], [0], [0], [1], [0, 0, 1, 1], [], []>} : vector<32x32xf32>, vector<32x256xf32>, vector<32x256xf32> -> vector<32x256xf32>
    %393 = arith.addf %388, %392 : vector<32x256xf32>
    %c0_338 = arith.constant 0 : index
    %c0_339 = arith.constant 0 : index
    %394 = vector.load %arg9[%c0_338, %c0_339] : memref<32x1xf32, #tpu.memory_space<vmem>>, vector<32x1xf32>
    %395 = vector.broadcast %394 : vector<32x1xf32> to vector<32x256xf32>
    %396 = arith.addf %393, %395 : vector<32x256xf32>
    %cst_340 = arith.constant 0.000000e+00 : f32
    %397 = vector.broadcast %cst_340 : f32 to vector<32x256xf32>
    %398 = arith.maximumf %396, %397 : vector<32x256xf32>
    %399 = vector.broadcast %0 : vector<1x256xf32> to vector<32x256xf32>
    %400 = arith.mulf %398, %399 : vector<32x256xf32>
    %cst_341 = arith.constant 0.000000e+00 : f32
    %401 = vector.broadcast %cst_341 : f32 to vector<8x256xf32>
    %c13_i32_342 = arith.constant 13 : i32
    %402 = tpu.dynamic_rotate %400 by %c13_i32_342 dim 1 : vector<32x256xf32>, i32 -> vector<32x256xf32>
    %c0_343 = arith.constant 0 : index
    %c0_344 = arith.constant 0 : index
    %c0_345 = arith.constant 0 : index
    %403 = vector.load %arg10[%c0_343, %c0_344, %c0_345] : memref<9x8x32xf32, #tpu.memory_space<vmem>>, vector<1x8x32xf32>
    %404 = vector.shape_cast %403 : vector<1x8x32xf32> to vector<8x32xf32>
    %cst_346 = arith.constant dense<0.000000e+00> : vector<8x256xf32>
    %405 = tpu.matmul %404, %402, %cst_346 {dimension_numbers = #tpu.dot_dimension_numbers<[1], [0], [0], [1], [0, 0, 1, 1], [], []>} : vector<8x32xf32>, vector<32x256xf32>, vector<8x256xf32> -> vector<8x256xf32>
    %406 = arith.addf %401, %405 : vector<8x256xf32>
    %c12_i32_347 = arith.constant 12 : i32
    %407 = tpu.dynamic_rotate %400 by %c12_i32_347 dim 1 : vector<32x256xf32>, i32 -> vector<32x256xf32>
    %c1_348 = arith.constant 1 : index
    %c0_349 = arith.constant 0 : index
    %c0_350 = arith.constant 0 : index
    %408 = vector.load %arg10[%c1_348, %c0_349, %c0_350] : memref<9x8x32xf32, #tpu.memory_space<vmem>>, vector<1x8x32xf32>
    %409 = vector.shape_cast %408 : vector<1x8x32xf32> to vector<8x32xf32>
    %cst_351 = arith.constant dense<0.000000e+00> : vector<8x256xf32>
    %410 = tpu.matmul %409, %407, %cst_351 {dimension_numbers = #tpu.dot_dimension_numbers<[1], [0], [0], [1], [0, 0, 1, 1], [], []>} : vector<8x32xf32>, vector<32x256xf32>, vector<8x256xf32> -> vector<8x256xf32>
    %411 = arith.addf %406, %410 : vector<8x256xf32>
    %c11_i32_352 = arith.constant 11 : i32
    %412 = tpu.dynamic_rotate %400 by %c11_i32_352 dim 1 : vector<32x256xf32>, i32 -> vector<32x256xf32>
    %c2_353 = arith.constant 2 : index
    %c0_354 = arith.constant 0 : index
    %c0_355 = arith.constant 0 : index
    %413 = vector.load %arg10[%c2_353, %c0_354, %c0_355] : memref<9x8x32xf32, #tpu.memory_space<vmem>>, vector<1x8x32xf32>
    %414 = vector.shape_cast %413 : vector<1x8x32xf32> to vector<8x32xf32>
    %cst_356 = arith.constant dense<0.000000e+00> : vector<8x256xf32>
    %415 = tpu.matmul %414, %412, %cst_356 {dimension_numbers = #tpu.dot_dimension_numbers<[1], [0], [0], [1], [0, 0, 1, 1], [], []>} : vector<8x32xf32>, vector<32x256xf32>, vector<8x256xf32> -> vector<8x256xf32>
    %416 = arith.addf %411, %415 : vector<8x256xf32>
    %c1_i32_357 = arith.constant 1 : i32
    %417 = tpu.dynamic_rotate %400 by %c1_i32_357 dim 1 : vector<32x256xf32>, i32 -> vector<32x256xf32>
    %c3_358 = arith.constant 3 : index
    %c0_359 = arith.constant 0 : index
    %c0_360 = arith.constant 0 : index
    %418 = vector.load %arg10[%c3_358, %c0_359, %c0_360] : memref<9x8x32xf32, #tpu.memory_space<vmem>>, vector<1x8x32xf32>
    %419 = vector.shape_cast %418 : vector<1x8x32xf32> to vector<8x32xf32>
    %cst_361 = arith.constant dense<0.000000e+00> : vector<8x256xf32>
    %420 = tpu.matmul %419, %417, %cst_361 {dimension_numbers = #tpu.dot_dimension_numbers<[1], [0], [0], [1], [0, 0, 1, 1], [], []>} : vector<8x32xf32>, vector<32x256xf32>, vector<8x256xf32> -> vector<8x256xf32>
    %421 = arith.addf %416, %420 : vector<8x256xf32>
    %c4_362 = arith.constant 4 : index
    %c0_363 = arith.constant 0 : index
    %c0_364 = arith.constant 0 : index
    %422 = vector.load %arg10[%c4_362, %c0_363, %c0_364] : memref<9x8x32xf32, #tpu.memory_space<vmem>>, vector<1x8x32xf32>
    %423 = vector.shape_cast %422 : vector<1x8x32xf32> to vector<8x32xf32>
    %cst_365 = arith.constant dense<0.000000e+00> : vector<8x256xf32>
    %424 = tpu.matmul %423, %400, %cst_365 {dimension_numbers = #tpu.dot_dimension_numbers<[1], [0], [0], [1], [0, 0, 1, 1], [], []>} : vector<8x32xf32>, vector<32x256xf32>, vector<8x256xf32> -> vector<8x256xf32>
    %425 = arith.addf %421, %424 : vector<8x256xf32>
    %c255_i32_366 = arith.constant 255 : i32
    %426 = tpu.dynamic_rotate %400 by %c255_i32_366 dim 1 : vector<32x256xf32>, i32 -> vector<32x256xf32>
    %c5_367 = arith.constant 5 : index
    %c0_368 = arith.constant 0 : index
    %c0_369 = arith.constant 0 : index
    %427 = vector.load %arg10[%c5_367, %c0_368, %c0_369] : memref<9x8x32xf32, #tpu.memory_space<vmem>>, vector<1x8x32xf32>
    %428 = vector.shape_cast %427 : vector<1x8x32xf32> to vector<8x32xf32>
    %cst_370 = arith.constant dense<0.000000e+00> : vector<8x256xf32>
    %429 = tpu.matmul %428, %426, %cst_370 {dimension_numbers = #tpu.dot_dimension_numbers<[1], [0], [0], [1], [0, 0, 1, 1], [], []>} : vector<8x32xf32>, vector<32x256xf32>, vector<8x256xf32> -> vector<8x256xf32>
    %430 = arith.addf %425, %429 : vector<8x256xf32>
    %c245_i32_371 = arith.constant 245 : i32
    %431 = tpu.dynamic_rotate %400 by %c245_i32_371 dim 1 : vector<32x256xf32>, i32 -> vector<32x256xf32>
    %c6_372 = arith.constant 6 : index
    %c0_373 = arith.constant 0 : index
    %c0_374 = arith.constant 0 : index
    %432 = vector.load %arg10[%c6_372, %c0_373, %c0_374] : memref<9x8x32xf32, #tpu.memory_space<vmem>>, vector<1x8x32xf32>
    %433 = vector.shape_cast %432 : vector<1x8x32xf32> to vector<8x32xf32>
    %cst_375 = arith.constant dense<0.000000e+00> : vector<8x256xf32>
    %434 = tpu.matmul %433, %431, %cst_375 {dimension_numbers = #tpu.dot_dimension_numbers<[1], [0], [0], [1], [0, 0, 1, 1], [], []>} : vector<8x32xf32>, vector<32x256xf32>, vector<8x256xf32> -> vector<8x256xf32>
    %435 = arith.addf %430, %434 : vector<8x256xf32>
    %c244_i32_376 = arith.constant 244 : i32
    %436 = tpu.dynamic_rotate %400 by %c244_i32_376 dim 1 : vector<32x256xf32>, i32 -> vector<32x256xf32>
    %c7_377 = arith.constant 7 : index
    %c0_378 = arith.constant 0 : index
    %c0_379 = arith.constant 0 : index
    %437 = vector.load %arg10[%c7_377, %c0_378, %c0_379] : memref<9x8x32xf32, #tpu.memory_space<vmem>>, vector<1x8x32xf32>
    %438 = vector.shape_cast %437 : vector<1x8x32xf32> to vector<8x32xf32>
    %cst_380 = arith.constant dense<0.000000e+00> : vector<8x256xf32>
    %439 = tpu.matmul %438, %436, %cst_380 {dimension_numbers = #tpu.dot_dimension_numbers<[1], [0], [0], [1], [0, 0, 1, 1], [], []>} : vector<8x32xf32>, vector<32x256xf32>, vector<8x256xf32> -> vector<8x256xf32>
    %440 = arith.addf %435, %439 : vector<8x256xf32>
    %c243_i32_381 = arith.constant 243 : i32
    %441 = tpu.dynamic_rotate %400 by %c243_i32_381 dim 1 : vector<32x256xf32>, i32 -> vector<32x256xf32>
    %c8_382 = arith.constant 8 : index
    %c0_383 = arith.constant 0 : index
    %c0_384 = arith.constant 0 : index
    %442 = vector.load %arg10[%c8_382, %c0_383, %c0_384] : memref<9x8x32xf32, #tpu.memory_space<vmem>>, vector<1x8x32xf32>
    %443 = vector.shape_cast %442 : vector<1x8x32xf32> to vector<8x32xf32>
    %cst_385 = arith.constant dense<0.000000e+00> : vector<8x256xf32>
    %444 = tpu.matmul %443, %441, %cst_385 {dimension_numbers = #tpu.dot_dimension_numbers<[1], [0], [0], [1], [0, 0, 1, 1], [], []>} : vector<8x32xf32>, vector<32x256xf32>, vector<8x256xf32> -> vector<8x256xf32>
    %445 = arith.addf %440, %444 : vector<8x256xf32>
    %c0_386 = arith.constant 0 : index
    %c0_387 = arith.constant 0 : index
    %446 = vector.load %arg11[%c0_386, %c0_387] : memref<8x1xf32, #tpu.memory_space<vmem>>, vector<8x1xf32>
    %447 = vector.broadcast %446 : vector<8x1xf32> to vector<8x256xf32>
    %448 = arith.addf %445, %447 : vector<8x256xf32>
    %c0_388 = arith.constant 0 : index
    %c0_389 = arith.constant 0 : index
    %c0_390 = arith.constant 0 : index
    %449 = vector.load %arg12[%c0_388, %c0_389, %c0_390] : memref<1x8x256xf32, #tpu.memory_space<vmem>>, vector<1x8x256xf32>
    %450 = vector.shape_cast %449 : vector<1x8x256xf32> to vector<8x256xf32>
    %451 = vector.shape_cast %448 : vector<8x256xf32> to vector<1x8x256xf32>
    tpu.vector_store %arg12[%c0_388, %c0_389, %c0_390], %451 {strides = array<i32>} : memref<1x8x256xf32, #tpu.memory_space<vmem>>, vector<1x8x256xf32>,
    return
  }
  func.func @transform_0(%arg0: i32) -> (i32, i32, i32) {
    %c0_i32 = arith.constant 0 : i32
    %c0_i32_0 = arith.constant 0 : i32
    %c0_i32_1 = arith.constant 0 : i32
    return %arg0, %c0_i32, %c0_i32_0 : i32, i32, i32
  }
  func.func @transform_1(%arg0: i32) -> (i32, i32) {
    %c0_i32 = arith.constant 0 : i32
    %c0_i32_0 = arith.constant 0 : i32
    %c0_i32_1 = arith.constant 0 : i32
    return %c0_i32, %c0_i32_0 : i32, i32
  }
  func.func @transform_2(%arg0: i32) -> (i32, i32) {
    %c0_i32 = arith.constant 0 : i32
    %c0_i32_0 = arith.constant 0 : i32
    %c0_i32_1 = arith.constant 0 : i32
    return %c0_i32, %c0_i32_0 : i32, i32
  }
  func.func @transform_3(%arg0: i32) -> (i32, i32, i32) {
    %c0_i32 = arith.constant 0 : i32
    %c0_i32_0 = arith.constant 0 : i32
    %c0_i32_1 = arith.constant 0 : i32
    %c0_i32_2 = arith.constant 0 : i32
    return %c0_i32, %c0_i32_0, %c0_i32_1 : i32, i32, i32
  }
  func.func @transform_4(%arg0: i32) -> (i32, i32) {
    %c0_i32 = arith.constant 0 : i32
    %c0_i32_0 = arith.constant 0 : i32
    %c0_i32_1 = arith.constant 0 : i32
    return %c0_i32, %c0_i32_0 : i32, i32
  }
  func.func @transform_5(%arg0: i32) -> (i32, i32, i32) {
    %c0_i32 = arith.constant 0 : i32
    %c0_i32_0 = arith.constant 0 : i32
    %c0_i32_1 = arith.constant 0 : i32
    %c0_i32_2 = arith.constant 0 : i32
    return %c0_i32, %c0_i32_0, %c0_i32_1 : i32, i32, i32
  }
  func.func @transform_6(%arg0: i32) -> (i32, i32) {
    %c0_i32 = arith.constant 0 : i32
    %c0_i32_0 = arith.constant 0 : i32
    %c0_i32_1 = arith.constant 0 : i32
    return %c0_i32, %c0_i32_0 : i32, i32
  }
  func.func @transform_7(%arg0: i32) -> (i32, i32, i32) {
    %c0_i32 = arith.constant 0 : i32
    %c0_i32_0 = arith.constant 0 : i32
    %c0_i32_1 = arith.constant 0 : i32
    %c0_i32_2 = arith.constant 0 : i32
    return %c0_i32, %c0_i32_0, %c0_i32_1 : i32, i32, i32
  }
  func.func @transform_8(%arg0: i32) -> (i32, i32) {
    %c0_i32 = arith.constant 0 : i32
    %c0_i32_0 = arith.constant 0 : i32
    %c0_i32_1 = arith.constant 0 : i32
    return %c0_i32, %c0_i32_0 : i32, i32
  }
  func.func @transform_9(%arg0: i32) -> (i32, i32, i32) {
    %c0_i32 = arith.constant 0 : i32
    %c0_i32_0 = arith.constant 0 : i32
    %c0_i32_1 = arith.constant 0 : i32
    %c0_i32_2 = arith.constant 0 : i32
    return %c0_i32, %c0_i32_0, %c0_i32_1 : i32, i32, i32
  }
  func.func @transform_10(%arg0: i32) -> (i32, i32) {
    %c0_i32 = arith.constant 0 : i32
    %c0_i32_0 = arith.constant 0 : i32
    %c0_i32_1 = arith.constant 0 : i32
    return %c0_i32, %c0_i32_0 : i32, i32
  }
  func.func @transform_11(%arg0: i32) -> (i32, i32, i32) {
    %c0_i32 = arith.constant 0 : i32
    %c0_i32_0 = arith.constant 0 : i32
    %c0_i32_1 = arith.constant 0 : i32
    return %arg0, %c0_i32, %c0_i32_0 : i32, i32, i32
  }
}

</mosaic_0001>

<llo_original>
// kernel: tpu_custom_call.1
$region0: #{tpu_custom_call.1}
  #allocation0 [shape = 'u32[]', space=smem, size = 0x4, offset = 0x4, fixed_abs, tag = 'smem constant byte address 0x4 - core index']
  #allocation1 [shape = 'u32[72,128]{1,0:T(1,128)}', space=vmem, size = 0x9000, scoped, tag = 'internal scratch']
  %s0 = inlined_call_operand.vmem [shape: f32[2,8,256], index: 0, kind: input, shape index: {}]
  %s1 = inlined_call_operand.vmem [shape: f32[8,256], index: 1, kind: input, shape index: {}]
  %s2 = inlined_call_operand.vmem [shape: f32[1,256], index: 2, kind: input, shape index: {}]
  %s3 = inlined_call_operand.vmem [shape: f32[25,32,8], index: 3, kind: input, shape index: {}]
  %s4 = inlined_call_operand.vmem [shape: f32[32,1], index: 4, kind: input, shape index: {}]
  %s5 = inlined_call_operand.vmem [shape: f32[25,32,32], index: 5, kind: input, shape index: {}]
  %s6 = inlined_call_operand.vmem [shape: f32[32,1], index: 6, kind: input, shape index: {}]
  %s7 = inlined_call_operand.hbm [shape: f32[25,32,32], index: 7, kind: input, shape index: {}]
  %s8 = inlined_call_operand.vmem [shape: f32[32,1], index: 8, kind: input, shape index: {}]
  %s9 = inlined_call_operand.vmem [shape: f32[9,8,32], index: 9, kind: input, shape index: {}]
  %s10 = inlined_call_operand.vmem [shape: f32[8,1], index: 10, kind: input, shape index: {}]
  %s11 = inlined_call_operand.hbm [shape: f32[2,8,256], index: 11, kind: output, shape index: {}]
  %s12 = sld [smem:[#allocation0]]
  $region81: #{tpu_custom_call.1} parent=0
    _
  %s14 = ssub.s32 1, %s12
  %s15 = scalar_select 0, %s14, %s12
  $region1: #{tpu_custom_call.1} parent=0
    #allocation2 [shape = 'u8[409600]{0}', space=vmem, size = 0x64000, scoped, tag = 'input window, operand 7, single buffered']
    #allocation3 [shape = 's32[2]{0}', space=sflag, size = 0x8, scoped, tag = 'scoped memory for tpu_custom_call.1']
    #allocation4 [shape = 's32[2]{0}', space=sflag, size = 0x8, scoped, tag = 'scoped memory for tpu_custom_call.1']
    #allocation5 [shape = 'u8[16384]{0}', space=vmem, size = 0x4000, scoped, tag = 'output window, operand 0']
    %16 = vsyncpa [#allocation3], 0
    %17 = vsyncpa [#allocation4], 0
    %s18 = scalar_lea.sflag [#allocation4], 1
    %19 = vsyncpa %s18, 0
    loop: start=0, step=1, limit=4
    $region2: #{tpu_custom_call.1} parent=1 // loop_pre_header
      _
    $region3: #{tpu_custom_call.1} parent=1 // loop_header
      %s21 = sphi 0, %s25
      %p22 = scmp.ge.s32.totalorder %s21, 4
      %s31 = sphi 0, %s33
      %s34 = sphi 0, %s31
      %s35 = sphi 0, %s34
      %s51 = sphi 0, %s35
      %s55 = sphi 0, %s55
      %s57 = sphi 0, %s55
      %s58 = sphi 0, %s57
      %s72 = sphi 0, %s58
      %s76 = sphi 0, %s76
      %s78 = sphi 0, %s76
      %s79 = sphi 0, %s78
      %s93 = sphi 0, %s79
      %s97 = sphi 0, %s97
      %s99 = sphi 0, %s97
      %s100 = sphi 0, %s99
      %s114 = sphi 0, %s100
      %s118 = sphi 0, %s118
      %s120 = sphi 0, %s118
      %s121 = sphi 0, %s120
      %s135 = sphi 0, %s121
      %s139 = sphi 0, %s139
      %s141 = sphi 0, %s139
      %s142 = sphi 0, %s141
      %s156 = sphi 0, %s142
      %s160 = sphi 0, %s160
      %s162 = sphi 0, %s160
      %s163 = sphi 0, %s162
      %s177 = sphi 0, %s163
      %s181 = sphi 0, %s181
      %s183 = sphi 0, %s181
      %s184 = sphi 0, %s183
      %s198 = sphi 0, %s184
      %s202 = sphi 0, %s202
      %s204 = sphi 0, %s202
      %s205 = sphi 0, %s204
      %s219 = sphi 0, %s205
      %s223 = sphi 0, %s223
      %s225 = sphi 0, %s223
      %s226 = sphi 0, %s225
      %s240 = sphi 0, %s226
      %s244 = sphi 0, %s244
      %s246 = sphi 0, %s244
      %s247 = sphi 0, %s246
      %s261 = sphi 0, %s247
      %s267 = sphi 0, %s269
      %s270 = sphi 0, %s267
      %s271 = sphi 0, %s270
      %s287 = sphi 0, %s271
    $region4: #{tpu_custom_call.1} parent=1 // loop_header_branch
      %24 = sbr.rel (%p22) target = $region8
    $region5: #{tpu_custom_call.1} parent=1 // loop_body
      %s26 = ssub.s32 %s21, 1
      %s27 = ssub.s32 %s21, 2
      %s28 = sadd.s32 %s21, 1
      %s29 = ssub.s32 %s21, %s28
      %p30 = scmp.eq.s32.totalorder %s29, 0
      %s32 = sadd.s32 %s31, 1
      %s33 = scalar_select %p30, %s31, %s32
      %p36 = pneg %p30
      %p37 = scmp.eq.s32.totalorder %s21, 1
      %p38 = por %p36, %p37
      %p39 = scmp.ne.s32.totalorder %s31, %s34
      %p40 = scmp.eq.s32.totalorder %s21, 0
      %p41 = por %p39, %p40
      %p42 = scmp.ne.s32.totalorder %s31, %s34
      %p43 = scmp.eq.s32.totalorder %s26, 1
      %p44 = por %p42, %p43
      %p45 = scmp.ne.s32.totalorder %s34, %s35
      %p46 = scmp.eq.s32.totalorder %s26, 0
      %p47 = por %p45, %p46
      %p48 = scmp.ne.s32.totalorder %s34, %s35
      %p49 = scmp.eq.s32.totalorder %s27, 1
      %p50 = por %p48, %p49
      %p52 = scmp.ne.s32.totalorder %s35, %s51
      %p53 = scmp.eq.s32.totalorder %s27, 0
      %p54 = por %p52, %p53
      %s56 = sadd.s32 %s55, 1
      %p59 = scmp.eq.s32.totalorder %s21, 1
      %p60 = scmp.ne.s32.totalorder %s55, %s57
      %p61 = scmp.eq.s32.totalorder %s21, 0
      %p62 = por %p60, %p61
      %p63 = scmp.ne.s32.totalorder %s55, %s57
      %p64 = scmp.eq.s32.totalorder %s26, 1
      %p65 = por %p63, %p64
      %p66 = scmp.ne.s32.totalorder %s57, %s58
      %p67 = scmp.eq.s32.totalorder %s26, 0
      %p68 = por %p66, %p67
      %p69 = scmp.ne.s32.totalorder %s57, %s58
      %p70 = scmp.eq.s32.totalorder %s27, 1
      %p71 = por %p69, %p70
      %p73 = scmp.ne.s32.totalorder %s58, %s72
      %p74 = scmp.eq.s32.totalorder %s27, 0
      %p75 = por %p73, %p74
      %s77 = sadd.s32 %s76, 1
      %p80 = scmp.eq.s32.totalorder %s21, 1
      %p81 = scmp.ne.s32.totalorder %s76, %s78
      %p82 = scmp.eq.s32.totalorder %s21, 0
      %p83 = por %p81, %p82
      %p84 = scmp.ne.s32.totalorder %s76, %s78
      %p85 = scmp.eq.s32.totalorder %s26, 1
      %p86 = por %p84, %p85
      %p87 = scmp.ne.s32.totalorder %s78, %s79
      %p88 = scmp.eq.s32.totalorder %s26, 0
      %p89 = por %p87, %p88
      %p90 = scmp.ne.s32.totalorder %s78, %s79
      %p91 = scmp.eq.s32.totalorder %s27, 1
      %p92 = por %p90, %p91
      %p94 = scmp.ne.s32.totalorder %s79, %s93
      %p95 = scmp.eq.s32.totalorder %s27, 0
      %p96 = por %p94, %p95
      %s98 = sadd.s32 %s97, 1
      %p101 = scmp.eq.s32.totalorder %s21, 1
      %p102 = scmp.ne.s32.totalorder %s97, %s99
      %p103 = scmp.eq.s32.totalorder %s21, 0
      %p104 = por %p102, %p103
      %p105 = scmp.ne.s32.totalorder %s97, %s99
      %p106 = scmp.eq.s32.totalorder %s26, 1
      %p107 = por %p105, %p106
      %p108 = scmp.ne.s32.totalorder %s99, %s100
      %p109 = scmp.eq.s32.totalorder %s26, 0
      %p110 = por %p108, %p109
      %p111 = scmp.ne.s32.totalorder %s99, %s100
      %p112 = scmp.eq.s32.totalorder %s27, 1
      %p113 = por %p111, %p112
      %p115 = scmp.ne.s32.totalorder %s100, %s114
      %p116 = scmp.eq.s32.totalorder %s27, 0
      %p117 = por %p115, %p116
      %s119 = sadd.s32 %s118, 1
      %p122 = scmp.eq.s32.totalorder %s21, 1
      %p123 = scmp.ne.s32.totalorder %s118, %s120
      %p124 = scmp.eq.s32.totalorder %s21, 0
      %p125 = por %p123, %p124
      %p126 = scmp.ne.s32.totalorder %s118, %s120
      %p127 = scmp.eq.s32.totalorder %s26, 1
      %p128 = por %p126, %p127
      %p129 = scmp.ne.s32.totalorder %s120, %s121
      %p130 = scmp.eq.s32.totalorder %s26, 0
      %p131 = por %p129, %p130
      %p132 = scmp.ne.s32.totalorder %s120, %s121
      %p133 = scmp.eq.s32.totalorder %s27, 1
      %p134 = por %p132, %p133
      %p136 = scmp.ne.s32.totalorder %s121, %s135
      %p137 = scmp.eq.s32.totalorder %s27, 0
      %p138 = por %p136, %p137
      %s140 = sadd.s32 %s139, 1
      %p143 = scmp.eq.s32.totalorder %s21, 1
      %p144 = scmp.ne.s32.totalorder %s139, %s141
      %p145 = scmp.eq.s32.totalorder %s21, 0
      %p146 = por %p144, %p145
      %p147 = scmp.ne.s32.totalorder %s139, %s141
      %p148 = scmp.eq.s32.totalorder %s26, 1
      %p149 = por %p147, %p148
      %p150 = scmp.ne.s32.totalorder %s141, %s142
      %p151 = scmp.eq.s32.totalorder %s26, 0
      %p152 = por %p150, %p151
      %p153 = scmp.ne.s32.totalorder %s141, %s142
      %p154 = scmp.eq.s32.totalorder %s27, 1
      %p155 = por %p153, %p154
      %p157 = scmp.ne.s32.totalorder %s142, %s156
      %p158 = scmp.eq.s32.totalorder %s27, 0
      %p159 = por %p157, %p158
      %s161 = sadd.s32 %s160, 1
      %p164 = scmp.eq.s32.totalorder %s21, 1
      %p165 = scmp.ne.s32.totalorder %s160, %s162
      %p166 = scmp.eq.s32.totalorder %s21, 0
      %p167 = por %p165, %p166
      %p168 = scmp.ne.s32.totalorder %s160, %s162
      %p169 = scmp.eq.s32.totalorder %s26, 1
      %p170 = por %p168, %p169
      %p171 = scmp.ne.s32.totalorder %s162, %s163
      %p172 = scmp.eq.s32.totalorder %s26, 0
      %p173 = por %p171, %p172
      %p174 = scmp.ne.s32.totalorder %s162, %s163
      %p175 = scmp.eq.s32.totalorder %s27, 1
      %p176 = por %p174, %p175
      %p178 = scmp.ne.s32.totalorder %s163, %s177
      %p179 = scmp.eq.s32.totalorder %s27, 0
      %p180 = por %p178, %p179
      %s182 = sadd.s32 %s181, 1
      %p185 = scmp.eq.s32.totalorder %s21, 1
      %p186 = scmp.ne.s32.totalorder %s181, %s183
      %p187 = scmp.eq.s32.totalorder %s21, 0
      %p188 = por %p186, %p187
      %p189 = scmp.ne.s32.totalorder %s181, %s183
      %p190 = scmp.eq.s32.totalorder %s26, 1
      %p191 = por %p189, %p190
      %p192 = scmp.ne.s32.totalorder %s183, %s184
      %p193 = scmp.eq.s32.totalorder %s26, 0
      %p194 = por %p192, %p193
      %p195 = scmp.ne.s32.totalorder %s183, %s184
      %p196 = scmp.eq.s32.totalorder %s27, 1
      %p197 = por %p195, %p196
      %p199 = scmp.ne.s32.totalorder %s184, %s198
      %p200 = scmp.eq.s32.totalorder %s27, 0
      %p201 = por %p199, %p200
      %s203 = sadd.s32 %s202, 1
      %p206 = scmp.eq.s32.totalorder %s21, 1
      %p207 = scmp.ne.s32.totalorder %s202, %s204
      %p208 = scmp.eq.s32.totalorder %s21, 0
      %p209 = por %p207, %p208
      %p210 = scmp.ne.s32.totalorder %s202, %s204
      %p211 = scmp.eq.s32.totalorder %s26, 1
      %p212 = por %p210, %p211
      %p213 = scmp.ne.s32.totalorder %s204, %s205
      %p214 = scmp.eq.s32.totalorder %s26, 0
      %p215 = por %p213, %p214
      %p216 = scmp.ne.s32.totalorder %s204, %s205
      %p217 = scmp.eq.s32.totalorder %s27, 1
      %p218 = por %p216, %p217
      %p220 = scmp.ne.s32.totalorder %s205, %s219
      %p221 = scmp.eq.s32.totalorder %s27, 0
      %p222 = por %p220, %p221
      %s224 = sadd.s32 %s223, 1
      %p227 = scmp.eq.s32.totalorder %s21, 1
      %p228 = scmp.ne.s32.totalorder %s223, %s225
      %p229 = scmp.eq.s32.totalorder %s21, 0
      %p230 = por %p228, %p229
      %p231 = scmp.ne.s32.totalorder %s223, %s225
      %p232 = scmp.eq.s32.totalorder %s26, 1
      %p233 = por %p231, %p232
      %p234 = scmp.ne.s32.totalorder %s225, %s226
      %p235 = scmp.eq.s32.totalorder %s26, 0
      %p236 = por %p234, %p235
      %p237 = scmp.ne.s32.totalorder %s225, %s226
      %p238 = scmp.eq.s32.totalorder %s27, 1
      %p239 = por %p237, %p238
      %p241 = scmp.ne.s32.totalorder %s226, %s240
      %p242 = scmp.eq.s32.totalorder %s27, 0
      %p243 = por %p241, %p242
      %s245 = sadd.s32 %s244, 1
      %p248 = scmp.eq.s32.totalorder %s21, 1
      %p249 = scmp.ne.s32.totalorder %s244, %s246
      %p250 = scmp.eq.s32.totalorder %s21, 0
      %p251 = por %p249, %p250
      %p252 = scmp.ne.s32.totalorder %s244, %s246
      %p253 = scmp.eq.s32.totalorder %s26, 1
      %p254 = por %p252, %p253
      %p255 = scmp.ne.s32.totalorder %s246, %s247
      %p256 = scmp.eq.s32.totalorder %s26, 0
      %p257 = por %p255, %p256
      %p258 = scmp.ne.s32.totalorder %s246, %s247
      %p259 = scmp.eq.s32.totalorder %s27, 1
      %p260 = por %p258, %p259
      %p262 = scmp.ne.s32.totalorder %s247, %s261
      %p263 = scmp.eq.s32.totalorder %s27, 0
      %p264 = por %p262, %p263
      %s265 = ssub.s32 %s21, %s28
      %p266 = scmp.eq.s32.totalorder %s265, 0
      %s268 = sadd.s32 %s267, 1
      %s269 = scalar_select %p266, %s267, %s268
      %p272 = pneg %p266
      %p273 = scmp.eq.s32.totalorder %s21, 1
      %p274 = por %p272, %p273
      %p275 = scmp.ne.s32.totalorder %s267, %s270
      %p276 = scmp.eq.s32.totalorder %s21, 0
      %p277 = por %p275, %p276
      %p278 = scmp.ne.s32.totalorder %s267, %s270
      %p279 = scmp.eq.s32.totalorder %s26, 1
      %p280 = por %p278, %p279
      %p281 = scmp.ne.s32.totalorder %s270, %s271
      %p282 = scmp.eq.s32.totalorder %s26, 0
      %p283 = por %p281, %p282
      %p284 = scmp.ne.s32.totalorder %s270, %s271
      %p285 = scmp.eq.s32.totalorder %s27, 1
      %p286 = por %p284, %p285
      %p288 = scmp.ne.s32.totalorder %s271, %s287
      %p289 = scmp.eq.s32.totalorder %s27, 0
      %p290 = por %p288, %p289
      %p291 = scmp.le.s32.totalorder 1, %s21
      %p292 = scmp.lt.s32.totalorder %s21, 3
      %p293 = pnand %p291, %p292
      %p294 = pneg %p293
      // Predicated region
      $region9: #{tpu_custom_call.1} parent=5 // pred_check
        _
      $region10: #{tpu_custom_call.1} parent=5 // pred_check_branch
        %296 = sbr.rel (%p293) target = $region12
      $region11: #{tpu_custom_call.1} parent=5 // pred_region
        %s297 = ssub.s32 %s21, 1
        // Predicated region
        $region13: #{tpu_custom_call.1} parent=11 // pred_check
          %p298 = pneg %p68
        $region14: #{tpu_custom_call.1} parent=11 // pred_check_branch
          %300 = sbr.rel (%p298) target = $region16
        $region15: #{tpu_custom_call.1} parent=11 // pred_region
          _
        $region16: #{tpu_custom_call.1} parent=11 // pred_fallthru
          _
        // Predicated region
        $region17: #{tpu_custom_call.1} parent=11 // pred_check
          %p301 = pneg %p89
        $region18: #{tpu_custom_call.1} parent=11 // pred_check_branch
          %303 = sbr.rel (%p301) target = $region20
        $region19: #{tpu_custom_call.1} parent=11 // pred_region
          _
        $region20: #{tpu_custom_call.1} parent=11 // pred_fallthru
          _
        // Predicated region
        $region21: #{tpu_custom_call.1} parent=11 // pred_check
          %p304 = pneg %p110
        $region22: #{tpu_custom_call.1} parent=11 // pred_check_branch
          %306 = sbr.rel (%p304) target = $region24
        $region23: #{tpu_custom_call.1} parent=11 // pred_region
          _
        $region24: #{tpu_custom_call.1} parent=11 // pred_fallthru
          _
        // Predicated region
        $region25: #{tpu_custom_call.1} parent=11 // pred_check
          %p307 = pneg %p131
        $region26: #{tpu_custom_call.1} parent=11 // pred_check_branch
          %309 = sbr.rel (%p307) target = $region28
        $region27: #{tpu_custom_call.1} parent=11 // pred_region
          _
        $region28: #{tpu_custom_call.1} parent=11 // pred_fallthru
          _
        // Predicated region
        $region29: #{tpu_custom_call.1} parent=11 // pred_check
          %p310 = pneg %p152
        $region30: #{tpu_custom_call.1} parent=11 // pred_check_branch
          %312 = sbr.rel (%p310) target = $region32
        $region31: #{tpu_custom_call.1} parent=11 // pred_region
          _
        $region32: #{tpu_custom_call.1} parent=11 // pred_fallthru
          _
        // Predicated region
        $region33: #{tpu_custom_call.1} parent=11 // pred_check
          %p313 = pneg %p173
        $region34: #{tpu_custom_call.1} parent=11 // pred_check_branch
          %315 = sbr.rel (%p313) target = $region36
        $region35: #{tpu_custom_call.1} parent=11 // pred_region
          _
        $region36: #{tpu_custom_call.1} parent=11 // pred_fallthru
          _
        // Predicated region
        $region37: #{tpu_custom_call.1} parent=11 // pred_check
          %p316 = pneg %p194
        $region38: #{tpu_custom_call.1} parent=11 // pred_check_branch
          %318 = sbr.rel (%p316) target = $region40
        $region39: #{tpu_custom_call.1} parent=11 // pred_region
          %320 = vsyncadd [#allocation3], 0
          %s321 = sshll.u32 %s7, 4
          %s322 = int_to_ptr.hbm [resolvable:$true] %s321
          %s323 = sshll.u32 [#allocation2], 4
          %s324 = int_to_ptr.vmem [resolvable:$true] %s323
          %329 = dma.hbm_to_vmem [thread:$0]  %s322, 12800, %s324, [#allocation3], 128, 128, 8
        $region40: #{tpu_custom_call.1} parent=11 // pred_fallthru
          _
        // Predicated region
        $region41: #{tpu_custom_call.1} parent=11 // pred_check
          %p330 = pneg %p215
        $region42: #{tpu_custom_call.1} parent=11 // pred_check_branch
          %332 = sbr.rel (%p330) target = $region44
        $region43: #{tpu_custom_call.1} parent=11 // pred_region
          _
        $region44: #{tpu_custom_call.1} parent=11 // pred_fallthru
          _
        // Predicated region
        $region45: #{tpu_custom_call.1} parent=11 // pred_check
          %p333 = pneg %p236
        $region46: #{tpu_custom_call.1} parent=11 // pred_check_branch
          %335 = sbr.rel (%p333) target = $region48
        $region47: #{tpu_custom_call.1} parent=11 // pred_region
          _
        $region48: #{tpu_custom_call.1} parent=11 // pred_fallthru
          _
        // Predicated region
        $region49: #{tpu_custom_call.1} parent=11 // pred_check
          %p336 = pneg %p257
        $region50: #{tpu_custom_call.1} parent=11 // pred_check_branch
          %338 = sbr.rel (%p336) target = $region52
        $region51: #{tpu_custom_call.1} parent=11 // pred_region
          _
        $region52: #{tpu_custom_call.1} parent=11 // pred_fallthru
          _
      $region12: #{tpu_custom_call.1} parent=5 // pred_fallthru
        _
      %p339 = scmp.lt.s32.totalorder %s21, 2
      // Predicated region
      $region53: #{tpu_custom_call.1} parent=5 // pred_check
        %p340 = pneg %p339
      $region54: #{tpu_custom_call.1} parent=5 // pred_check_branch
        %342 = sbr.rel (%p340) target = $region56
      $region55: #{tpu_custom_call.1} parent=5 // pred_region
        // Predicated region
        $region57: #{tpu_custom_call.1} parent=55 // pred_check
          %p343 = pneg %p41
        $region58: #{tpu_custom_call.1} parent=55 // pred_check_branch
          %345 = sbr.rel (%p343) target = $region60
        $region59: #{tpu_custom_call.1} parent=55 // pred_region
          %p346 = scmp.lt.s32.totalorder %s21, 1
          %s347 = scalar_select %p346, %s21, 1
          %s348 = smul.addr %s347, 2
          %s349 = smul.addr %s348, 8
          %s350 = scalar_lea.vmem %s0, %s349
        $region60: #{tpu_custom_call.1} parent=55 // pred_fallthru
          _
      $region56: #{tpu_custom_call.1} parent=5 // pred_fallthru
        _
      %p351 = scmp.le.s32.totalorder 1, %s21
      %p352 = scmp.lt.s32.totalorder %s21, 3
      %p353 = pnand %p351, %p352
      %p354 = pneg %p353
      // Predicated region
      $region61: #{tpu_custom_call.1} parent=5 // pred_check
        _
      $region62: #{tpu_custom_call.1} parent=5 // pred_check_branch
        %356 = sbr.rel (%p353) target = $region64
      $region63: #{tpu_custom_call.1} parent=5 // pred_region
        %s357 = ssub.s32 %s21, 1
        // Predicated region
        $region65: #{tpu_custom_call.1} parent=63 // pred_check
          %p358 = pneg %p194
        $region66: #{tpu_custom_call.1} parent=63 // pred_check_branch
          %360 = sbr.rel (%p358) target = $region68
        $region67: #{tpu_custom_call.1} parent=63 // pred_region
          %362 = dma.done [#allocation3], 12800
        $region68: #{tpu_custom_call.1} parent=63 // pred_fallthru
          _
        %p363 = scmp.lt.s32.totalorder %s26, 1
        %s364 = scalar_select %p363, %s26, 1
        %s365 = smul.addr %s364, 2
        %s366 = smul.addr %s365, 8
        %s367 = scalar_lea.vmem %s0, %s366
        %p368 = pneg %p47
        %p369 = pneg %p44
        %p370 = pneg %p68
        %p371 = pneg %p65
        %p372 = pneg %p89
        %p373 = pneg %p86
        %p374 = pneg %p110
        %p375 = pneg %p107
        %p376 = pneg %p131
        %p377 = pneg %p128
        %p378 = pneg %p152
        %p379 = pneg %p149
        %p380 = pneg %p173
        %p381 = pneg %p170
        %p382 = pneg %p194
        %p383 = pneg %p191
        %p384 = pneg %p215
        %p385 = pneg %p212
        %p386 = pneg %p236
        %p387 = pneg %p233
        %p388 = pneg %p257
        %p389 = pneg %p254
        %p390 = pneg %p283
        %p391 = pneg %p280
        %s392 = sand.u32 %s270, 1
        %s393 = scalar_lea.sflag [#allocation4], %s392
        %s394 = sand.u32 %s270, 1
        %s395 = smul.addr %s394, 16
        %s396 = scalar_lea.vmem [#allocation5], %s395
        %p397 = scmp.lt.s32.totalorder %s26, 1
        %s398 = scalar_select %p397, %s26, 1
        %s399 = smul.addr %s398, 2
        %s400 = smul.addr %s399, 8
        %s401 = scalar_lea.vmem %s0, %s400
        %v402 = vld [vmem:[%s2] sm:$0x3]
        %v403 = vld [vmem:[%s401] sm:$0xff]
        %v404 = vld [vmem:[%s401 + $0x8] sm:$0xff]
        %v405 = vld [vmem:[%s1] sm:$0xff]
        %v406 = vld [vmem:[%s1 + $0x8] sm:$0xff]
        %v407 = vadd.f32 %v403, %v405
        %v408 = vadd.f32 %v404, %v406
        %409 = vrot.lane.b32.xlu0 %v407, 26
        %v410 = vpop.permute.xlu0 %409
        %411 = vrot.lane.b32.xlu0 %v408, 26
        %v412 = vpop.permute.xlu0 %411
        %v413 = vlaneseq
        %v414 = vand.u32 %v413, 127
        %vm415 = vcmp.lt.s32.totalorder %v414, 26
        %v416 = vsel %vm415, %v410, %v412
        %v417 = vsel %vm415, %v412, %v410
        %v418 = vld [vmem:[%s3] sm:$0xff]
        %v419 = vld [vmem:[%s3 + $0x8] sm:$0xff]
        %v420 = vld [vmem:[%s3 + $0x10] sm:$0xff]
        %v421 = vld [vmem:[%s3 + $0x18] sm:$0xff]
        %422 = vrot.lane.b32.xlu0 %v407, 25
        %v423 = vpop.permute.xlu0 %422
        %424 = vrot.lane.b32.xlu0 %v408, 25
        %v425 = vpop.permute.xlu0 %424
        %vm426 = vcmp.lt.s32.totalorder %v414, 25
        %v427 = vsel %vm426, %v423, %v425
        %v428 = vsel %vm426, %v425, %v423
        %s429 = scalar_lea.vmem %s3, 32
        %v430 = vld [vmem:[%s429] sm:$0xff]
        %v431 = vld [vmem:[%s429 + $0x8] sm:$0xff]
        %v432 = vld [vmem:[%s429 + $0x10] sm:$0xff]
        %v433 = vld [vmem:[%s429 + $0x18] sm:$0xff]
        %vm434 = vcmask 64512
        %v436 = vsel %vm434, %v430, 0
        %v439 = vsel %vm434, %v431, 0
        %v442 = vsel %vm434, %v432, 0
        %v445 = vsel %vm434, %v433, 0
        %447 = vmatpush.msra.mxu0 0.0
        %448 = vmatpush.msra.mxu0 0.0
        %449 = vmatpush.msra.mxu0 0.0
        %450 = vmatpush.msra.mxu0 0.0
        %451 = vmatpush.msra.mxu0 0.0
        %452 = vmatpush.msra.mxu0 0.0
        %453 = vmatpush.msra.mxu0 0.0
        %454 = vmatpush.msra.mxu0 0.0
        %455 = vmatpush.msra.mxu0 0.0
        %456 = vmatpush.msra.mxu0 0.0
        %457 = vmatpush.msra.mxu0 0.0
        %458 = vmatpush.msra.mxu0 0.0
        %459 = vmatpush.msra.mxu0 0.0
        %460 = vmatpush.msra.mxu0 0.0
        %461 = vmatpush.msra.mxu0 0.0
        %462 = vmatpush.msra.mxu0 %v428
        %463 = vmatmul.f32.gmra.mxu0 %v436
        %v464 = vpop.f32.mrf.mxu0
        %v465 = vadd.f32 0.0, %v464
        %466 = vmatmul.f32.gmra.mxu0 %v439
        %v467 = vpop.f32.mrf.mxu0
        %v468 = vadd.f32 0.0, %v467
        %469 = vmatmul.f32.gmra.mxu0 %v442
        %v470 = vpop.f32.mrf.mxu0
        %v471 = vadd.f32 0.0, %v470
        %472 = vmatmul.f32.gmra.mxu0 %v445
        %v473 = vpop.f32.mrf.mxu0
        %v474 = vadd.f32 0.0, %v473
        %475 = vdwg.mxu0
        %476 = vmatpush.msra.mxu0 0.0
        %477 = vmatpush.msra.mxu0 0.0
        %478 = vmatpush.msra.mxu0 0.0
        %479 = vmatpush.msra.mxu0 0.0
        %480 = vmatpush.msra.mxu0 0.0
        %481 = vmatpush.msra.mxu0 0.0
        %482 = vmatpush.msra.mxu0 0.0
        %483 = vmatpush.msra.mxu0 0.0
        %484 = vmatpush.msra.mxu0 0.0
        %485 = vmatpush.msra.mxu0 0.0
        %486 = vmatpush.msra.mxu0 0.0
        %487 = vmatpush.msra.mxu0 0.0
        %488 = vmatpush.msra.mxu0 0.0
        %489 = vmatpush.msra.mxu0 0.0
        %490 = vmatpush.msra.mxu0 0.0
        %491 = vmatpush.msra.mxu0 %v427
        %492 = vmatmul.f32.gmra.mxu0 %v436
        %v493 = vpop.f32.mrf.mxu0
        %v494 = vadd.f32 0.0, %v493
        %495 = vmatmul.f32.gmra.mxu0 %v439
        %v496 = vpop.f32.mrf.mxu0
        %v497 = vadd.f32 0.0, %v496
        %498 = vmatmul.f32.gmra.mxu0 %v442
        %v499 = vpop.f32.mrf.mxu0
        %v500 = vadd.f32 0.0, %v499
        %501 = vmatmul.f32.gmra.mxu0 %v445
        %v502 = vpop.f32.mrf.mxu0
        %v503 = vadd.f32 0.0, %v502
        %504 = vdwg.mxu0
        %v506 = vsel %vm434, %v418, 0
        %v509 = vsel %vm434, %v419, 0
        %v512 = vsel %vm434, %v420, 0
        %v515 = vsel %vm434, %v421, 0
        %517 = vmatpush.msra.mxu0 0.0
        %518 = vmatpush.msra.mxu0 0.0
        %519 = vmatpush.msra.mxu0 0.0
        %520 = vmatpush.msra.mxu0 0.0
        %521 = vmatpush.msra.mxu0 0.0
        %522 = vmatpush.msra.mxu0 0.0
        %523 = vmatpush.msra.mxu0 0.0
        %524 = vmatpush.msra.mxu0 0.0
        %525 = vmatpush.msra.mxu0 0.0
        %526 = vmatpush.msra.mxu0 0.0
        %527 = vmatpush.msra.mxu0 0.0
        %528 = vmatpush.msra.mxu0 0.0
        %529 = vmatpush.msra.mxu0 0.0
        %530 = vmatpush.msra.mxu0 0.0
        %531 = vmatpush.msra.mxu0 0.0
        %532 = vmatpush.msra.mxu0 %v417
        %533 = vmatmul.f32.gmra.mxu0 %v506
        %v534 = vpop.f32.mrf.mxu0
        %v535 = vadd.f32 %v465, %v534
        %536 = vmatmul.f32.gmra.mxu0 %v509
        %v537 = vpop.f32.mrf.mxu0
        %v538 = vadd.f32 %v468, %v537
        %539 = vmatmul.f32.gmra.mxu0 %v512
        %v540 = vpop.f32.mrf.mxu0
        %v541 = vadd.f32 %v471, %v540
        %542 = vmatmul.f32.gmra.mxu0 %v515
        %v543 = vpop.f32.mrf.mxu0
        %v544 = vadd.f32 %v474, %v543
        %545 = vdwg.mxu0
        %546 = vmatpush.msra.mxu0 0.0
        %547 = vmatpush.msra.mxu0 0.0
        %548 = vmatpush.msra.mxu0 0.0
        %549 = vmatpush.msra.mxu0 0.0
        %550 = vmatpush.msra.mxu0 0.0
        %551 = vmatpush.msra.mxu0 0.0
        %552 = vmatpush.msra.mxu0 0.0
        %553 = vmatpush.msra.mxu0 0.0
        %554 = vmatpush.msra.mxu0 0.0
        %555 = vmatpush.msra.mxu0 0.0
        %556 = vmatpush.msra.mxu0 0.0
        %557 = vmatpush.msra.mxu0 0.0
        %558 = vmatpush.msra.mxu0 0.0
        %559 = vmatpush.msra.mxu0 0.0
        %560 = vmatpush.msra.mxu0 0.0
        %561 = vmatpush.msra.mxu0 %v416
        %562 = vmatmul.f32.gmra.mxu0 %v506
        %v563 = vpop.f32.mrf.mxu0
        %v564 = vadd.f32 %v494, %v563
        %565 = vmatmul.f32.gmra.mxu0 %v509
        %v566 = vpop.f32.mrf.mxu0
        %v567 = vadd.f32 %v497, %v566
        %568 = vmatmul.f32.gmra.mxu0 %v512
        %v569 = vpop.f32.mrf.mxu0
        %v570 = vadd.f32 %v500, %v569
        %571 = vmatmul.f32.gmra.mxu0 %v515
        %v572 = vpop.f32.mrf.mxu0
        %v573 = vadd.f32 %v503, %v572
        %574 = vdwg.mxu0
        %575 = vrot.lane.b32.xlu0 %v407, 24
        %v576 = vpop.permute.xlu0 %575
        %577 = vrot.lane.b32.xlu0 %v408, 24
        %v578 = vpop.permute.xlu0 %577
        %vm579 = vcmp.lt.s32.totalorder %v414, 24
        %v580 = vsel %vm579, %v576, %v578
        %v581 = vsel %vm579, %v578, %v576
        %s582 = scalar_lea.vmem %s3, 64
        %v583 = vld [vmem:[%s582] sm:$0xff]
        %v584 = vld [vmem:[%s582 + $0x8] sm:$0xff]
        %v585 = vld [vmem:[%s582 + $0x10] sm:$0xff]
        %v586 = vld [vmem:[%s582 + $0x18] sm:$0xff]
        %v588 = vsel %vm434, %v583, 0
        %v591 = vsel %vm434, %v584, 0
        %v594 = vsel %vm434, %v585, 0
        %v597 = vsel %vm434, %v586, 0
        %599 = vmatpush.msra.mxu0 0.0
        %600 = vmatpush.msra.mxu0 0.0
        %601 = vmatpush.msra.mxu0 0.0
        %602 = vmatpush.msra.mxu0 0.0
        %603 = vmatpush.msra.mxu0 0.0
        %604 = vmatpush.msra.mxu0 0.0
        %605 = vmatpush.msra.mxu0 0.0
        %606 = vmatpush.msra.mxu0 0.0
        %607 = vmatpush.msra.mxu0 0.0
        %608 = vmatpush.msra.mxu0 0.0
        %609 = vmatpush.msra.mxu0 0.0
        %610 = vmatpush.msra.mxu0 0.0
        %611 = vmatpush.msra.mxu0 0.0
        %612 = vmatpush.msra.mxu0 0.0
        %613 = vmatpush.msra.mxu0 0.0
        %614 = vmatpush.msra.mxu0 %v581
        %615 = vmatmul.f32.gmra.mxu0 %v588
        %v616 = vpop.f32.mrf.mxu0
        %v617 = vadd.f32 0.0, %v616
        %618 = vmatmul.f32.gmra.mxu0 %v591
        %v619 = vpop.f32.mrf.mxu0
        %v620 = vadd.f32 0.0, %v619
        %621 = vmatmul.f32.gmra.mxu0 %v594
        %v622 = vpop.f32.mrf.mxu0
        %v623 = vadd.f32 0.0, %v622
        %624 = vmatmul.f32.gmra.mxu0 %v597
        %v625 = vpop.f32.mrf.mxu0
        %v626 = vadd.f32 0.0, %v625
        %627 = vdwg.mxu0
        %628 = vmatpush.msra.mxu0 0.0
        %629 = vmatpush.msra.mxu0 0.0
        %630 = vmatpush.msra.mxu0 0.0
        %631 = vmatpush.msra.mxu0 0.0
        %632 = vmatpush.msra.mxu0 0.0
        %633 = vmatpush.msra.mxu0 0.0
        %634 = vmatpush.msra.mxu0 0.0
        %635 = vmatpush.msra.mxu0 0.0
        %636 = vmatpush.msra.mxu0 0.0
        %637 = vmatpush.msra.mxu0 0.0
        %638 = vmatpush.msra.mxu0 0.0
        %639 = vmatpush.msra.mxu0 0.0
        %640 = vmatpush.msra.mxu0 0.0
        %641 = vmatpush.msra.mxu0 0.0
        %642 = vmatpush.msra.mxu0 0.0
        %643 = vmatpush.msra.mxu0 %v580
        %644 = vmatmul.f32.gmra.mxu0 %v588
        %v645 = vpop.f32.mrf.mxu0
        %v646 = vadd.f32 0.0, %v645
        %647 = vmatmul.f32.gmra.mxu0 %v591
        %v648 = vpop.f32.mrf.mxu0
        %v649 = vadd.f32 0.0, %v648
        %650 = vmatmul.f32.gmra.mxu0 %v594
        %v651 = vpop.f32.mrf.mxu0
        %v652 = vadd.f32 0.0, %v651
        %653 = vmatmul.f32.gmra.mxu0 %v597
        %v654 = vpop.f32.mrf.mxu0
        %v655 = vadd.f32 0.0, %v654
        %656 = vdwg.mxu0
        %v657 = vadd.f32 %v535, %v617
        %v658 = vadd.f32 %v564, %v646
        %v659 = vadd.f32 %v538, %v620
        %v660 = vadd.f32 %v567, %v649
        %v661 = vadd.f32 %v541, %v623
        %v662 = vadd.f32 %v570, %v652
        %v663 = vadd.f32 %v544, %v626
        %v664 = vadd.f32 %v573, %v655
        %665 = vrot.lane.b32.xlu0 %v407, 23
        %v666 = vpop.permute.xlu0 %665
        %667 = vrot.lane.b32.xlu0 %v408, 23
        %v668 = vpop.permute.xlu0 %667
        %vm669 = vcmp.lt.s32.totalorder %v414, 23
        %v670 = vsel %vm669, %v666, %v668
        %v671 = vsel %vm669, %v668, %v666
        %s672 = scalar_lea.vmem %s3, 96
        %v673 = vld [vmem:[%s672] sm:$0xff]
        %v674 = vld [vmem:[%s672 + $0x8] sm:$0xff]
        %v675 = vld [vmem:[%s672 + $0x10] sm:$0xff]
        %v676 = vld [vmem:[%s672 + $0x18] sm:$0xff]
        %v678 = vsel %vm434, %v673, 0
        %v681 = vsel %vm434, %v674, 0
        %v684 = vsel %vm434, %v675, 0
        %v687 = vsel %vm434, %v676, 0
        %689 = vmatpush.msra.mxu0 0.0
        %690 = vmatpush.msra.mxu0 0.0
        %691 = vmatpush.msra.mxu0 0.0
        %692 = vmatpush.msra.mxu0 0.0
        %693 = vmatpush.msra.mxu0 0.0
        %694 = vmatpush.msra.mxu0 0.0
        %695 = vmatpush.msra.mxu0 0.0
        %696 = vmatpush.msra.mxu0 0.0
        %697 = vmatpush.msra.mxu0 0.0
        %698 = vmatpush.msra.mxu0 0.0
        %699 = vmatpush.msra.mxu0 0.0
        %700 = vmatpush.msra.mxu0 0.0
        %701 = vmatpush.msra.mxu0 0.0
        %702 = vmatpush.msra.mxu0 0.0
        %703 = vmatpush.msra.mxu0 0.0
        %704 = vmatpush.msra.mxu0 %v671
        %705 = vmatmul.f32.gmra.mxu0 %v678
        %v706 = vpop.f32.mrf.mxu0
        %v707 = vadd.f32 0.0, %v706
        %708 = vmatmul.f32.gmra.mxu0 %v681
        %v709 = vpop.f32.mrf.mxu0
        %v710 = vadd.f32 0.0, %v709
        %711 = vmatmul.f32.gmra.mxu0 %v684
        %v712 = vpop.f32.mrf.mxu0
        %v713 = vadd.f32 0.0, %v712
        %714 = vmatmul.f32.gmra.mxu0 %v687
        %v715 = vpop.f32.mrf.mxu0
        %v716 = vadd.f32 0.0, %v715
        %717 = vdwg.mxu0
        %718 = vmatpush.msra.mxu0 0.0
        %719 = vmatpush.msra.mxu0 0.0
        %720 = vmatpush.msra.mxu0 0.0
        %721 = vmatpush.msra.mxu0 0.0
        %722 = vmatpush.msra.mxu0 0.0
        %723 = vmatpush.msra.mxu0 0.0
        %724 = vmatpush.msra.mxu0 0.0
        %725 = vmatpush.msra.mxu0 0.0
        %726 = vmatpush.msra.mxu0 0.0
        %727 = vmatpush.msra.mxu0 0.0
        %728 = vmatpush.msra.mxu0 0.0
        %729 = vmatpush.msra.mxu0 0.0
        %730 = vmatpush.msra.mxu0 0.0
        %731 = vmatpush.msra.mxu0 0.0
        %732 = vmatpush.msra.mxu0 0.0
        %733 = vmatpush.msra.mxu0 %v670
        %734 = vmatmul.f32.gmra.mxu0 %v678
        %v735 = vpop.f32.mrf.mxu0
        %v736 = vadd.f32 0.0, %v735
        %737 = vmatmul.f32.gmra.mxu0 %v681
        %v738 = vpop.f32.mrf.mxu0
        %v739 = vadd.f32 0.0, %v738
        %740 = vmatmul.f32.gmra.mxu0 %v684
        %v741 = vpop.f32.mrf.mxu0
        %v742 = vadd.f32 0.0, %v741
        %743 = vmatmul.f32.gmra.mxu0 %v687
        %v744 = vpop.f32.mrf.mxu0
        %v745 = vadd.f32 0.0, %v744
        %746 = vdwg.mxu0
        %v747 = vadd.f32 %v657, %v707
        %v748 = vadd.f32 %v658, %v736
        %v749 = vadd.f32 %v659, %v710
        %v750 = vadd.f32 %v660, %v739
        %v751 = vadd.f32 %v661, %v713
        %v752 = vadd.f32 %v662, %v742
        %v753 = vadd.f32 %v663, %v716
        %v754 = vadd.f32 %v664, %v745
        %755 = vrot.lane.b32.xlu0 %v407, 22
        %v756 = vpop.permute.xlu0 %755
        %757 = vrot.lane.b32.xlu0 %v408, 22
        %v758 = vpop.permute.xlu0 %757
        %vm759 = vcmp.lt.s32.totalorder %v414, 22
        %v760 = vsel %vm759, %v756, %v758
        %v761 = vsel %vm759, %v758, %v756
        %s762 = scalar_lea.vmem %s3, 128
        %v763 = vld [vmem:[%s762] sm:$0xff]
        %v764 = vld [vmem:[%s762 + $0x8] sm:$0xff]
        %v765 = vld [vmem:[%s762 + $0x10] sm:$0xff]
        %v766 = vld [vmem:[%s762 + $0x18] sm:$0xff]
        %v768 = vsel %vm434, %v763, 0
        %v771 = vsel %vm434, %v764, 0
        %v774 = vsel %vm434, %v765, 0
        %v777 = vsel %vm434, %v766, 0
        %779 = vmatpush.msra.mxu0 0.0
        %780 = vmatpush.msra.mxu0 0.0
        %781 = vmatpush.msra.mxu0 0.0
        %782 = vmatpush.msra.mxu0 0.0
        %783 = vmatpush.msra.mxu0 0.0
        %784 = vmatpush.msra.mxu0 0.0
        %785 = vmatpush.msra.mxu0 0.0
        %786 = vmatpush.msra.mxu0 0.0
        %787 = vmatpush.msra.mxu0 0.0
        %788 = vmatpush.msra.mxu0 0.0
        %789 = vmatpush.msra.mxu0 0.0
        %790 = vmatpush.msra.mxu0 0.0
        %791 = vmatpush.msra.mxu0 0.0
        %792 = vmatpush.msra.mxu0 0.0
        %793 = vmatpush.msra.mxu0 0.0
        %794 = vmatpush.msra.mxu0 %v761
        %795 = vmatmul.f32.gmra.mxu0 %v768
        %v796 = vpop.f32.mrf.mxu0
        %v797 = vadd.f32 0.0, %v796
        %798 = vmatmul.f32.gmra.mxu0 %v771
        %v799 = vpop.f32.mrf.mxu0
        %v800 = vadd.f32 0.0, %v799
        %801 = vmatmul.f32.gmra.mxu0 %v774
        %v802 = vpop.f32.mrf.mxu0
        %v803 = vadd.f32 0.0, %v802
        %804 = vmatmul.f32.gmra.mxu0 %v777
        %v805 = vpop.f32.mrf.mxu0
        %v806 = vadd.f32 0.0, %v805
        %807 = vdwg.mxu0
        %808 = vmatpush.msra.mxu0 0.0
        %809 = vmatpush.msra.mxu0 0.0
        %810 = vmatpush.msra.mxu0 0.0
        %811 = vmatpush.msra.mxu0 0.0
        %812 = vmatpush.msra.mxu0 0.0
        %813 = vmatpush.msra.mxu0 0.0
        %814 = vmatpush.msra.mxu0 0.0
        %815 = vmatpush.msra.mxu0 0.0
        %816 = vmatpush.msra.mxu0 0.0
        %817 = vmatpush.msra.mxu0 0.0
        %818 = vmatpush.msra.mxu0 0.0
        %819 = vmatpush.msra.mxu0 0.0
        %820 = vmatpush.msra.mxu0 0.0
        %821 = vmatpush.msra.mxu0 0.0
        %822 = vmatpush.msra.mxu0 0.0
        %823 = vmatpush.msra.mxu0 %v760
        %824 = vmatmul.f32.gmra.mxu0 %v768
        %v825 = vpop.f32.mrf.mxu0
        %v826 = vadd.f32 0.0, %v825
        %827 = vmatmul.f32.gmra.mxu0 %v771
        %v828 = vpop.f32.mrf.mxu0
        %v829 = vadd.f32 0.0, %v828
        %830 = vmatmul.f32.gmra.mxu0 %v774
        %v831 = vpop.f32.mrf.mxu0
        %v832 = vadd.f32 0.0, %v831
        %833 = vmatmul.f32.gmra.mxu0 %v777
        %v834 = vpop.f32.mrf.mxu0
        %v835 = vadd.f32 0.0, %v834
        %836 = vdwg.mxu0
        %v837 = vadd.f32 %v747, %v797
        %v838 = vadd.f32 %v748, %v826
        %v839 = vadd.f32 %v749, %v800
        %v840 = vadd.f32 %v750, %v829
        %v841 = vadd.f32 %v751, %v803
        %v842 = vadd.f32 %v752, %v832
        %v843 = vadd.f32 %v753, %v806
        %v844 = vadd.f32 %v754, %v835
        %845 = vrot.lane.b32.xlu0 %v407, 14
        %v846 = vpop.permute.xlu0 %845
        %847 = vrot.lane.b32.xlu0 %v408, 14
        %v848 = vpop.permute.xlu0 %847
        %vm849 = vcmp.lt.s32.totalorder %v414, 14
        %v850 = vsel %vm849, %v846, %v848
        %v851 = vsel %vm849, %v848, %v846
        %s852 = scalar_lea.vmem %s3, 160
        %v853 = vld [vmem:[%s852] sm:$0xff]
        %v854 = vld [vmem:[%s852 + $0x8] sm:$0xff]
        %v855 = vld [vmem:[%s852 + $0x10] sm:$0xff]
        %v856 = vld [vmem:[%s852 + $0x18] sm:$0xff]
        %v858 = vsel %vm434, %v853, 0
        %v861 = vsel %vm434, %v854, 0
        %v864 = vsel %vm434, %v855, 0
        %v867 = vsel %vm434, %v856, 0
        %869 = vmatpush.msra.mxu0 0.0
        %870 = vmatpush.msra.mxu0 0.0
        %871 = vmatpush.msra.mxu0 0.0
        %872 = vmatpush.msra.mxu0 0.0
        %873 = vmatpush.msra.mxu0 0.0
        %874 = vmatpush.msra.mxu0 0.0
        %875 = vmatpush.msra.mxu0 0.0
        %876 = vmatpush.msra.mxu0 0.0
        %877 = vmatpush.msra.mxu0 0.0
        %878 = vmatpush.msra.mxu0 0.0
        %879 = vmatpush.msra.mxu0 0.0
        %880 = vmatpush.msra.mxu0 0.0
        %881 = vmatpush.msra.mxu0 0.0
        %882 = vmatpush.msra.mxu0 0.0
        %883 = vmatpush.msra.mxu0 0.0
        %884 = vmatpush.msra.mxu0 %v851
        %885 = vmatmul.f32.gmra.mxu0 %v858
        %v886 = vpop.f32.mrf.mxu0
        %v887 = vadd.f32 0.0, %v886
        %888 = vmatmul.f32.gmra.mxu0 %v861
        %v889 = vpop.f32.mrf.mxu0
        %v890 = vadd.f32 0.0, %v889
        %891 = vmatmul.f32.gmra.mxu0 %v864
        %v892 = vpop.f32.mrf.mxu0
        %v893 = vadd.f32 0.0, %v892
        %894 = vmatmul.f32.gmra.mxu0 %v867
        %v895 = vpop.f32.mrf.mxu0
        %v896 = vadd.f32 0.0, %v895
        %897 = vdwg.mxu0
        %898 = vmatpush.msra.mxu0 0.0
        %899 = vmatpush.msra.mxu0 0.0
        %900 = vmatpush.msra.mxu0 0.0
        %901 = vmatpush.msra.mxu0 0.0
        %902 = vmatpush.msra.mxu0 0.0
        %903 = vmatpush.msra.mxu0 0.0
        %904 = vmatpush.msra.mxu0 0.0
        %905 = vmatpush.msra.mxu0 0.0
        %906 = vmatpush.msra.mxu0 0.0
        %907 = vmatpush.msra.mxu0 0.0
        %908 = vmatpush.msra.mxu0 0.0
        %909 = vmatpush.msra.mxu0 0.0
        %910 = vmatpush.msra.mxu0 0.0
        %911 = vmatpush.msra.mxu0 0.0
        %912 = vmatpush.msra.mxu0 0.0
        %913 = vmatpush.msra.mxu0 %v850
        %914 = vmatmul.f32.gmra.mxu0 %v858
        %v915 = vpop.f32.mrf.mxu0
        %v916 = vadd.f32 0.0, %v915
        %917 = vmatmul.f32.gmra.mxu0 %v861
        %v918 = vpop.f32.mrf.mxu0
        %v919 = vadd.f32 0.0, %v918
        %920 = vmatmul.f32.gmra.mxu0 %v864
        %v921 = vpop.f32.mrf.mxu0
        %v922 = vadd.f32 0.0, %v921
        %923 = vmatmul.f32.gmra.mxu0 %v867
        %v924 = vpop.f32.mrf.mxu0
        %v925 = vadd.f32 0.0, %v924
        %926 = vdwg.mxu0
        %v927 = vadd.f32 %v837, %v887
        %v928 = vadd.f32 %v838, %v916
        %v929 = vadd.f32 %v839, %v890
        %v930 = vadd.f32 %v840, %v919
        %v931 = vadd.f32 %v841, %v893
        %v932 = vadd.f32 %v842, %v922
        %v933 = vadd.f32 %v843, %v896
        %v934 = vadd.f32 %v844, %v925
        %935 = vrot.lane.b32.xlu0 %v407, 13
        %v936 = vpop.permute.xlu0 %935
        %937 = vrot.lane.b32.xlu0 %v408, 13
        %v938 = vpop.permute.xlu0 %937
        %vm939 = vcmp.lt.s32.totalorder %v414, 13
        %v940 = vsel %vm939, %v936, %v938
        %v941 = vsel %vm939, %v938, %v936
        %s942 = scalar_lea.vmem %s3, 192
        %v943 = vld [vmem:[%s942] sm:$0xff]
        %v944 = vld [vmem:[%s942 + $0x8] sm:$0xff]
        %v945 = vld [vmem:[%s942 + $0x10] sm:$0xff]
        %v946 = vld [vmem:[%s942 + $0x18] sm:$0xff]
        %v948 = vsel %vm434, %v943, 0
        %v951 = vsel %vm434, %v944, 0
        %v954 = vsel %vm434, %v945, 0
        %v957 = vsel %vm434, %v946, 0
        %959 = vmatpush.msra.mxu0 0.0
        %960 = vmatpush.msra.mxu0 0.0
        %961 = vmatpush.msra.mxu0 0.0
        %962 = vmatpush.msra.mxu0 0.0
        %963 = vmatpush.msra.mxu0 0.0
        %964 = vmatpush.msra.mxu0 0.0
        %965 = vmatpush.msra.mxu0 0.0
        %966 = vmatpush.msra.mxu0 0.0
        %967 = vmatpush.msra.mxu0 0.0
        %968 = vmatpush.msra.mxu0 0.0
        %969 = vmatpush.msra.mxu0 0.0
        %970 = vmatpush.msra.mxu0 0.0
        %971 = vmatpush.msra.mxu0 0.0
        %972 = vmatpush.msra.mxu0 0.0
        %973 = vmatpush.msra.mxu0 0.0
        %974 = vmatpush.msra.mxu0 %v941
        %975 = vmatmul.f32.gmra.mxu0 %v948
        %v976 = vpop.f32.mrf.mxu0
        %v977 = vadd.f32 0.0, %v976
        %978 = vmatmul.f32.gmra.mxu0 %v951
        %v979 = vpop.f32.mrf.mxu0
        %v980 = vadd.f32 0.0, %v979
        %981 = vmatmul.f32.gmra.mxu0 %v954
        %v982 = vpop.f32.mrf.mxu0
        %v983 = vadd.f32 0.0, %v982
        %984 = vmatmul.f32.gmra.mxu0 %v957
        %v985 = vpop.f32.mrf.mxu0
        %v986 = vadd.f32 0.0, %v985
        %987 = vdwg.mxu0
        %988 = vmatpush.msra.mxu0 0.0
        %989 = vmatpush.msra.mxu0 0.0
        %990 = vmatpush.msra.mxu0 0.0
        %991 = vmatpush.msra.mxu0 0.0
        %992 = vmatpush.msra.mxu0 0.0
        %993 = vmatpush.msra.mxu0 0.0
        %994 = vmatpush.msra.mxu0 0.0
        %995 = vmatpush.msra.mxu0 0.0
        %996 = vmatpush.msra.mxu0 0.0
        %997 = vmatpush.msra.mxu0 0.0
        %998 = vmatpush.msra.mxu0 0.0
        %999 = vmatpush.msra.mxu0 0.0
        %1000 = vmatpush.msra.mxu0 0.0
        %1001 = vmatpush.msra.mxu0 0.0
        %1002 = vmatpush.msra.mxu0 0.0
        %1003 = vmatpush.msra.mxu0 %v940
        %1004 = vmatmul.f32.gmra.mxu0 %v948
        %v1005 = vpop.f32.mrf.mxu0
        %v1006 = vadd.f32 0.0, %v1005
        %1007 = vmatmul.f32.gmra.mxu0 %v951
        %v1008 = vpop.f32.mrf.mxu0
        %v1009 = vadd.f32 0.0, %v1008
        %1010 = vmatmul.f32.gmra.mxu0 %v954
        %v1011 = vpop.f32.mrf.mxu0
        %v1012 = vadd.f32 0.0, %v1011
        %1013 = vmatmul.f32.gmra.mxu0 %v957
        %v1014 = vpop.f32.mrf.mxu0
        %v1015 = vadd.f32 0.0, %v1014
        %1016 = vdwg.mxu0
        %v1017 = vadd.f32 %v927, %v977
        %v1018 = vadd.f32 %v928, %v1006
        %v1019 = vadd.f32 %v929, %v980
        %v1020 = vadd.f32 %v930, %v1009
        %v1021 = vadd.f32 %v931, %v983
        %v1022 = vadd.f32 %v932, %v1012
        %v1023 = vadd.f32 %v933, %v986
        %v1024 = vadd.f32 %v934, %v1015
        %1025 = vrot.lane.b32.xlu0 %v407, 12
        %v1026 = vpop.permute.xlu0 %1025
        %1027 = vrot.lane.b32.xlu0 %v408, 12
        %v1028 = vpop.permute.xlu0 %1027
        %vm1029 = vcmp.lt.s32.totalorder %v414, 12
        %v1030 = vsel %vm1029, %v1026, %v1028
        %v1031 = vsel %vm1029, %v1028, %v1026
        %s1032 = scalar_lea.vmem %s3, 224
        %v1033 = vld [vmem:[%s1032] sm:$0xff]
        %v1034 = vld [vmem:[%s1032 + $0x8] sm:$0xff]
        %v1035 = vld [vmem:[%s1032 + $0x10] sm:$0xff]
        %v1036 = vld [vmem:[%s1032 + $0x18] sm:$0xff]
        %v1038 = vsel %vm434, %v1033, 0
        %v1041 = vsel %vm434, %v1034, 0
        %v1044 = vsel %vm434, %v1035, 0
        %v1047 = vsel %vm434, %v1036, 0
        %1049 = vmatpush.msra.mxu0 0.0
        %1050 = vmatpush.msra.mxu0 0.0
        %1051 = vmatpush.msra.mxu0 0.0
        %1052 = vmatpush.msra.mxu0 0.0
        %1053 = vmatpush.msra.mxu0 0.0
        %1054 = vmatpush.msra.mxu0 0.0
        %1055 = vmatpush.msra.mxu0 0.0
        %1056 = vmatpush.msra.mxu0 0.0
        %1057 = vmatpush.msra.mxu0 0.0
        %1058 = vmatpush.msra.mxu0 0.0
        %1059 = vmatpush.msra.mxu0 0.0
        %1060 = vmatpush.msra.mxu0 0.0
        %1061 = vmatpush.msra.mxu0 0.0
        %1062 = vmatpush.msra.mxu0 0.0
        %1063 = vmatpush.msra.mxu0 0.0
        %1064 = vmatpush.msra.mxu0 %v1031
        %1065 = vmatmul.f32.gmra.mxu0 %v1038
        %v1066 = vpop.f32.mrf.mxu0
        %v1067 = vadd.f32 0.0, %v1066
        %1068 = vmatmul.f32.gmra.mxu0 %v1041
        %v1069 = vpop.f32.mrf.mxu0
        %v1070 = vadd.f32 0.0, %v1069
        %1071 = vmatmul.f32.gmra.mxu0 %v1044
        %v1072 = vpop.f32.mrf.mxu0
        %v1073 = vadd.f32 0.0, %v1072
        %1074 = vmatmul.f32.gmra.mxu0 %v1047
        %v1075 = vpop.f32.mrf.mxu0
        %v1076 = vadd.f32 0.0, %v1075
        %1077 = vdwg.mxu0
        %1078 = vmatpush.msra.mxu0 0.0
        %1079 = vmatpush.msra.mxu0 0.0
        %1080 = vmatpush.msra.mxu0 0.0
        %1081 = vmatpush.msra.mxu0 0.0
        %1082 = vmatpush.msra.mxu0 0.0
        %1083 = vmatpush.msra.mxu0 0.0
        %1084 = vmatpush.msra.mxu0 0.0
        %1085 = vmatpush.msra.mxu0 0.0
        %1086 = vmatpush.msra.mxu0 0.0
        %1087 = vmatpush.msra.mxu0 0.0
        %1088 = vmatpush.msra.mxu0 0.0
        %1089 = vmatpush.msra.mxu0 0.0
        %1090 = vmatpush.msra.mxu0 0.0
        %1091 = vmatpush.msra.mxu0 0.0
        %1092 = vmatpush.msra.mxu0 0.0
        %1093 = vmatpush.msra.mxu0 %v1030
        %1094 = vmatmul.f32.gmra.mxu0 %v1038
        %v1095 = vpop.f32.mrf.mxu0
        %v1096 = vadd.f32 0.0, %v1095
        %1097 = vmatmul.f32.gmra.mxu0 %v1041
        %v1098 = vpop.f32.mrf.mxu0
        %v1099 = vadd.f32 0.0, %v1098
        %1100 = vmatmul.f32.gmra.mxu0 %v1044
        %v1101 = vpop.f32.mrf.mxu0
        %v1102 = vadd.f32 0.0, %v1101
        %1103 = vmatmul.f32.gmra.mxu0 %v1047
        %v1104 = vpop.f32.mrf.mxu0
        %v1105 = vadd.f32 0.0, %v1104
        %1106 = vdwg.mxu0
        %v1107 = vadd.f32 %v1017, %v1067
        %v1108 = vadd.f32 %v1018, %v1096
        %v1109 = vadd.f32 %v1019, %v1070
        %v1110 = vadd.f32 %v1020, %v1099
        %v1111 = vadd.f32 %v1021, %v1073
        %v1112 = vadd.f32 %v1022, %v1102
        %v1113 = vadd.f32 %v1023, %v1076
        %v1114 = vadd.f32 %v1024, %v1105
        %1115 = vrot.lane.b32.xlu0 %v407, 11
        %v1116 = vpop.permute.xlu0 %1115
        %1117 = vrot.lane.b32.xlu0 %v408, 11
        %v1118 = vpop.permute.xlu0 %1117
        %vm1119 = vcmp.lt.s32.totalorder %v414, 11
        %v1120 = vsel %vm1119, %v1116, %v1118
        %v1121 = vsel %vm1119, %v1118, %v1116
        %s1122 = scalar_lea.vmem %s3, 256
        %v1123 = vld [vmem:[%s1122] sm:$0xff]
        %v1124 = vld [vmem:[%s1122 + $0x8] sm:$0xff]
        %v1125 = vld [vmem:[%s1122 + $0x10] sm:$0xff]
        %v1126 = vld [vmem:[%s1122 + $0x18] sm:$0xff]
        %v1128 = vsel %vm434, %v1123, 0
        %v1131 = vsel %vm434, %v1124, 0
        %v1134 = vsel %vm434, %v1125, 0
        %v1137 = vsel %vm434, %v1126, 0
        %1139 = vmatpush.msra.mxu0 0.0
        %1140 = vmatpush.msra.mxu0 0.0
        %1141 = vmatpush.msra.mxu0 0.0
        %1142 = vmatpush.msra.mxu0 0.0
        %1143 = vmatpush.msra.mxu0 0.0
        %1144 = vmatpush.msra.mxu0 0.0
        %1145 = vmatpush.msra.mxu0 0.0
        %1146 = vmatpush.msra.mxu0 0.0
        %1147 = vmatpush.msra.mxu0 0.0
        %1148 = vmatpush.msra.mxu0 0.0
        %1149 = vmatpush.msra.mxu0 0.0
        %1150 = vmatpush.msra.mxu0 0.0
        %1151 = vmatpush.msra.mxu0 0.0
        %1152 = vmatpush.msra.mxu0 0.0
        %1153 = vmatpush.msra.mxu0 0.0
        %1154 = vmatpush.msra.mxu0 %v1121
        %1155 = vmatmul.f32.gmra.mxu0 %v1128
        %v1156 = vpop.f32.mrf.mxu0
        %v1157 = vadd.f32 0.0, %v1156
        %1158 = vmatmul.f32.gmra.mxu0 %v1131
        %v1159 = vpop.f32.mrf.mxu0
        %v1160 = vadd.f32 0.0, %v1159
        %1161 = vmatmul.f32.gmra.mxu0 %v1134
        %v1162 = vpop.f32.mrf.mxu0
        %v1163 = vadd.f32 0.0, %v1162
        %1164 = vmatmul.f32.gmra.mxu0 %v1137
        %v1165 = vpop.f32.mrf.mxu0
        %v1166 = vadd.f32 0.0, %v1165
        %1167 = vdwg.mxu0
        %1168 = vmatpush.msra.mxu0 0.0
        %1169 = vmatpush.msra.mxu0 0.0
        %1170 = vmatpush.msra.mxu0 0.0
        %1171 = vmatpush.msra.mxu0 0.0
        %1172 = vmatpush.msra.mxu0 0.0
        %1173 = vmatpush.msra.mxu0 0.0
        %1174 = vmatpush.msra.mxu0 0.0
        %1175 = vmatpush.msra.mxu0 0.0
        %1176 = vmatpush.msra.mxu0 0.0
        %1177 = vmatpush.msra.mxu0 0.0
        %1178 = vmatpush.msra.mxu0 0.0
        %1179 = vmatpush.msra.mxu0 0.0
        %1180 = vmatpush.msra.mxu0 0.0
        %1181 = vmatpush.msra.mxu0 0.0
        %1182 = vmatpush.msra.mxu0 0.0
        %1183 = vmatpush.msra.mxu0 %v1120
        %1184 = vmatmul.f32.gmra.mxu0 %v1128
        %v1185 = vpop.f32.mrf.mxu0
        %v1186 = vadd.f32 0.0, %v1185
        %1187 = vmatmul.f32.gmra.mxu0 %v1131
        %v1188 = vpop.f32.mrf.mxu0
        %v1189 = vadd.f32 0.0, %v1188
        %1190 = vmatmul.f32.gmra.mxu0 %v1134
        %v1191 = vpop.f32.mrf.mxu0
        %v1192 = vadd.f32 0.0, %v1191
        %1193 = vmatmul.f32.gmra.mxu0 %v1137
        %v1194 = vpop.f32.mrf.mxu0
        %v1195 = vadd.f32 0.0, %v1194
        %1196 = vdwg.mxu0
        %v1197 = vadd.f32 %v1107, %v1157
        %v1198 = vadd.f32 %v1108, %v1186
        %v1199 = vadd.f32 %v1109, %v1160
        %v1200 = vadd.f32 %v1110, %v1189
        %v1201 = vadd.f32 %v1111, %v1163
        %v1202 = vadd.f32 %v1112, %v1192
        %v1203 = vadd.f32 %v1113, %v1166
        %v1204 = vadd.f32 %v1114, %v1195
        %1205 = vrot.lane.b32.xlu0 %v407, 10
        %v1206 = vpop.permute.xlu0 %1205
        %1207 = vrot.lane.b32.xlu0 %v408, 10
        %v1208 = vpop.permute.xlu0 %1207
        %vm1209 = vcmp.lt.s32.totalorder %v414, 10
        %v1210 = vsel %vm1209, %v1206, %v1208
        %v1211 = vsel %vm1209, %v1208, %v1206
        %s1212 = scalar_lea.vmem %s3, 288
        %v1213 = vld [vmem:[%s1212] sm:$0xff]
        %v1214 = vld [vmem:[%s1212 + $0x8] sm:$0xff]
        %v1215 = vld [vmem:[%s1212 + $0x10] sm:$0xff]
        %v1216 = vld [vmem:[%s1212 + $0x18] sm:$0xff]
        %v1218 = vsel %vm434, %v1213, 0
        %v1221 = vsel %vm434, %v1214, 0
        %v1224 = vsel %vm434, %v1215, 0
        %v1227 = vsel %vm434, %v1216, 0
        %1229 = vmatpush.msra.mxu0 0.0
        %1230 = vmatpush.msra.mxu0 0.0
        %1231 = vmatpush.msra.mxu0 0.0
        %1232 = vmatpush.msra.mxu0 0.0
        %1233 = vmatpush.msra.mxu0 0.0
        %1234 = vmatpush.msra.mxu0 0.0
        %1235 = vmatpush.msra.mxu0 0.0
        %1236 = vmatpush.msra.mxu0 0.0
        %1237 = vmatpush.msra.mxu0 0.0
        %1238 = vmatpush.msra.mxu0 0.0
        %1239 = vmatpush.msra.mxu0 0.0
        %1240 = vmatpush.msra.mxu0 0.0
        %1241 = vmatpush.msra.mxu0 0.0
        %1242 = vmatpush.msra.mxu0 0.0
        %1243 = vmatpush.msra.mxu0 0.0
        %1244 = vmatpush.msra.mxu0 %v1211
        %1245 = vmatmul.f32.gmra.mxu0 %v1218
        %v1246 = vpop.f32.mrf.mxu0
        %v1247 = vadd.f32 0.0, %v1246
        %1248 = vmatmul.f32.gmra.mxu0 %v1221
        %v1249 = vpop.f32.mrf.mxu0
        %v1250 = vadd.f32 0.0, %v1249
        %1251 = vmatmul.f32.gmra.mxu0 %v1224
        %v1252 = vpop.f32.mrf.mxu0
        %v1253 = vadd.f32 0.0, %v1252
        %1254 = vmatmul.f32.gmra.mxu0 %v1227
        %v1255 = vpop.f32.mrf.mxu0
        %v1256 = vadd.f32 0.0, %v1255
        %1257 = vdwg.mxu0
        %1258 = vmatpush.msra.mxu0 0.0
        %1259 = vmatpush.msra.mxu0 0.0
        %1260 = vmatpush.msra.mxu0 0.0
        %1261 = vmatpush.msra.mxu0 0.0
        %1262 = vmatpush.msra.mxu0 0.0
        %1263 = vmatpush.msra.mxu0 0.0
        %1264 = vmatpush.msra.mxu0 0.0
        %1265 = vmatpush.msra.mxu0 0.0
        %1266 = vmatpush.msra.mxu0 0.0
        %1267 = vmatpush.msra.mxu0 0.0
        %1268 = vmatpush.msra.mxu0 0.0
        %1269 = vmatpush.msra.mxu0 0.0
        %1270 = vmatpush.msra.mxu0 0.0
        %1271 = vmatpush.msra.mxu0 0.0
        %1272 = vmatpush.msra.mxu0 0.0
        %1273 = vmatpush.msra.mxu0 %v1210
        %1274 = vmatmul.f32.gmra.mxu0 %v1218
        %v1275 = vpop.f32.mrf.mxu0
        %v1276 = vadd.f32 0.0, %v1275
        %1277 = vmatmul.f32.gmra.mxu0 %v1221
        %v1278 = vpop.f32.mrf.mxu0
        %v1279 = vadd.f32 0.0, %v1278
        %1280 = vmatmul.f32.gmra.mxu0 %v1224
        %v1281 = vpop.f32.mrf.mxu0
        %v1282 = vadd.f32 0.0, %v1281
        %1283 = vmatmul.f32.gmra.mxu0 %v1227
        %v1284 = vpop.f32.mrf.mxu0
        %v1285 = vadd.f32 0.0, %v1284
        %1286 = vdwg.mxu0
        %v1287 = vadd.f32 %v1197, %v1247
        %v1288 = vadd.f32 %v1198, %v1276
        %v1289 = vadd.f32 %v1199, %v1250
        %v1290 = vadd.f32 %v1200, %v1279
        %v1291 = vadd.f32 %v1201, %v1253
        %v1292 = vadd.f32 %v1202, %v1282
        %v1293 = vadd.f32 %v1203, %v1256
        %v1294 = vadd.f32 %v1204, %v1285
        %1295 = vrot.lane.b32.xlu0 %v407, 2
        %v1296 = vpop.permute.xlu0 %1295
        %1297 = vrot.lane.b32.xlu0 %v408, 2
        %v1298 = vpop.permute.xlu0 %1297
        %vm1299 = vcmp.lt.s32.totalorder %v414, 2
        %v1300 = vsel %vm1299, %v1296, %v1298
        %v1301 = vsel %vm1299, %v1298, %v1296
        %s1302 = scalar_lea.vmem %s3, 320
        %v1303 = vld [vmem:[%s1302] sm:$0xff]
        %v1304 = vld [vmem:[%s1302 + $0x8] sm:$0xff]
        %v1305 = vld [vmem:[%s1302 + $0x10] sm:$0xff]
        %v1306 = vld [vmem:[%s1302 + $0x18] sm:$0xff]
        %v1308 = vsel %vm434, %v1303, 0
        %v1311 = vsel %vm434, %v1304, 0
        %v1314 = vsel %vm434, %v1305, 0
        %v1317 = vsel %vm434, %v1306, 0
        %1319 = vmatpush.msra.mxu0 0.0
        %1320 = vmatpush.msra.mxu0 0.0
        %1321 = vmatpush.msra.mxu0 0.0
        %1322 = vmatpush.msra.mxu0 0.0
        %1323 = vmatpush.msra.mxu0 0.0
        %1324 = vmatpush.msra.mxu0 0.0
        %1325 = vmatpush.msra.mxu0 0.0
        %1326 = vmatpush.msra.mxu0 0.0
        %1327 = vmatpush.msra.mxu0 0.0
        %1328 = vmatpush.msra.mxu0 0.0
        %1329 = vmatpush.msra.mxu0 0.0
        %1330 = vmatpush.msra.mxu0 0.0
        %1331 = vmatpush.msra.mxu0 0.0
        %1332 = vmatpush.msra.mxu0 0.0
        %1333 = vmatpush.msra.mxu0 0.0
        %1334 = vmatpush.msra.mxu0 %v1301
        %1335 = vmatmul.f32.gmra.mxu0 %v1308
        %v1336 = vpop.f32.mrf.mxu0
        %v1337 = vadd.f32 0.0, %v1336
        %1338 = vmatmul.f32.gmra.mxu0 %v1311
        %v1339 = vpop.f32.mrf.mxu0
        %v1340 = vadd.f32 0.0, %v1339
        %1341 = vmatmul.f32.gmra.mxu0 %v1314
        %v1342 = vpop.f32.mrf.mxu0
        %v1343 = vadd.f32 0.0, %v1342
        %1344 = vmatmul.f32.gmra.mxu0 %v1317
        %v1345 = vpop.f32.mrf.mxu0
        %v1346 = vadd.f32 0.0, %v1345
        %1347 = vdwg.mxu0
        %1348 = vmatpush.msra.mxu0 0.0
        %1349 = vmatpush.msra.mxu0 0.0
        %1350 = vmatpush.msra.mxu0 0.0
        %1351 = vmatpush.msra.mxu0 0.0
        %1352 = vmatpush.msra.mxu0 0.0
        %1353 = vmatpush.msra.mxu0 0.0
        %1354 = vmatpush.msra.mxu0 0.0
        %1355 = vmatpush.msra.mxu0 0.0
        %1356 = vmatpush.msra.mxu0 0.0
        %1357 = vmatpush.msra.mxu0 0.0
        %1358 = vmatpush.msra.mxu0 0.0
        %1359 = vmatpush.msra.mxu0 0.0
        %1360 = vmatpush.msra.mxu0 0.0
        %1361 = vmatpush.msra.mxu0 0.0
        %1362 = vmatpush.msra.mxu0 0.0
        %1363 = vmatpush.msra.mxu0 %v1300
        %1364 = vmatmul.f32.gmra.mxu0 %v1308
        %v1365 = vpop.f32.mrf.mxu0
        %v1366 = vadd.f32 0.0, %v1365
        %1367 = vmatmul.f32.gmra.mxu0 %v1311
        %v1368 = vpop.f32.mrf.mxu0
        %v1369 = vadd.f32 0.0, %v1368
        %1370 = vmatmul.f32.gmra.mxu0 %v1314
        %v1371 = vpop.f32.mrf.mxu0
        %v1372 = vadd.f32 0.0, %v1371
        %1373 = vmatmul.f32.gmra.mxu0 %v1317
        %v1374 = vpop.f32.mrf.mxu0
        %v1375 = vadd.f32 0.0, %v1374
        %1376 = vdwg.mxu0
        %v1377 = vadd.f32 %v1287, %v1337
        %v1378 = vadd.f32 %v1288, %v1366
        %v1379 = vadd.f32 %v1289, %v1340
        %v1380 = vadd.f32 %v1290, %v1369
        %v1381 = vadd.f32 %v1291, %v1343
        %v1382 = vadd.f32 %v1292, %v1372
        %v1383 = vadd.f32 %v1293, %v1346
        %v1384 = vadd.f32 %v1294, %v1375
        %1385 = vrot.lane.b32.xlu0 %v407, 1
        %v1386 = vpop.permute.xlu0 %1385
        %1387 = vrot.lane.b32.xlu0 %v408, 1
        %v1388 = vpop.permute.xlu0 %1387
        %vm1389 = vcmp.lt.s32.totalorder %v414, 1
        %v1390 = vsel %vm1389, %v1386, %v1388
        %v1391 = vsel %vm1389, %v1388, %v1386
        %s1392 = scalar_lea.vmem %s3, 352
        %v1393 = vld [vmem:[%s1392] sm:$0xff]
        %v1394 = vld [vmem:[%s1392 + $0x8] sm:$0xff]
        %v1395 = vld [vmem:[%s1392 + $0x10] sm:$0xff]
        %v1396 = vld [vmem:[%s1392 + $0x18] sm:$0xff]
        %v1398 = vsel %vm434, %v1393, 0
        %v1401 = vsel %vm434, %v1394, 0
        %v1404 = vsel %vm434, %v1395, 0
        %v1407 = vsel %vm434, %v1396, 0
        %1409 = vmatpush.msra.mxu0 0.0
        %1410 = vmatpush.msra.mxu0 0.0
        %1411 = vmatpush.msra.mxu0 0.0
        %1412 = vmatpush.msra.mxu0 0.0
        %1413 = vmatpush.msra.mxu0 0.0
        %1414 = vmatpush.msra.mxu0 0.0
        %1415 = vmatpush.msra.mxu0 0.0
        %1416 = vmatpush.msra.mxu0 0.0
        %1417 = vmatpush.msra.mxu0 0.0
        %1418 = vmatpush.msra.mxu0 0.0
        %1419 = vmatpush.msra.mxu0 0.0
        %1420 = vmatpush.msra.mxu0 0.0
        %1421 = vmatpush.msra.mxu0 0.0
        %1422 = vmatpush.msra.mxu0 0.0
        %1423 = vmatpush.msra.mxu0 0.0
        %1424 = vmatpush.msra.mxu0 %v1391
        %1425 = vmatmul.f32.gmra.mxu0 %v1398
        %v1426 = vpop.f32.mrf.mxu0
        %v1427 = vadd.f32 0.0, %v1426
        %1428 = vmatmul.f32.gmra.mxu0 %v1401
        %v1429 = vpop.f32.mrf.mxu0
        %v1430 = vadd.f32 0.0, %v1429
        %1431 = vmatmul.f32.gmra.mxu0 %v1404
        %v1432 = vpop.f32.mrf.mxu0
        %v1433 = vadd.f32 0.0, %v1432
        %1434 = vmatmul.f32.gmra.mxu0 %v1407
        %v1435 = vpop.f32.mrf.mxu0
        %v1436 = vadd.f32 0.0, %v1435
        %1437 = vdwg.mxu0
        %1438 = vmatpush.msra.mxu0 0.0
        %1439 = vmatpush.msra.mxu0 0.0
        %1440 = vmatpush.msra.mxu0 0.0
        %1441 = vmatpush.msra.mxu0 0.0
        %1442 = vmatpush.msra.mxu0 0.0
        %1443 = vmatpush.msra.mxu0 0.0
        %1444 = vmatpush.msra.mxu0 0.0
        %1445 = vmatpush.msra.mxu0 0.0
        %1446 = vmatpush.msra.mxu0 0.0
        %1447 = vmatpush.msra.mxu0 0.0
        %1448 = vmatpush.msra.mxu0 0.0
        %1449 = vmatpush.msra.mxu0 0.0
        %1450 = vmatpush.msra.mxu0 0.0
        %1451 = vmatpush.msra.mxu0 0.0
        %1452 = vmatpush.msra.mxu0 0.0
        %1453 = vmatpush.msra.mxu0 %v1390
        %1454 = vmatmul.f32.gmra.mxu0 %v1398
        %v1455 = vpop.f32.mrf.mxu0
        %v1456 = vadd.f32 0.0, %v1455
        %1457 = vmatmul.f32.gmra.mxu0 %v1401
        %v1458 = vpop.f32.mrf.mxu0
        %v1459 = vadd.f32 0.0, %v1458
        %1460 = vmatmul.f32.gmra.mxu0 %v1404
        %v1461 = vpop.f32.mrf.mxu0
        %v1462 = vadd.f32 0.0, %v1461
        %1463 = vmatmul.f32.gmra.mxu0 %v1407
        %v1464 = vpop.f32.mrf.mxu0
        %v1465 = vadd.f32 0.0, %v1464
        %1466 = vdwg.mxu0
        %v1467 = vadd.f32 %v1377, %v1427
        %v1468 = vadd.f32 %v1378, %v1456
        %v1469 = vadd.f32 %v1379, %v1430
        %v1470 = vadd.f32 %v1380, %v1459
        %v1471 = vadd.f32 %v1381, %v1433
        %v1472 = vadd.f32 %v1382, %v1462
        %v1473 = vadd.f32 %v1383, %v1436
        %v1474 = vadd.f32 %v1384, %v1465
        %s1475 = scalar_lea.vmem %s3, 384
        %v1476 = vld [vmem:[%s1475] sm:$0xff]
        %v1477 = vld [vmem:[%s1475 + $0x8] sm:$0xff]
        %v1478 = vld [vmem:[%s1475 + $0x10] sm:$0xff]
        %v1479 = vld [vmem:[%s1475 + $0x18] sm:$0xff]
        %v1481 = vsel %vm434, %v1476, 0
        %v1484 = vsel %vm434, %v1477, 0
        %v1487 = vsel %vm434, %v1478, 0
        %v1490 = vsel %vm434, %v1479, 0
        %1492 = vmatpush.msra.mxu0 0.0
        %1493 = vmatpush.msra.mxu0 0.0
        %1494 = vmatpush.msra.mxu0 0.0
        %1495 = vmatpush.msra.mxu0 0.0
        %1496 = vmatpush.msra.mxu0 0.0
        %1497 = vmatpush.msra.mxu0 0.0
        %1498 = vmatpush.msra.mxu0 0.0
        %1499 = vmatpush.msra.mxu0 0.0
        %1500 = vmatpush.msra.mxu0 0.0
        %1501 = vmatpush.msra.mxu0 0.0
        %1502 = vmatpush.msra.mxu0 0.0
        %1503 = vmatpush.msra.mxu0 0.0
        %1504 = vmatpush.msra.mxu0 0.0
        %1505 = vmatpush.msra.mxu0 0.0
        %1506 = vmatpush.msra.mxu0 0.0
        %1507 = vmatpush.msra.mxu0 %v407
        %1508 = vmatmul.f32.gmra.mxu0 %v1481
        %v1509 = vpop.f32.mrf.mxu0
        %v1510 = vadd.f32 0.0, %v1509
        %1511 = vmatmul.f32.gmra.mxu0 %v1484
        %v1512 = vpop.f32.mrf.mxu0
        %v1513 = vadd.f32 0.0, %v1512
        %1514 = vmatmul.f32.gmra.mxu0 %v1487
        %v1515 = vpop.f32.mrf.mxu0
        %v1516 = vadd.f32 0.0, %v1515
        %1517 = vmatmul.f32.gmra.mxu0 %v1490
        %v1518 = vpop.f32.mrf.mxu0
        %v1519 = vadd.f32 0.0, %v1518
        %1520 = vdwg.mxu0
        %1521 = vmatpush.msra.mxu0 0.0
        %1522 = vmatpush.msra.mxu0 0.0
        %1523 = vmatpush.msra.mxu0 0.0
        %1524 = vmatpush.msra.mxu0 0.0
        %1525 = vmatpush.msra.mxu0 0.0
        %1526 = vmatpush.msra.mxu0 0.0
        %1527 = vmatpush.msra.mxu0 0.0
        %1528 = vmatpush.msra.mxu0 0.0
        %1529 = vmatpush.msra.mxu0 0.0
        %1530 = vmatpush.msra.mxu0 0.0
        %1531 = vmatpush.msra.mxu0 0.0
        %1532 = vmatpush.msra.mxu0 0.0
        %1533 = vmatpush.msra.mxu0 0.0
        %1534 = vmatpush.msra.mxu0 0.0
        %1535 = vmatpush.msra.mxu0 0.0
        %1536 = vmatpush.msra.mxu0 %v408
        %1537 = vmatmul.f32.gmra.mxu0 %v1481
        %v1538 = vpop.f32.mrf.mxu0
        %v1539 = vadd.f32 0.0, %v1538
        %1540 = vmatmul.f32.gmra.mxu0 %v1484
        %v1541 = vpop.f32.mrf.mxu0
        %v1542 = vadd.f32 0.0, %v1541
        %1543 = vmatmul.f32.gmra.mxu0 %v1487
        %v1544 = vpop.f32.mrf.mxu0
        %v1545 = vadd.f32 0.0, %v1544
        %1546 = vmatmul.f32.gmra.mxu0 %v1490
        %v1547 = vpop.f32.mrf.mxu0
        %v1548 = vadd.f32 0.0, %v1547
        %1549 = vdwg.mxu0
        %v1550 = vadd.f32 %v1467, %v1510
        %v1551 = vadd.f32 %v1468, %v1539
        %v1552 = vadd.f32 %v1469, %v1513
        %v1553 = vadd.f32 %v1470, %v1542
        %v1554 = vadd.f32 %v1471, %v1516
        %v1555 = vadd.f32 %v1472, %v1545
        %v1556 = vadd.f32 %v1473, %v1519
        %v1557 = vadd.f32 %v1474, %v1548
        %1558 = vrot.lane.b32.xlu0 %v407, 127
        %v1559 = vpop.permute.xlu0 %1558
        %1560 = vrot.lane.b32.xlu0 %v408, 127
        %v1561 = vpop.permute.xlu0 %1560
        %vm1562 = vcmp.lt.s32.totalorder %v414, 127
        %v1563 = vsel %vm1562, %v1559, %v1561
        %v1564 = vsel %vm1562, %v1561, %v1559
        %s1565 = scalar_lea.vmem %s3, 416
        %v1566 = vld [vmem:[%s1565] sm:$0xff]
        %v1567 = vld [vmem:[%s1565 + $0x8] sm:$0xff]
        %v1568 = vld [vmem:[%s1565 + $0x10] sm:$0xff]
        %v1569 = vld [vmem:[%s1565 + $0x18] sm:$0xff]
        %v1571 = vsel %vm434, %v1566, 0
        %v1574 = vsel %vm434, %v1567, 0
        %v1577 = vsel %vm434, %v1568, 0
        %v1580 = vsel %vm434, %v1569, 0
        %1582 = vmatpush.msra.mxu0 0.0
        %1583 = vmatpush.msra.mxu0 0.0
        %1584 = vmatpush.msra.mxu0 0.0
        %1585 = vmatpush.msra.mxu0 0.0
        %1586 = vmatpush.msra.mxu0 0.0
        %1587 = vmatpush.msra.mxu0 0.0
        %1588 = vmatpush.msra.mxu0 0.0
        %1589 = vmatpush.msra.mxu0 0.0
        %1590 = vmatpush.msra.mxu0 0.0
        %1591 = vmatpush.msra.mxu0 0.0
        %1592 = vmatpush.msra.mxu0 0.0
        %1593 = vmatpush.msra.mxu0 0.0
        %1594 = vmatpush.msra.mxu0 0.0
        %1595 = vmatpush.msra.mxu0 0.0
        %1596 = vmatpush.msra.mxu0 0.0
        %1597 = vmatpush.msra.mxu0 %v1563
        %1598 = vmatmul.f32.gmra.mxu0 %v1571
        %v1599 = vpop.f32.mrf.mxu0
        %v1600 = vadd.f32 0.0, %v1599
        %1601 = vmatmul.f32.gmra.mxu0 %v1574
        %v1602 = vpop.f32.mrf.mxu0
        %v1603 = vadd.f32 0.0, %v1602
        %1604 = vmatmul.f32.gmra.mxu0 %v1577
        %v1605 = vpop.f32.mrf.mxu0
        %v1606 = vadd.f32 0.0, %v1605
        %1607 = vmatmul.f32.gmra.mxu0 %v1580
        %v1608 = vpop.f32.mrf.mxu0
        %v1609 = vadd.f32 0.0, %v1608
        %1610 = vdwg.mxu0
        %1611 = vmatpush.msra.mxu0 0.0
        %1612 = vmatpush.msra.mxu0 0.0
        %1613 = vmatpush.msra.mxu0 0.0
        %1614 = vmatpush.msra.mxu0 0.0
        %1615 = vmatpush.msra.mxu0 0.0
        %1616 = vmatpush.msra.mxu0 0.0
        %1617 = vmatpush.msra.mxu0 0.0
        %1618 = vmatpush.msra.mxu0 0.0
        %1619 = vmatpush.msra.mxu0 0.0
        %1620 = vmatpush.msra.mxu0 0.0
        %1621 = vmatpush.msra.mxu0 0.0
        %1622 = vmatpush.msra.mxu0 0.0
        %1623 = vmatpush.msra.mxu0 0.0
        %1624 = vmatpush.msra.mxu0 0.0
        %1625 = vmatpush.msra.mxu0 0.0
        %1626 = vmatpush.msra.mxu0 %v1564
        %1627 = vmatmul.f32.gmra.mxu0 %v1571
        %v1628 = vpop.f32.mrf.mxu0
        %v1629 = vadd.f32 0.0, %v1628
        %1630 = vmatmul.f32.gmra.mxu0 %v1574
        %v1631 = vpop.f32.mrf.mxu0
        %v1632 = vadd.f32 0.0, %v1631
        %1633 = vmatmul.f32.gmra.mxu0 %v1577
        %v1634 = vpop.f32.mrf.mxu0
        %v1635 = vadd.f32 0.0, %v1634
        %1636 = vmatmul.f32.gmra.mxu0 %v1580
        %v1637 = vpop.f32.mrf.mxu0
        %v1638 = vadd.f32 0.0, %v1637
        %1639 = vdwg.mxu0
        %v1640 = vadd.f32 %v1550, %v1600
        %v1641 = vadd.f32 %v1551, %v1629
        %v1642 = vadd.f32 %v1552, %v1603
        %v1643 = vadd.f32 %v1553, %v1632
        %v1644 = vadd.f32 %v1554, %v1606
        %v1645 = vadd.f32 %v1555, %v1635
        %v1646 = vadd.f32 %v1556, %v1609
        %v1647 = vadd.f32 %v1557, %v1638
        %1648 = vrot.lane.b32.xlu0 %v407, 126
        %v1649 = vpop.permute.xlu0 %1648
        %1650 = vrot.lane.b32.xlu0 %v408, 126
        %v1651 = vpop.permute.xlu0 %1650
        %vm1652 = vcmp.lt.s32.totalorder %v414, 126
        %v1653 = vsel %vm1652, %v1649, %v1651
        %v1654 = vsel %vm1652, %v1651, %v1649
        %s1655 = scalar_lea.vmem %s3, 448
        %v1656 = vld [vmem:[%s1655] sm:$0xff]
        %v1657 = vld [vmem:[%s1655 + $0x8] sm:$0xff]
        %v1658 = vld [vmem:[%s1655 + $0x10] sm:$0xff]
        %v1659 = vld [vmem:[%s1655 + $0x18] sm:$0xff]
        %v1661 = vsel %vm434, %v1656, 0
        %v1664 = vsel %vm434, %v1657, 0
        %v1667 = vsel %vm434, %v1658, 0
        %v1670 = vsel %vm434, %v1659, 0
        %1672 = vmatpush.msra.mxu0 0.0
        %1673 = vmatpush.msra.mxu0 0.0
        %1674 = vmatpush.msra.mxu0 0.0
        %1675 = vmatpush.msra.mxu0 0.0
        %1676 = vmatpush.msra.mxu0 0.0
        %1677 = vmatpush.msra.mxu0 0.0
        %1678 = vmatpush.msra.mxu0 0.0
        %1679 = vmatpush.msra.mxu0 0.0
        %1680 = vmatpush.msra.mxu0 0.0
        %1681 = vmatpush.msra.mxu0 0.0
        %1682 = vmatpush.msra.mxu0 0.0
        %1683 = vmatpush.msra.mxu0 0.0
        %1684 = vmatpush.msra.mxu0 0.0
        %1685 = vmatpush.msra.mxu0 0.0
        %1686 = vmatpush.msra.mxu0 0.0
        %1687 = vmatpush.msra.mxu0 %v1653
        %1688 = vmatmul.f32.gmra.mxu0 %v1661
        %v1689 = vpop.f32.mrf.mxu0
        %v1690 = vadd.f32 0.0, %v1689
        %1691 = vmatmul.f32.gmra.mxu0 %v1664
        %v1692 = vpop.f32.mrf.mxu0
        %v1693 = vadd.f32 0.0, %v1692
        %1694 = vmatmul.f32.gmra.mxu0 %v1667
        %v1695 = vpop.f32.mrf.mxu0
        %v1696 = vadd.f32 0.0, %v1695
        %1697 = vmatmul.f32.gmra.mxu0 %v1670
        %v1698 = vpop.f32.mrf.mxu0
        %v1699 = vadd.f32 0.0, %v1698
        %1700 = vdwg.mxu0
        %1701 = vmatpush.msra.mxu0 0.0
        %1702 = vmatpush.msra.mxu0 0.0
        %1703 = vmatpush.msra.mxu0 0.0
        %1704 = vmatpush.msra.mxu0 0.0
        %1705 = vmatpush.msra.mxu0 0.0
        %1706 = vmatpush.msra.mxu0 0.0
        %1707 = vmatpush.msra.mxu0 0.0
        %1708 = vmatpush.msra.mxu0 0.0
        %1709 = vmatpush.msra.mxu0 0.0
        %1710 = vmatpush.msra.mxu0 0.0
        %1711 = vmatpush.msra.mxu0 0.0
        %1712 = vmatpush.msra.mxu0 0.0
        %1713 = vmatpush.msra.mxu0 0.0
        %1714 = vmatpush.msra.mxu0 0.0
        %1715 = vmatpush.msra.mxu0 0.0
        %1716 = vmatpush.msra.mxu0 %v1654
        %1717 = vmatmul.f32.gmra.mxu0 %v1661
        %v1718 = vpop.f32.mrf.mxu0
        %v1719 = vadd.f32 0.0, %v1718
        %1720 = vmatmul.f32.gmra.mxu0 %v1664
        %v1721 = vpop.f32.mrf.mxu0
        %v1722 = vadd.f32 0.0, %v1721
        %1723 = vmatmul.f32.gmra.mxu0 %v1667
        %v1724 = vpop.f32.mrf.mxu0
        %v1725 = vadd.f32 0.0, %v1724
        %1726 = vmatmul.f32.gmra.mxu0 %v1670
        %v1727 = vpop.f32.mrf.mxu0
        %v1728 = vadd.f32 0.0, %v1727
        %1729 = vdwg.mxu0
        %v1730 = vadd.f32 %v1640, %v1690
        %v1731 = vadd.f32 %v1641, %v1719
        %v1732 = vadd.f32 %v1642, %v1693
        %v1733 = vadd.f32 %v1643, %v1722
        %v1734 = vadd.f32 %v1644, %v1696
        %v1735 = vadd.f32 %v1645, %v1725
        %v1736 = vadd.f32 %v1646, %v1699
        %v1737 = vadd.f32 %v1647, %v1728
        %1738 = vrot.lane.b32.xlu0 %v407, 118
        %v1739 = vpop.permute.xlu0 %1738
        %1740 = vrot.lane.b32.xlu0 %v408, 118
        %v1741 = vpop.permute.xlu0 %1740
        %vm1742 = vcmp.lt.s32.totalorder %v414, 118
        %v1743 = vsel %vm1742, %v1739, %v1741
        %v1744 = vsel %vm1742, %v1741, %v1739
        %s1745 = scalar_lea.vmem %s3, 480
        %v1746 = vld [vmem:[%s1745] sm:$0xff]
        %v1747 = vld [vmem:[%s1745 + $0x8] sm:$0xff]
        %v1748 = vld [vmem:[%s1745 + $0x10] sm:$0xff]
        %v1749 = vld [vmem:[%s1745 + $0x18] sm:$0xff]
        %v1751 = vsel %vm434, %v1746, 0
        %v1754 = vsel %vm434, %v1747, 0
        %v1757 = vsel %vm434, %v1748, 0
        %v1760 = vsel %vm434, %v1749, 0
        %1762 = vmatpush.msra.mxu0 0.0
        %1763 = vmatpush.msra.mxu0 0.0
        %1764 = vmatpush.msra.mxu0 0.0
        %1765 = vmatpush.msra.mxu0 0.0
        %1766 = vmatpush.msra.mxu0 0.0
        %1767 = vmatpush.msra.mxu0 0.0
        %1768 = vmatpush.msra.mxu0 0.0
        %1769 = vmatpush.msra.mxu0 0.0
        %1770 = vmatpush.msra.mxu0 0.0
        %1771 = vmatpush.msra.mxu0 0.0
        %1772 = vmatpush.msra.mxu0 0.0
        %1773 = vmatpush.msra.mxu0 0.0
        %1774 = vmatpush.msra.mxu0 0.0
        %1775 = vmatpush.msra.mxu0 0.0
        %1776 = vmatpush.msra.mxu0 0.0
        %1777 = vmatpush.msra.mxu0 %v1743
        %1778 = vmatmul.f32.gmra.mxu0 %v1751
        %v1779 = vpop.f32.mrf.mxu0
        %v1780 = vadd.f32 0.0, %v1779
        %1781 = vmatmul.f32.gmra.mxu0 %v1754
        %v1782 = vpop.f32.mrf.mxu0
        %v1783 = vadd.f32 0.0, %v1782
        %1784 = vmatmul.f32.gmra.mxu0 %v1757
        %v1785 = vpop.f32.mrf.mxu0
        %v1786 = vadd.f32 0.0, %v1785
        %1787 = vmatmul.f32.gmra.mxu0 %v1760
        %v1788 = vpop.f32.mrf.mxu0
        %v1789 = vadd.f32 0.0, %v1788
        %1790 = vdwg.mxu0
        %1791 = vmatpush.msra.mxu0 0.0
        %1792 = vmatpush.msra.mxu0 0.0
        %1793 = vmatpush.msra.mxu0 0.0
        %1794 = vmatpush.msra.mxu0 0.0
        %1795 = vmatpush.msra.mxu0 0.0
        %1796 = vmatpush.msra.mxu0 0.0
        %1797 = vmatpush.msra.mxu0 0.0
        %1798 = vmatpush.msra.mxu0 0.0
        %1799 = vmatpush.msra.mxu0 0.0
        %1800 = vmatpush.msra.mxu0 0.0
        %1801 = vmatpush.msra.mxu0 0.0
        %1802 = vmatpush.msra.mxu0 0.0
        %1803 = vmatpush.msra.mxu0 0.0
        %1804 = vmatpush.msra.mxu0 0.0
        %1805 = vmatpush.msra.mxu0 0.0
        %1806 = vmatpush.msra.mxu0 %v1744
        %1807 = vmatmul.f32.gmra.mxu0 %v1751
        %v1808 = vpop.f32.mrf.mxu0
        %v1809 = vadd.f32 0.0, %v1808
        %1810 = vmatmul.f32.gmra.mxu0 %v1754
        %v1811 = vpop.f32.mrf.mxu0
        %v1812 = vadd.f32 0.0, %v1811
        %1813 = vmatmul.f32.gmra.mxu0 %v1757
        %v1814 = vpop.f32.mrf.mxu0
        %v1815 = vadd.f32 0.0, %v1814
        %1816 = vmatmul.f32.gmra.mxu0 %v1760
        %v1817 = vpop.f32.mrf.mxu0
        %v1818 = vadd.f32 0.0, %v1817
        %1819 = vdwg.mxu0
        %v1820 = vadd.f32 %v1730, %v1780
        %v1821 = vadd.f32 %v1731, %v1809
        %v1822 = vadd.f32 %v1732, %v1783
        %v1823 = vadd.f32 %v1733, %v1812
        %v1824 = vadd.f32 %v1734, %v1786
        %v1825 = vadd.f32 %v1735, %v1815
        %v1826 = vadd.f32 %v1736, %v1789
        %v1827 = vadd.f32 %v1737, %v1818
        %1828 = vrot.lane.b32.xlu0 %v407, 117
        %v1829 = vpop.permute.xlu0 %1828
        %1830 = vrot.lane.b32.xlu0 %v408, 117
        %v1831 = vpop.permute.xlu0 %1830
        %vm1832 = vcmp.lt.s32.totalorder %v414, 117
        %v1833 = vsel %vm1832, %v1829, %v1831
        %v1834 = vsel %vm1832, %v1831, %v1829
        %s1835 = scalar_lea.vmem %s3, 512
        %v1836 = vld [vmem:[%s1835] sm:$0xff]
        %v1837 = vld [vmem:[%s1835 + $0x8] sm:$0xff]
        %v1838 = vld [vmem:[%s1835 + $0x10] sm:$0xff]
        %v1839 = vld [vmem:[%s1835 + $0x18] sm:$0xff]
        %v1841 = vsel %vm434, %v1836, 0
        %v1844 = vsel %vm434, %v1837, 0
        %v1847 = vsel %vm434, %v1838, 0
        %v1850 = vsel %vm434, %v1839, 0
        %1852 = vmatpush.msra.mxu0 0.0
        %1853 = vmatpush.msra.mxu0 0.0
        %1854 = vmatpush.msra.mxu0 0.0
        %1855 = vmatpush.msra.mxu0 0.0
        %1856 = vmatpush.msra.mxu0 0.0
        %1857 = vmatpush.msra.mxu0 0.0
        %1858 = vmatpush.msra.mxu0 0.0
        %1859 = vmatpush.msra.mxu0 0.0
        %1860 = vmatpush.msra.mxu0 0.0
        %1861 = vmatpush.msra.mxu0 0.0
        %1862 = vmatpush.msra.mxu0 0.0
        %1863 = vmatpush.msra.mxu0 0.0
        %1864 = vmatpush.msra.mxu0 0.0
        %1865 = vmatpush.msra.mxu0 0.0
        %1866 = vmatpush.msra.mxu0 0.0
        %1867 = vmatpush.msra.mxu0 %v1833
        %1868 = vmatmul.f32.gmra.mxu0 %v1841
        %v1869 = vpop.f32.mrf.mxu0
        %v1870 = vadd.f32 0.0, %v1869
        %1871 = vmatmul.f32.gmra.mxu0 %v1844
        %v1872 = vpop.f32.mrf.mxu0
        %v1873 = vadd.f32 0.0, %v1872
        %1874 = vmatmul.f32.gmra.mxu0 %v1847
        %v1875 = vpop.f32.mrf.mxu0
        %v1876 = vadd.f32 0.0, %v1875
        %1877 = vmatmul.f32.gmra.mxu0 %v1850
        %v1878 = vpop.f32.mrf.mxu0
        %v1879 = vadd.f32 0.0, %v1878
        %1880 = vdwg.mxu0
        %1881 = vmatpush.msra.mxu0 0.0
        %1882 = vmatpush.msra.mxu0 0.0
        %1883 = vmatpush.msra.mxu0 0.0
        %1884 = vmatpush.msra.mxu0 0.0
        %1885 = vmatpush.msra.mxu0 0.0
        %1886 = vmatpush.msra.mxu0 0.0
        %1887 = vmatpush.msra.mxu0 0.0
        %1888 = vmatpush.msra.mxu0 0.0
        %1889 = vmatpush.msra.mxu0 0.0
        %1890 = vmatpush.msra.mxu0 0.0
        %1891 = vmatpush.msra.mxu0 0.0
        %1892 = vmatpush.msra.mxu0 0.0
        %1893 = vmatpush.msra.mxu0 0.0
        %1894 = vmatpush.msra.mxu0 0.0
        %1895 = vmatpush.msra.mxu0 0.0
        %1896 = vmatpush.msra.mxu0 %v1834
        %1897 = vmatmul.f32.gmra.mxu0 %v1841
        %v1898 = vpop.f32.mrf.mxu0
        %v1899 = vadd.f32 0.0, %v1898
        %1900 = vmatmul.f32.gmra.mxu0 %v1844
        %v1901 = vpop.f32.mrf.mxu0
        %v1902 = vadd.f32 0.0, %v1901
        %1903 = vmatmul.f32.gmra.mxu0 %v1847
        %v1904 = vpop.f32.mrf.mxu0
        %v1905 = vadd.f32 0.0, %v1904
        %1906 = vmatmul.f32.gmra.mxu0 %v1850
        %v1907 = vpop.f32.mrf.mxu0
        %v1908 = vadd.f32 0.0, %v1907
        %1909 = vdwg.mxu0
        %v1910 = vadd.f32 %v1820, %v1870
        %v1911 = vadd.f32 %v1821, %v1899
        %v1912 = vadd.f32 %v1822, %v1873
        %v1913 = vadd.f32 %v1823, %v1902
        %v1914 = vadd.f32 %v1824, %v1876
        %v1915 = vadd.f32 %v1825, %v1905
        %v1916 = vadd.f32 %v1826, %v1879
        %v1917 = vadd.f32 %v1827, %v1908
        %1918 = vrot.lane.b32.xlu0 %v407, 116
        %v1919 = vpop.permute.xlu0 %1918
        %1920 = vrot.lane.b32.xlu0 %v408, 116
        %v1921 = vpop.permute.xlu0 %1920
        %vm1922 = vcmp.lt.s32.totalorder %v414, 116
        %v1923 = vsel %vm1922, %v1919, %v1921
        %v1924 = vsel %vm1922, %v1921, %v1919
        %s1925 = scalar_lea.vmem %s3, 544
        %v1926 = vld [vmem:[%s1925] sm:$0xff]
        %v1927 = vld [vmem:[%s1925 + $0x8] sm:$0xff]
        %v1928 = vld [vmem:[%s1925 + $0x10] sm:$0xff]
        %v1929 = vld [vmem:[%s1925 + $0x18] sm:$0xff]
        %v1931 = vsel %vm434, %v1926, 0
        %v1934 = vsel %vm434, %v1927, 0
        %v1937 = vsel %vm434, %v1928, 0
        %v1940 = vsel %vm434, %v1929, 0
        %1942 = vmatpush.msra.mxu0 0.0
        %1943 = vmatpush.msra.mxu0 0.0
        %1944 = vmatpush.msra.mxu0 0.0
        %1945 = vmatpush.msra.mxu0 0.0
        %1946 = vmatpush.msra.mxu0 0.0
        %1947 = vmatpush.msra.mxu0 0.0
        %1948 = vmatpush.msra.mxu0 0.0
        %1949 = vmatpush.msra.mxu0 0.0
        %1950 = vmatpush.msra.mxu0 0.0
        %1951 = vmatpush.msra.mxu0 0.0
        %1952 = vmatpush.msra.mxu0 0.0
        %1953 = vmatpush.msra.mxu0 0.0
        %1954 = vmatpush.msra.mxu0 0.0
        %1955 = vmatpush.msra.mxu0 0.0
        %1956 = vmatpush.msra.mxu0 0.0
        %1957 = vmatpush.msra.mxu0 %v1923
        %1958 = vmatmul.f32.gmra.mxu0 %v1931
        %v1959 = vpop.f32.mrf.mxu0
        %v1960 = vadd.f32 0.0, %v1959
        %1961 = vmatmul.f32.gmra.mxu0 %v1934
        %v1962 = vpop.f32.mrf.mxu0
        %v1963 = vadd.f32 0.0, %v1962
        %1964 = vmatmul.f32.gmra.mxu0 %v1937
        %v1965 = vpop.f32.mrf.mxu0
        %v1966 = vadd.f32 0.0, %v1965
        %1967 = vmatmul.f32.gmra.mxu0 %v1940
        %v1968 = vpop.f32.mrf.mxu0
        %v1969 = vadd.f32 0.0, %v1968
        %1970 = vdwg.mxu0
        %1971 = vmatpush.msra.mxu0 0.0
        %1972 = vmatpush.msra.mxu0 0.0
        %1973 = vmatpush.msra.mxu0 0.0
        %1974 = vmatpush.msra.mxu0 0.0
        %1975 = vmatpush.msra.mxu0 0.0
        %1976 = vmatpush.msra.mxu0 0.0
        %1977 = vmatpush.msra.mxu0 0.0
        %1978 = vmatpush.msra.mxu0 0.0
        %1979 = vmatpush.msra.mxu0 0.0
        %1980 = vmatpush.msra.mxu0 0.0
        %1981 = vmatpush.msra.mxu0 0.0
        %1982 = vmatpush.msra.mxu0 0.0
        %1983 = vmatpush.msra.mxu0 0.0
        %1984 = vmatpush.msra.mxu0 0.0
        %1985 = vmatpush.msra.mxu0 0.0
        %1986 = vmatpush.msra.mxu0 %v1924
        %1987 = vmatmul.f32.gmra.mxu0 %v1931
        %v1988 = vpop.f32.mrf.mxu0
        %v1989 = vadd.f32 0.0, %v1988
        %1990 = vmatmul.f32.gmra.mxu0 %v1934
        %v1991 = vpop.f32.mrf.mxu0
        %v1992 = vadd.f32 0.0, %v1991
        %1993 = vmatmul.f32.gmra.mxu0 %v1937
        %v1994 = vpop.f32.mrf.mxu0
        %v1995 = vadd.f32 0.0, %v1994
        %1996 = vmatmul.f32.gmra.mxu0 %v1940
        %v1997 = vpop.f32.mrf.mxu0
        %v1998 = vadd.f32 0.0, %v1997
        %1999 = vdwg.mxu0
        %v2000 = vadd.f32 %v1910, %v1960
        %v2001 = vadd.f32 %v1911, %v1989
        %v2002 = vadd.f32 %v1912, %v1963
        %v2003 = vadd.f32 %v1913, %v1992
        %v2004 = vadd.f32 %v1914, %v1966
        %v2005 = vadd.f32 %v1915, %v1995
        %v2006 = vadd.f32 %v1916, %v1969
        %v2007 = vadd.f32 %v1917, %v1998
        %2008 = vrot.lane.b32.xlu0 %v407, 115
        %v2009 = vpop.permute.xlu0 %2008
        %2010 = vrot.lane.b32.xlu0 %v408, 115
        %v2011 = vpop.permute.xlu0 %2010
        %vm2012 = vcmp.lt.s32.totalorder %v414, 115
        %v2013 = vsel %vm2012, %v2009, %v2011
        %v2014 = vsel %vm2012, %v2011, %v2009
        %s2015 = scalar_lea.vmem %s3, 576
        %v2016 = vld [vmem:[%s2015] sm:$0xff]
        %v2017 = vld [vmem:[%s2015 + $0x8] sm:$0xff]
        %v2018 = vld [vmem:[%s2015 + $0x10] sm:$0xff]
        %v2019 = vld [vmem:[%s2015 + $0x18] sm:$0xff]
        %v2021 = vsel %vm434, %v2016, 0
        %v2024 = vsel %vm434, %v2017, 0
        %v2027 = vsel %vm434, %v2018, 0
        %v2030 = vsel %vm434, %v2019, 0
        %2032 = vmatpush.msra.mxu0 0.0
        %2033 = vmatpush.msra.mxu0 0.0
        %2034 = vmatpush.msra.mxu0 0.0
        %2035 = vmatpush.msra.mxu0 0.0
        %2036 = vmatpush.msra.mxu0 0.0
        %2037 = vmatpush.msra.mxu0 0.0
        %2038 = vmatpush.msra.mxu0 0.0
        %2039 = vmatpush.msra.mxu0 0.0
        %2040 = vmatpush.msra.mxu0 0.0
        %2041 = vmatpush.msra.mxu0 0.0
        %2042 = vmatpush.msra.mxu0 0.0
        %2043 = vmatpush.msra.mxu0 0.0
        %2044 = vmatpush.msra.mxu0 0.0
        %2045 = vmatpush.msra.mxu0 0.0
        %2046 = vmatpush.msra.mxu0 0.0
        %2047 = vmatpush.msra.mxu0 %v2013
        %2048 = vmatmul.f32.gmra.mxu0 %v2021
        %v2049 = vpop.f32.mrf.mxu0
        %v2050 = vadd.f32 0.0, %v2049
        %2051 = vmatmul.f32.gmra.mxu0 %v2024
        %v2052 = vpop.f32.mrf.mxu0
        %v2053 = vadd.f32 0.0, %v2052
        %2054 = vmatmul.f32.gmra.mxu0 %v2027
        %v2055 = vpop.f32.mrf.mxu0
        %v2056 = vadd.f32 0.0, %v2055
        %2057 = vmatmul.f32.gmra.mxu0 %v2030
        %v2058 = vpop.f32.mrf.mxu0
        %v2059 = vadd.f32 0.0, %v2058
        %2060 = vdwg.mxu0
        %2061 = vmatpush.msra.mxu0 0.0
        %2062 = vmatpush.msra.mxu0 0.0
        %2063 = vmatpush.msra.mxu0 0.0
        %2064 = vmatpush.msra.mxu0 0.0
        %2065 = vmatpush.msra.mxu0 0.0
        %2066 = vmatpush.msra.mxu0 0.0
        %2067 = vmatpush.msra.mxu0 0.0
        %2068 = vmatpush.msra.mxu0 0.0
        %2069 = vmatpush.msra.mxu0 0.0
        %2070 = vmatpush.msra.mxu0 0.0
        %2071 = vmatpush.msra.mxu0 0.0
        %2072 = vmatpush.msra.mxu0 0.0
        %2073 = vmatpush.msra.mxu0 0.0
        %2074 = vmatpush.msra.mxu0 0.0
        %2075 = vmatpush.msra.mxu0 0.0
        %2076 = vmatpush.msra.mxu0 %v2014
        %2077 = vmatmul.f32.gmra.mxu0 %v2021
        %v2078 = vpop.f32.mrf.mxu0
        %v2079 = vadd.f32 0.0, %v2078
        %2080 = vmatmul.f32.gmra.mxu0 %v2024
        %v2081 = vpop.f32.mrf.mxu0
        %v2082 = vadd.f32 0.0, %v2081
        %2083 = vmatmul.f32.gmra.mxu0 %v2027
        %v2084 = vpop.f32.mrf.mxu0
        %v2085 = vadd.f32 0.0, %v2084
        %2086 = vmatmul.f32.gmra.mxu0 %v2030
        %v2087 = vpop.f32.mrf.mxu0
        %v2088 = vadd.f32 0.0, %v2087
        %2089 = vdwg.mxu0
        %v2090 = vadd.f32 %v2000, %v2050
        %v2091 = vadd.f32 %v2001, %v2079
        %v2092 = vadd.f32 %v2002, %v2053
        %v2093 = vadd.f32 %v2003, %v2082
        %v2094 = vadd.f32 %v2004, %v2056
        %v2095 = vadd.f32 %v2005, %v2085
        %v2096 = vadd.f32 %v2006, %v2059
        %v2097 = vadd.f32 %v2007, %v2088
        %2098 = vrot.lane.b32.xlu0 %v407, 114
        %v2099 = vpop.permute.xlu0 %2098
        %2100 = vrot.lane.b32.xlu0 %v408, 114
        %v2101 = vpop.permute.xlu0 %2100
        %vm2102 = vcmp.lt.s32.totalorder %v414, 114
        %v2103 = vsel %vm2102, %v2099, %v2101
        %v2104 = vsel %vm2102, %v2101, %v2099
        %s2105 = scalar_lea.vmem %s3, 608
        %v2106 = vld [vmem:[%s2105] sm:$0xff]
        %v2107 = vld [vmem:[%s2105 + $0x8] sm:$0xff]
        %v2108 = vld [vmem:[%s2105 + $0x10] sm:$0xff]
        %v2109 = vld [vmem:[%s2105 + $0x18] sm:$0xff]
        %v2111 = vsel %vm434, %v2106, 0
        %v2114 = vsel %vm434, %v2107, 0
        %v2117 = vsel %vm434, %v2108, 0
        %v2120 = vsel %vm434, %v2109, 0
        %2122 = vmatpush.msra.mxu0 0.0
        %2123 = vmatpush.msra.mxu0 0.0
        %2124 = vmatpush.msra.mxu0 0.0
        %2125 = vmatpush.msra.mxu0 0.0
        %2126 = vmatpush.msra.mxu0 0.0
        %2127 = vmatpush.msra.mxu0 0.0
        %2128 = vmatpush.msra.mxu0 0.0
        %2129 = vmatpush.msra.mxu0 0.0
        %2130 = vmatpush.msra.mxu0 0.0
        %2131 = vmatpush.msra.mxu0 0.0
        %2132 = vmatpush.msra.mxu0 0.0
        %2133 = vmatpush.msra.mxu0 0.0
        %2134 = vmatpush.msra.mxu0 0.0
        %2135 = vmatpush.msra.mxu0 0.0
        %2136 = vmatpush.msra.mxu0 0.0
        %2137 = vmatpush.msra.mxu0 %v2103
        %2138 = vmatmul.f32.gmra.mxu0 %v2111
        %v2139 = vpop.f32.mrf.mxu0
        %v2140 = vadd.f32 0.0, %v2139
        %2141 = vmatmul.f32.gmra.mxu0 %v2114
        %v2142 = vpop.f32.mrf.mxu0
        %v2143 = vadd.f32 0.0, %v2142
        %2144 = vmatmul.f32.gmra.mxu0 %v2117
        %v2145 = vpop.f32.mrf.mxu0
        %v2146 = vadd.f32 0.0, %v2145
        %2147 = vmatmul.f32.gmra.mxu0 %v2120
        %v2148 = vpop.f32.mrf.mxu0
        %v2149 = vadd.f32 0.0, %v2148
        %2150 = vdwg.mxu0
        %2151 = vmatpush.msra.mxu0 0.0
        %2152 = vmatpush.msra.mxu0 0.0
        %2153 = vmatpush.msra.mxu0 0.0
        %2154 = vmatpush.msra.mxu0 0.0
        %2155 = vmatpush.msra.mxu0 0.0
        %2156 = vmatpush.msra.mxu0 0.0
        %2157 = vmatpush.msra.mxu0 0.0
        %2158 = vmatpush.msra.mxu0 0.0
        %2159 = vmatpush.msra.mxu0 0.0
        %2160 = vmatpush.msra.mxu0 0.0
        %2161 = vmatpush.msra.mxu0 0.0
        %2162 = vmatpush.msra.mxu0 0.0
        %2163 = vmatpush.msra.mxu0 0.0
        %2164 = vmatpush.msra.mxu0 0.0
        %2165 = vmatpush.msra.mxu0 0.0
        %2166 = vmatpush.msra.mxu0 %v2104
        %2167 = vmatmul.f32.gmra.mxu0 %v2111
        %v2168 = vpop.f32.mrf.mxu0
        %v2169 = vadd.f32 0.0, %v2168
        %2170 = vmatmul.f32.gmra.mxu0 %v2114
        %v2171 = vpop.f32.mrf.mxu0
        %v2172 = vadd.f32 0.0, %v2171
        %2173 = vmatmul.f32.gmra.mxu0 %v2117
        %v2174 = vpop.f32.mrf.mxu0
        %v2175 = vadd.f32 0.0, %v2174
        %2176 = vmatmul.f32.gmra.mxu0 %v2120
        %v2177 = vpop.f32.mrf.mxu0
        %v2178 = vadd.f32 0.0, %v2177
        %2179 = vdwg.mxu0
        %v2180 = vadd.f32 %v2090, %v2140
        %v2181 = vadd.f32 %v2091, %v2169
        %v2182 = vadd.f32 %v2092, %v2143
        %v2183 = vadd.f32 %v2093, %v2172
        %v2184 = vadd.f32 %v2094, %v2146
        %v2185 = vadd.f32 %v2095, %v2175
        %v2186 = vadd.f32 %v2096, %v2149
        %v2187 = vadd.f32 %v2097, %v2178
        %2188 = vrot.lane.b32.xlu0 %v407, 106
        %v2189 = vpop.permute.xlu0 %2188
        %2190 = vrot.lane.b32.xlu0 %v408, 106
        %v2191 = vpop.permute.xlu0 %2190
        %vm2192 = vcmp.lt.s32.totalorder %v414, 106
        %v2193 = vsel %vm2192, %v2189, %v2191
        %v2194 = vsel %vm2192, %v2191, %v2189
        %s2195 = scalar_lea.vmem %s3, 640
        %v2196 = vld [vmem:[%s2195] sm:$0xff]
        %v2197 = vld [vmem:[%s2195 + $0x8] sm:$0xff]
        %v2198 = vld [vmem:[%s2195 + $0x10] sm:$0xff]
        %v2199 = vld [vmem:[%s2195 + $0x18] sm:$0xff]
        %v2201 = vsel %vm434, %v2196, 0
        %v2204 = vsel %vm434, %v2197, 0
        %v2207 = vsel %vm434, %v2198, 0
        %v2210 = vsel %vm434, %v2199, 0
        %2212 = vmatpush.msra.mxu0 0.0
        %2213 = vmatpush.msra.mxu0 0.0
        %2214 = vmatpush.msra.mxu0 0.0
        %2215 = vmatpush.msra.mxu0 0.0
        %2216 = vmatpush.msra.mxu0 0.0
        %2217 = vmatpush.msra.mxu0 0.0
        %2218 = vmatpush.msra.mxu0 0.0
        %2219 = vmatpush.msra.mxu0 0.0
        %2220 = vmatpush.msra.mxu0 0.0
        %2221 = vmatpush.msra.mxu0 0.0
        %2222 = vmatpush.msra.mxu0 0.0
        %2223 = vmatpush.msra.mxu0 0.0
        %2224 = vmatpush.msra.mxu0 0.0
        %2225 = vmatpush.msra.mxu0 0.0
        %2226 = vmatpush.msra.mxu0 0.0
        %2227 = vmatpush.msra.mxu0 %v2193
        %2228 = vmatmul.f32.gmra.mxu0 %v2201
        %v2229 = vpop.f32.mrf.mxu0
        %v2230 = vadd.f32 0.0, %v2229
        %2231 = vmatmul.f32.gmra.mxu0 %v2204
        %v2232 = vpop.f32.mrf.mxu0
        %v2233 = vadd.f32 0.0, %v2232
        %2234 = vmatmul.f32.gmra.mxu0 %v2207
        %v2235 = vpop.f32.mrf.mxu0
        %v2236 = vadd.f32 0.0, %v2235
        %2237 = vmatmul.f32.gmra.mxu0 %v2210
        %v2238 = vpop.f32.mrf.mxu0
        %v2239 = vadd.f32 0.0, %v2238
        %2240 = vdwg.mxu0
        %2241 = vmatpush.msra.mxu0 0.0
        %2242 = vmatpush.msra.mxu0 0.0
        %2243 = vmatpush.msra.mxu0 0.0
        %2244 = vmatpush.msra.mxu0 0.0
        %2245 = vmatpush.msra.mxu0 0.0
        %2246 = vmatpush.msra.mxu0 0.0
        %2247 = vmatpush.msra.mxu0 0.0
        %2248 = vmatpush.msra.mxu0 0.0
        %2249 = vmatpush.msra.mxu0 0.0
        %2250 = vmatpush.msra.mxu0 0.0
        %2251 = vmatpush.msra.mxu0 0.0
        %2252 = vmatpush.msra.mxu0 0.0
        %2253 = vmatpush.msra.mxu0 0.0
        %2254 = vmatpush.msra.mxu0 0.0
        %2255 = vmatpush.msra.mxu0 0.0
        %2256 = vmatpush.msra.mxu0 %v2194
        %2257 = vmatmul.f32.gmra.mxu0 %v2201
        %v2258 = vpop.f32.mrf.mxu0
        %v2259 = vadd.f32 0.0, %v2258
        %2260 = vmatmul.f32.gmra.mxu0 %v2204
        %v2261 = vpop.f32.mrf.mxu0
        %v2262 = vadd.f32 0.0, %v2261
        %2263 = vmatmul.f32.gmra.mxu0 %v2207
        %v2264 = vpop.f32.mrf.mxu0
        %v2265 = vadd.f32 0.0, %v2264
        %2266 = vmatmul.f32.gmra.mxu0 %v2210
        %v2267 = vpop.f32.mrf.mxu0
        %v2268 = vadd.f32 0.0, %v2267
        %2269 = vdwg.mxu0
        %v2270 = vadd.f32 %v2180, %v2230
        %v2271 = vadd.f32 %v2181, %v2259
        %v2272 = vadd.f32 %v2182, %v2233
        %v2273 = vadd.f32 %v2183, %v2262
        %v2274 = vadd.f32 %v2184, %v2236
        %v2275 = vadd.f32 %v2185, %v2265
        %v2276 = vadd.f32 %v2186, %v2239
        %v2277 = vadd.f32 %v2187, %v2268
        %2278 = vrot.lane.b32.xlu0 %v407, 105
        %v2279 = vpop.permute.xlu0 %2278
        %2280 = vrot.lane.b32.xlu0 %v408, 105
        %v2281 = vpop.permute.xlu0 %2280
        %vm2282 = vcmp.lt.s32.totalorder %v414, 105
        %v2283 = vsel %vm2282, %v2279, %v2281
        %v2284 = vsel %vm2282, %v2281, %v2279
        %s2285 = scalar_lea.vmem %s3, 672
        %v2286 = vld [vmem:[%s2285] sm:$0xff]
        %v2287 = vld [vmem:[%s2285 + $0x8] sm:$0xff]
        %v2288 = vld [vmem:[%s2285 + $0x10] sm:$0xff]
        %v2289 = vld [vmem:[%s2285 + $0x18] sm:$0xff]
        %v2291 = vsel %vm434, %v2286, 0
        %v2294 = vsel %vm434, %v2287, 0
        %v2297 = vsel %vm434, %v2288, 0
        %v2300 = vsel %vm434, %v2289, 0
        %2302 = vmatpush.msra.mxu0 0.0
        %2303 = vmatpush.msra.mxu0 0.0
        %2304 = vmatpush.msra.mxu0 0.0
        %2305 = vmatpush.msra.mxu0 0.0
        %2306 = vmatpush.msra.mxu0 0.0
        %2307 = vmatpush.msra.mxu0 0.0
        %2308 = vmatpush.msra.mxu0 0.0
        %2309 = vmatpush.msra.mxu0 0.0
        %2310 = vmatpush.msra.mxu0 0.0
        %2311 = vmatpush.msra.mxu0 0.0
        %2312 = vmatpush.msra.mxu0 0.0
        %2313 = vmatpush.msra.mxu0 0.0
        %2314 = vmatpush.msra.mxu0 0.0
        %2315 = vmatpush.msra.mxu0 0.0
        %2316 = vmatpush.msra.mxu0 0.0
        %2317 = vmatpush.msra.mxu0 %v2283
        %2318 = vmatmul.f32.gmra.mxu0 %v2291
        %v2319 = vpop.f32.mrf.mxu0
        %v2320 = vadd.f32 0.0, %v2319
        %2321 = vmatmul.f32.gmra.mxu0 %v2294
        %v2322 = vpop.f32.mrf.mxu0
        %v2323 = vadd.f32 0.0, %v2322
        %2324 = vmatmul.f32.gmra.mxu0 %v2297
        %v2325 = vpop.f32.mrf.mxu0
        %v2326 = vadd.f32 0.0, %v2325
        %2327 = vmatmul.f32.gmra.mxu0 %v2300
        %v2328 = vpop.f32.mrf.mxu0
        %v2329 = vadd.f32 0.0, %v2328
        %2330 = vdwg.mxu0
        %2331 = vmatpush.msra.mxu0 0.0
        %2332 = vmatpush.msra.mxu0 0.0
        %2333 = vmatpush.msra.mxu0 0.0
        %2334 = vmatpush.msra.mxu0 0.0
        %2335 = vmatpush.msra.mxu0 0.0
        %2336 = vmatpush.msra.mxu0 0.0
        %2337 = vmatpush.msra.mxu0 0.0
        %2338 = vmatpush.msra.mxu0 0.0
        %2339 = vmatpush.msra.mxu0 0.0
        %2340 = vmatpush.msra.mxu0 0.0
        %2341 = vmatpush.msra.mxu0 0.0
        %2342 = vmatpush.msra.mxu0 0.0
        %2343 = vmatpush.msra.mxu0 0.0
        %2344 = vmatpush.msra.mxu0 0.0
        %2345 = vmatpush.msra.mxu0 0.0
        %2346 = vmatpush.msra.mxu0 %v2284
        %2347 = vmatmul.f32.gmra.mxu0 %v2291
        %v2348 = vpop.f32.mrf.mxu0
        %v2349 = vadd.f32 0.0, %v2348
        %2350 = vmatmul.f32.gmra.mxu0 %v2294
        %v2351 = vpop.f32.mrf.mxu0
        %v2352 = vadd.f32 0.0, %v2351
        %2353 = vmatmul.f32.gmra.mxu0 %v2297
        %v2354 = vpop.f32.mrf.mxu0
        %v2355 = vadd.f32 0.0, %v2354
        %2356 = vmatmul.f32.gmra.mxu0 %v2300
        %v2357 = vpop.f32.mrf.mxu0
        %v2358 = vadd.f32 0.0, %v2357
        %2359 = vdwg.mxu0
        %v2360 = vadd.f32 %v2270, %v2320
        %v2361 = vadd.f32 %v2271, %v2349
        %v2362 = vadd.f32 %v2272, %v2323
        %v2363 = vadd.f32 %v2273, %v2352
        %v2364 = vadd.f32 %v2274, %v2326
        %v2365 = vadd.f32 %v2275, %v2355
        %v2366 = vadd.f32 %v2276, %v2329
        %v2367 = vadd.f32 %v2277, %v2358
        %2368 = vrot.lane.b32.xlu0 %v407, 104
        %v2369 = vpop.permute.xlu0 %2368
        %2370 = vrot.lane.b32.xlu0 %v408, 104
        %v2371 = vpop.permute.xlu0 %2370
        %vm2372 = vcmp.lt.s32.totalorder %v414, 104
        %v2373 = vsel %vm2372, %v2369, %v2371
        %v2374 = vsel %vm2372, %v2371, %v2369
        %s2375 = scalar_lea.vmem %s3, 704
        %v2376 = vld [vmem:[%s2375] sm:$0xff]
        %v2377 = vld [vmem:[%s2375 + $0x8] sm:$0xff]
        %v2378 = vld [vmem:[%s2375 + $0x10] sm:$0xff]
        %v2379 = vld [vmem:[%s2375 + $0x18] sm:$0xff]
        %v2381 = vsel %vm434, %v2376, 0
        %v2384 = vsel %vm434, %v2377, 0
        %v2387 = vsel %vm434, %v2378, 0
        %v2390 = vsel %vm434, %v2379, 0
        %2392 = vmatpush.msra.mxu0 0.0
        %2393 = vmatpush.msra.mxu0 0.0
        %2394 = vmatpush.msra.mxu0 0.0
        %2395 = vmatpush.msra.mxu0 0.0
        %2396 = vmatpush.msra.mxu0 0.0
        %2397 = vmatpush.msra.mxu0 0.0
        %2398 = vmatpush.msra.mxu0 0.0
        %2399 = vmatpush.msra.mxu0 0.0
        %2400 = vmatpush.msra.mxu0 0.0
        %2401 = vmatpush.msra.mxu0 0.0
        %2402 = vmatpush.msra.mxu0 0.0
        %2403 = vmatpush.msra.mxu0 0.0
        %2404 = vmatpush.msra.mxu0 0.0
        %2405 = vmatpush.msra.mxu0 0.0
        %2406 = vmatpush.msra.mxu0 0.0
        %2407 = vmatpush.msra.mxu0 %v2373
        %2408 = vmatmul.f32.gmra.mxu0 %v2381
        %v2409 = vpop.f32.mrf.mxu0
        %v2410 = vadd.f32 0.0, %v2409
        %2411 = vmatmul.f32.gmra.mxu0 %v2384
        %v2412 = vpop.f32.mrf.mxu0
        %v2413 = vadd.f32 0.0, %v2412
        %2414 = vmatmul.f32.gmra.mxu0 %v2387
        %v2415 = vpop.f32.mrf.mxu0
        %v2416 = vadd.f32 0.0, %v2415
        %2417 = vmatmul.f32.gmra.mxu0 %v2390
        %v2418 = vpop.f32.mrf.mxu0
        %v2419 = vadd.f32 0.0, %v2418
        %2420 = vdwg.mxu0
        %2421 = vmatpush.msra.mxu0 0.0
        %2422 = vmatpush.msra.mxu0 0.0
        %2423 = vmatpush.msra.mxu0 0.0
        %2424 = vmatpush.msra.mxu0 0.0
        %2425 = vmatpush.msra.mxu0 0.0
        %2426 = vmatpush.msra.mxu0 0.0
        %2427 = vmatpush.msra.mxu0 0.0
        %2428 = vmatpush.msra.mxu0 0.0
        %2429 = vmatpush.msra.mxu0 0.0
        %2430 = vmatpush.msra.mxu0 0.0
        %2431 = vmatpush.msra.mxu0 0.0
        %2432 = vmatpush.msra.mxu0 0.0
        %2433 = vmatpush.msra.mxu0 0.0
        %2434 = vmatpush.msra.mxu0 0.0
        %2435 = vmatpush.msra.mxu0 0.0
        %2436 = vmatpush.msra.mxu0 %v2374
        %2437 = vmatmul.f32.gmra.mxu0 %v2381
        %v2438 = vpop.f32.mrf.mxu0
        %v2439 = vadd.f32 0.0, %v2438
        %2440 = vmatmul.f32.gmra.mxu0 %v2384
        %v2441 = vpop.f32.mrf.mxu0
        %v2442 = vadd.f32 0.0, %v2441
        %2443 = vmatmul.f32.gmra.mxu0 %v2387
        %v2444 = vpop.f32.mrf.mxu0
        %v2445 = vadd.f32 0.0, %v2444
        %2446 = vmatmul.f32.gmra.mxu0 %v2390
        %v2447 = vpop.f32.mrf.mxu0
        %v2448 = vadd.f32 0.0, %v2447
        %2449 = vdwg.mxu0
        %v2450 = vadd.f32 %v2360, %v2410
        %v2451 = vadd.f32 %v2361, %v2439
        %v2452 = vadd.f32 %v2362, %v2413
        %v2453 = vadd.f32 %v2363, %v2442
        %v2454 = vadd.f32 %v2364, %v2416
        %v2455 = vadd.f32 %v2365, %v2445
        %v2456 = vadd.f32 %v2366, %v2419
        %v2457 = vadd.f32 %v2367, %v2448
        %2458 = vrot.lane.b32.xlu0 %v407, 103
        %v2459 = vpop.permute.xlu0 %2458
        %2460 = vrot.lane.b32.xlu0 %v408, 103
        %v2461 = vpop.permute.xlu0 %2460
        %vm2462 = vcmp.lt.s32.totalorder %v414, 103
        %v2463 = vsel %vm2462, %v2459, %v2461
        %v2464 = vsel %vm2462, %v2461, %v2459
        %s2465 = scalar_lea.vmem %s3, 736
        %v2466 = vld [vmem:[%s2465] sm:$0xff]
        %v2467 = vld [vmem:[%s2465 + $0x8] sm:$0xff]
        %v2468 = vld [vmem:[%s2465 + $0x10] sm:$0xff]
        %v2469 = vld [vmem:[%s2465 + $0x18] sm:$0xff]
        %v2471 = vsel %vm434, %v2466, 0
        %v2474 = vsel %vm434, %v2467, 0
        %v2477 = vsel %vm434, %v2468, 0
        %v2480 = vsel %vm434, %v2469, 0
        %2482 = vmatpush.msra.mxu0 0.0
        %2483 = vmatpush.msra.mxu0 0.0
        %2484 = vmatpush.msra.mxu0 0.0
        %2485 = vmatpush.msra.mxu0 0.0
        %2486 = vmatpush.msra.mxu0 0.0
        %2487 = vmatpush.msra.mxu0 0.0
        %2488 = vmatpush.msra.mxu0 0.0
        %2489 = vmatpush.msra.mxu0 0.0
        %2490 = vmatpush.msra.mxu0 0.0
        %2491 = vmatpush.msra.mxu0 0.0
        %2492 = vmatpush.msra.mxu0 0.0
        %2493 = vmatpush.msra.mxu0 0.0
        %2494 = vmatpush.msra.mxu0 0.0
        %2495 = vmatpush.msra.mxu0 0.0
        %2496 = vmatpush.msra.mxu0 0.0
        %2497 = vmatpush.msra.mxu0 %v2463
        %2498 = vmatmul.f32.gmra.mxu0 %v2471
        %v2499 = vpop.f32.mrf.mxu0
        %v2500 = vadd.f32 0.0, %v2499
        %2501 = vmatmul.f32.gmra.mxu0 %v2474
        %v2502 = vpop.f32.mrf.mxu0
        %v2503 = vadd.f32 0.0, %v2502
        %2504 = vmatmul.f32.gmra.mxu0 %v2477
        %v2505 = vpop.f32.mrf.mxu0
        %v2506 = vadd.f32 0.0, %v2505
        %2507 = vmatmul.f32.gmra.mxu0 %v2480
        %v2508 = vpop.f32.mrf.mxu0
        %v2509 = vadd.f32 0.0, %v2508
        %2510 = vdwg.mxu0
        %2511 = vmatpush.msra.mxu0 0.0
        %2512 = vmatpush.msra.mxu0 0.0
        %2513 = vmatpush.msra.mxu0 0.0
        %2514 = vmatpush.msra.mxu0 0.0
        %2515 = vmatpush.msra.mxu0 0.0
        %2516 = vmatpush.msra.mxu0 0.0
        %2517 = vmatpush.msra.mxu0 0.0
        %2518 = vmatpush.msra.mxu0 0.0
        %2519 = vmatpush.msra.mxu0 0.0
        %2520 = vmatpush.msra.mxu0 0.0
        %2521 = vmatpush.msra.mxu0 0.0
        %2522 = vmatpush.msra.mxu0 0.0
        %2523 = vmatpush.msra.mxu0 0.0
        %2524 = vmatpush.msra.mxu0 0.0
        %2525 = vmatpush.msra.mxu0 0.0
        %2526 = vmatpush.msra.mxu0 %v2464
        %2527 = vmatmul.f32.gmra.mxu0 %v2471
        %v2528 = vpop.f32.mrf.mxu0
        %v2529 = vadd.f32 0.0, %v2528
        %2530 = vmatmul.f32.gmra.mxu0 %v2474
        %v2531 = vpop.f32.mrf.mxu0
        %v2532 = vadd.f32 0.0, %v2531
        %2533 = vmatmul.f32.gmra.mxu0 %v2477
        %v2534 = vpop.f32.mrf.mxu0
        %v2535 = vadd.f32 0.0, %v2534
        %2536 = vmatmul.f32.gmra.mxu0 %v2480
        %v2537 = vpop.f32.mrf.mxu0
        %v2538 = vadd.f32 0.0, %v2537
        %2539 = vdwg.mxu0
        %v2540 = vadd.f32 %v2450, %v2500
        %v2541 = vadd.f32 %v2451, %v2529
        %v2542 = vadd.f32 %v2452, %v2503
        %v2543 = vadd.f32 %v2453, %v2532
        %v2544 = vadd.f32 %v2454, %v2506
        %v2545 = vadd.f32 %v2455, %v2535
        %v2546 = vadd.f32 %v2456, %v2509
        %v2547 = vadd.f32 %v2457, %v2538
        %2548 = vrot.lane.b32.xlu0 %v407, 102
        %v2549 = vpop.permute.xlu0 %2548
        %2550 = vrot.lane.b32.xlu0 %v408, 102
        %v2551 = vpop.permute.xlu0 %2550
        %vm2552 = vcmp.lt.s32.totalorder %v414, 102
        %v2553 = vsel %vm2552, %v2549, %v2551
        %v2554 = vsel %vm2552, %v2551, %v2549
        %s2555 = scalar_lea.vmem %s3, 768
        %v2556 = vld [vmem:[%s2555] sm:$0xff]
        %v2557 = vld [vmem:[%s2555 + $0x8] sm:$0xff]
        %v2558 = vld [vmem:[%s2555 + $0x10] sm:$0xff]
        %v2559 = vld [vmem:[%s2555 + $0x18] sm:$0xff]
        %v2561 = vsel %vm434, %v2556, 0
        %v2564 = vsel %vm434, %v2557, 0
        %v2567 = vsel %vm434, %v2558, 0
        %v2570 = vsel %vm434, %v2559, 0
        %2572 = vmatpush.msra.mxu0 0.0
        %2573 = vmatpush.msra.mxu0 0.0
        %2574 = vmatpush.msra.mxu0 0.0
        %2575 = vmatpush.msra.mxu0 0.0
        %2576 = vmatpush.msra.mxu0 0.0
        %2577 = vmatpush.msra.mxu0 0.0
        %2578 = vmatpush.msra.mxu0 0.0
        %2579 = vmatpush.msra.mxu0 0.0
        %2580 = vmatpush.msra.mxu0 0.0
        %2581 = vmatpush.msra.mxu0 0.0
        %2582 = vmatpush.msra.mxu0 0.0
        %2583 = vmatpush.msra.mxu0 0.0
        %2584 = vmatpush.msra.mxu0 0.0
        %2585 = vmatpush.msra.mxu0 0.0
        %2586 = vmatpush.msra.mxu0 0.0
        %2587 = vmatpush.msra.mxu0 %v2553
        %2588 = vmatmul.f32.gmra.mxu0 %v2561
        %v2589 = vpop.f32.mrf.mxu0
        %v2590 = vadd.f32 0.0, %v2589
        %2591 = vmatmul.f32.gmra.mxu0 %v2564
        %v2592 = vpop.f32.mrf.mxu0
        %v2593 = vadd.f32 0.0, %v2592
        %2594 = vmatmul.f32.gmra.mxu0 %v2567
        %v2595 = vpop.f32.mrf.mxu0
        %v2596 = vadd.f32 0.0, %v2595
        %2597 = vmatmul.f32.gmra.mxu0 %v2570
        %v2598 = vpop.f32.mrf.mxu0
        %v2599 = vadd.f32 0.0, %v2598
        %2600 = vdwg.mxu0
        %2601 = vmatpush.msra.mxu0 0.0
        %2602 = vmatpush.msra.mxu0 0.0
        %2603 = vmatpush.msra.mxu0 0.0
        %2604 = vmatpush.msra.mxu0 0.0
        %2605 = vmatpush.msra.mxu0 0.0
        %2606 = vmatpush.msra.mxu0 0.0
        %2607 = vmatpush.msra.mxu0 0.0
        %2608 = vmatpush.msra.mxu0 0.0
        %2609 = vmatpush.msra.mxu0 0.0
        %2610 = vmatpush.msra.mxu0 0.0
        %2611 = vmatpush.msra.mxu0 0.0
        %2612 = vmatpush.msra.mxu0 0.0
        %2613 = vmatpush.msra.mxu0 0.0
        %2614 = vmatpush.msra.mxu0 0.0
        %2615 = vmatpush.msra.mxu0 0.0
        %2616 = vmatpush.msra.mxu0 %v2554
        %2617 = vmatmul.f32.gmra.mxu0 %v2561
        %v2618 = vpop.f32.mrf.mxu0
        %v2619 = vadd.f32 0.0, %v2618
        %2620 = vmatmul.f32.gmra.mxu0 %v2564
        %v2621 = vpop.f32.mrf.mxu0
        %v2622 = vadd.f32 0.0, %v2621
        %2623 = vmatmul.f32.gmra.mxu0 %v2567
        %v2624 = vpop.f32.mrf.mxu0
        %v2625 = vadd.f32 0.0, %v2624
        %2626 = vmatmul.f32.gmra.mxu0 %v2570
        %v2627 = vpop.f32.mrf.mxu0
        %v2628 = vadd.f32 0.0, %v2627
        %2629 = vdwg.mxu0
        %v2630 = vadd.f32 %v2540, %v2590
        %v2631 = vadd.f32 %v2541, %v2619
        %v2632 = vadd.f32 %v2542, %v2593
        %v2633 = vadd.f32 %v2543, %v2622
        %v2634 = vadd.f32 %v2544, %v2596
        %v2635 = vadd.f32 %v2545, %v2625
        %v2636 = vadd.f32 %v2546, %v2599
        %v2637 = vadd.f32 %v2547, %v2628
        %v2638 = vld [vmem:[%s4] sm:$0xff]
        %v2639 = vld [vmem:[%s4 + $0x8] sm:$0xff]
        %v2640 = vld [vmem:[%s4 + $0x10] sm:$0xff]
        %v2641 = vld [vmem:[%s4 + $0x18] sm:$0xff]
        %2643 = vset.pattern.permute.xlu0 0
        %2644 = vperm.xlu0 %2643, %v2638
        %v2645 = vpop.permute.xlu0 %2644
        %2648 = vset.pattern.permute.xlu0 0
        %2649 = vperm.xlu0 %2648, %v2639
        %v2650 = vpop.permute.xlu0 %2649
        %2653 = vset.pattern.permute.xlu0 0
        %2654 = vperm.xlu0 %2653, %v2640
        %v2655 = vpop.permute.xlu0 %2654
        %2658 = vset.pattern.permute.xlu0 0
        %2659 = vperm.xlu0 %2658, %v2641
        %v2660 = vpop.permute.xlu0 %2659
        %v2662 = vadd.f32 %v2630, %v2645
        %v2663 = vadd.f32 %v2631, %v2645
        %v2664 = vadd.f32 %v2632, %v2650
        %v2665 = vadd.f32 %v2633, %v2650
        %v2666 = vadd.f32 %v2634, %v2655
        %v2667 = vadd.f32 %v2635, %v2655
        %v2668 = vadd.f32 %v2636, %v2660
        %v2669 = vadd.f32 %v2637, %v2660
        %v2670 = vmax.f32 %v2662, 0.0
        %v2671 = vmax.f32 %v2663, 0.0
        %v2672 = vmax.f32 %v2664, 0.0
        %v2673 = vmax.f32 %v2665, 0.0
        %v2674 = vmax.f32 %v2666, 0.0
        %v2675 = vmax.f32 %v2667, 0.0
        %v2676 = vmax.f32 %v2668, 0.0
        %v2677 = vmax.f32 %v2669, 0.0
        %v2679 = vperm.slane %v402, 0
        %v2680 = vperm.slane %v402, 1
        %v2683 = vmul.f32 %v2670, %v2679
        %v2684 = vmul.f32 %v2671, %v2680
        %v2685 = vmul.f32 %v2672, %v2679
        %v2686 = vmul.f32 %v2673, %v2680
        %v2687 = vmul.f32 %v2674, %v2679
        %v2688 = vmul.f32 %v2675, %v2680
        %v2689 = vmul.f32 %v2676, %v2679
        %v2690 = vmul.f32 %v2677, %v2680
        %2691 = vrot.lane.b32.xlu0 %v2683, 26
        %v2692 = vpop.permute.xlu0 %2691
        %2693 = vrot.lane.b32.xlu0 %v2685, 26
        %v2694 = vpop.permute.xlu0 %2693
        %2695 = vrot.lane.b32.xlu0 %v2687, 26
        %v2696 = vpop.permute.xlu0 %2695
        %2697 = vrot.lane.b32.xlu0 %v2689, 26
        %v2698 = vpop.permute.xlu0 %2697
        %2699 = vrot.lane.b32.xlu0 %v2684, 26
        %v2700 = vpop.permute.xlu0 %2699
        %2701 = vrot.lane.b32.xlu0 %v2686, 26
        %v2702 = vpop.permute.xlu0 %2701
        %2703 = vrot.lane.b32.xlu0 %v2688, 26
        %v2704 = vpop.permute.xlu0 %2703
        %2705 = vrot.lane.b32.xlu0 %v2690, 26
        %v2706 = vpop.permute.xlu0 %2705
        %v2707 = vsel %vm415, %v2692, %v2700
        %v2708 = vsel %vm415, %v2694, %v2702
        %v2709 = vsel %vm415, %v2696, %v2704
        %v2710 = vsel %vm415, %v2698, %v2706
        %v2711 = vsel %vm415, %v2700, %v2692
        %v2712 = vsel %vm415, %v2702, %v2694
        %v2713 = vsel %vm415, %v2704, %v2696
        %v2714 = vsel %vm415, %v2706, %v2698
        %v2715 = vld [vmem:[%s5] sm:$0xff]
        %v2716 = vld [vmem:[%s5 + $0x8] sm:$0xff]
        %v2717 = vld [vmem:[%s5 + $0x10] sm:$0xff]
        %v2718 = vld [vmem:[%s5 + $0x18] sm:$0xff]
        %2719 = vrot.lane.b32.xlu0 %v2683, 25
        %v2720 = vpop.permute.xlu0 %2719
        %2721 = vrot.lane.b32.xlu0 %v2685, 25
        %v2722 = vpop.permute.xlu0 %2721
        %2723 = vrot.lane.b32.xlu0 %v2687, 25
        %v2724 = vpop.permute.xlu0 %2723
        %2725 = vrot.lane.b32.xlu0 %v2689, 25
        %v2726 = vpop.permute.xlu0 %2725
        %2727 = vrot.lane.b32.xlu0 %v2684, 25
        %v2728 = vpop.permute.xlu0 %2727
        %2729 = vrot.lane.b32.xlu0 %v2686, 25
        %v2730 = vpop.permute.xlu0 %2729
        %2731 = vrot.lane.b32.xlu0 %v2688, 25
        %v2732 = vpop.permute.xlu0 %2731
        %2733 = vrot.lane.b32.xlu0 %v2690, 25
        %v2734 = vpop.permute.xlu0 %2733
        %v2735 = vsel %vm426, %v2720, %v2728
        %v2736 = vsel %vm426, %v2722, %v2730
        %v2737 = vsel %vm426, %v2724, %v2732
        %v2738 = vsel %vm426, %v2726, %v2734
        %v2739 = vsel %vm426, %v2728, %v2720
        %v2740 = vsel %vm426, %v2730, %v2722
        %v2741 = vsel %vm426, %v2732, %v2724
        %v2742 = vsel %vm426, %v2734, %v2726
        %s2743 = scalar_lea.vmem %s5, 32
        %v2744 = vld [vmem:[%s2743] sm:$0xff]
        %v2745 = vld [vmem:[%s2743 + $0x8] sm:$0xff]
        %v2746 = vld [vmem:[%s2743 + $0x10] sm:$0xff]
        %v2747 = vld [vmem:[%s2743 + $0x18] sm:$0xff]
        %vm2748 = vcmask 261120
        %v2750 = vsel %vm2748, %v2744, 0
        %v2753 = vsel %vm2748, %v2745, 0
        %v2756 = vsel %vm2748, %v2746, 0
        %v2759 = vsel %vm2748, %v2747, 0
        %2761 = vmatpush.msra.mxu0 0.0
        %2762 = vmatpush.msra.mxu0 0.0
        %2763 = vmatpush.msra.mxu0 0.0
        %2764 = vmatpush.msra.mxu0 0.0
        %2765 = vmatpush.msra.mxu0 0.0
        %2766 = vmatpush.msra.mxu0 0.0
        %2767 = vmatpush.msra.mxu0 0.0
        %2768 = vmatpush.msra.mxu0 0.0
        %2769 = vmatpush.msra.mxu0 0.0
        %2770 = vmatpush.msra.mxu0 0.0
        %2771 = vmatpush.msra.mxu0 0.0
        %2772 = vmatpush.msra.mxu0 0.0
        %2773 = vmatpush.msra.mxu0 %v2742
        %2774 = vmatpush.msra.mxu0 %v2741
        %2775 = vmatpush.msra.mxu0 %v2740
        %2776 = vmatpush.msra.mxu0 %v2739
        %2777 = vmatmul.f32.gmra.mxu0 %v2750
        %v2778 = vpop.f32.mrf.mxu0
        %v2779 = vadd.f32 0.0, %v2778
        %2780 = vmatmul.f32.gmra.mxu0 %v2753
        %v2781 = vpop.f32.mrf.mxu0
        %v2782 = vadd.f32 0.0, %v2781
        %2783 = vmatmul.f32.gmra.mxu0 %v2756
        %v2784 = vpop.f32.mrf.mxu0
        %v2785 = vadd.f32 0.0, %v2784
        %2786 = vmatmul.f32.gmra.mxu0 %v2759
        %v2787 = vpop.f32.mrf.mxu0
        %v2788 = vadd.f32 0.0, %v2787
        %2789 = vdwg.mxu0
        %2790 = vmatpush.msra.mxu0 0.0
        %2791 = vmatpush.msra.mxu0 0.0
        %2792 = vmatpush.msra.mxu0 0.0
        %2793 = vmatpush.msra.mxu0 0.0
        %2794 = vmatpush.msra.mxu0 0.0
        %2795 = vmatpush.msra.mxu0 0.0
        %2796 = vmatpush.msra.mxu0 0.0
        %2797 = vmatpush.msra.mxu0 0.0
        %2798 = vmatpush.msra.mxu0 0.0
        %2799 = vmatpush.msra.mxu0 0.0
        %2800 = vmatpush.msra.mxu0 0.0
        %2801 = vmatpush.msra.mxu0 0.0
        %2802 = vmatpush.msra.mxu0 %v2738
        %2803 = vmatpush.msra.mxu0 %v2737
        %2804 = vmatpush.msra.mxu0 %v2736
        %2805 = vmatpush.msra.mxu0 %v2735
        %2806 = vmatmul.f32.gmra.mxu0 %v2750
        %v2807 = vpop.f32.mrf.mxu0
        %v2808 = vadd.f32 0.0, %v2807
        %2809 = vmatmul.f32.gmra.mxu0 %v2753
        %v2810 = vpop.f32.mrf.mxu0
        %v2811 = vadd.f32 0.0, %v2810
        %2812 = vmatmul.f32.gmra.mxu0 %v2756
        %v2813 = vpop.f32.mrf.mxu0
        %v2814 = vadd.f32 0.0, %v2813
        %2815 = vmatmul.f32.gmra.mxu0 %v2759
        %v2816 = vpop.f32.mrf.mxu0
        %v2817 = vadd.f32 0.0, %v2816
        %2818 = vdwg.mxu0
        %v2820 = vsel %vm2748, %v2715, 0
        %v2823 = vsel %vm2748, %v2716, 0
        %v2826 = vsel %vm2748, %v2717, 0
        %v2829 = vsel %vm2748, %v2718, 0
        %2831 = vmatpush.msra.mxu0 0.0
        %2832 = vmatpush.msra.mxu0 0.0
        %2833 = vmatpush.msra.mxu0 0.0
        %2834 = vmatpush.msra.mxu0 0.0
        %2835 = vmatpush.msra.mxu0 0.0
        %2836 = vmatpush.msra.mxu0 0.0
        %2837 = vmatpush.msra.mxu0 0.0
        %2838 = vmatpush.msra.mxu0 0.0
        %2839 = vmatpush.msra.mxu0 0.0
        %2840 = vmatpush.msra.mxu0 0.0
        %2841 = vmatpush.msra.mxu0 0.0
        %2842 = vmatpush.msra.mxu0 0.0
        %2843 = vmatpush.msra.mxu0 %v2714
        %2844 = vmatpush.msra.mxu0 %v2713
        %2845 = vmatpush.msra.mxu0 %v2712
        %2846 = vmatpush.msra.mxu0 %v2711
        %2847 = vmatmul.f32.gmra.mxu0 %v2820
        %v2848 = vpop.f32.mrf.mxu0
        %v2849 = vadd.f32 %v2779, %v2848
        %2850 = vmatmul.f32.gmra.mxu0 %v2823
        %v2851 = vpop.f32.mrf.mxu0
        %v2852 = vadd.f32 %v2782, %v2851
        %2853 = vmatmul.f32.gmra.mxu0 %v2826
        %v2854 = vpop.f32.mrf.mxu0
        %v2855 = vadd.f32 %v2785, %v2854
        %2856 = vmatmul.f32.gmra.mxu0 %v2829
        %v2857 = vpop.f32.mrf.mxu0
        %v2858 = vadd.f32 %v2788, %v2857
        %2859 = vdwg.mxu0
        %2860 = vmatpush.msra.mxu0 0.0
        %2861 = vmatpush.msra.mxu0 0.0
        %2862 = vmatpush.msra.mxu0 0.0
        %2863 = vmatpush.msra.mxu0 0.0
        %2864 = vmatpush.msra.mxu0 0.0
        %2865 = vmatpush.msra.mxu0 0.0
        %2866 = vmatpush.msra.mxu0 0.0
        %2867 = vmatpush.msra.mxu0 0.0
        %2868 = vmatpush.msra.mxu0 0.0
        %2869 = vmatpush.msra.mxu0 0.0
        %2870 = vmatpush.msra.mxu0 0.0
        %2871 = vmatpush.msra.mxu0 0.0
        %2872 = vmatpush.msra.mxu0 %v2710
        %2873 = vmatpush.msra.mxu0 %v2709
        %2874 = vmatpush.msra.mxu0 %v2708
        %2875 = vmatpush.msra.mxu0 %v2707
        %2876 = vmatmul.f32.gmra.mxu0 %v2820
        %v2877 = vpop.f32.mrf.mxu0
        %v2878 = vadd.f32 %v2808, %v2877
        %2879 = vmatmul.f32.gmra.mxu0 %v2823
        %v2880 = vpop.f32.mrf.mxu0
        %v2881 = vadd.f32 %v2811, %v2880
        %2882 = vmatmul.f32.gmra.mxu0 %v2826
        %v2883 = vpop.f32.mrf.mxu0
        %v2884 = vadd.f32 %v2814, %v2883
        %2885 = vmatmul.f32.gmra.mxu0 %v2829
        %v2886 = vpop.f32.mrf.mxu0
        %v2887 = vadd.f32 %v2817, %v2886
        %2888 = vdwg.mxu0
        %2889 = vrot.lane.b32.xlu0 %v2683, 24
        %v2890 = vpop.permute.xlu0 %2889
        %2891 = vrot.lane.b32.xlu0 %v2685, 24
        %v2892 = vpop.permute.xlu0 %2891
        %2893 = vrot.lane.b32.xlu0 %v2687, 24
        %v2894 = vpop.permute.xlu0 %2893
        %2895 = vrot.lane.b32.xlu0 %v2689, 24
        %v2896 = vpop.permute.xlu0 %2895
        %2897 = vrot.lane.b32.xlu0 %v2684, 24
        %v2898 = vpop.permute.xlu0 %2897
        %2899 = vrot.lane.b32.xlu0 %v2686, 24
        %v2900 = vpop.permute.xlu0 %2899
        %2901 = vrot.lane.b32.xlu0 %v2688, 24
        %v2902 = vpop.permute.xlu0 %2901
        %2903 = vrot.lane.b32.xlu0 %v2690, 24
        %v2904 = vpop.permute.xlu0 %2903
        %v2905 = vsel %vm579, %v2890, %v2898
        %v2906 = vsel %vm579, %v2892, %v2900
        %v2907 = vsel %vm579, %v2894, %v2902
        %v2908 = vsel %vm579, %v2896, %v2904
        %v2909 = vsel %vm579, %v2898, %v2890
        %v2910 = vsel %vm579, %v2900, %v2892
        %v2911 = vsel %vm579, %v2902, %v2894
        %v2912 = vsel %vm579, %v2904, %v2896
        %s2913 = scalar_lea.vmem %s5, 64
        %v2914 = vld [vmem:[%s2913] sm:$0xff]
        %v2915 = vld [vmem:[%s2913 + $0x8] sm:$0xff]
        %v2916 = vld [vmem:[%s2913 + $0x10] sm:$0xff]
        %v2917 = vld [vmem:[%s2913 + $0x18] sm:$0xff]
        %v2919 = vsel %vm2748, %v2914, 0
        %v2922 = vsel %vm2748, %v2915, 0
        %v2925 = vsel %vm2748, %v2916, 0
        %v2928 = vsel %vm2748, %v2917, 0
        %2930 = vmatpush.msra.mxu0 0.0
        %2931 = vmatpush.msra.mxu0 0.0
        %2932 = vmatpush.msra.mxu0 0.0
        %2933 = vmatpush.msra.mxu0 0.0
        %2934 = vmatpush.msra.mxu0 0.0
        %2935 = vmatpush.msra.mxu0 0.0
        %2936 = vmatpush.msra.mxu0 0.0
        %2937 = vmatpush.msra.mxu0 0.0
        %2938 = vmatpush.msra.mxu0 0.0
        %2939 = vmatpush.msra.mxu0 0.0
        %2940 = vmatpush.msra.mxu0 0.0
        %2941 = vmatpush.msra.mxu0 0.0
        %2942 = vmatpush.msra.mxu0 %v2912
        %2943 = vmatpush.msra.mxu0 %v2911
        %2944 = vmatpush.msra.mxu0 %v2910
        %2945 = vmatpush.msra.mxu0 %v2909
        %2946 = vmatmul.f32.gmra.mxu0 %v2919
        %v2947 = vpop.f32.mrf.mxu0
        %v2948 = vadd.f32 0.0, %v2947
        %2949 = vmatmul.f32.gmra.mxu0 %v2922
        %v2950 = vpop.f32.mrf.mxu0
        %v2951 = vadd.f32 0.0, %v2950
        %2952 = vmatmul.f32.gmra.mxu0 %v2925
        %v2953 = vpop.f32.mrf.mxu0
        %v2954 = vadd.f32 0.0, %v2953
        %2955 = vmatmul.f32.gmra.mxu0 %v2928
        %v2956 = vpop.f32.mrf.mxu0
        %v2957 = vadd.f32 0.0, %v2956
        %2958 = vdwg.mxu0
        %2959 = vmatpush.msra.mxu0 0.0
        %2960 = vmatpush.msra.mxu0 0.0
        %2961 = vmatpush.msra.mxu0 0.0
        %2962 = vmatpush.msra.mxu0 0.0
        %2963 = vmatpush.msra.mxu0 0.0
        %2964 = vmatpush.msra.mxu0 0.0
        %2965 = vmatpush.msra.mxu0 0.0
        %2966 = vmatpush.msra.mxu0 0.0
        %2967 = vmatpush.msra.mxu0 0.0
        %2968 = vmatpush.msra.mxu0 0.0
        %2969 = vmatpush.msra.mxu0 0.0
        %2970 = vmatpush.msra.mxu0 0.0
        %2971 = vmatpush.msra.mxu0 %v2908
        %2972 = vmatpush.msra.mxu0 %v2907
        %2973 = vmatpush.msra.mxu0 %v2906
        %2974 = vmatpush.msra.mxu0 %v2905
        %2975 = vmatmul.f32.gmra.mxu0 %v2919
        %v2976 = vpop.f32.mrf.mxu0
        %v2977 = vadd.f32 0.0, %v2976
        %2978 = vmatmul.f32.gmra.mxu0 %v2922
        %v2979 = vpop.f32.mrf.mxu0
        %v2980 = vadd.f32 0.0, %v2979
        %2981 = vmatmul.f32.gmra.mxu0 %v2925
        %v2982 = vpop.f32.mrf.mxu0
        %v2983 = vadd.f32 0.0, %v2982
        %2984 = vmatmul.f32.gmra.mxu0 %v2928
        %v2985 = vpop.f32.mrf.mxu0
        %v2986 = vadd.f32 0.0, %v2985
        %2987 = vdwg.mxu0
        %v2988 = vadd.f32 %v2849, %v2948
        %v2989 = vadd.f32 %v2878, %v2977
        %v2990 = vadd.f32 %v2852, %v2951
        %v2991 = vadd.f32 %v2881, %v2980
        %v2992 = vadd.f32 %v2855, %v2954
        %v2993 = vadd.f32 %v2884, %v2983
        %v2994 = vadd.f32 %v2858, %v2957
        %v2995 = vadd.f32 %v2887, %v2986
        %2996 = vrot.lane.b32.xlu0 %v2683, 23
        %v2997 = vpop.permute.xlu0 %2996
        %2998 = vrot.lane.b32.xlu0 %v2685, 23
        %v2999 = vpop.permute.xlu0 %2998
        %3000 = vrot.lane.b32.xlu0 %v2687, 23
        %v3001 = vpop.permute.xlu0 %3000
        %3002 = vrot.lane.b32.xlu0 %v2689, 23
        %v3003 = vpop.permute.xlu0 %3002
        %3004 = vrot.lane.b32.xlu0 %v2684, 23
        %v3005 = vpop.permute.xlu0 %3004
        %3006 = vrot.lane.b32.xlu0 %v2686, 23
        %v3007 = vpop.permute.xlu0 %3006
        %3008 = vrot.lane.b32.xlu0 %v2688, 23
        %v3009 = vpop.permute.xlu0 %3008
        %3010 = vrot.lane.b32.xlu0 %v2690, 23
        %v3011 = vpop.permute.xlu0 %3010
        %v3012 = vsel %vm669, %v2997, %v3005
        %v3013 = vsel %vm669, %v2999, %v3007
        %v3014 = vsel %vm669, %v3001, %v3009
        %v3015 = vsel %vm669, %v3003, %v3011
        %v3016 = vsel %vm669, %v3005, %v2997
        %v3017 = vsel %vm669, %v3007, %v2999
        %v3018 = vsel %vm669, %v3009, %v3001
        %v3019 = vsel %vm669, %v3011, %v3003
        %s3020 = scalar_lea.vmem %s5, 96
        %v3021 = vld [vmem:[%s3020] sm:$0xff]
        %v3022 = vld [vmem:[%s3020 + $0x8] sm:$0xff]
        %v3023 = vld [vmem:[%s3020 + $0x10] sm:$0xff]
        %v3024 = vld [vmem:[%s3020 + $0x18] sm:$0xff]
        %v3026 = vsel %vm2748, %v3021, 0
        %v3029 = vsel %vm2748, %v3022, 0
        %v3032 = vsel %vm2748, %v3023, 0
        %v3035 = vsel %vm2748, %v3024, 0
        %3037 = vmatpush.msra.mxu0 0.0
        %3038 = vmatpush.msra.mxu0 0.0
        %3039 = vmatpush.msra.mxu0 0.0
        %3040 = vmatpush.msra.mxu0 0.0
        %3041 = vmatpush.msra.mxu0 0.0
        %3042 = vmatpush.msra.mxu0 0.0
        %3043 = vmatpush.msra.mxu0 0.0
        %3044 = vmatpush.msra.mxu0 0.0
        %3045 = vmatpush.msra.mxu0 0.0
        %3046 = vmatpush.msra.mxu0 0.0
        %3047 = vmatpush.msra.mxu0 0.0
        %3048 = vmatpush.msra.mxu0 0.0
        %3049 = vmatpush.msra.mxu0 %v3019
        %3050 = vmatpush.msra.mxu0 %v3018
        %3051 = vmatpush.msra.mxu0 %v3017
        %3052 = vmatpush.msra.mxu0 %v3016
        %3053 = vmatmul.f32.gmra.mxu0 %v3026
        %v3054 = vpop.f32.mrf.mxu0
        %v3055 = vadd.f32 0.0, %v3054
        %3056 = vmatmul.f32.gmra.mxu0 %v3029
        %v3057 = vpop.f32.mrf.mxu0
        %v3058 = vadd.f32 0.0, %v3057
        %3059 = vmatmul.f32.gmra.mxu0 %v3032
        %v3060 = vpop.f32.mrf.mxu0
        %v3061 = vadd.f32 0.0, %v3060
        %3062 = vmatmul.f32.gmra.mxu0 %v3035
        %v3063 = vpop.f32.mrf.mxu0
        %v3064 = vadd.f32 0.0, %v3063
        %3065 = vdwg.mxu0
        %3066 = vmatpush.msra.mxu0 0.0
        %3067 = vmatpush.msra.mxu0 0.0
        %3068 = vmatpush.msra.mxu0 0.0
        %3069 = vmatpush.msra.mxu0 0.0
        %3070 = vmatpush.msra.mxu0 0.0
        %3071 = vmatpush.msra.mxu0 0.0
        %3072 = vmatpush.msra.mxu0 0.0
        %3073 = vmatpush.msra.mxu0 0.0
        %3074 = vmatpush.msra.mxu0 0.0
        %3075 = vmatpush.msra.mxu0 0.0
        %3076 = vmatpush.msra.mxu0 0.0
        %3077 = vmatpush.msra.mxu0 0.0
        %3078 = vmatpush.msra.mxu0 %v3015
        %3079 = vmatpush.msra.mxu0 %v3014
        %3080 = vmatpush.msra.mxu0 %v3013
        %3081 = vmatpush.msra.mxu0 %v3012
        %3082 = vmatmul.f32.gmra.mxu0 %v3026
        %v3083 = vpop.f32.mrf.mxu0
        %v3084 = vadd.f32 0.0, %v3083
        %3085 = vmatmul.f32.gmra.mxu0 %v3029
        %v3086 = vpop.f32.mrf.mxu0
        %v3087 = vadd.f32 0.0, %v3086
        %3088 = vmatmul.f32.gmra.mxu0 %v3032
        %v3089 = vpop.f32.mrf.mxu0
        %v3090 = vadd.f32 0.0, %v3089
        %3091 = vmatmul.f32.gmra.mxu0 %v3035
        %v3092 = vpop.f32.mrf.mxu0
        %v3093 = vadd.f32 0.0, %v3092
        %3094 = vdwg.mxu0
        %v3095 = vadd.f32 %v2988, %v3055
        %v3096 = vadd.f32 %v2989, %v3084
        %v3097 = vadd.f32 %v2990, %v3058
        %v3098 = vadd.f32 %v2991, %v3087
        %v3099 = vadd.f32 %v2992, %v3061
        %v3100 = vadd.f32 %v2993, %v3090
        %v3101 = vadd.f32 %v2994, %v3064
        %v3102 = vadd.f32 %v2995, %v3093
        %3103 = vrot.lane.b32.xlu0 %v2683, 22
        %v3104 = vpop.permute.xlu0 %3103
        %3105 = vrot.lane.b32.xlu0 %v2685, 22
        %v3106 = vpop.permute.xlu0 %3105
        %3107 = vrot.lane.b32.xlu0 %v2687, 22
        %v3108 = vpop.permute.xlu0 %3107
        %3109 = vrot.lane.b32.xlu0 %v2689, 22
        %v3110 = vpop.permute.xlu0 %3109
        %3111 = vrot.lane.b32.xlu0 %v2684, 22
        %v3112 = vpop.permute.xlu0 %3111
        %3113 = vrot.lane.b32.xlu0 %v2686, 22
        %v3114 = vpop.permute.xlu0 %3113
        %3115 = vrot.lane.b32.xlu0 %v2688, 22
        %v3116 = vpop.permute.xlu0 %3115
        %3117 = vrot.lane.b32.xlu0 %v2690, 22
        %v3118 = vpop.permute.xlu0 %3117
        %v3119 = vsel %vm759, %v3104, %v3112
        %v3120 = vsel %vm759, %v3106, %v3114
        %v3121 = vsel %vm759, %v3108, %v3116
        %v3122 = vsel %vm759, %v3110, %v3118
        %v3123 = vsel %vm759, %v3112, %v3104
        %v3124 = vsel %vm759, %v3114, %v3106
        %v3125 = vsel %vm759, %v3116, %v3108
        %v3126 = vsel %vm759, %v3118, %v3110
        %s3127 = scalar_lea.vmem %s5, 128
        %v3128 = vld [vmem:[%s3127] sm:$0xff]
        %v3129 = vld [vmem:[%s3127 + $0x8] sm:$0xff]
        %v3130 = vld [vmem:[%s3127 + $0x10] sm:$0xff]
        %v3131 = vld [vmem:[%s3127 + $0x18] sm:$0xff]
        %v3133 = vsel %vm2748, %v3128, 0
        %v3136 = vsel %vm2748, %v3129, 0
        %v3139 = vsel %vm2748, %v3130, 0
        %v3142 = vsel %vm2748, %v3131, 0
        %3144 = vmatpush.msra.mxu0 0.0
        %3145 = vmatpush.msra.mxu0 0.0
        %3146 = vmatpush.msra.mxu0 0.0
        %3147 = vmatpush.msra.mxu0 0.0
        %3148 = vmatpush.msra.mxu0 0.0
        %3149 = vmatpush.msra.mxu0 0.0
        %3150 = vmatpush.msra.mxu0 0.0
        %3151 = vmatpush.msra.mxu0 0.0
        %3152 = vmatpush.msra.mxu0 0.0
        %3153 = vmatpush.msra.mxu0 0.0
        %3154 = vmatpush.msra.mxu0 0.0
        %3155 = vmatpush.msra.mxu0 0.0
        %3156 = vmatpush.msra.mxu0 %v3126
        %3157 = vmatpush.msra.mxu0 %v3125
        %3158 = vmatpush.msra.mxu0 %v3124
        %3159 = vmatpush.msra.mxu0 %v3123
        %3160 = vmatmul.f32.gmra.mxu0 %v3133
        %v3161 = vpop.f32.mrf.mxu0
        %v3162 = vadd.f32 0.0, %v3161
        %3163 = vmatmul.f32.gmra.mxu0 %v3136
        %v3164 = vpop.f32.mrf.mxu0
        %v3165 = vadd.f32 0.0, %v3164
        %3166 = vmatmul.f32.gmra.mxu0 %v3139
        %v3167 = vpop.f32.mrf.mxu0
        %v3168 = vadd.f32 0.0, %v3167
        %3169 = vmatmul.f32.gmra.mxu0 %v3142
        %v3170 = vpop.f32.mrf.mxu0
        %v3171 = vadd.f32 0.0, %v3170
        %3172 = vdwg.mxu0
        %3173 = vmatpush.msra.mxu0 0.0
        %3174 = vmatpush.msra.mxu0 0.0
        %3175 = vmatpush.msra.mxu0 0.0
        %3176 = vmatpush.msra.mxu0 0.0
        %3177 = vmatpush.msra.mxu0 0.0
        %3178 = vmatpush.msra.mxu0 0.0
        %3179 = vmatpush.msra.mxu0 0.0
        %3180 = vmatpush.msra.mxu0 0.0
        %3181 = vmatpush.msra.mxu0 0.0
        %3182 = vmatpush.msra.mxu0 0.0
        %3183 = vmatpush.msra.mxu0 0.0
        %3184 = vmatpush.msra.mxu0 0.0
        %3185 = vmatpush.msra.mxu0 %v3122
        %3186 = vmatpush.msra.mxu0 %v3121
        %3187 = vmatpush.msra.mxu0 %v3120
        %3188 = vmatpush.msra.mxu0 %v3119
        %3189 = vmatmul.f32.gmra.mxu0 %v3133
        %v3190 = vpop.f32.mrf.mxu0
        %v3191 = vadd.f32 0.0, %v3190
        %3192 = vmatmul.f32.gmra.mxu0 %v3136
        %v3193 = vpop.f32.mrf.mxu0
        %v3194 = vadd.f32 0.0, %v3193
        %3195 = vmatmul.f32.gmra.mxu0 %v3139
        %v3196 = vpop.f32.mrf.mxu0
        %v3197 = vadd.f32 0.0, %v3196
        %3198 = vmatmul.f32.gmra.mxu0 %v3142
        %v3199 = vpop.f32.mrf.mxu0
        %v3200 = vadd.f32 0.0, %v3199
        %3201 = vdwg.mxu0
        %v3202 = vadd.f32 %v3095, %v3162
        %v3203 = vadd.f32 %v3096, %v3191
        %v3204 = vadd.f32 %v3097, %v3165
        %v3205 = vadd.f32 %v3098, %v3194
        %v3206 = vadd.f32 %v3099, %v3168
        %v3207 = vadd.f32 %v3100, %v3197
        %v3208 = vadd.f32 %v3101, %v3171
        %v3209 = vadd.f32 %v3102, %v3200
        %3210 = vrot.lane.b32.xlu0 %v2683, 14
        %v3211 = vpop.permute.xlu0 %3210
        %3212 = vrot.lane.b32.xlu0 %v2685, 14
        %v3213 = vpop.permute.xlu0 %3212
        %3214 = vrot.lane.b32.xlu0 %v2687, 14
        %v3215 = vpop.permute.xlu0 %3214
        %3216 = vrot.lane.b32.xlu0 %v2689, 14
        %v3217 = vpop.permute.xlu0 %3216
        %3218 = vrot.lane.b32.xlu0 %v2684, 14
        %v3219 = vpop.permute.xlu0 %3218
        %3220 = vrot.lane.b32.xlu0 %v2686, 14
        %v3221 = vpop.permute.xlu0 %3220
        %3222 = vrot.lane.b32.xlu0 %v2688, 14
        %v3223 = vpop.permute.xlu0 %3222
        %3224 = vrot.lane.b32.xlu0 %v2690, 14
        %v3225 = vpop.permute.xlu0 %3224
        %v3226 = vsel %vm849, %v3211, %v3219
        %v3227 = vsel %vm849, %v3213, %v3221
        %v3228 = vsel %vm849, %v3215, %v3223
        %v3229 = vsel %vm849, %v3217, %v3225
        %v3230 = vsel %vm849, %v3219, %v3211
        %v3231 = vsel %vm849, %v3221, %v3213
        %v3232 = vsel %vm849, %v3223, %v3215
        %v3233 = vsel %vm849, %v3225, %v3217
        %s3234 = scalar_lea.vmem %s5, 160
        %v3235 = vld [vmem:[%s3234] sm:$0xff]
        %v3236 = vld [vmem:[%s3234 + $0x8] sm:$0xff]
        %v3237 = vld [vmem:[%s3234 + $0x10] sm:$0xff]
        %v3238 = vld [vmem:[%s3234 + $0x18] sm:$0xff]
        %v3240 = vsel %vm2748, %v3235, 0
        %v3243 = vsel %vm2748, %v3236, 0
        %v3246 = vsel %vm2748, %v3237, 0
        %v3249 = vsel %vm2748, %v3238, 0
        %3251 = vmatpush.msra.mxu0 0.0
        %3252 = vmatpush.msra.mxu0 0.0
        %3253 = vmatpush.msra.mxu0 0.0
        %3254 = vmatpush.msra.mxu0 0.0
        %3255 = vmatpush.msra.mxu0 0.0
        %3256 = vmatpush.msra.mxu0 0.0
        %3257 = vmatpush.msra.mxu0 0.0
        %3258 = vmatpush.msra.mxu0 0.0
        %3259 = vmatpush.msra.mxu0 0.0
        %3260 = vmatpush.msra.mxu0 0.0
        %3261 = vmatpush.msra.mxu0 0.0
        %3262 = vmatpush.msra.mxu0 0.0
        %3263 = vmatpush.msra.mxu0 %v3233
        %3264 = vmatpush.msra.mxu0 %v3232
        %3265 = vmatpush.msra.mxu0 %v3231
        %3266 = vmatpush.msra.mxu0 %v3230
        %3267 = vmatmul.f32.gmra.mxu0 %v3240
        %v3268 = vpop.f32.mrf.mxu0
        %v3269 = vadd.f32 0.0, %v3268
        %3270 = vmatmul.f32.gmra.mxu0 %v3243
        %v3271 = vpop.f32.mrf.mxu0
        %v3272 = vadd.f32 0.0, %v3271
        %3273 = vmatmul.f32.gmra.mxu0 %v3246
        %v3274 = vpop.f32.mrf.mxu0
        %v3275 = vadd.f32 0.0, %v3274
        %3276 = vmatmul.f32.gmra.mxu0 %v3249
        %v3277 = vpop.f32.mrf.mxu0
        %v3278 = vadd.f32 0.0, %v3277
        %3279 = vdwg.mxu0
        %3280 = vmatpush.msra.mxu0 0.0
        %3281 = vmatpush.msra.mxu0 0.0
        %3282 = vmatpush.msra.mxu0 0.0
        %3283 = vmatpush.msra.mxu0 0.0
        %3284 = vmatpush.msra.mxu0 0.0
        %3285 = vmatpush.msra.mxu0 0.0
        %3286 = vmatpush.msra.mxu0 0.0
        %3287 = vmatpush.msra.mxu0 0.0
        %3288 = vmatpush.msra.mxu0 0.0
        %3289 = vmatpush.msra.mxu0 0.0
        %3290 = vmatpush.msra.mxu0 0.0
        %3291 = vmatpush.msra.mxu0 0.0
        %3292 = vmatpush.msra.mxu0 %v3229
        %3293 = vmatpush.msra.mxu0 %v3228
        %3294 = vmatpush.msra.mxu0 %v3227
        %3295 = vmatpush.msra.mxu0 %v3226
        %3296 = vmatmul.f32.gmra.mxu0 %v3240
        %v3297 = vpop.f32.mrf.mxu0
        %v3298 = vadd.f32 0.0, %v3297
        %3299 = vmatmul.f32.gmra.mxu0 %v3243
        %v3300 = vpop.f32.mrf.mxu0
        %v3301 = vadd.f32 0.0, %v3300
        %3302 = vmatmul.f32.gmra.mxu0 %v3246
        %v3303 = vpop.f32.mrf.mxu0
        %v3304 = vadd.f32 0.0, %v3303
        %3305 = vmatmul.f32.gmra.mxu0 %v3249
        %v3306 = vpop.f32.mrf.mxu0
        %v3307 = vadd.f32 0.0, %v3306
        %3308 = vdwg.mxu0
        %v3309 = vadd.f32 %v3202, %v3269
        %v3310 = vadd.f32 %v3203, %v3298
        %v3311 = vadd.f32 %v3204, %v3272
        %v3312 = vadd.f32 %v3205, %v3301
        %v3313 = vadd.f32 %v3206, %v3275
        %v3314 = vadd.f32 %v3207, %v3304
        %v3315 = vadd.f32 %v3208, %v3278
        %v3316 = vadd.f32 %v3209, %v3307
        %3317 = vrot.lane.b32.xlu0 %v2683, 13
        %v3318 = vpop.permute.xlu0 %3317
        %3319 = vrot.lane.b32.xlu0 %v2685, 13
        %v3320 = vpop.permute.xlu0 %3319
        %3321 = vrot.lane.b32.xlu0 %v2687, 13
        %v3322 = vpop.permute.xlu0 %3321
        %3323 = vrot.lane.b32.xlu0 %v2689, 13
        %v3324 = vpop.permute.xlu0 %3323
        %3325 = vrot.lane.b32.xlu0 %v2684, 13
        %v3326 = vpop.permute.xlu0 %3325
        %3327 = vrot.lane.b32.xlu0 %v2686, 13
        %v3328 = vpop.permute.xlu0 %3327
        %3329 = vrot.lane.b32.xlu0 %v2688, 13
        %v3330 = vpop.permute.xlu0 %3329
        %3331 = vrot.lane.b32.xlu0 %v2690, 13
        %v3332 = vpop.permute.xlu0 %3331
        %v3333 = vsel %vm939, %v3318, %v3326
        %v3334 = vsel %vm939, %v3320, %v3328
        %v3335 = vsel %vm939, %v3322, %v3330
        %v3336 = vsel %vm939, %v3324, %v3332
        %v3337 = vsel %vm939, %v3326, %v3318
        %v3338 = vsel %vm939, %v3328, %v3320
        %v3339 = vsel %vm939, %v3330, %v3322
        %v3340 = vsel %vm939, %v3332, %v3324
        %s3341 = scalar_lea.vmem %s5, 192
        %v3342 = vld [vmem:[%s3341] sm:$0xff]
        %v3343 = vld [vmem:[%s3341 + $0x8] sm:$0xff]
        %v3344 = vld [vmem:[%s3341 + $0x10] sm:$0xff]
        %v3345 = vld [vmem:[%s3341 + $0x18] sm:$0xff]
        %v3347 = vsel %vm2748, %v3342, 0
        %v3350 = vsel %vm2748, %v3343, 0
        %v3353 = vsel %vm2748, %v3344, 0
        %v3356 = vsel %vm2748, %v3345, 0
        %3358 = vmatpush.msra.mxu0 0.0
        %3359 = vmatpush.msra.mxu0 0.0
        %3360 = vmatpush.msra.mxu0 0.0
        %3361 = vmatpush.msra.mxu0 0.0
        %3362 = vmatpush.msra.mxu0 0.0
        %3363 = vmatpush.msra.mxu0 0.0
        %3364 = vmatpush.msra.mxu0 0.0
        %3365 = vmatpush.msra.mxu0 0.0
        %3366 = vmatpush.msra.mxu0 0.0
        %3367 = vmatpush.msra.mxu0 0.0
        %3368 = vmatpush.msra.mxu0 0.0
        %3369 = vmatpush.msra.mxu0 0.0
        %3370 = vmatpush.msra.mxu0 %v3340
        %3371 = vmatpush.msra.mxu0 %v3339
        %3372 = vmatpush.msra.mxu0 %v3338
        %3373 = vmatpush.msra.mxu0 %v3337
        %3374 = vmatmul.f32.gmra.mxu0 %v3347
        %v3375 = vpop.f32.mrf.mxu0
        %v3376 = vadd.f32 0.0, %v3375
        %3377 = vmatmul.f32.gmra.mxu0 %v3350
        %v3378 = vpop.f32.mrf.mxu0
        %v3379 = vadd.f32 0.0, %v3378
        %3380 = vmatmul.f32.gmra.mxu0 %v3353
        %v3381 = vpop.f32.mrf.mxu0
        %v3382 = vadd.f32 0.0, %v3381
        %3383 = vmatmul.f32.gmra.mxu0 %v3356
        %v3384 = vpop.f32.mrf.mxu0
        %v3385 = vadd.f32 0.0, %v3384
        %3386 = vdwg.mxu0
        %3387 = vmatpush.msra.mxu0 0.0
        %3388 = vmatpush.msra.mxu0 0.0
        %3389 = vmatpush.msra.mxu0 0.0
        %3390 = vmatpush.msra.mxu0 0.0
        %3391 = vmatpush.msra.mxu0 0.0
        %3392 = vmatpush.msra.mxu0 0.0
        %3393 = vmatpush.msra.mxu0 0.0
        %3394 = vmatpush.msra.mxu0 0.0
        %3395 = vmatpush.msra.mxu0 0.0
        %3396 = vmatpush.msra.mxu0 0.0
        %3397 = vmatpush.msra.mxu0 0.0
        %3398 = vmatpush.msra.mxu0 0.0
        %3399 = vmatpush.msra.mxu0 %v3336
        %3400 = vmatpush.msra.mxu0 %v3335
        %3401 = vmatpush.msra.mxu0 %v3334
        %3402 = vmatpush.msra.mxu0 %v3333
        %3403 = vmatmul.f32.gmra.mxu0 %v3347
        %v3404 = vpop.f32.mrf.mxu0
        %v3405 = vadd.f32 0.0, %v3404
        %3406 = vmatmul.f32.gmra.mxu0 %v3350
        %v3407 = vpop.f32.mrf.mxu0
        %v3408 = vadd.f32 0.0, %v3407
        %3409 = vmatmul.f32.gmra.mxu0 %v3353
        %v3410 = vpop.f32.mrf.mxu0
        %v3411 = vadd.f32 0.0, %v3410
        %3412 = vmatmul.f32.gmra.mxu0 %v3356
        %v3413 = vpop.f32.mrf.mxu0
        %v3414 = vadd.f32 0.0, %v3413
        %3415 = vdwg.mxu0
        %v3416 = vadd.f32 %v3309, %v3376
        %v3417 = vadd.f32 %v3310, %v3405
        %v3418 = vadd.f32 %v3311, %v3379
        %v3419 = vadd.f32 %v3312, %v3408
        %v3420 = vadd.f32 %v3313, %v3382
        %v3421 = vadd.f32 %v3314, %v3411
        %v3422 = vadd.f32 %v3315, %v3385
        %v3423 = vadd.f32 %v3316, %v3414
        %3424 = vrot.lane.b32.xlu0 %v2683, 12
        %v3425 = vpop.permute.xlu0 %3424
        %3426 = vrot.lane.b32.xlu0 %v2685, 12
        %v3427 = vpop.permute.xlu0 %3426
        %3428 = vrot.lane.b32.xlu0 %v2687, 12
        %v3429 = vpop.permute.xlu0 %3428
        %3430 = vrot.lane.b32.xlu0 %v2689, 12
        %v3431 = vpop.permute.xlu0 %3430
        %3432 = vrot.lane.b32.xlu0 %v2684, 12
        %v3433 = vpop.permute.xlu0 %3432
        %3434 = vrot.lane.b32.xlu0 %v2686, 12
        %v3435 = vpop.permute.xlu0 %3434
        %3436 = vrot.lane.b32.xlu0 %v2688, 12
        %v3437 = vpop.permute.xlu0 %3436
        %3438 = vrot.lane.b32.xlu0 %v2690, 12
        %v3439 = vpop.permute.xlu0 %3438
        %v3440 = vsel %vm1029, %v3425, %v3433
        %v3441 = vsel %vm1029, %v3427, %v3435
        %v3442 = vsel %vm1029, %v3429, %v3437
        %v3443 = vsel %vm1029, %v3431, %v3439
        %v3444 = vsel %vm1029, %v3433, %v3425
        %v3445 = vsel %vm1029, %v3435, %v3427
        %v3446 = vsel %vm1029, %v3437, %v3429
        %v3447 = vsel %vm1029, %v3439, %v3431
        %s3448 = scalar_lea.vmem %s5, 224
        %v3449 = vld [vmem:[%s3448] sm:$0xff]
        %v3450 = vld [vmem:[%s3448 + $0x8] sm:$0xff]
        %v3451 = vld [vmem:[%s3448 + $0x10] sm:$0xff]
        %v3452 = vld [vmem:[%s3448 + $0x18] sm:$0xff]
        %v3454 = vsel %vm2748, %v3449, 0
        %v3457 = vsel %vm2748, %v3450, 0
        %v3460 = vsel %vm2748, %v3451, 0
        %v3463 = vsel %vm2748, %v3452, 0
        %3465 = vmatpush.msra.mxu0 0.0
        %3466 = vmatpush.msra.mxu0 0.0
        %3467 = vmatpush.msra.mxu0 0.0
        %3468 = vmatpush.msra.mxu0 0.0
        %3469 = vmatpush.msra.mxu0 0.0
        %3470 = vmatpush.msra.mxu0 0.0
        %3471 = vmatpush.msra.mxu0 0.0
        %3472 = vmatpush.msra.mxu0 0.0
        %3473 = vmatpush.msra.mxu0 0.0
        %3474 = vmatpush.msra.mxu0 0.0
        %3475 = vmatpush.msra.mxu0 0.0
        %3476 = vmatpush.msra.mxu0 0.0
        %3477 = vmatpush.msra.mxu0 %v3447
        %3478 = vmatpush.msra.mxu0 %v3446
        %3479 = vmatpush.msra.mxu0 %v3445
        %3480 = vmatpush.msra.mxu0 %v3444
        %3481 = vmatmul.f32.gmra.mxu0 %v3454
        %v3482 = vpop.f32.mrf.mxu0
        %v3483 = vadd.f32 0.0, %v3482
        %3484 = vmatmul.f32.gmra.mxu0 %v3457
        %v3485 = vpop.f32.mrf.mxu0
        %v3486 = vadd.f32 0.0, %v3485
        %3487 = vmatmul.f32.gmra.mxu0 %v3460
        %v3488 = vpop.f32.mrf.mxu0
        %v3489 = vadd.f32 0.0, %v3488
        %3490 = vmatmul.f32.gmra.mxu0 %v3463
        %v3491 = vpop.f32.mrf.mxu0
        %v3492 = vadd.f32 0.0, %v3491
        %3493 = vdwg.mxu0
        %3494 = vmatpush.msra.mxu0 0.0
        %3495 = vmatpush.msra.mxu0 0.0
        %3496 = vmatpush.msra.mxu0 0.0
        %3497 = vmatpush.msra.mxu0 0.0
        %3498 = vmatpush.msra.mxu0 0.0
        %3499 = vmatpush.msra.mxu0 0.0
        %3500 = vmatpush.msra.mxu0 0.0
        %3501 = vmatpush.msra.mxu0 0.0
        %3502 = vmatpush.msra.mxu0 0.0
        %3503 = vmatpush.msra.mxu0 0.0
        %3504 = vmatpush.msra.mxu0 0.0
        %3505 = vmatpush.msra.mxu0 0.0
        %3506 = vmatpush.msra.mxu0 %v3443
        %3507 = vmatpush.msra.mxu0 %v3442
        %3508 = vmatpush.msra.mxu0 %v3441
        %3509 = vmatpush.msra.mxu0 %v3440
        %3510 = vmatmul.f32.gmra.mxu0 %v3454
        %v3511 = vpop.f32.mrf.mxu0
        %v3512 = vadd.f32 0.0, %v3511
        %3513 = vmatmul.f32.gmra.mxu0 %v3457
        %v3514 = vpop.f32.mrf.mxu0
        %v3515 = vadd.f32 0.0, %v3514
        %3516 = vmatmul.f32.gmra.mxu0 %v3460
        %v3517 = vpop.f32.mrf.mxu0
        %v3518 = vadd.f32 0.0, %v3517
        %3519 = vmatmul.f32.gmra.mxu0 %v3463
        %v3520 = vpop.f32.mrf.mxu0
        %v3521 = vadd.f32 0.0, %v3520
        %3522 = vdwg.mxu0
        %v3523 = vadd.f32 %v3416, %v3483
        %v3524 = vadd.f32 %v3417, %v3512
        %v3525 = vadd.f32 %v3418, %v3486
        %v3526 = vadd.f32 %v3419, %v3515
        %v3527 = vadd.f32 %v3420, %v3489
        %v3528 = vadd.f32 %v3421, %v3518
        %v3529 = vadd.f32 %v3422, %v3492
        %v3530 = vadd.f32 %v3423, %v3521
        %3531 = vrot.lane.b32.xlu0 %v2683, 11
        %v3532 = vpop.permute.xlu0 %3531
        %3533 = vrot.lane.b32.xlu0 %v2685, 11
        %v3534 = vpop.permute.xlu0 %3533
        %3535 = vrot.lane.b32.xlu0 %v2687, 11
        %v3536 = vpop.permute.xlu0 %3535
        %3537 = vrot.lane.b32.xlu0 %v2689, 11
        %v3538 = vpop.permute.xlu0 %3537
        %3539 = vrot.lane.b32.xlu0 %v2684, 11
        %v3540 = vpop.permute.xlu0 %3539
        %3541 = vrot.lane.b32.xlu0 %v2686, 11
        %v3542 = vpop.permute.xlu0 %3541
        %3543 = vrot.lane.b32.xlu0 %v2688, 11
        %v3544 = vpop.permute.xlu0 %3543
        %3545 = vrot.lane.b32.xlu0 %v2690, 11
        %v3546 = vpop.permute.xlu0 %3545
        %v3547 = vsel %vm1119, %v3532, %v3540
        %v3548 = vsel %vm1119, %v3534, %v3542
        %v3549 = vsel %vm1119, %v3536, %v3544
        %v3550 = vsel %vm1119, %v3538, %v3546
        %v3551 = vsel %vm1119, %v3540, %v3532
        %v3552 = vsel %vm1119, %v3542, %v3534
        %v3553 = vsel %vm1119, %v3544, %v3536
        %v3554 = vsel %vm1119, %v3546, %v3538
        %s3555 = scalar_lea.vmem %s5, 256
        %v3556 = vld [vmem:[%s3555] sm:$0xff]
        %v3557 = vld [vmem:[%s3555 + $0x8] sm:$0xff]
        %v3558 = vld [vmem:[%s3555 + $0x10] sm:$0xff]
        %v3559 = vld [vmem:[%s3555 + $0x18] sm:$0xff]
        %v3561 = vsel %vm2748, %v3556, 0
        %v3564 = vsel %vm2748, %v3557, 0
        %v3567 = vsel %vm2748, %v3558, 0
        %v3570 = vsel %vm2748, %v3559, 0
        %3572 = vmatpush.msra.mxu0 0.0
        %3573 = vmatpush.msra.mxu0 0.0
        %3574 = vmatpush.msra.mxu0 0.0
        %3575 = vmatpush.msra.mxu0 0.0
        %3576 = vmatpush.msra.mxu0 0.0
        %3577 = vmatpush.msra.mxu0 0.0
        %3578 = vmatpush.msra.mxu0 0.0
        %3579 = vmatpush.msra.mxu0 0.0
        %3580 = vmatpush.msra.mxu0 0.0
        %3581 = vmatpush.msra.mxu0 0.0
        %3582 = vmatpush.msra.mxu0 0.0
        %3583 = vmatpush.msra.mxu0 0.0
        %3584 = vmatpush.msra.mxu0 %v3554
        %3585 = vmatpush.msra.mxu0 %v3553
        %3586 = vmatpush.msra.mxu0 %v3552
        %3587 = vmatpush.msra.mxu0 %v3551
        %3588 = vmatmul.f32.gmra.mxu0 %v3561
        %v3589 = vpop.f32.mrf.mxu0
        %v3590 = vadd.f32 0.0, %v3589
        %3591 = vmatmul.f32.gmra.mxu0 %v3564
        %v3592 = vpop.f32.mrf.mxu0
        %v3593 = vadd.f32 0.0, %v3592
        %3594 = vmatmul.f32.gmra.mxu0 %v3567
        %v3595 = vpop.f32.mrf.mxu0
        %v3596 = vadd.f32 0.0, %v3595
        %3597 = vmatmul.f32.gmra.mxu0 %v3570
        %v3598 = vpop.f32.mrf.mxu0
        %v3599 = vadd.f32 0.0, %v3598
        %3600 = vdwg.mxu0
        %3601 = vmatpush.msra.mxu0 0.0
        %3602 = vmatpush.msra.mxu0 0.0
        %3603 = vmatpush.msra.mxu0 0.0
        %3604 = vmatpush.msra.mxu0 0.0
        %3605 = vmatpush.msra.mxu0 0.0
        %3606 = vmatpush.msra.mxu0 0.0
        %3607 = vmatpush.msra.mxu0 0.0
        %3608 = vmatpush.msra.mxu0 0.0
        %3609 = vmatpush.msra.mxu0 0.0
        %3610 = vmatpush.msra.mxu0 0.0
        %3611 = vmatpush.msra.mxu0 0.0
        %3612 = vmatpush.msra.mxu0 0.0
        %3613 = vmatpush.msra.mxu0 %v3550
        %3614 = vmatpush.msra.mxu0 %v3549
        %3615 = vmatpush.msra.mxu0 %v3548
        %3616 = vmatpush.msra.mxu0 %v3547
        %3617 = vmatmul.f32.gmra.mxu0 %v3561
        %v3618 = vpop.f32.mrf.mxu0
        %v3619 = vadd.f32 0.0, %v3618
        %3620 = vmatmul.f32.gmra.mxu0 %v3564
        %v3621 = vpop.f32.mrf.mxu0
        %v3622 = vadd.f32 0.0, %v3621
        %3623 = vmatmul.f32.gmra.mxu0 %v3567
        %v3624 = vpop.f32.mrf.mxu0
        %v3625 = vadd.f32 0.0, %v3624
        %3626 = vmatmul.f32.gmra.mxu0 %v3570
        %v3627 = vpop.f32.mrf.mxu0
        %v3628 = vadd.f32 0.0, %v3627
        %3629 = vdwg.mxu0
        %v3630 = vadd.f32 %v3523, %v3590
        %v3631 = vadd.f32 %v3524, %v3619
        %v3632 = vadd.f32 %v3525, %v3593
        %v3633 = vadd.f32 %v3526, %v3622
        %v3634 = vadd.f32 %v3527, %v3596
        %v3635 = vadd.f32 %v3528, %v3625
        %v3636 = vadd.f32 %v3529, %v3599
        %v3637 = vadd.f32 %v3530, %v3628
        %3638 = vrot.lane.b32.xlu0 %v2683, 10
        %v3639 = vpop.permute.xlu0 %3638
        %3640 = vrot.lane.b32.xlu0 %v2685, 10
        %v3641 = vpop.permute.xlu0 %3640
        %3642 = vrot.lane.b32.xlu0 %v2687, 10
        %v3643 = vpop.permute.xlu0 %3642
        %3644 = vrot.lane.b32.xlu0 %v2689, 10
        %v3645 = vpop.permute.xlu0 %3644
        %3646 = vrot.lane.b32.xlu0 %v2684, 10
        %v3647 = vpop.permute.xlu0 %3646
        %3648 = vrot.lane.b32.xlu0 %v2686, 10
        %v3649 = vpop.permute.xlu0 %3648
        %3650 = vrot.lane.b32.xlu0 %v2688, 10
        %v3651 = vpop.permute.xlu0 %3650
        %3652 = vrot.lane.b32.xlu0 %v2690, 10
        %v3653 = vpop.permute.xlu0 %3652
        %v3654 = vsel %vm1209, %v3639, %v3647
        %v3655 = vsel %vm1209, %v3641, %v3649
        %v3656 = vsel %vm1209, %v3643, %v3651
        %v3657 = vsel %vm1209, %v3645, %v3653
        %v3658 = vsel %vm1209, %v3647, %v3639
        %v3659 = vsel %vm1209, %v3649, %v3641
        %v3660 = vsel %vm1209, %v3651, %v3643
        %v3661 = vsel %vm1209, %v3653, %v3645
        %s3662 = scalar_lea.vmem %s5, 288
        %v3663 = vld [vmem:[%s3662] sm:$0xff]
        %v3664 = vld [vmem:[%s3662 + $0x8] sm:$0xff]
        %v3665 = vld [vmem:[%s3662 + $0x10] sm:$0xff]
        %v3666 = vld [vmem:[%s3662 + $0x18] sm:$0xff]
        %v3668 = vsel %vm2748, %v3663, 0
        %v3671 = vsel %vm2748, %v3664, 0
        %v3674 = vsel %vm2748, %v3665, 0
        %v3677 = vsel %vm2748, %v3666, 0
        %3679 = vmatpush.msra.mxu0 0.0
        %3680 = vmatpush.msra.mxu0 0.0
        %3681 = vmatpush.msra.mxu0 0.0
        %3682 = vmatpush.msra.mxu0 0.0
        %3683 = vmatpush.msra.mxu0 0.0
        %3684 = vmatpush.msra.mxu0 0.0
        %3685 = vmatpush.msra.mxu0 0.0
        %3686 = vmatpush.msra.mxu0 0.0
        %3687 = vmatpush.msra.mxu0 0.0
        %3688 = vmatpush.msra.mxu0 0.0
        %3689 = vmatpush.msra.mxu0 0.0
        %3690 = vmatpush.msra.mxu0 0.0
        %3691 = vmatpush.msra.mxu0 %v3661
        %3692 = vmatpush.msra.mxu0 %v3660
        %3693 = vmatpush.msra.mxu0 %v3659
        %3694 = vmatpush.msra.mxu0 %v3658
        %3695 = vmatmul.f32.gmra.mxu0 %v3668
        %v3696 = vpop.f32.mrf.mxu0
        %v3697 = vadd.f32 0.0, %v3696
        %3698 = vmatmul.f32.gmra.mxu0 %v3671
        %v3699 = vpop.f32.mrf.mxu0
        %v3700 = vadd.f32 0.0, %v3699
        %3701 = vmatmul.f32.gmra.mxu0 %v3674
        %v3702 = vpop.f32.mrf.mxu0
        %v3703 = vadd.f32 0.0, %v3702
        %3704 = vmatmul.f32.gmra.mxu0 %v3677
        %v3705 = vpop.f32.mrf.mxu0
        %v3706 = vadd.f32 0.0, %v3705
        %3707 = vdwg.mxu0
        %3708 = vmatpush.msra.mxu0 0.0
        %3709 = vmatpush.msra.mxu0 0.0
        %3710 = vmatpush.msra.mxu0 0.0
        %3711 = vmatpush.msra.mxu0 0.0
        %3712 = vmatpush.msra.mxu0 0.0
        %3713 = vmatpush.msra.mxu0 0.0
        %3714 = vmatpush.msra.mxu0 0.0
        %3715 = vmatpush.msra.mxu0 0.0
        %3716 = vmatpush.msra.mxu0 0.0
        %3717 = vmatpush.msra.mxu0 0.0
        %3718 = vmatpush.msra.mxu0 0.0
        %3719 = vmatpush.msra.mxu0 0.0
        %3720 = vmatpush.msra.mxu0 %v3657
        %3721 = vmatpush.msra.mxu0 %v3656
        %3722 = vmatpush.msra.mxu0 %v3655
        %3723 = vmatpush.msra.mxu0 %v3654
        %3724 = vmatmul.f32.gmra.mxu0 %v3668
        %v3725 = vpop.f32.mrf.mxu0
        %v3726 = vadd.f32 0.0, %v3725
        %3727 = vmatmul.f32.gmra.mxu0 %v3671
        %v3728 = vpop.f32.mrf.mxu0
        %v3729 = vadd.f32 0.0, %v3728
        %3730 = vmatmul.f32.gmra.mxu0 %v3674
        %v3731 = vpop.f32.mrf.mxu0
        %v3732 = vadd.f32 0.0, %v3731
        %3733 = vmatmul.f32.gmra.mxu0 %v3677
        %v3734 = vpop.f32.mrf.mxu0
        %v3735 = vadd.f32 0.0, %v3734
        %3736 = vdwg.mxu0
        %v3737 = vadd.f32 %v3630, %v3697
        %v3738 = vadd.f32 %v3631, %v3726
        %v3739 = vadd.f32 %v3632, %v3700
        %v3740 = vadd.f32 %v3633, %v3729
        %v3741 = vadd.f32 %v3634, %v3703
        %v3742 = vadd.f32 %v3635, %v3732
        %v3743 = vadd.f32 %v3636, %v3706
        %v3744 = vadd.f32 %v3637, %v3735
        %3745 = vrot.lane.b32.xlu0 %v2683, 2
        %v3746 = vpop.permute.xlu0 %3745
        %3747 = vrot.lane.b32.xlu0 %v2685, 2
        %v3748 = vpop.permute.xlu0 %3747
        %3749 = vrot.lane.b32.xlu0 %v2687, 2
        %v3750 = vpop.permute.xlu0 %3749
        %3751 = vrot.lane.b32.xlu0 %v2689, 2
        %v3752 = vpop.permute.xlu0 %3751
        %3753 = vrot.lane.b32.xlu0 %v2684, 2
        %v3754 = vpop.permute.xlu0 %3753
        %3755 = vrot.lane.b32.xlu0 %v2686, 2
        %v3756 = vpop.permute.xlu0 %3755
        %3757 = vrot.lane.b32.xlu0 %v2688, 2
        %v3758 = vpop.permute.xlu0 %3757
        %3759 = vrot.lane.b32.xlu0 %v2690, 2
        %v3760 = vpop.permute.xlu0 %3759
        %v3761 = vsel %vm1299, %v3746, %v3754
        %v3762 = vsel %vm1299, %v3748, %v3756
        %v3763 = vsel %vm1299, %v3750, %v3758
        %v3764 = vsel %vm1299, %v3752, %v3760
        %v3765 = vsel %vm1299, %v3754, %v3746
        %v3766 = vsel %vm1299, %v3756, %v3748
        %v3767 = vsel %vm1299, %v3758, %v3750
        %v3768 = vsel %vm1299, %v3760, %v3752
        %s3769 = scalar_lea.vmem %s5, 320
        %v3770 = vld [vmem:[%s3769] sm:$0xff]
        %v3771 = vld [vmem:[%s3769 + $0x8] sm:$0xff]
        %v3772 = vld [vmem:[%s3769 + $0x10] sm:$0xff]
        %v3773 = vld [vmem:[%s3769 + $0x18] sm:$0xff]
        %v3775 = vsel %vm2748, %v3770, 0
        %v3778 = vsel %vm2748, %v3771, 0
        %v3781 = vsel %vm2748, %v3772, 0
        %v3784 = vsel %vm2748, %v3773, 0
        %3786 = vmatpush.msra.mxu0 0.0
        %3787 = vmatpush.msra.mxu0 0.0
        %3788 = vmatpush.msra.mxu0 0.0
        %3789 = vmatpush.msra.mxu0 0.0
        %3790 = vmatpush.msra.mxu0 0.0
        %3791 = vmatpush.msra.mxu0 0.0
        %3792 = vmatpush.msra.mxu0 0.0
        %3793 = vmatpush.msra.mxu0 0.0
        %3794 = vmatpush.msra.mxu0 0.0
        %3795 = vmatpush.msra.mxu0 0.0
        %3796 = vmatpush.msra.mxu0 0.0
        %3797 = vmatpush.msra.mxu0 0.0
        %3798 = vmatpush.msra.mxu0 %v3768
        %3799 = vmatpush.msra.mxu0 %v3767
        %3800 = vmatpush.msra.mxu0 %v3766
        %3801 = vmatpush.msra.mxu0 %v3765
        %3802 = vmatmul.f32.gmra.mxu0 %v3775
        %v3803 = vpop.f32.mrf.mxu0
        %v3804 = vadd.f32 0.0, %v3803
        %3805 = vmatmul.f32.gmra.mxu0 %v3778
        %v3806 = vpop.f32.mrf.mxu0
        %v3807 = vadd.f32 0.0, %v3806
        %3808 = vmatmul.f32.gmra.mxu0 %v3781
        %v3809 = vpop.f32.mrf.mxu0
        %v3810 = vadd.f32 0.0, %v3809
        %3811 = vmatmul.f32.gmra.mxu0 %v3784
        %v3812 = vpop.f32.mrf.mxu0
        %v3813 = vadd.f32 0.0, %v3812
        %3814 = vdwg.mxu0
        %3815 = vmatpush.msra.mxu0 0.0
        %3816 = vmatpush.msra.mxu0 0.0
        %3817 = vmatpush.msra.mxu0 0.0
        %3818 = vmatpush.msra.mxu0 0.0
        %3819 = vmatpush.msra.mxu0 0.0
        %3820 = vmatpush.msra.mxu0 0.0
        %3821 = vmatpush.msra.mxu0 0.0
        %3822 = vmatpush.msra.mxu0 0.0
        %3823 = vmatpush.msra.mxu0 0.0
        %3824 = vmatpush.msra.mxu0 0.0
        %3825 = vmatpush.msra.mxu0 0.0
        %3826 = vmatpush.msra.mxu0 0.0
        %3827 = vmatpush.msra.mxu0 %v3764
        %3828 = vmatpush.msra.mxu0 %v3763
        %3829 = vmatpush.msra.mxu0 %v3762
        %3830 = vmatpush.msra.mxu0 %v3761
        %3831 = vmatmul.f32.gmra.mxu0 %v3775
        %v3832 = vpop.f32.mrf.mxu0
        %v3833 = vadd.f32 0.0, %v3832
        %3834 = vmatmul.f32.gmra.mxu0 %v3778
        %v3835 = vpop.f32.mrf.mxu0
        %v3836 = vadd.f32 0.0, %v3835
        %3837 = vmatmul.f32.gmra.mxu0 %v3781
        %v3838 = vpop.f32.mrf.mxu0
        %v3839 = vadd.f32 0.0, %v3838
        %3840 = vmatmul.f32.gmra.mxu0 %v3784
        %v3841 = vpop.f32.mrf.mxu0
        %v3842 = vadd.f32 0.0, %v3841
        %3843 = vdwg.mxu0
        %v3844 = vadd.f32 %v3737, %v3804
        %v3845 = vadd.f32 %v3738, %v3833
        %v3846 = vadd.f32 %v3739, %v3807
        %v3847 = vadd.f32 %v3740, %v3836
        %v3848 = vadd.f32 %v3741, %v3810
        %v3849 = vadd.f32 %v3742, %v3839
        %v3850 = vadd.f32 %v3743, %v3813
        %v3851 = vadd.f32 %v3744, %v3842
        %3852 = vrot.lane.b32.xlu0 %v2683, 1
        %v3853 = vpop.permute.xlu0 %3852
        %3854 = vrot.lane.b32.xlu0 %v2685, 1
        %v3855 = vpop.permute.xlu0 %3854
        %3856 = vrot.lane.b32.xlu0 %v2687, 1
        %v3857 = vpop.permute.xlu0 %3856
        %3858 = vrot.lane.b32.xlu0 %v2689, 1
        %v3859 = vpop.permute.xlu0 %3858
        %3860 = vrot.lane.b32.xlu0 %v2684, 1
        %v3861 = vpop.permute.xlu0 %3860
        %3862 = vrot.lane.b32.xlu0 %v2686, 1
        %v3863 = vpop.permute.xlu0 %3862
        %3864 = vrot.lane.b32.xlu0 %v2688, 1
        %v3865 = vpop.permute.xlu0 %3864
        %3866 = vrot.lane.b32.xlu0 %v2690, 1
        %v3867 = vpop.permute.xlu0 %3866
        %v3868 = vsel %vm1389, %v3853, %v3861
        %v3869 = vsel %vm1389, %v3855, %v3863
        %v3870 = vsel %vm1389, %v3857, %v3865
        %v3871 = vsel %vm1389, %v3859, %v3867
        %v3872 = vsel %vm1389, %v3861, %v3853
        %v3873 = vsel %vm1389, %v3863, %v3855
        %v3874 = vsel %vm1389, %v3865, %v3857
        %v3875 = vsel %vm1389, %v3867, %v3859
        %s3876 = scalar_lea.vmem %s5, 352
        %v3877 = vld [vmem:[%s3876] sm:$0xff]
        %v3878 = vld [vmem:[%s3876 + $0x8] sm:$0xff]
        %v3879 = vld [vmem:[%s3876 + $0x10] sm:$0xff]
        %v3880 = vld [vmem:[%s3876 + $0x18] sm:$0xff]
        %v3882 = vsel %vm2748, %v3877, 0
        %v3885 = vsel %vm2748, %v3878, 0
        %v3888 = vsel %vm2748, %v3879, 0
        %v3891 = vsel %vm2748, %v3880, 0
        %3893 = vmatpush.msra.mxu0 0.0
        %3894 = vmatpush.msra.mxu0 0.0
        %3895 = vmatpush.msra.mxu0 0.0
        %3896 = vmatpush.msra.mxu0 0.0
        %3897 = vmatpush.msra.mxu0 0.0
        %3898 = vmatpush.msra.mxu0 0.0
        %3899 = vmatpush.msra.mxu0 0.0
        %3900 = vmatpush.msra.mxu0 0.0
        %3901 = vmatpush.msra.mxu0 0.0
        %3902 = vmatpush.msra.mxu0 0.0
        %3903 = vmatpush.msra.mxu0 0.0
        %3904 = vmatpush.msra.mxu0 0.0
        %3905 = vmatpush.msra.mxu0 %v3875
        %3906 = vmatpush.msra.mxu0 %v3874
        %3907 = vmatpush.msra.mxu0 %v3873
        %3908 = vmatpush.msra.mxu0 %v3872
        %3909 = vmatmul.f32.gmra.mxu0 %v3882
        %v3910 = vpop.f32.mrf.mxu0
        %v3911 = vadd.f32 0.0, %v3910
        %3912 = vmatmul.f32.gmra.mxu0 %v3885
        %v3913 = vpop.f32.mrf.mxu0
        %v3914 = vadd.f32 0.0, %v3913
        %3915 = vmatmul.f32.gmra.mxu0 %v3888
        %v3916 = vpop.f32.mrf.mxu0
        %v3917 = vadd.f32 0.0, %v3916
        %3918 = vmatmul.f32.gmra.mxu0 %v3891
        %v3919 = vpop.f32.mrf.mxu0
        %v3920 = vadd.f32 0.0, %v3919
        %3921 = vdwg.mxu0
        %3922 = vmatpush.msra.mxu0 0.0
        %3923 = vmatpush.msra.mxu0 0.0
        %3924 = vmatpush.msra.mxu0 0.0
        %3925 = vmatpush.msra.mxu0 0.0
        %3926 = vmatpush.msra.mxu0 0.0
        %3927 = vmatpush.msra.mxu0 0.0
        %3928 = vmatpush.msra.mxu0 0.0
        %3929 = vmatpush.msra.mxu0 0.0
        %3930 = vmatpush.msra.mxu0 0.0
        %3931 = vmatpush.msra.mxu0 0.0
        %3932 = vmatpush.msra.mxu0 0.0
        %3933 = vmatpush.msra.mxu0 0.0
        %3934 = vmatpush.msra.mxu0 %v3871
        %3935 = vmatpush.msra.mxu0 %v3870
        %3936 = vmatpush.msra.mxu0 %v3869
        %3937 = vmatpush.msra.mxu0 %v3868
        %3938 = vmatmul.f32.gmra.mxu0 %v3882
        %v3939 = vpop.f32.mrf.mxu0
        %v3940 = vadd.f32 0.0, %v3939
        %3941 = vmatmul.f32.gmra.mxu0 %v3885
        %v3942 = vpop.f32.mrf.mxu0
        %v3943 = vadd.f32 0.0, %v3942
        %3944 = vmatmul.f32.gmra.mxu0 %v3888
        %v3945 = vpop.f32.mrf.mxu0
        %v3946 = vadd.f32 0.0, %v3945
        %3947 = vmatmul.f32.gmra.mxu0 %v3891
        %v3948 = vpop.f32.mrf.mxu0
        %v3949 = vadd.f32 0.0, %v3948
        %3950 = vdwg.mxu0
        %v3951 = vadd.f32 %v3844, %v3911
        %v3952 = vadd.f32 %v3845, %v3940
        %v3953 = vadd.f32 %v3846, %v3914
        %v3954 = vadd.f32 %v3847, %v3943
        %v3955 = vadd.f32 %v3848, %v3917
        %v3956 = vadd.f32 %v3849, %v3946
        %v3957 = vadd.f32 %v3850, %v3920
        %v3958 = vadd.f32 %v3851, %v3949
        %s3959 = scalar_lea.vmem %s5, 384
        %v3960 = vld [vmem:[%s3959] sm:$0xff]
        %v3961 = vld [vmem:[%s3959 + $0x8] sm:$0xff]
        %v3962 = vld [vmem:[%s3959 + $0x10] sm:$0xff]
        %v3963 = vld [vmem:[%s3959 + $0x18] sm:$0xff]
        %v3965 = vsel %vm2748, %v3960, 0
        %v3968 = vsel %vm2748, %v3961, 0
        %v3971 = vsel %vm2748, %v3962, 0
        %v3974 = vsel %vm2748, %v3963, 0
        %3976 = vmatpush.msra.mxu0 0.0
        %3977 = vmatpush.msra.mxu0 0.0
        %3978 = vmatpush.msra.mxu0 0.0
        %3979 = vmatpush.msra.mxu0 0.0
        %3980 = vmatpush.msra.mxu0 0.0
        %3981 = vmatpush.msra.mxu0 0.0
        %3982 = vmatpush.msra.mxu0 0.0
        %3983 = vmatpush.msra.mxu0 0.0
        %3984 = vmatpush.msra.mxu0 0.0
        %3985 = vmatpush.msra.mxu0 0.0
        %3986 = vmatpush.msra.mxu0 0.0
        %3987 = vmatpush.msra.mxu0 0.0
        %3988 = vmatpush.msra.mxu0 %v2689
        %3989 = vmatpush.msra.mxu0 %v2687
        %3990 = vmatpush.msra.mxu0 %v2685
        %3991 = vmatpush.msra.mxu0 %v2683
        %3992 = vmatmul.f32.gmra.mxu0 %v3965
        %v3993 = vpop.f32.mrf.mxu0
        %v3994 = vadd.f32 0.0, %v3993
        %3995 = vmatmul.f32.gmra.mxu0 %v3968
        %v3996 = vpop.f32.mrf.mxu0
        %v3997 = vadd.f32 0.0, %v3996
        %3998 = vmatmul.f32.gmra.mxu0 %v3971
        %v3999 = vpop.f32.mrf.mxu0
        %v4000 = vadd.f32 0.0, %v3999
        %4001 = vmatmul.f32.gmra.mxu0 %v3974
        %v4002 = vpop.f32.mrf.mxu0
        %v4003 = vadd.f32 0.0, %v4002
        %4004 = vdwg.mxu0
        %4005 = vmatpush.msra.mxu0 0.0
        %4006 = vmatpush.msra.mxu0 0.0
        %4007 = vmatpush.msra.mxu0 0.0
        %4008 = vmatpush.msra.mxu0 0.0
        %4009 = vmatpush.msra.mxu0 0.0
        %4010 = vmatpush.msra.mxu0 0.0
        %4011 = vmatpush.msra.mxu0 0.0
        %4012 = vmatpush.msra.mxu0 0.0
        %4013 = vmatpush.msra.mxu0 0.0
        %4014 = vmatpush.msra.mxu0 0.0
        %4015 = vmatpush.msra.mxu0 0.0
        %4016 = vmatpush.msra.mxu0 0.0
        %4017 = vmatpush.msra.mxu0 %v2690
        %4018 = vmatpush.msra.mxu0 %v2688
        %4019 = vmatpush.msra.mxu0 %v2686
        %4020 = vmatpush.msra.mxu0 %v2684
        %4021 = vmatmul.f32.gmra.mxu0 %v3965
        %v4022 = vpop.f32.mrf.mxu0
        %v4023 = vadd.f32 0.0, %v4022
        %4024 = vmatmul.f32.gmra.mxu0 %v3968
        %v4025 = vpop.f32.mrf.mxu0
        %v4026 = vadd.f32 0.0, %v4025
        %4027 = vmatmul.f32.gmra.mxu0 %v3971
        %v4028 = vpop.f32.mrf.mxu0
        %v4029 = vadd.f32 0.0, %v4028
        %4030 = vmatmul.f32.gmra.mxu0 %v3974
        %v4031 = vpop.f32.mrf.mxu0
        %v4032 = vadd.f32 0.0, %v4031
        %4033 = vdwg.mxu0
        %v4034 = vadd.f32 %v3951, %v3994
        %v4035 = vadd.f32 %v3952, %v4023
        %v4036 = vadd.f32 %v3953, %v3997
        %v4037 = vadd.f32 %v3954, %v4026
        %v4038 = vadd.f32 %v3955, %v4000
        %v4039 = vadd.f32 %v3956, %v4029
        %v4040 = vadd.f32 %v3957, %v4003
        %v4041 = vadd.f32 %v3958, %v4032
        %4042 = vrot.lane.b32.xlu0 %v2683, 127
        %v4043 = vpop.permute.xlu0 %4042
        %4044 = vrot.lane.b32.xlu0 %v2685, 127
        %v4045 = vpop.permute.xlu0 %4044
        %4046 = vrot.lane.b32.xlu0 %v2687, 127
        %v4047 = vpop.permute.xlu0 %4046
        %4048 = vrot.lane.b32.xlu0 %v2689, 127
        %v4049 = vpop.permute.xlu0 %4048
        %4050 = vrot.lane.b32.xlu0 %v2684, 127
        %v4051 = vpop.permute.xlu0 %4050
        %4052 = vrot.lane.b32.xlu0 %v2686, 127
        %v4053 = vpop.permute.xlu0 %4052
        %4054 = vrot.lane.b32.xlu0 %v2688, 127
        %v4055 = vpop.permute.xlu0 %4054
        %4056 = vrot.lane.b32.xlu0 %v2690, 127
        %v4057 = vpop.permute.xlu0 %4056
        %v4058 = vsel %vm1562, %v4043, %v4051
        %v4059 = vsel %vm1562, %v4045, %v4053
        %v4060 = vsel %vm1562, %v4047, %v4055
        %v4061 = vsel %vm1562, %v4049, %v4057
        %v4062 = vsel %vm1562, %v4051, %v4043
        %v4063 = vsel %vm1562, %v4053, %v4045
        %v4064 = vsel %vm1562, %v4055, %v4047
        %v4065 = vsel %vm1562, %v4057, %v4049
        %s4066 = scalar_lea.vmem %s5, 416
        %v4067 = vld [vmem:[%s4066] sm:$0xff]
        %v4068 = vld [vmem:[%s4066 + $0x8] sm:$0xff]
        %v4069 = vld [vmem:[%s4066 + $0x10] sm:$0xff]
        %v4070 = vld [vmem:[%s4066 + $0x18] sm:$0xff]
        %v4072 = vsel %vm2748, %v4067, 0
        %v4075 = vsel %vm2748, %v4068, 0
        %v4078 = vsel %vm2748, %v4069, 0
        %v4081 = vsel %vm2748, %v4070, 0
        %4083 = vmatpush.msra.mxu0 0.0
        %4084 = vmatpush.msra.mxu0 0.0
        %4085 = vmatpush.msra.mxu0 0.0
        %4086 = vmatpush.msra.mxu0 0.0
        %4087 = vmatpush.msra.mxu0 0.0
        %4088 = vmatpush.msra.mxu0 0.0
        %4089 = vmatpush.msra.mxu0 0.0
        %4090 = vmatpush.msra.mxu0 0.0
        %4091 = vmatpush.msra.mxu0 0.0
        %4092 = vmatpush.msra.mxu0 0.0
        %4093 = vmatpush.msra.mxu0 0.0
        %4094 = vmatpush.msra.mxu0 0.0
        %4095 = vmatpush.msra.mxu0 %v4061
        %4096 = vmatpush.msra.mxu0 %v4060
        %4097 = vmatpush.msra.mxu0 %v4059
        %4098 = vmatpush.msra.mxu0 %v4058
        %4099 = vmatmul.f32.gmra.mxu0 %v4072
        %v4100 = vpop.f32.mrf.mxu0
        %v4101 = vadd.f32 0.0, %v4100
        %4102 = vmatmul.f32.gmra.mxu0 %v4075
        %v4103 = vpop.f32.mrf.mxu0
        %v4104 = vadd.f32 0.0, %v4103
        %4105 = vmatmul.f32.gmra.mxu0 %v4078
        %v4106 = vpop.f32.mrf.mxu0
        %v4107 = vadd.f32 0.0, %v4106
        %4108 = vmatmul.f32.gmra.mxu0 %v4081
        %v4109 = vpop.f32.mrf.mxu0
        %v4110 = vadd.f32 0.0, %v4109
        %4111 = vdwg.mxu0
        %4112 = vmatpush.msra.mxu0 0.0
        %4113 = vmatpush.msra.mxu0 0.0
        %4114 = vmatpush.msra.mxu0 0.0
        %4115 = vmatpush.msra.mxu0 0.0
        %4116 = vmatpush.msra.mxu0 0.0
        %4117 = vmatpush.msra.mxu0 0.0
        %4118 = vmatpush.msra.mxu0 0.0
        %4119 = vmatpush.msra.mxu0 0.0
        %4120 = vmatpush.msra.mxu0 0.0
        %4121 = vmatpush.msra.mxu0 0.0
        %4122 = vmatpush.msra.mxu0 0.0
        %4123 = vmatpush.msra.mxu0 0.0
        %4124 = vmatpush.msra.mxu0 %v4065
        %4125 = vmatpush.msra.mxu0 %v4064
        %4126 = vmatpush.msra.mxu0 %v4063
        %4127 = vmatpush.msra.mxu0 %v4062
        %4128 = vmatmul.f32.gmra.mxu0 %v4072
        %v4129 = vpop.f32.mrf.mxu0
        %v4130 = vadd.f32 0.0, %v4129
        %4131 = vmatmul.f32.gmra.mxu0 %v4075
        %v4132 = vpop.f32.mrf.mxu0
        %v4133 = vadd.f32 0.0, %v4132
        %4134 = vmatmul.f32.gmra.mxu0 %v4078
        %v4135 = vpop.f32.mrf.mxu0
        %v4136 = vadd.f32 0.0, %v4135
        %4137 = vmatmul.f32.gmra.mxu0 %v4081
        %v4138 = vpop.f32.mrf.mxu0
        %v4139 = vadd.f32 0.0, %v4138
        %4140 = vdwg.mxu0
        %v4141 = vadd.f32 %v4034, %v4101
        %v4142 = vadd.f32 %v4035, %v4130
        %v4143 = vadd.f32 %v4036, %v4104
        %v4144 = vadd.f32 %v4037, %v4133
        %v4145 = vadd.f32 %v4038, %v4107
        %v4146 = vadd.f32 %v4039, %v4136
        %v4147 = vadd.f32 %v4040, %v4110
        %v4148 = vadd.f32 %v4041, %v4139
        %4149 = vrot.lane.b32.xlu0 %v2683, 126
        %v4150 = vpop.permute.xlu0 %4149
        %4151 = vrot.lane.b32.xlu0 %v2685, 126
        %v4152 = vpop.permute.xlu0 %4151
        %4153 = vrot.lane.b32.xlu0 %v2687, 126
        %v4154 = vpop.permute.xlu0 %4153
        %4155 = vrot.lane.b32.xlu0 %v2689, 126
        %v4156 = vpop.permute.xlu0 %4155
        %4157 = vrot.lane.b32.xlu0 %v2684, 126
        %v4158 = vpop.permute.xlu0 %4157
        %4159 = vrot.lane.b32.xlu0 %v2686, 126
        %v4160 = vpop.permute.xlu0 %4159
        %4161 = vrot.lane.b32.xlu0 %v2688, 126
        %v4162 = vpop.permute.xlu0 %4161
        %4163 = vrot.lane.b32.xlu0 %v2690, 126
        %v4164 = vpop.permute.xlu0 %4163
        %v4165 = vsel %vm1652, %v4150, %v4158
        %v4166 = vsel %vm1652, %v4152, %v4160
        %v4167 = vsel %vm1652, %v4154, %v4162
        %v4168 = vsel %vm1652, %v4156, %v4164
        %v4169 = vsel %vm1652, %v4158, %v4150
        %v4170 = vsel %vm1652, %v4160, %v4152
        %v4171 = vsel %vm1652, %v4162, %v4154
        %v4172 = vsel %vm1652, %v4164, %v4156
        %s4173 = scalar_lea.vmem %s5, 448
        %v4174 = vld [vmem:[%s4173] sm:$0xff]
        %v4175 = vld [vmem:[%s4173 + $0x8] sm:$0xff]
        %v4176 = vld [vmem:[%s4173 + $0x10] sm:$0xff]
        %v4177 = vld [vmem:[%s4173 + $0x18] sm:$0xff]
        %v4179 = vsel %vm2748, %v4174, 0
        %v4182 = vsel %vm2748, %v4175, 0
        %v4185 = vsel %vm2748, %v4176, 0
        %v4188 = vsel %vm2748, %v4177, 0
        %4190 = vmatpush.msra.mxu0 0.0
        %4191 = vmatpush.msra.mxu0 0.0
        %4192 = vmatpush.msra.mxu0 0.0
        %4193 = vmatpush.msra.mxu0 0.0
        %4194 = vmatpush.msra.mxu0 0.0
        %4195 = vmatpush.msra.mxu0 0.0
        %4196 = vmatpush.msra.mxu0 0.0
        %4197 = vmatpush.msra.mxu0 0.0
        %4198 = vmatpush.msra.mxu0 0.0
        %4199 = vmatpush.msra.mxu0 0.0
        %4200 = vmatpush.msra.mxu0 0.0
        %4201 = vmatpush.msra.mxu0 0.0
        %4202 = vmatpush.msra.mxu0 %v4168
        %4203 = vmatpush.msra.mxu0 %v4167
        %4204 = vmatpush.msra.mxu0 %v4166
        %4205 = vmatpush.msra.mxu0 %v4165
        %4206 = vmatmul.f32.gmra.mxu0 %v4179
        %v4207 = vpop.f32.mrf.mxu0
        %v4208 = vadd.f32 0.0, %v4207
        %4209 = vmatmul.f32.gmra.mxu0 %v4182
        %v4210 = vpop.f32.mrf.mxu0
        %v4211 = vadd.f32 0.0, %v4210
        %4212 = vmatmul.f32.gmra.mxu0 %v4185
        %v4213 = vpop.f32.mrf.mxu0
        %v4214 = vadd.f32 0.0, %v4213
        %4215 = vmatmul.f32.gmra.mxu0 %v4188
        %v4216 = vpop.f32.mrf.mxu0
        %v4217 = vadd.f32 0.0, %v4216
        %4218 = vdwg.mxu0
        %4219 = vmatpush.msra.mxu0 0.0
        %4220 = vmatpush.msra.mxu0 0.0
        %4221 = vmatpush.msra.mxu0 0.0
        %4222 = vmatpush.msra.mxu0 0.0
        %4223 = vmatpush.msra.mxu0 0.0
        %4224 = vmatpush.msra.mxu0 0.0
        %4225 = vmatpush.msra.mxu0 0.0
        %4226 = vmatpush.msra.mxu0 0.0
        %4227 = vmatpush.msra.mxu0 0.0
        %4228 = vmatpush.msra.mxu0 0.0
        %4229 = vmatpush.msra.mxu0 0.0
        %4230 = vmatpush.msra.mxu0 0.0
        %4231 = vmatpush.msra.mxu0 %v4172
        %4232 = vmatpush.msra.mxu0 %v4171
        %4233 = vmatpush.msra.mxu0 %v4170
        %4234 = vmatpush.msra.mxu0 %v4169
        %4235 = vmatmul.f32.gmra.mxu0 %v4179
        %v4236 = vpop.f32.mrf.mxu0
        %v4237 = vadd.f32 0.0, %v4236
        %4238 = vmatmul.f32.gmra.mxu0 %v4182
        %v4239 = vpop.f32.mrf.mxu0
        %v4240 = vadd.f32 0.0, %v4239
        %4241 = vmatmul.f32.gmra.mxu0 %v4185
        %v4242 = vpop.f32.mrf.mxu0
        %v4243 = vadd.f32 0.0, %v4242
        %4244 = vmatmul.f32.gmra.mxu0 %v4188
        %v4245 = vpop.f32.mrf.mxu0
        %v4246 = vadd.f32 0.0, %v4245
        %4247 = vdwg.mxu0
        %v4248 = vadd.f32 %v4141, %v4208
        %v4249 = vadd.f32 %v4142, %v4237
        %v4250 = vadd.f32 %v4143, %v4211
        %v4251 = vadd.f32 %v4144, %v4240
        %v4252 = vadd.f32 %v4145, %v4214
        %v4253 = vadd.f32 %v4146, %v4243
        %v4254 = vadd.f32 %v4147, %v4217
        %v4255 = vadd.f32 %v4148, %v4246
        %4256 = vrot.lane.b32.xlu0 %v2683, 118
        %v4257 = vpop.permute.xlu0 %4256
        %4258 = vrot.lane.b32.xlu0 %v2685, 118
        %v4259 = vpop.permute.xlu0 %4258
        %4260 = vrot.lane.b32.xlu0 %v2687, 118
        %v4261 = vpop.permute.xlu0 %4260
        %4262 = vrot.lane.b32.xlu0 %v2689, 118
        %v4263 = vpop.permute.xlu0 %4262
        %4264 = vrot.lane.b32.xlu0 %v2684, 118
        %v4265 = vpop.permute.xlu0 %4264
        %4266 = vrot.lane.b32.xlu0 %v2686, 118
        %v4267 = vpop.permute.xlu0 %4266
        %4268 = vrot.lane.b32.xlu0 %v2688, 118
        %v4269 = vpop.permute.xlu0 %4268
        %4270 = vrot.lane.b32.xlu0 %v2690, 118
        %v4271 = vpop.permute.xlu0 %4270
        %v4272 = vsel %vm1742, %v4257, %v4265
        %v4273 = vsel %vm1742, %v4259, %v4267
        %v4274 = vsel %vm1742, %v4261, %v4269
        %v4275 = vsel %vm1742, %v4263, %v4271
        %v4276 = vsel %vm1742, %v4265, %v4257
        %v4277 = vsel %vm1742, %v4267, %v4259
        %v4278 = vsel %vm1742, %v4269, %v4261
        %v4279 = vsel %vm1742, %v4271, %v4263
        %s4280 = scalar_lea.vmem %s5, 480
        %v4281 = vld [vmem:[%s4280] sm:$0xff]
        %v4282 = vld [vmem:[%s4280 + $0x8] sm:$0xff]
        %v4283 = vld [vmem:[%s4280 + $0x10] sm:$0xff]
        %v4284 = vld [vmem:[%s4280 + $0x18] sm:$0xff]
        %v4286 = vsel %vm2748, %v4281, 0
        %v4289 = vsel %vm2748, %v4282, 0
        %v4292 = vsel %vm2748, %v4283, 0
        %v4295 = vsel %vm2748, %v4284, 0
        %4297 = vmatpush.msra.mxu0 0.0
        %4298 = vmatpush.msra.mxu0 0.0
        %4299 = vmatpush.msra.mxu0 0.0
        %4300 = vmatpush.msra.mxu0 0.0
        %4301 = vmatpush.msra.mxu0 0.0
        %4302 = vmatpush.msra.mxu0 0.0
        %4303 = vmatpush.msra.mxu0 0.0
        %4304 = vmatpush.msra.mxu0 0.0
        %4305 = vmatpush.msra.mxu0 0.0
        %4306 = vmatpush.msra.mxu0 0.0
        %4307 = vmatpush.msra.mxu0 0.0
        %4308 = vmatpush.msra.mxu0 0.0
        %4309 = vmatpush.msra.mxu0 %v4275
        %4310 = vmatpush.msra.mxu0 %v4274
        %4311 = vmatpush.msra.mxu0 %v4273
        %4312 = vmatpush.msra.mxu0 %v4272
        %4313 = vmatmul.f32.gmra.mxu0 %v4286
        %v4314 = vpop.f32.mrf.mxu0
        %v4315 = vadd.f32 0.0, %v4314
        %4316 = vmatmul.f32.gmra.mxu0 %v4289
        %v4317 = vpop.f32.mrf.mxu0
        %v4318 = vadd.f32 0.0, %v4317
        %4319 = vmatmul.f32.gmra.mxu0 %v4292
        %v4320 = vpop.f32.mrf.mxu0
        %v4321 = vadd.f32 0.0, %v4320
        %4322 = vmatmul.f32.gmra.mxu0 %v4295
        %v4323 = vpop.f32.mrf.mxu0
        %v4324 = vadd.f32 0.0, %v4323
        %4325 = vdwg.mxu0
        %4326 = vmatpush.msra.mxu0 0.0
        %4327 = vmatpush.msra.mxu0 0.0
        %4328 = vmatpush.msra.mxu0 0.0
        %4329 = vmatpush.msra.mxu0 0.0
        %4330 = vmatpush.msra.mxu0 0.0
        %4331 = vmatpush.msra.mxu0 0.0
        %4332 = vmatpush.msra.mxu0 0.0
        %4333 = vmatpush.msra.mxu0 0.0
        %4334 = vmatpush.msra.mxu0 0.0
        %4335 = vmatpush.msra.mxu0 0.0
        %4336 = vmatpush.msra.mxu0 0.0
        %4337 = vmatpush.msra.mxu0 0.0
        %4338 = vmatpush.msra.mxu0 %v4279
        %4339 = vmatpush.msra.mxu0 %v4278
        %4340 = vmatpush.msra.mxu0 %v4277
        %4341 = vmatpush.msra.mxu0 %v4276
        %4342 = vmatmul.f32.gmra.mxu0 %v4286
        %v4343 = vpop.f32.mrf.mxu0
        %v4344 = vadd.f32 0.0, %v4343
        %4345 = vmatmul.f32.gmra.mxu0 %v4289
        %v4346 = vpop.f32.mrf.mxu0
        %v4347 = vadd.f32 0.0, %v4346
        %4348 = vmatmul.f32.gmra.mxu0 %v4292
        %v4349 = vpop.f32.mrf.mxu0
        %v4350 = vadd.f32 0.0, %v4349
        %4351 = vmatmul.f32.gmra.mxu0 %v4295
        %v4352 = vpop.f32.mrf.mxu0
        %v4353 = vadd.f32 0.0, %v4352
        %4354 = vdwg.mxu0
        %v4355 = vadd.f32 %v4248, %v4315
        %v4356 = vadd.f32 %v4249, %v4344
        %v4357 = vadd.f32 %v4250, %v4318
        %v4358 = vadd.f32 %v4251, %v4347
        %v4359 = vadd.f32 %v4252, %v4321
        %v4360 = vadd.f32 %v4253, %v4350
        %v4361 = vadd.f32 %v4254, %v4324
        %v4362 = vadd.f32 %v4255, %v4353
        %4363 = vrot.lane.b32.xlu0 %v2683, 117
        %v4364 = vpop.permute.xlu0 %4363
        %4365 = vrot.lane.b32.xlu0 %v2685, 117
        %v4366 = vpop.permute.xlu0 %4365
        %4367 = vrot.lane.b32.xlu0 %v2687, 117
        %v4368 = vpop.permute.xlu0 %4367
        %4369 = vrot.lane.b32.xlu0 %v2689, 117
        %v4370 = vpop.permute.xlu0 %4369
        %4371 = vrot.lane.b32.xlu0 %v2684, 117
        %v4372 = vpop.permute.xlu0 %4371
        %4373 = vrot.lane.b32.xlu0 %v2686, 117
        %v4374 = vpop.permute.xlu0 %4373
        %4375 = vrot.lane.b32.xlu0 %v2688, 117
        %v4376 = vpop.permute.xlu0 %4375
        %4377 = vrot.lane.b32.xlu0 %v2690, 117
        %v4378 = vpop.permute.xlu0 %4377
        %v4379 = vsel %vm1832, %v4364, %v4372
        %v4380 = vsel %vm1832, %v4366, %v4374
        %v4381 = vsel %vm1832, %v4368, %v4376
        %v4382 = vsel %vm1832, %v4370, %v4378
        %v4383 = vsel %vm1832, %v4372, %v4364
        %v4384 = vsel %vm1832, %v4374, %v4366
        %v4385 = vsel %vm1832, %v4376, %v4368
        %v4386 = vsel %vm1832, %v4378, %v4370
        %s4387 = scalar_lea.vmem %s5, 512
        %v4388 = vld [vmem:[%s4387] sm:$0xff]
        %v4389 = vld [vmem:[%s4387 + $0x8] sm:$0xff]
        %v4390 = vld [vmem:[%s4387 + $0x10] sm:$0xff]
        %v4391 = vld [vmem:[%s4387 + $0x18] sm:$0xff]
        %v4393 = vsel %vm2748, %v4388, 0
        %v4396 = vsel %vm2748, %v4389, 0
        %v4399 = vsel %vm2748, %v4390, 0
        %v4402 = vsel %vm2748, %v4391, 0
        %4404 = vmatpush.msra.mxu0 0.0
        %4405 = vmatpush.msra.mxu0 0.0
        %4406 = vmatpush.msra.mxu0 0.0
        %4407 = vmatpush.msra.mxu0 0.0
        %4408 = vmatpush.msra.mxu0 0.0
        %4409 = vmatpush.msra.mxu0 0.0
        %4410 = vmatpush.msra.mxu0 0.0
        %4411 = vmatpush.msra.mxu0 0.0
        %4412 = vmatpush.msra.mxu0 0.0
        %4413 = vmatpush.msra.mxu0 0.0
        %4414 = vmatpush.msra.mxu0 0.0
        %4415 = vmatpush.msra.mxu0 0.0
        %4416 = vmatpush.msra.mxu0 %v4382
        %4417 = vmatpush.msra.mxu0 %v4381
        %4418 = vmatpush.msra.mxu0 %v4380
        %4419 = vmatpush.msra.mxu0 %v4379
        %4420 = vmatmul.f32.gmra.mxu0 %v4393
        %v4421 = vpop.f32.mrf.mxu0
        %v4422 = vadd.f32 0.0, %v4421
        %4423 = vmatmul.f32.gmra.mxu0 %v4396
        %v4424 = vpop.f32.mrf.mxu0
        %v4425 = vadd.f32 0.0, %v4424
        %4426 = vmatmul.f32.gmra.mxu0 %v4399
        %v4427 = vpop.f32.mrf.mxu0
        %v4428 = vadd.f32 0.0, %v4427
        %4429 = vmatmul.f32.gmra.mxu0 %v4402
        %v4430 = vpop.f32.mrf.mxu0
        %v4431 = vadd.f32 0.0, %v4430
        %4432 = vdwg.mxu0
        %4433 = vmatpush.msra.mxu0 0.0
        %4434 = vmatpush.msra.mxu0 0.0
        %4435 = vmatpush.msra.mxu0 0.0
        %4436 = vmatpush.msra.mxu0 0.0
        %4437 = vmatpush.msra.mxu0 0.0
        %4438 = vmatpush.msra.mxu0 0.0
        %4439 = vmatpush.msra.mxu0 0.0
        %4440 = vmatpush.msra.mxu0 0.0
        %4441 = vmatpush.msra.mxu0 0.0
        %4442 = vmatpush.msra.mxu0 0.0
        %4443 = vmatpush.msra.mxu0 0.0
        %4444 = vmatpush.msra.mxu0 0.0
        %4445 = vmatpush.msra.mxu0 %v4386
        %4446 = vmatpush.msra.mxu0 %v4385
        %4447 = vmatpush.msra.mxu0 %v4384
        %4448 = vmatpush.msra.mxu0 %v4383
        %4449 = vmatmul.f32.gmra.mxu0 %v4393
        %v4450 = vpop.f32.mrf.mxu0
        %v4451 = vadd.f32 0.0, %v4450
        %4452 = vmatmul.f32.gmra.mxu0 %v4396
        %v4453 = vpop.f32.mrf.mxu0
        %v4454 = vadd.f32 0.0, %v4453
        %4455 = vmatmul.f32.gmra.mxu0 %v4399
        %v4456 = vpop.f32.mrf.mxu0
        %v4457 = vadd.f32 0.0, %v4456
        %4458 = vmatmul.f32.gmra.mxu0 %v4402
        %v4459 = vpop.f32.mrf.mxu0
        %v4460 = vadd.f32 0.0, %v4459
        %4461 = vdwg.mxu0
        %v4462 = vadd.f32 %v4355, %v4422
        %v4463 = vadd.f32 %v4356, %v4451
        %v4464 = vadd.f32 %v4357, %v4425
        %v4465 = vadd.f32 %v4358, %v4454
        %v4466 = vadd.f32 %v4359, %v4428
        %v4467 = vadd.f32 %v4360, %v4457
        %v4468 = vadd.f32 %v4361, %v4431
        %v4469 = vadd.f32 %v4362, %v4460
        %4470 = vrot.lane.b32.xlu0 %v2683, 116
        %v4471 = vpop.permute.xlu0 %4470
        %4472 = vrot.lane.b32.xlu0 %v2685, 116
        %v4473 = vpop.permute.xlu0 %4472
        %4474 = vrot.lane.b32.xlu0 %v2687, 116
        %v4475 = vpop.permute.xlu0 %4474
        %4476 = vrot.lane.b32.xlu0 %v2689, 116
        %v4477 = vpop.permute.xlu0 %4476
        %4478 = vrot.lane.b32.xlu0 %v2684, 116
        %v4479 = vpop.permute.xlu0 %4478
        %4480 = vrot.lane.b32.xlu0 %v2686, 116
        %v4481 = vpop.permute.xlu0 %4480
        %4482 = vrot.lane.b32.xlu0 %v2688, 116
        %v4483 = vpop.permute.xlu0 %4482
        %4484 = vrot.lane.b32.xlu0 %v2690, 116
        %v4485 = vpop.permute.xlu0 %4484
        %v4486 = vsel %vm1922, %v4471, %v4479
        %v4487 = vsel %vm1922, %v4473, %v4481
        %v4488 = vsel %vm1922, %v4475, %v4483
        %v4489 = vsel %vm1922, %v4477, %v4485
        %v4490 = vsel %vm1922, %v4479, %v4471
        %v4491 = vsel %vm1922, %v4481, %v4473
        %v4492 = vsel %vm1922, %v4483, %v4475
        %v4493 = vsel %vm1922, %v4485, %v4477
        %s4494 = scalar_lea.vmem %s5, 544
        %v4495 = vld [vmem:[%s4494] sm:$0xff]
        %v4496 = vld [vmem:[%s4494 + $0x8] sm:$0xff]
        %v4497 = vld [vmem:[%s4494 + $0x10] sm:$0xff]
        %v4498 = vld [vmem:[%s4494 + $0x18] sm:$0xff]
        %v4500 = vsel %vm2748, %v4495, 0
        %v4503 = vsel %vm2748, %v4496, 0
        %v4506 = vsel %vm2748, %v4497, 0
        %v4509 = vsel %vm2748, %v4498, 0
        %4511 = vmatpush.msra.mxu0 0.0
        %4512 = vmatpush.msra.mxu0 0.0
        %4513 = vmatpush.msra.mxu0 0.0
        %4514 = vmatpush.msra.mxu0 0.0
        %4515 = vmatpush.msra.mxu0 0.0
        %4516 = vmatpush.msra.mxu0 0.0
        %4517 = vmatpush.msra.mxu0 0.0
        %4518 = vmatpush.msra.mxu0 0.0
        %4519 = vmatpush.msra.mxu0 0.0
        %4520 = vmatpush.msra.mxu0 0.0
        %4521 = vmatpush.msra.mxu0 0.0
        %4522 = vmatpush.msra.mxu0 0.0
        %4523 = vmatpush.msra.mxu0 %v4489
        %4524 = vmatpush.msra.mxu0 %v4488
        %4525 = vmatpush.msra.mxu0 %v4487
        %4526 = vmatpush.msra.mxu0 %v4486
        %4527 = vmatmul.f32.gmra.mxu0 %v4500
        %v4528 = vpop.f32.mrf.mxu0
        %v4529 = vadd.f32 0.0, %v4528
        %4530 = vmatmul.f32.gmra.mxu0 %v4503
        %v4531 = vpop.f32.mrf.mxu0
        %v4532 = vadd.f32 0.0, %v4531
        %4533 = vmatmul.f32.gmra.mxu0 %v4506
        %v4534 = vpop.f32.mrf.mxu0
        %v4535 = vadd.f32 0.0, %v4534
        %4536 = vmatmul.f32.gmra.mxu0 %v4509
        %v4537 = vpop.f32.mrf.mxu0
        %v4538 = vadd.f32 0.0, %v4537
        %4539 = vdwg.mxu0
        %4540 = vmatpush.msra.mxu0 0.0
        %4541 = vmatpush.msra.mxu0 0.0
        %4542 = vmatpush.msra.mxu0 0.0
        %4543 = vmatpush.msra.mxu0 0.0
        %4544 = vmatpush.msra.mxu0 0.0
        %4545 = vmatpush.msra.mxu0 0.0
        %4546 = vmatpush.msra.mxu0 0.0
        %4547 = vmatpush.msra.mxu0 0.0
        %4548 = vmatpush.msra.mxu0 0.0
        %4549 = vmatpush.msra.mxu0 0.0
        %4550 = vmatpush.msra.mxu0 0.0
        %4551 = vmatpush.msra.mxu0 0.0
        %4552 = vmatpush.msra.mxu0 %v4493
        %4553 = vmatpush.msra.mxu0 %v4492
        %4554 = vmatpush.msra.mxu0 %v4491
        %4555 = vmatpush.msra.mxu0 %v4490
        %4556 = vmatmul.f32.gmra.mxu0 %v4500
        %v4557 = vpop.f32.mrf.mxu0
        %v4558 = vadd.f32 0.0, %v4557
        %4559 = vmatmul.f32.gmra.mxu0 %v4503
        %v4560 = vpop.f32.mrf.mxu0
        %v4561 = vadd.f32 0.0, %v4560
        %4562 = vmatmul.f32.gmra.mxu0 %v4506
        %v4563 = vpop.f32.mrf.mxu0
        %v4564 = vadd.f32 0.0, %v4563
        %4565 = vmatmul.f32.gmra.mxu0 %v4509
        %v4566 = vpop.f32.mrf.mxu0
        %v4567 = vadd.f32 0.0, %v4566
        %4568 = vdwg.mxu0
        %v4569 = vadd.f32 %v4462, %v4529
        %v4570 = vadd.f32 %v4463, %v4558
        %v4571 = vadd.f32 %v4464, %v4532
        %v4572 = vadd.f32 %v4465, %v4561
        %v4573 = vadd.f32 %v4466, %v4535
        %v4574 = vadd.f32 %v4467, %v4564
        %v4575 = vadd.f32 %v4468, %v4538
        %v4576 = vadd.f32 %v4469, %v4567
        %4577 = vrot.lane.b32.xlu0 %v2683, 115
        %v4578 = vpop.permute.xlu0 %4577
        %4579 = vrot.lane.b32.xlu0 %v2685, 115
        %v4580 = vpop.permute.xlu0 %4579
        %4581 = vrot.lane.b32.xlu0 %v2687, 115
        %v4582 = vpop.permute.xlu0 %4581
        %4583 = vrot.lane.b32.xlu0 %v2689, 115
        %v4584 = vpop.permute.xlu0 %4583
        %4585 = vrot.lane.b32.xlu0 %v2684, 115
        %v4586 = vpop.permute.xlu0 %4585
        %4587 = vrot.lane.b32.xlu0 %v2686, 115
        %v4588 = vpop.permute.xlu0 %4587
        %4589 = vrot.lane.b32.xlu0 %v2688, 115
        %v4590 = vpop.permute.xlu0 %4589
        %4591 = vrot.lane.b32.xlu0 %v2690, 115
        %v4592 = vpop.permute.xlu0 %4591
        %v4593 = vsel %vm2012, %v4578, %v4586
        %v4594 = vsel %vm2012, %v4580, %v4588
        %v4595 = vsel %vm2012, %v4582, %v4590
        %v4596 = vsel %vm2012, %v4584, %v4592
        %v4597 = vsel %vm2012, %v4586, %v4578
        %v4598 = vsel %vm2012, %v4588, %v4580
        %v4599 = vsel %vm2012, %v4590, %v4582
        %v4600 = vsel %vm2012, %v4592, %v4584
        %s4601 = scalar_lea.vmem %s5, 576
        %v4602 = vld [vmem:[%s4601] sm:$0xff]
        %v4603 = vld [vmem:[%s4601 + $0x8] sm:$0xff]
        %v4604 = vld [vmem:[%s4601 + $0x10] sm:$0xff]
        %v4605 = vld [vmem:[%s4601 + $0x18] sm:$0xff]
        %v4607 = vsel %vm2748, %v4602, 0
        %v4610 = vsel %vm2748, %v4603, 0
        %v4613 = vsel %vm2748, %v4604, 0
        %v4616 = vsel %vm2748, %v4605, 0
        %4618 = vmatpush.msra.mxu0 0.0
        %4619 = vmatpush.msra.mxu0 0.0
        %4620 = vmatpush.msra.mxu0 0.0
        %4621 = vmatpush.msra.mxu0 0.0
        %4622 = vmatpush.msra.mxu0 0.0
        %4623 = vmatpush.msra.mxu0 0.0
        %4624 = vmatpush.msra.mxu0 0.0
        %4625 = vmatpush.msra.mxu0 0.0
        %4626 = vmatpush.msra.mxu0 0.0
        %4627 = vmatpush.msra.mxu0 0.0
        %4628 = vmatpush.msra.mxu0 0.0
        %4629 = vmatpush.msra.mxu0 0.0
        %4630 = vmatpush.msra.mxu0 %v4596
        %4631 = vmatpush.msra.mxu0 %v4595
        %4632 = vmatpush.msra.mxu0 %v4594
        %4633 = vmatpush.msra.mxu0 %v4593
        %4634 = vmatmul.f32.gmra.mxu0 %v4607
        %v4635 = vpop.f32.mrf.mxu0
        %v4636 = vadd.f32 0.0, %v4635
        %4637 = vmatmul.f32.gmra.mxu0 %v4610
        %v4638 = vpop.f32.mrf.mxu0
        %v4639 = vadd.f32 0.0, %v4638
        %4640 = vmatmul.f32.gmra.mxu0 %v4613
        %v4641 = vpop.f32.mrf.mxu0
        %v4642 = vadd.f32 0.0, %v4641
        %4643 = vmatmul.f32.gmra.mxu0 %v4616
        %v4644 = vpop.f32.mrf.mxu0
        %v4645 = vadd.f32 0.0, %v4644
        %4646 = vdwg.mxu0
        %4647 = vmatpush.msra.mxu0 0.0
        %4648 = vmatpush.msra.mxu0 0.0
        %4649 = vmatpush.msra.mxu0 0.0
        %4650 = vmatpush.msra.mxu0 0.0
        %4651 = vmatpush.msra.mxu0 0.0
        %4652 = vmatpush.msra.mxu0 0.0
        %4653 = vmatpush.msra.mxu0 0.0
        %4654 = vmatpush.msra.mxu0 0.0
        %4655 = vmatpush.msra.mxu0 0.0
        %4656 = vmatpush.msra.mxu0 0.0
        %4657 = vmatpush.msra.mxu0 0.0
        %4658 = vmatpush.msra.mxu0 0.0
        %4659 = vmatpush.msra.mxu0 %v4600
        %4660 = vmatpush.msra.mxu0 %v4599
        %4661 = vmatpush.msra.mxu0 %v4598
        %4662 = vmatpush.msra.mxu0 %v4597
        %4663 = vmatmul.f32.gmra.mxu0 %v4607
        %v4664 = vpop.f32.mrf.mxu0
        %v4665 = vadd.f32 0.0, %v4664
        %4666 = vmatmul.f32.gmra.mxu0 %v4610
        %v4667 = vpop.f32.mrf.mxu0
        %v4668 = vadd.f32 0.0, %v4667
        %4669 = vmatmul.f32.gmra.mxu0 %v4613
        %v4670 = vpop.f32.mrf.mxu0
        %v4671 = vadd.f32 0.0, %v4670
        %4672 = vmatmul.f32.gmra.mxu0 %v4616
        %v4673 = vpop.f32.mrf.mxu0
        %v4674 = vadd.f32 0.0, %v4673
        %4675 = vdwg.mxu0
        %v4676 = vadd.f32 %v4569, %v4636
        %v4677 = vadd.f32 %v4570, %v4665
        %v4678 = vadd.f32 %v4571, %v4639
        %v4679 = vadd.f32 %v4572, %v4668
        %v4680 = vadd.f32 %v4573, %v4642
        %v4681 = vadd.f32 %v4574, %v4671
        %v4682 = vadd.f32 %v4575, %v4645
        %v4683 = vadd.f32 %v4576, %v4674
        %4684 = vrot.lane.b32.xlu0 %v2683, 114
        %v4685 = vpop.permute.xlu0 %4684
        %4686 = vrot.lane.b32.xlu0 %v2685, 114
        %v4687 = vpop.permute.xlu0 %4686
        %4688 = vrot.lane.b32.xlu0 %v2687, 114
        %v4689 = vpop.permute.xlu0 %4688
        %4690 = vrot.lane.b32.xlu0 %v2689, 114
        %v4691 = vpop.permute.xlu0 %4690
        %4692 = vrot.lane.b32.xlu0 %v2684, 114
        %v4693 = vpop.permute.xlu0 %4692
        %4694 = vrot.lane.b32.xlu0 %v2686, 114
        %v4695 = vpop.permute.xlu0 %4694
        %4696 = vrot.lane.b32.xlu0 %v2688, 114
        %v4697 = vpop.permute.xlu0 %4696
        %4698 = vrot.lane.b32.xlu0 %v2690, 114
        %v4699 = vpop.permute.xlu0 %4698
        %v4700 = vsel %vm2102, %v4685, %v4693
        %v4701 = vsel %vm2102, %v4687, %v4695
        %v4702 = vsel %vm2102, %v4689, %v4697
        %v4703 = vsel %vm2102, %v4691, %v4699
        %v4704 = vsel %vm2102, %v4693, %v4685
        %v4705 = vsel %vm2102, %v4695, %v4687
        %v4706 = vsel %vm2102, %v4697, %v4689
        %v4707 = vsel %vm2102, %v4699, %v4691
        %s4708 = scalar_lea.vmem %s5, 608
        %v4709 = vld [vmem:[%s4708] sm:$0xff]
        %v4710 = vld [vmem:[%s4708 + $0x8] sm:$0xff]
        %v4711 = vld [vmem:[%s4708 + $0x10] sm:$0xff]
        %v4712 = vld [vmem:[%s4708 + $0x18] sm:$0xff]
        %v4714 = vsel %vm2748, %v4709, 0
        %v4717 = vsel %vm2748, %v4710, 0
        %v4720 = vsel %vm2748, %v4711, 0
        %v4723 = vsel %vm2748, %v4712, 0
        %4725 = vmatpush.msra.mxu0 0.0
        %4726 = vmatpush.msra.mxu0 0.0
        %4727 = vmatpush.msra.mxu0 0.0
        %4728 = vmatpush.msra.mxu0 0.0
        %4729 = vmatpush.msra.mxu0 0.0
        %4730 = vmatpush.msra.mxu0 0.0
        %4731 = vmatpush.msra.mxu0 0.0
        %4732 = vmatpush.msra.mxu0 0.0
        %4733 = vmatpush.msra.mxu0 0.0
        %4734 = vmatpush.msra.mxu0 0.0
        %4735 = vmatpush.msra.mxu0 0.0
        %4736 = vmatpush.msra.mxu0 0.0
        %4737 = vmatpush.msra.mxu0 %v4703
        %4738 = vmatpush.msra.mxu0 %v4702
        %4739 = vmatpush.msra.mxu0 %v4701
        %4740 = vmatpush.msra.mxu0 %v4700
        %4741 = vmatmul.f32.gmra.mxu0 %v4714
        %v4742 = vpop.f32.mrf.mxu0
        %v4743 = vadd.f32 0.0, %v4742
        %4744 = vmatmul.f32.gmra.mxu0 %v4717
        %v4745 = vpop.f32.mrf.mxu0
        %v4746 = vadd.f32 0.0, %v4745
        %4747 = vmatmul.f32.gmra.mxu0 %v4720
        %v4748 = vpop.f32.mrf.mxu0
        %v4749 = vadd.f32 0.0, %v4748
        %4750 = vmatmul.f32.gmra.mxu0 %v4723
        %v4751 = vpop.f32.mrf.mxu0
        %v4752 = vadd.f32 0.0, %v4751
        %4753 = vdwg.mxu0
        %4754 = vmatpush.msra.mxu0 0.0
        %4755 = vmatpush.msra.mxu0 0.0
        %4756 = vmatpush.msra.mxu0 0.0
        %4757 = vmatpush.msra.mxu0 0.0
        %4758 = vmatpush.msra.mxu0 0.0
        %4759 = vmatpush.msra.mxu0 0.0
        %4760 = vmatpush.msra.mxu0 0.0
        %4761 = vmatpush.msra.mxu0 0.0
        %4762 = vmatpush.msra.mxu0 0.0
        %4763 = vmatpush.msra.mxu0 0.0
        %4764 = vmatpush.msra.mxu0 0.0
        %4765 = vmatpush.msra.mxu0 0.0
        %4766 = vmatpush.msra.mxu0 %v4707
        %4767 = vmatpush.msra.mxu0 %v4706
        %4768 = vmatpush.msra.mxu0 %v4705
        %4769 = vmatpush.msra.mxu0 %v4704
        %4770 = vmatmul.f32.gmra.mxu0 %v4714
        %v4771 = vpop.f32.mrf.mxu0
        %v4772 = vadd.f32 0.0, %v4771
        %4773 = vmatmul.f32.gmra.mxu0 %v4717
        %v4774 = vpop.f32.mrf.mxu0
        %v4775 = vadd.f32 0.0, %v4774
        %4776 = vmatmul.f32.gmra.mxu0 %v4720
        %v4777 = vpop.f32.mrf.mxu0
        %v4778 = vadd.f32 0.0, %v4777
        %4779 = vmatmul.f32.gmra.mxu0 %v4723
        %v4780 = vpop.f32.mrf.mxu0
        %v4781 = vadd.f32 0.0, %v4780
        %4782 = vdwg.mxu0
        %v4783 = vadd.f32 %v4676, %v4743
        %v4784 = vadd.f32 %v4677, %v4772
        %v4785 = vadd.f32 %v4678, %v4746
        %v4786 = vadd.f32 %v4679, %v4775
        %v4787 = vadd.f32 %v4680, %v4749
        %v4788 = vadd.f32 %v4681, %v4778
        %v4789 = vadd.f32 %v4682, %v4752
        %v4790 = vadd.f32 %v4683, %v4781
        %4791 = vrot.lane.b32.xlu0 %v2683, 106
        %v4792 = vpop.permute.xlu0 %4791
        %4793 = vrot.lane.b32.xlu0 %v2685, 106
        %v4794 = vpop.permute.xlu0 %4793
        %4795 = vrot.lane.b32.xlu0 %v2687, 106
        %v4796 = vpop.permute.xlu0 %4795
        %4797 = vrot.lane.b32.xlu0 %v2689, 106
        %v4798 = vpop.permute.xlu0 %4797
        %4799 = vrot.lane.b32.xlu0 %v2684, 106
        %v4800 = vpop.permute.xlu0 %4799
        %4801 = vrot.lane.b32.xlu0 %v2686, 106
        %v4802 = vpop.permute.xlu0 %4801
        %4803 = vrot.lane.b32.xlu0 %v2688, 106
        %v4804 = vpop.permute.xlu0 %4803
        %4805 = vrot.lane.b32.xlu0 %v2690, 106
        %v4806 = vpop.permute.xlu0 %4805
        %v4807 = vsel %vm2192, %v4792, %v4800
        %v4808 = vsel %vm2192, %v4794, %v4802
        %v4809 = vsel %vm2192, %v4796, %v4804
        %v4810 = vsel %vm2192, %v4798, %v4806
        %v4811 = vsel %vm2192, %v4800, %v4792
        %v4812 = vsel %vm2192, %v4802, %v4794
        %v4813 = vsel %vm2192, %v4804, %v4796
        %v4814 = vsel %vm2192, %v4806, %v4798
        %s4815 = scalar_lea.vmem %s5, 640
        %v4816 = vld [vmem:[%s4815] sm:$0xff]
        %v4817 = vld [vmem:[%s4815 + $0x8] sm:$0xff]
        %v4818 = vld [vmem:[%s4815 + $0x10] sm:$0xff]
        %v4819 = vld [vmem:[%s4815 + $0x18] sm:$0xff]
        %v4821 = vsel %vm2748, %v4816, 0
        %v4824 = vsel %vm2748, %v4817, 0
        %v4827 = vsel %vm2748, %v4818, 0
        %v4830 = vsel %vm2748, %v4819, 0
        %4832 = vmatpush.msra.mxu0 0.0
        %4833 = vmatpush.msra.mxu0 0.0
        %4834 = vmatpush.msra.mxu0 0.0
        %4835 = vmatpush.msra.mxu0 0.0
        %4836 = vmatpush.msra.mxu0 0.0
        %4837 = vmatpush.msra.mxu0 0.0
        %4838 = vmatpush.msra.mxu0 0.0
        %4839 = vmatpush.msra.mxu0 0.0
        %4840 = vmatpush.msra.mxu0 0.0
        %4841 = vmatpush.msra.mxu0 0.0
        %4842 = vmatpush.msra.mxu0 0.0
        %4843 = vmatpush.msra.mxu0 0.0
        %4844 = vmatpush.msra.mxu0 %v4810
        %4845 = vmatpush.msra.mxu0 %v4809
        %4846 = vmatpush.msra.mxu0 %v4808
        %4847 = vmatpush.msra.mxu0 %v4807
        %4848 = vmatmul.f32.gmra.mxu0 %v4821
        %v4849 = vpop.f32.mrf.mxu0
        %v4850 = vadd.f32 0.0, %v4849
        %4851 = vmatmul.f32.gmra.mxu0 %v4824
        %v4852 = vpop.f32.mrf.mxu0
        %v4853 = vadd.f32 0.0, %v4852
        %4854 = vmatmul.f32.gmra.mxu0 %v4827
        %v4855 = vpop.f32.mrf.mxu0
        %v4856 = vadd.f32 0.0, %v4855
        %4857 = vmatmul.f32.gmra.mxu0 %v4830
        %v4858 = vpop.f32.mrf.mxu0
        %v4859 = vadd.f32 0.0, %v4858
        %4860 = vdwg.mxu0
        %4861 = vmatpush.msra.mxu0 0.0
        %4862 = vmatpush.msra.mxu0 0.0
        %4863 = vmatpush.msra.mxu0 0.0
        %4864 = vmatpush.msra.mxu0 0.0
        %4865 = vmatpush.msra.mxu0 0.0
        %4866 = vmatpush.msra.mxu0 0.0
        %4867 = vmatpush.msra.mxu0 0.0
        %4868 = vmatpush.msra.mxu0 0.0
        %4869 = vmatpush.msra.mxu0 0.0
        %4870 = vmatpush.msra.mxu0 0.0
        %4871 = vmatpush.msra.mxu0 0.0
        %4872 = vmatpush.msra.mxu0 0.0
        %4873 = vmatpush.msra.mxu0 %v4814
        %4874 = vmatpush.msra.mxu0 %v4813
        %4875 = vmatpush.msra.mxu0 %v4812
        %4876 = vmatpush.msra.mxu0 %v4811
        %4877 = vmatmul.f32.gmra.mxu0 %v4821
        %v4878 = vpop.f32.mrf.mxu0
        %v4879 = vadd.f32 0.0, %v4878
        %4880 = vmatmul.f32.gmra.mxu0 %v4824
        %v4881 = vpop.f32.mrf.mxu0
        %v4882 = vadd.f32 0.0, %v4881
        %4883 = vmatmul.f32.gmra.mxu0 %v4827
        %v4884 = vpop.f32.mrf.mxu0
        %v4885 = vadd.f32 0.0, %v4884
        %4886 = vmatmul.f32.gmra.mxu0 %v4830
        %v4887 = vpop.f32.mrf.mxu0
        %v4888 = vadd.f32 0.0, %v4887
        %4889 = vdwg.mxu0
        %v4890 = vadd.f32 %v4783, %v4850
        %v4891 = vadd.f32 %v4784, %v4879
        %v4892 = vadd.f32 %v4785, %v4853
        %v4893 = vadd.f32 %v4786, %v4882
        %v4894 = vadd.f32 %v4787, %v4856
        %v4895 = vadd.f32 %v4788, %v4885
        %v4896 = vadd.f32 %v4789, %v4859
        %v4897 = vadd.f32 %v4790, %v4888
        %4898 = vrot.lane.b32.xlu0 %v2683, 105
        %v4899 = vpop.permute.xlu0 %4898
        %4900 = vrot.lane.b32.xlu0 %v2685, 105
        %v4901 = vpop.permute.xlu0 %4900
        %4902 = vrot.lane.b32.xlu0 %v2687, 105
        %v4903 = vpop.permute.xlu0 %4902
        %4904 = vrot.lane.b32.xlu0 %v2689, 105
        %v4905 = vpop.permute.xlu0 %4904
        %4906 = vrot.lane.b32.xlu0 %v2684, 105
        %v4907 = vpop.permute.xlu0 %4906
        %4908 = vrot.lane.b32.xlu0 %v2686, 105
        %v4909 = vpop.permute.xlu0 %4908
        %4910 = vrot.lane.b32.xlu0 %v2688, 105
        %v4911 = vpop.permute.xlu0 %4910
        %4912 = vrot.lane.b32.xlu0 %v2690, 105
        %v4913 = vpop.permute.xlu0 %4912
        %v4914 = vsel %vm2282, %v4899, %v4907
        %v4915 = vsel %vm2282, %v4901, %v4909
        %v4916 = vsel %vm2282, %v4903, %v4911
        %v4917 = vsel %vm2282, %v4905, %v4913
        %v4918 = vsel %vm2282, %v4907, %v4899
        %v4919 = vsel %vm2282, %v4909, %v4901
        %v4920 = vsel %vm2282, %v4911, %v4903
        %v4921 = vsel %vm2282, %v4913, %v4905
        %s4922 = scalar_lea.vmem %s5, 672
        %v4923 = vld [vmem:[%s4922] sm:$0xff]
        %v4924 = vld [vmem:[%s4922 + $0x8] sm:$0xff]
        %v4925 = vld [vmem:[%s4922 + $0x10] sm:$0xff]
        %v4926 = vld [vmem:[%s4922 + $0x18] sm:$0xff]
        %v4928 = vsel %vm2748, %v4923, 0
        %v4931 = vsel %vm2748, %v4924, 0
        %v4934 = vsel %vm2748, %v4925, 0
        %v4937 = vsel %vm2748, %v4926, 0
        %4939 = vmatpush.msra.mxu0 0.0
        %4940 = vmatpush.msra.mxu0 0.0
        %4941 = vmatpush.msra.mxu0 0.0
        %4942 = vmatpush.msra.mxu0 0.0
        %4943 = vmatpush.msra.mxu0 0.0
        %4944 = vmatpush.msra.mxu0 0.0
        %4945 = vmatpush.msra.mxu0 0.0
        %4946 = vmatpush.msra.mxu0 0.0
        %4947 = vmatpush.msra.mxu0 0.0
        %4948 = vmatpush.msra.mxu0 0.0
        %4949 = vmatpush.msra.mxu0 0.0
        %4950 = vmatpush.msra.mxu0 0.0
        %4951 = vmatpush.msra.mxu0 %v4917
        %4952 = vmatpush.msra.mxu0 %v4916
        %4953 = vmatpush.msra.mxu0 %v4915
        %4954 = vmatpush.msra.mxu0 %v4914
        %4955 = vmatmul.f32.gmra.mxu0 %v4928
        %v4956 = vpop.f32.mrf.mxu0
        %v4957 = vadd.f32 0.0, %v4956
        %4958 = vmatmul.f32.gmra.mxu0 %v4931
        %v4959 = vpop.f32.mrf.mxu0
        %v4960 = vadd.f32 0.0, %v4959
        %4961 = vmatmul.f32.gmra.mxu0 %v4934
        %v4962 = vpop.f32.mrf.mxu0
        %v4963 = vadd.f32 0.0, %v4962
        %4964 = vmatmul.f32.gmra.mxu0 %v4937
        %v4965 = vpop.f32.mrf.mxu0
        %v4966 = vadd.f32 0.0, %v4965
        %4967 = vdwg.mxu0
        %4968 = vmatpush.msra.mxu0 0.0
        %4969 = vmatpush.msra.mxu0 0.0
        %4970 = vmatpush.msra.mxu0 0.0
        %4971 = vmatpush.msra.mxu0 0.0
        %4972 = vmatpush.msra.mxu0 0.0
        %4973 = vmatpush.msra.mxu0 0.0
        %4974 = vmatpush.msra.mxu0 0.0
        %4975 = vmatpush.msra.mxu0 0.0
        %4976 = vmatpush.msra.mxu0 0.0
        %4977 = vmatpush.msra.mxu0 0.0
        %4978 = vmatpush.msra.mxu0 0.0
        %4979 = vmatpush.msra.mxu0 0.0
        %4980 = vmatpush.msra.mxu0 %v4921
        %4981 = vmatpush.msra.mxu0 %v4920
        %4982 = vmatpush.msra.mxu0 %v4919
        %4983 = vmatpush.msra.mxu0 %v4918
        %4984 = vmatmul.f32.gmra.mxu0 %v4928
        %v4985 = vpop.f32.mrf.mxu0
        %v4986 = vadd.f32 0.0, %v4985
        %4987 = vmatmul.f32.gmra.mxu0 %v4931
        %v4988 = vpop.f32.mrf.mxu0
        %v4989 = vadd.f32 0.0, %v4988
        %4990 = vmatmul.f32.gmra.mxu0 %v4934
        %v4991 = vpop.f32.mrf.mxu0
        %v4992 = vadd.f32 0.0, %v4991
        %4993 = vmatmul.f32.gmra.mxu0 %v4937
        %v4994 = vpop.f32.mrf.mxu0
        %v4995 = vadd.f32 0.0, %v4994
        %4996 = vdwg.mxu0
        %v4997 = vadd.f32 %v4890, %v4957
        %v4998 = vadd.f32 %v4891, %v4986
        %v4999 = vadd.f32 %v4892, %v4960
        %v5000 = vadd.f32 %v4893, %v4989
        %v5001 = vadd.f32 %v4894, %v4963
        %v5002 = vadd.f32 %v4895, %v4992
        %v5003 = vadd.f32 %v4896, %v4966
        %v5004 = vadd.f32 %v4897, %v4995
        %5005 = vrot.lane.b32.xlu0 %v2683, 104
        %v5006 = vpop.permute.xlu0 %5005
        %5007 = vrot.lane.b32.xlu0 %v2685, 104
        %v5008 = vpop.permute.xlu0 %5007
        %5009 = vrot.lane.b32.xlu0 %v2687, 104
        %v5010 = vpop.permute.xlu0 %5009
        %5011 = vrot.lane.b32.xlu0 %v2689, 104
        %v5012 = vpop.permute.xlu0 %5011
        %5013 = vrot.lane.b32.xlu0 %v2684, 104
        %v5014 = vpop.permute.xlu0 %5013
        %5015 = vrot.lane.b32.xlu0 %v2686, 104
        %v5016 = vpop.permute.xlu0 %5015
        %5017 = vrot.lane.b32.xlu0 %v2688, 104
        %v5018 = vpop.permute.xlu0 %5017
        %5019 = vrot.lane.b32.xlu0 %v2690, 104
        %v5020 = vpop.permute.xlu0 %5019
        %v5021 = vsel %vm2372, %v5006, %v5014
        %v5022 = vsel %vm2372, %v5008, %v5016
        %v5023 = vsel %vm2372, %v5010, %v5018
        %v5024 = vsel %vm2372, %v5012, %v5020
        %v5025 = vsel %vm2372, %v5014, %v5006
        %v5026 = vsel %vm2372, %v5016, %v5008
        %v5027 = vsel %vm2372, %v5018, %v5010
        %v5028 = vsel %vm2372, %v5020, %v5012
        %s5029 = scalar_lea.vmem %s5, 704
        %v5030 = vld [vmem:[%s5029] sm:$0xff]
        %v5031 = vld [vmem:[%s5029 + $0x8] sm:$0xff]
        %v5032 = vld [vmem:[%s5029 + $0x10] sm:$0xff]
        %v5033 = vld [vmem:[%s5029 + $0x18] sm:$0xff]
        %v5035 = vsel %vm2748, %v5030, 0
        %v5038 = vsel %vm2748, %v5031, 0
        %v5041 = vsel %vm2748, %v5032, 0
        %v5044 = vsel %vm2748, %v5033, 0
        %5046 = vmatpush.msra.mxu0 0.0
        %5047 = vmatpush.msra.mxu0 0.0
        %5048 = vmatpush.msra.mxu0 0.0
        %5049 = vmatpush.msra.mxu0 0.0
        %5050 = vmatpush.msra.mxu0 0.0
        %5051 = vmatpush.msra.mxu0 0.0
        %5052 = vmatpush.msra.mxu0 0.0
        %5053 = vmatpush.msra.mxu0 0.0
        %5054 = vmatpush.msra.mxu0 0.0
        %5055 = vmatpush.msra.mxu0 0.0
        %5056 = vmatpush.msra.mxu0 0.0
        %5057 = vmatpush.msra.mxu0 0.0
        %5058 = vmatpush.msra.mxu0 %v5024
        %5059 = vmatpush.msra.mxu0 %v5023
        %5060 = vmatpush.msra.mxu0 %v5022
        %5061 = vmatpush.msra.mxu0 %v5021
        %5062 = vmatmul.f32.gmra.mxu0 %v5035
        %v5063 = vpop.f32.mrf.mxu0
        %v5064 = vadd.f32 0.0, %v5063
        %5065 = vmatmul.f32.gmra.mxu0 %v5038
        %v5066 = vpop.f32.mrf.mxu0
        %v5067 = vadd.f32 0.0, %v5066
        %5068 = vmatmul.f32.gmra.mxu0 %v5041
        %v5069 = vpop.f32.mrf.mxu0
        %v5070 = vadd.f32 0.0, %v5069
        %5071 = vmatmul.f32.gmra.mxu0 %v5044
        %v5072 = vpop.f32.mrf.mxu0
        %v5073 = vadd.f32 0.0, %v5072
        %5074 = vdwg.mxu0
        %5075 = vmatpush.msra.mxu0 0.0
        %5076 = vmatpush.msra.mxu0 0.0
        %5077 = vmatpush.msra.mxu0 0.0
        %5078 = vmatpush.msra.mxu0 0.0
        %5079 = vmatpush.msra.mxu0 0.0
        %5080 = vmatpush.msra.mxu0 0.0
        %5081 = vmatpush.msra.mxu0 0.0
        %5082 = vmatpush.msra.mxu0 0.0
        %5083 = vmatpush.msra.mxu0 0.0
        %5084 = vmatpush.msra.mxu0 0.0
        %5085 = vmatpush.msra.mxu0 0.0
        %5086 = vmatpush.msra.mxu0 0.0
        %5087 = vmatpush.msra.mxu0 %v5028
        %5088 = vmatpush.msra.mxu0 %v5027
        %5089 = vmatpush.msra.mxu0 %v5026
        %5090 = vmatpush.msra.mxu0 %v5025
        %5091 = vmatmul.f32.gmra.mxu0 %v5035
        %v5092 = vpop.f32.mrf.mxu0
        %v5093 = vadd.f32 0.0, %v5092
        %5094 = vmatmul.f32.gmra.mxu0 %v5038
        %v5095 = vpop.f32.mrf.mxu0
        %v5096 = vadd.f32 0.0, %v5095
        %5097 = vmatmul.f32.gmra.mxu0 %v5041
        %v5098 = vpop.f32.mrf.mxu0
        %v5099 = vadd.f32 0.0, %v5098
        %5100 = vmatmul.f32.gmra.mxu0 %v5044
        %v5101 = vpop.f32.mrf.mxu0
        %v5102 = vadd.f32 0.0, %v5101
        %5103 = vdwg.mxu0
        %v5104 = vadd.f32 %v4997, %v5064
        %v5105 = vadd.f32 %v4998, %v5093
        %v5106 = vadd.f32 %v4999, %v5067
        %v5107 = vadd.f32 %v5000, %v5096
        %v5108 = vadd.f32 %v5001, %v5070
        %v5109 = vadd.f32 %v5002, %v5099
        %v5110 = vadd.f32 %v5003, %v5073
        %v5111 = vadd.f32 %v5004, %v5102
        %5112 = vrot.lane.b32.xlu0 %v2683, 103
        %v5113 = vpop.permute.xlu0 %5112
        %5114 = vrot.lane.b32.xlu0 %v2685, 103
        %v5115 = vpop.permute.xlu0 %5114
        %5116 = vrot.lane.b32.xlu0 %v2687, 103
        %v5117 = vpop.permute.xlu0 %5116
        %5118 = vrot.lane.b32.xlu0 %v2689, 103
        %v5119 = vpop.permute.xlu0 %5118
        %5120 = vrot.lane.b32.xlu0 %v2684, 103
        %v5121 = vpop.permute.xlu0 %5120
        %5122 = vrot.lane.b32.xlu0 %v2686, 103
        %v5123 = vpop.permute.xlu0 %5122
        %5124 = vrot.lane.b32.xlu0 %v2688, 103
        %v5125 = vpop.permute.xlu0 %5124
        %5126 = vrot.lane.b32.xlu0 %v2690, 103
        %v5127 = vpop.permute.xlu0 %5126
        %v5128 = vsel %vm2462, %v5113, %v5121
        %v5129 = vsel %vm2462, %v5115, %v5123
        %v5130 = vsel %vm2462, %v5117, %v5125
        %v5131 = vsel %vm2462, %v5119, %v5127
        %v5132 = vsel %vm2462, %v5121, %v5113
        %v5133 = vsel %vm2462, %v5123, %v5115
        %v5134 = vsel %vm2462, %v5125, %v5117
        %v5135 = vsel %vm2462, %v5127, %v5119
        %s5136 = scalar_lea.vmem %s5, 736
        %v5137 = vld [vmem:[%s5136] sm:$0xff]
        %v5138 = vld [vmem:[%s5136 + $0x8] sm:$0xff]
        %v5139 = vld [vmem:[%s5136 + $0x10] sm:$0xff]
        %v5140 = vld [vmem:[%s5136 + $0x18] sm:$0xff]
        %v5142 = vsel %vm2748, %v5137, 0
        %v5145 = vsel %vm2748, %v5138, 0
        %v5148 = vsel %vm2748, %v5139, 0
        %v5151 = vsel %vm2748, %v5140, 0
        %5153 = vmatpush.msra.mxu0 0.0
        %5154 = vmatpush.msra.mxu0 0.0
        %5155 = vmatpush.msra.mxu0 0.0
        %5156 = vmatpush.msra.mxu0 0.0
        %5157 = vmatpush.msra.mxu0 0.0
        %5158 = vmatpush.msra.mxu0 0.0
        %5159 = vmatpush.msra.mxu0 0.0
        %5160 = vmatpush.msra.mxu0 0.0
        %5161 = vmatpush.msra.mxu0 0.0
        %5162 = vmatpush.msra.mxu0 0.0
        %5163 = vmatpush.msra.mxu0 0.0
        %5164 = vmatpush.msra.mxu0 0.0
        %5165 = vmatpush.msra.mxu0 %v5131
        %5166 = vmatpush.msra.mxu0 %v5130
        %5167 = vmatpush.msra.mxu0 %v5129
        %5168 = vmatpush.msra.mxu0 %v5128
        %5169 = vmatmul.f32.gmra.mxu0 %v5142
        %v5170 = vpop.f32.mrf.mxu0
        %v5171 = vadd.f32 0.0, %v5170
        %5172 = vmatmul.f32.gmra.mxu0 %v5145
        %v5173 = vpop.f32.mrf.mxu0
        %v5174 = vadd.f32 0.0, %v5173
        %5175 = vmatmul.f32.gmra.mxu0 %v5148
        %v5176 = vpop.f32.mrf.mxu0
        %v5177 = vadd.f32 0.0, %v5176
        %5178 = vmatmul.f32.gmra.mxu0 %v5151
        %v5179 = vpop.f32.mrf.mxu0
        %v5180 = vadd.f32 0.0, %v5179
        %5181 = vdwg.mxu0
        %5182 = vmatpush.msra.mxu0 0.0
        %5183 = vmatpush.msra.mxu0 0.0
        %5184 = vmatpush.msra.mxu0 0.0
        %5185 = vmatpush.msra.mxu0 0.0
        %5186 = vmatpush.msra.mxu0 0.0
        %5187 = vmatpush.msra.mxu0 0.0
        %5188 = vmatpush.msra.mxu0 0.0
        %5189 = vmatpush.msra.mxu0 0.0
        %5190 = vmatpush.msra.mxu0 0.0
        %5191 = vmatpush.msra.mxu0 0.0
        %5192 = vmatpush.msra.mxu0 0.0
        %5193 = vmatpush.msra.mxu0 0.0
        %5194 = vmatpush.msra.mxu0 %v5135
        %5195 = vmatpush.msra.mxu0 %v5134
        %5196 = vmatpush.msra.mxu0 %v5133
        %5197 = vmatpush.msra.mxu0 %v5132
        %5198 = vmatmul.f32.gmra.mxu0 %v5142
        %v5199 = vpop.f32.mrf.mxu0
        %v5200 = vadd.f32 0.0, %v5199
        %5201 = vmatmul.f32.gmra.mxu0 %v5145
        %v5202 = vpop.f32.mrf.mxu0
        %v5203 = vadd.f32 0.0, %v5202
        %5204 = vmatmul.f32.gmra.mxu0 %v5148
        %v5205 = vpop.f32.mrf.mxu0
        %v5206 = vadd.f32 0.0, %v5205
        %5207 = vmatmul.f32.gmra.mxu0 %v5151
        %v5208 = vpop.f32.mrf.mxu0
        %v5209 = vadd.f32 0.0, %v5208
        %5210 = vdwg.mxu0
        %v5211 = vadd.f32 %v5104, %v5171
        %v5212 = vadd.f32 %v5105, %v5200
        %v5213 = vadd.f32 %v5106, %v5174
        %v5214 = vadd.f32 %v5107, %v5203
        %v5215 = vadd.f32 %v5108, %v5177
        %v5216 = vadd.f32 %v5109, %v5206
        %v5217 = vadd.f32 %v5110, %v5180
        %v5218 = vadd.f32 %v5111, %v5209
        %5219 = vrot.lane.b32.xlu0 %v2683, 102
        %v5220 = vpop.permute.xlu0 %5219
        %5221 = vrot.lane.b32.xlu0 %v2685, 102
        %v5222 = vpop.permute.xlu0 %5221
        %5223 = vrot.lane.b32.xlu0 %v2687, 102
        %v5224 = vpop.permute.xlu0 %5223
        %5225 = vrot.lane.b32.xlu0 %v2689, 102
        %v5226 = vpop.permute.xlu0 %5225
        %5227 = vrot.lane.b32.xlu0 %v2684, 102
        %v5228 = vpop.permute.xlu0 %5227
        %5229 = vrot.lane.b32.xlu0 %v2686, 102
        %v5230 = vpop.permute.xlu0 %5229
        %5231 = vrot.lane.b32.xlu0 %v2688, 102
        %v5232 = vpop.permute.xlu0 %5231
        %5233 = vrot.lane.b32.xlu0 %v2690, 102
        %v5234 = vpop.permute.xlu0 %5233
        %v5235 = vsel %vm2552, %v5220, %v5228
        %v5236 = vsel %vm2552, %v5222, %v5230
        %v5237 = vsel %vm2552, %v5224, %v5232
        %v5238 = vsel %vm2552, %v5226, %v5234
        %v5239 = vsel %vm2552, %v5228, %v5220
        %v5240 = vsel %vm2552, %v5230, %v5222
        %v5241 = vsel %vm2552, %v5232, %v5224
        %v5242 = vsel %vm2552, %v5234, %v5226
        %s5243 = scalar_lea.vmem %s5, 768
        %v5244 = vld [vmem:[%s5243] sm:$0xff]
        %v5245 = vld [vmem:[%s5243 + $0x8] sm:$0xff]
        %v5246 = vld [vmem:[%s5243 + $0x10] sm:$0xff]
        %v5247 = vld [vmem:[%s5243 + $0x18] sm:$0xff]
        %v5249 = vsel %vm2748, %v5244, 0
        %v5252 = vsel %vm2748, %v5245, 0
        %v5255 = vsel %vm2748, %v5246, 0
        %v5258 = vsel %vm2748, %v5247, 0
        %5260 = vmatpush.msra.mxu0 0.0
        %5261 = vmatpush.msra.mxu0 0.0
        %5262 = vmatpush.msra.mxu0 0.0
        %5263 = vmatpush.msra.mxu0 0.0
        %5264 = vmatpush.msra.mxu0 0.0
        %5265 = vmatpush.msra.mxu0 0.0
        %5266 = vmatpush.msra.mxu0 0.0
        %5267 = vmatpush.msra.mxu0 0.0
        %5268 = vmatpush.msra.mxu0 0.0
        %5269 = vmatpush.msra.mxu0 0.0
        %5270 = vmatpush.msra.mxu0 0.0
        %5271 = vmatpush.msra.mxu0 0.0
        %5272 = vmatpush.msra.mxu0 %v5238
        %5273 = vmatpush.msra.mxu0 %v5237
        %5274 = vmatpush.msra.mxu0 %v5236
        %5275 = vmatpush.msra.mxu0 %v5235
        %5276 = vmatmul.f32.gmra.mxu0 %v5249
        %v5277 = vpop.f32.mrf.mxu0
        %v5278 = vadd.f32 0.0, %v5277
        %5279 = vmatmul.f32.gmra.mxu0 %v5252
        %v5280 = vpop.f32.mrf.mxu0
        %v5281 = vadd.f32 0.0, %v5280
        %5282 = vmatmul.f32.gmra.mxu0 %v5255
        %v5283 = vpop.f32.mrf.mxu0
        %v5284 = vadd.f32 0.0, %v5283
        %5285 = vmatmul.f32.gmra.mxu0 %v5258
        %v5286 = vpop.f32.mrf.mxu0
        %v5287 = vadd.f32 0.0, %v5286
        %5288 = vdwg.mxu0
        %5289 = vmatpush.msra.mxu0 0.0
        %5290 = vmatpush.msra.mxu0 0.0
        %5291 = vmatpush.msra.mxu0 0.0
        %5292 = vmatpush.msra.mxu0 0.0
        %5293 = vmatpush.msra.mxu0 0.0
        %5294 = vmatpush.msra.mxu0 0.0
        %5295 = vmatpush.msra.mxu0 0.0
        %5296 = vmatpush.msra.mxu0 0.0
        %5297 = vmatpush.msra.mxu0 0.0
        %5298 = vmatpush.msra.mxu0 0.0
        %5299 = vmatpush.msra.mxu0 0.0
        %5300 = vmatpush.msra.mxu0 0.0
        %5301 = vmatpush.msra.mxu0 %v5242
        %5302 = vmatpush.msra.mxu0 %v5241
        %5303 = vmatpush.msra.mxu0 %v5240
        %5304 = vmatpush.msra.mxu0 %v5239
        %5305 = vmatmul.f32.gmra.mxu0 %v5249
        %v5306 = vpop.f32.mrf.mxu0
        %v5307 = vadd.f32 0.0, %v5306
        %5308 = vmatmul.f32.gmra.mxu0 %v5252
        %v5309 = vpop.f32.mrf.mxu0
        %v5310 = vadd.f32 0.0, %v5309
        %5311 = vmatmul.f32.gmra.mxu0 %v5255
        %v5312 = vpop.f32.mrf.mxu0
        %v5313 = vadd.f32 0.0, %v5312
        %5314 = vmatmul.f32.gmra.mxu0 %v5258
        %v5315 = vpop.f32.mrf.mxu0
        %v5316 = vadd.f32 0.0, %v5315
        %5317 = vdwg.mxu0
        %v5318 = vadd.f32 %v5211, %v5278
        %v5319 = vadd.f32 %v5212, %v5307
        %v5320 = vadd.f32 %v5213, %v5281
        %v5321 = vadd.f32 %v5214, %v5310
        %v5322 = vadd.f32 %v5215, %v5284
        %v5323 = vadd.f32 %v5216, %v5313
        %v5324 = vadd.f32 %v5217, %v5287
        %v5325 = vadd.f32 %v5218, %v5316
        %v5326 = vld [vmem:[%s6] sm:$0xff]
        %v5327 = vld [vmem:[%s6 + $0x8] sm:$0xff]
        %v5328 = vld [vmem:[%s6 + $0x10] sm:$0xff]
        %v5329 = vld [vmem:[%s6 + $0x18] sm:$0xff]
        %5331 = vset.pattern.permute.xlu0 0
        %5332 = vperm.xlu0 %5331, %v5326
        %v5333 = vpop.permute.xlu0 %5332
        %5336 = vset.pattern.permute.xlu0 0
        %5337 = vperm.xlu0 %5336, %v5327
        %v5338 = vpop.permute.xlu0 %5337
        %5341 = vset.pattern.permute.xlu0 0
        %5342 = vperm.xlu0 %5341, %v5328
        %v5343 = vpop.permute.xlu0 %5342
        %5346 = vset.pattern.permute.xlu0 0
        %5347 = vperm.xlu0 %5346, %v5329
        %v5348 = vpop.permute.xlu0 %5347
        %v5350 = vadd.f32 %v5318, %v5333
        %v5351 = vadd.f32 %v5319, %v5333
        %v5352 = vadd.f32 %v5320, %v5338
        %v5353 = vadd.f32 %v5321, %v5338
        %v5354 = vadd.f32 %v5322, %v5343
        %v5355 = vadd.f32 %v5323, %v5343
        %v5356 = vadd.f32 %v5324, %v5348
        %v5357 = vadd.f32 %v5325, %v5348
        %v5358 = vmax.f32 %v5350, 0.0
        %v5359 = vmax.f32 %v5351, 0.0
        %v5360 = vmax.f32 %v5352, 0.0
        %v5361 = vmax.f32 %v5353, 0.0
        %v5362 = vmax.f32 %v5354, 0.0
        %v5363 = vmax.f32 %v5355, 0.0
        %v5364 = vmax.f32 %v5356, 0.0
        %v5365 = vmax.f32 %v5357, 0.0
        %v5366 = vmul.f32 %v5358, %v2679
        %v5367 = vmul.f32 %v5359, %v2680
        %v5368 = vmul.f32 %v5360, %v2679
        %v5369 = vmul.f32 %v5361, %v2680
        %v5370 = vmul.f32 %v5362, %v2679
        %v5371 = vmul.f32 %v5363, %v2680
        %v5372 = vmul.f32 %v5364, %v2679
        %v5373 = vmul.f32 %v5365, %v2680
        %5374 = vrot.lane.b32.xlu0 %v5366, 26
        %v5375 = vpop.permute.xlu0 %5374
        %5376 = vrot.lane.b32.xlu0 %v5368, 26
        %v5377 = vpop.permute.xlu0 %5376
        %5378 = vrot.lane.b32.xlu0 %v5370, 26
        %v5379 = vpop.permute.xlu0 %5378
        %5380 = vrot.lane.b32.xlu0 %v5372, 26
        %v5381 = vpop.permute.xlu0 %5380
        %5382 = vrot.lane.b32.xlu0 %v5367, 26
        %v5383 = vpop.permute.xlu0 %5382
        %5384 = vrot.lane.b32.xlu0 %v5369, 26
        %v5385 = vpop.permute.xlu0 %5384
        %5386 = vrot.lane.b32.xlu0 %v5371, 26
        %v5387 = vpop.permute.xlu0 %5386
        %5388 = vrot.lane.b32.xlu0 %v5373, 26
        %v5389 = vpop.permute.xlu0 %5388
        %v5390 = vsel %vm415, %v5375, %v5383
        %v5391 = vsel %vm415, %v5377, %v5385
        %v5392 = vsel %vm415, %v5379, %v5387
        %v5393 = vsel %vm415, %v5381, %v5389
        %v5394 = vsel %vm415, %v5383, %v5375
        %v5395 = vsel %vm415, %v5385, %v5377
        %v5396 = vsel %vm415, %v5387, %v5379
        %v5397 = vsel %vm415, %v5389, %v5381
        %v5398 = vld [vmem:[#allocation2] sm:$0xff]
        %v5399 = vld [vmem:[#allocation2 + $0x8] sm:$0xff]
        %v5400 = vld [vmem:[#allocation2 + $0x10] sm:$0xff]
        %v5401 = vld [vmem:[#allocation2 + $0x18] sm:$0xff]
        %5402 = vrot.lane.b32.xlu0 %v5366, 25
        %v5403 = vpop.permute.xlu0 %5402
        %5404 = vrot.lane.b32.xlu0 %v5368, 25
        %v5405 = vpop.permute.xlu0 %5404
        %5406 = vrot.lane.b32.xlu0 %v5370, 25
        %v5407 = vpop.permute.xlu0 %5406
        %5408 = vrot.lane.b32.xlu0 %v5372, 25
        %v5409 = vpop.permute.xlu0 %5408
        %5410 = vrot.lane.b32.xlu0 %v5367, 25
        %v5411 = vpop.permute.xlu0 %5410
        %5412 = vrot.lane.b32.xlu0 %v5369, 25
        %v5413 = vpop.permute.xlu0 %5412
        %5414 = vrot.lane.b32.xlu0 %v5371, 25
        %v5415 = vpop.permute.xlu0 %5414
        %5416 = vrot.lane.b32.xlu0 %v5373, 25
        %v5417 = vpop.permute.xlu0 %5416
        %v5418 = vsel %vm426, %v5403, %v5411
        %v5419 = vsel %vm426, %v5405, %v5413
        %v5420 = vsel %vm426, %v5407, %v5415
        %v5421 = vsel %vm426, %v5409, %v5417
        %v5422 = vsel %vm426, %v5411, %v5403
        %v5423 = vsel %vm426, %v5413, %v5405
        %v5424 = vsel %vm426, %v5415, %v5407
        %v5425 = vsel %vm426, %v5417, %v5409
        %s5426 = scalar_lea.vmem [#allocation2], 32
        %v5427 = vld [vmem:[%s5426] sm:$0xff]
        %v5428 = vld [vmem:[%s5426 + $0x8] sm:$0xff]
        %v5429 = vld [vmem:[%s5426 + $0x10] sm:$0xff]
        %v5430 = vld [vmem:[%s5426 + $0x18] sm:$0xff]
        %v5432 = vsel %vm2748, %v5427, 0
        %v5435 = vsel %vm2748, %v5428, 0
        %v5438 = vsel %vm2748, %v5429, 0
        %v5441 = vsel %vm2748, %v5430, 0
        %5443 = vmatpush.msra.mxu0 0.0
        %5444 = vmatpush.msra.mxu0 0.0
        %5445 = vmatpush.msra.mxu0 0.0
        %5446 = vmatpush.msra.mxu0 0.0
        %5447 = vmatpush.msra.mxu0 0.0
        %5448 = vmatpush.msra.mxu0 0.0
        %5449 = vmatpush.msra.mxu0 0.0
        %5450 = vmatpush.msra.mxu0 0.0
        %5451 = vmatpush.msra.mxu0 0.0
        %5452 = vmatpush.msra.mxu0 0.0
        %5453 = vmatpush.msra.mxu0 0.0
        %5454 = vmatpush.msra.mxu0 0.0
        %5455 = vmatpush.msra.mxu0 %v5425
        %5456 = vmatpush.msra.mxu0 %v5424
        %5457 = vmatpush.msra.mxu0 %v5423
        %5458 = vmatpush.msra.mxu0 %v5422
        %5459 = vmatmul.f32.gmra.mxu0 %v5432
        %v5460 = vpop.f32.mrf.mxu0
        %v5461 = vadd.f32 0.0, %v5460
        %5462 = vmatmul.f32.gmra.mxu0 %v5435
        %v5463 = vpop.f32.mrf.mxu0
        %v5464 = vadd.f32 0.0, %v5463
        %5465 = vmatmul.f32.gmra.mxu0 %v5438
        %v5466 = vpop.f32.mrf.mxu0
        %v5467 = vadd.f32 0.0, %v5466
        %5468 = vmatmul.f32.gmra.mxu0 %v5441
        %v5469 = vpop.f32.mrf.mxu0
        %v5470 = vadd.f32 0.0, %v5469
        %5471 = vdwg.mxu0
        %5472 = vmatpush.msra.mxu0 0.0
        %5473 = vmatpush.msra.mxu0 0.0
        %5474 = vmatpush.msra.mxu0 0.0
        %5475 = vmatpush.msra.mxu0 0.0
        %5476 = vmatpush.msra.mxu0 0.0
        %5477 = vmatpush.msra.mxu0 0.0
        %5478 = vmatpush.msra.mxu0 0.0
        %5479 = vmatpush.msra.mxu0 0.0
        %5480 = vmatpush.msra.mxu0 0.0
        %5481 = vmatpush.msra.mxu0 0.0
        %5482 = vmatpush.msra.mxu0 0.0
        %5483 = vmatpush.msra.mxu0 0.0
        %5484 = vmatpush.msra.mxu0 %v5421
        %5485 = vmatpush.msra.mxu0 %v5420
        %5486 = vmatpush.msra.mxu0 %v5419
        %5487 = vmatpush.msra.mxu0 %v5418
        %5488 = vmatmul.f32.gmra.mxu0 %v5432
        %v5489 = vpop.f32.mrf.mxu0
        %v5490 = vadd.f32 0.0, %v5489
        %5491 = vmatmul.f32.gmra.mxu0 %v5435
        %v5492 = vpop.f32.mrf.mxu0
        %v5493 = vadd.f32 0.0, %v5492
        %5494 = vmatmul.f32.gmra.mxu0 %v5438
        %v5495 = vpop.f32.mrf.mxu0
        %v5496 = vadd.f32 0.0, %v5495
        %5497 = vmatmul.f32.gmra.mxu0 %v5441
        %v5498 = vpop.f32.mrf.mxu0
        %v5499 = vadd.f32 0.0, %v5498
        %5500 = vdwg.mxu0
        %v5502 = vsel %vm2748, %v5398, 0
        %v5505 = vsel %vm2748, %v5399, 0
        %v5508 = vsel %vm2748, %v5400, 0
        %v5511 = vsel %vm2748, %v5401, 0
        %5513 = vmatpush.msra.mxu0 0.0
        %5514 = vmatpush.msra.mxu0 0.0
        %5515 = vmatpush.msra.mxu0 0.0
        %5516 = vmatpush.msra.mxu0 0.0
        %5517 = vmatpush.msra.mxu0 0.0
        %5518 = vmatpush.msra.mxu0 0.0
        %5519 = vmatpush.msra.mxu0 0.0
        %5520 = vmatpush.msra.mxu0 0.0
        %5521 = vmatpush.msra.mxu0 0.0
        %5522 = vmatpush.msra.mxu0 0.0
        %5523 = vmatpush.msra.mxu0 0.0
        %5524 = vmatpush.msra.mxu0 0.0
        %5525 = vmatpush.msra.mxu0 %v5397
        %5526 = vmatpush.msra.mxu0 %v5396
        %5527 = vmatpush.msra.mxu0 %v5395
        %5528 = vmatpush.msra.mxu0 %v5394
        %5529 = vmatmul.f32.gmra.mxu0 %v5502
        %v5530 = vpop.f32.mrf.mxu0
        %v5531 = vadd.f32 %v5461, %v5530
        %5532 = vmatmul.f32.gmra.mxu0 %v5505
        %v5533 = vpop.f32.mrf.mxu0
        %v5534 = vadd.f32 %v5464, %v5533
        %5535 = vmatmul.f32.gmra.mxu0 %v5508
        %v5536 = vpop.f32.mrf.mxu0
        %v5537 = vadd.f32 %v5467, %v5536
        %5538 = vmatmul.f32.gmra.mxu0 %v5511
        %v5539 = vpop.f32.mrf.mxu0
        %v5540 = vadd.f32 %v5470, %v5539
        %5541 = vdwg.mxu0
        %5542 = vmatpush.msra.mxu0 0.0
        %5543 = vmatpush.msra.mxu0 0.0
        %5544 = vmatpush.msra.mxu0 0.0
        %5545 = vmatpush.msra.mxu0 0.0
        %5546 = vmatpush.msra.mxu0 0.0
        %5547 = vmatpush.msra.mxu0 0.0
        %5548 = vmatpush.msra.mxu0 0.0
        %5549 = vmatpush.msra.mxu0 0.0
        %5550 = vmatpush.msra.mxu0 0.0
        %5551 = vmatpush.msra.mxu0 0.0
        %5552 = vmatpush.msra.mxu0 0.0
        %5553 = vmatpush.msra.mxu0 0.0
        %5554 = vmatpush.msra.mxu0 %v5393
        %5555 = vmatpush.msra.mxu0 %v5392
        %5556 = vmatpush.msra.mxu0 %v5391
        %5557 = vmatpush.msra.mxu0 %v5390
        %5558 = vmatmul.f32.gmra.mxu0 %v5502
        %v5559 = vpop.f32.mrf.mxu0
        %v5560 = vadd.f32 %v5490, %v5559
        %5561 = vmatmul.f32.gmra.mxu0 %v5505
        %v5562 = vpop.f32.mrf.mxu0
        %v5563 = vadd.f32 %v5493, %v5562
        %5564 = vmatmul.f32.gmra.mxu0 %v5508
        %v5565 = vpop.f32.mrf.mxu0
        %v5566 = vadd.f32 %v5496, %v5565
        %5567 = vmatmul.f32.gmra.mxu0 %v5511
        %v5568 = vpop.f32.mrf.mxu0
        %v5569 = vadd.f32 %v5499, %v5568
        %5570 = vdwg.mxu0
        %5571 = vrot.lane.b32.xlu0 %v5366, 24
        %v5572 = vpop.permute.xlu0 %5571
        %5573 = vrot.lane.b32.xlu0 %v5368, 24
        %v5574 = vpop.permute.xlu0 %5573
        %5575 = vrot.lane.b32.xlu0 %v5370, 24
        %v5576 = vpop.permute.xlu0 %5575
        %5577 = vrot.lane.b32.xlu0 %v5372, 24
        %v5578 = vpop.permute.xlu0 %5577
        %5579 = vrot.lane.b32.xlu0 %v5367, 24
        %v5580 = vpop.permute.xlu0 %5579
        %5581 = vrot.lane.b32.xlu0 %v5369, 24
        %v5582 = vpop.permute.xlu0 %5581
        %5583 = vrot.lane.b32.xlu0 %v5371, 24
        %v5584 = vpop.permute.xlu0 %5583
        %5585 = vrot.lane.b32.xlu0 %v5373, 24
        %v5586 = vpop.permute.xlu0 %5585
        %v5587 = vsel %vm579, %v5572, %v5580
        %v5588 = vsel %vm579, %v5574, %v5582
        %v5589 = vsel %vm579, %v5576, %v5584
        %v5590 = vsel %vm579, %v5578, %v5586
        %v5591 = vsel %vm579, %v5580, %v5572
        %v5592 = vsel %vm579, %v5582, %v5574
        %v5593 = vsel %vm579, %v5584, %v5576
        %v5594 = vsel %vm579, %v5586, %v5578
        %s5595 = scalar_lea.vmem [#allocation2], 64
        %v5596 = vld [vmem:[%s5595] sm:$0xff]
        %v5597 = vld [vmem:[%s5595 + $0x8] sm:$0xff]
        %v5598 = vld [vmem:[%s5595 + $0x10] sm:$0xff]
        %v5599 = vld [vmem:[%s5595 + $0x18] sm:$0xff]
        %v5601 = vsel %vm2748, %v5596, 0
        %v5604 = vsel %vm2748, %v5597, 0
        %v5607 = vsel %vm2748, %v5598, 0
        %v5610 = vsel %vm2748, %v5599, 0
        %5612 = vmatpush.msra.mxu0 0.0
        %5613 = vmatpush.msra.mxu0 0.0
        %5614 = vmatpush.msra.mxu0 0.0
        %5615 = vmatpush.msra.mxu0 0.0
        %5616 = vmatpush.msra.mxu0 0.0
        %5617 = vmatpush.msra.mxu0 0.0
        %5618 = vmatpush.msra.mxu0 0.0
        %5619 = vmatpush.msra.mxu0 0.0
        %5620 = vmatpush.msra.mxu0 0.0
        %5621 = vmatpush.msra.mxu0 0.0
        %5622 = vmatpush.msra.mxu0 0.0
        %5623 = vmatpush.msra.mxu0 0.0
        %5624 = vmatpush.msra.mxu0 %v5594
        %5625 = vmatpush.msra.mxu0 %v5593
        %5626 = vmatpush.msra.mxu0 %v5592
        %5627 = vmatpush.msra.mxu0 %v5591
        %5628 = vmatmul.f32.gmra.mxu0 %v5601
        %v5629 = vpop.f32.mrf.mxu0
        %v5630 = vadd.f32 0.0, %v5629
        %5631 = vmatmul.f32.gmra.mxu0 %v5604
        %v5632 = vpop.f32.mrf.mxu0
        %v5633 = vadd.f32 0.0, %v5632
        %5634 = vmatmul.f32.gmra.mxu0 %v5607
        %v5635 = vpop.f32.mrf.mxu0
        %v5636 = vadd.f32 0.0, %v5635
        %5637 = vmatmul.f32.gmra.mxu0 %v5610
        %v5638 = vpop.f32.mrf.mxu0
        %v5639 = vadd.f32 0.0, %v5638
        %5640 = vdwg.mxu0
        %5641 = vmatpush.msra.mxu0 0.0
        %5642 = vmatpush.msra.mxu0 0.0
        %5643 = vmatpush.msra.mxu0 0.0
        %5644 = vmatpush.msra.mxu0 0.0
        %5645 = vmatpush.msra.mxu0 0.0
        %5646 = vmatpush.msra.mxu0 0.0
        %5647 = vmatpush.msra.mxu0 0.0
        %5648 = vmatpush.msra.mxu0 0.0
        %5649 = vmatpush.msra.mxu0 0.0
        %5650 = vmatpush.msra.mxu0 0.0
        %5651 = vmatpush.msra.mxu0 0.0
        %5652 = vmatpush.msra.mxu0 0.0
        %5653 = vmatpush.msra.mxu0 %v5590
        %5654 = vmatpush.msra.mxu0 %v5589
        %5655 = vmatpush.msra.mxu0 %v5588
        %5656 = vmatpush.msra.mxu0 %v5587
        %5657 = vmatmul.f32.gmra.mxu0 %v5601
        %v5658 = vpop.f32.mrf.mxu0
        %v5659 = vadd.f32 0.0, %v5658
        %5660 = vmatmul.f32.gmra.mxu0 %v5604
        %v5661 = vpop.f32.mrf.mxu0
        %v5662 = vadd.f32 0.0, %v5661
        %5663 = vmatmul.f32.gmra.mxu0 %v5607
        %v5664 = vpop.f32.mrf.mxu0
        %v5665 = vadd.f32 0.0, %v5664
        %5666 = vmatmul.f32.gmra.mxu0 %v5610
        %v5667 = vpop.f32.mrf.mxu0
        %v5668 = vadd.f32 0.0, %v5667
        %5669 = vdwg.mxu0
        %v5670 = vadd.f32 %v5531, %v5630
        %v5671 = vadd.f32 %v5560, %v5659
        %v5672 = vadd.f32 %v5534, %v5633
        %v5673 = vadd.f32 %v5563, %v5662
        %v5674 = vadd.f32 %v5537, %v5636
        %v5675 = vadd.f32 %v5566, %v5665
        %v5676 = vadd.f32 %v5540, %v5639
        %v5677 = vadd.f32 %v5569, %v5668
        %5678 = vrot.lane.b32.xlu0 %v5366, 23
        %v5679 = vpop.permute.xlu0 %5678
        %5680 = vrot.lane.b32.xlu0 %v5368, 23
        %v5681 = vpop.permute.xlu0 %5680
        %5682 = vrot.lane.b32.xlu0 %v5370, 23
        %v5683 = vpop.permute.xlu0 %5682
        %5684 = vrot.lane.b32.xlu0 %v5372, 23
        %v5685 = vpop.permute.xlu0 %5684
        %5686 = vrot.lane.b32.xlu0 %v5367, 23
        %v5687 = vpop.permute.xlu0 %5686
        %5688 = vrot.lane.b32.xlu0 %v5369, 23
        %v5689 = vpop.permute.xlu0 %5688
        %5690 = vrot.lane.b32.xlu0 %v5371, 23
        %v5691 = vpop.permute.xlu0 %5690
        %5692 = vrot.lane.b32.xlu0 %v5373, 23
        %v5693 = vpop.permute.xlu0 %5692
        %v5694 = vsel %vm669, %v5679, %v5687
        %v5695 = vsel %vm669, %v5681, %v5689
        %v5696 = vsel %vm669, %v5683, %v5691
        %v5697 = vsel %vm669, %v5685, %v5693
        %v5698 = vsel %vm669, %v5687, %v5679
        %v5699 = vsel %vm669, %v5689, %v5681
        %v5700 = vsel %vm669, %v5691, %v5683
        %v5701 = vsel %vm669, %v5693, %v5685
        %s5702 = scalar_lea.vmem [#allocation2], 96
        %v5703 = vld [vmem:[%s5702] sm:$0xff]
        %v5704 = vld [vmem:[%s5702 + $0x8] sm:$0xff]
        %v5705 = vld [vmem:[%s5702 + $0x10] sm:$0xff]
        %v5706 = vld [vmem:[%s5702 + $0x18] sm:$0xff]
        %v5708 = vsel %vm2748, %v5703, 0
        %v5711 = vsel %vm2748, %v5704, 0
        %v5714 = vsel %vm2748, %v5705, 0
        %v5717 = vsel %vm2748, %v5706, 0
        %5719 = vmatpush.msra.mxu0 0.0
        %5720 = vmatpush.msra.mxu0 0.0
        %5721 = vmatpush.msra.mxu0 0.0
        %5722 = vmatpush.msra.mxu0 0.0
        %5723 = vmatpush.msra.mxu0 0.0
        %5724 = vmatpush.msra.mxu0 0.0
        %5725 = vmatpush.msra.mxu0 0.0
        %5726 = vmatpush.msra.mxu0 0.0
        %5727 = vmatpush.msra.mxu0 0.0
        %5728 = vmatpush.msra.mxu0 0.0
        %5729 = vmatpush.msra.mxu0 0.0
        %5730 = vmatpush.msra.mxu0 0.0
        %5731 = vmatpush.msra.mxu0 %v5701
        %5732 = vmatpush.msra.mxu0 %v5700
        %5733 = vmatpush.msra.mxu0 %v5699
        %5734 = vmatpush.msra.mxu0 %v5698
        %5735 = vmatmul.f32.gmra.mxu0 %v5708
        %v5736 = vpop.f32.mrf.mxu0
        %v5737 = vadd.f32 0.0, %v5736
        %5738 = vmatmul.f32.gmra.mxu0 %v5711
        %v5739 = vpop.f32.mrf.mxu0
        %v5740 = vadd.f32 0.0, %v5739
        %5741 = vmatmul.f32.gmra.mxu0 %v5714
        %v5742 = vpop.f32.mrf.mxu0
        %v5743 = vadd.f32 0.0, %v5742
        %5744 = vmatmul.f32.gmra.mxu0 %v5717
        %v5745 = vpop.f32.mrf.mxu0
        %v5746 = vadd.f32 0.0, %v5745
        %5747 = vdwg.mxu0
        %5748 = vmatpush.msra.mxu0 0.0
        %5749 = vmatpush.msra.mxu0 0.0
        %5750 = vmatpush.msra.mxu0 0.0
        %5751 = vmatpush.msra.mxu0 0.0
        %5752 = vmatpush.msra.mxu0 0.0
        %5753 = vmatpush.msra.mxu0 0.0
        %5754 = vmatpush.msra.mxu0 0.0
        %5755 = vmatpush.msra.mxu0 0.0
        %5756 = vmatpush.msra.mxu0 0.0
        %5757 = vmatpush.msra.mxu0 0.0
        %5758 = vmatpush.msra.mxu0 0.0
        %5759 = vmatpush.msra.mxu0 0.0
        %5760 = vmatpush.msra.mxu0 %v5697
        %5761 = vmatpush.msra.mxu0 %v5696
        %5762 = vmatpush.msra.mxu0 %v5695
        %5763 = vmatpush.msra.mxu0 %v5694
        %5764 = vmatmul.f32.gmra.mxu0 %v5708
        %v5765 = vpop.f32.mrf.mxu0
        %v5766 = vadd.f32 0.0, %v5765
        %5767 = vmatmul.f32.gmra.mxu0 %v5711
        %v5768 = vpop.f32.mrf.mxu0
        %v5769 = vadd.f32 0.0, %v5768
        %5770 = vmatmul.f32.gmra.mxu0 %v5714
        %v5771 = vpop.f32.mrf.mxu0
        %v5772 = vadd.f32 0.0, %v5771
        %5773 = vmatmul.f32.gmra.mxu0 %v5717
        %v5774 = vpop.f32.mrf.mxu0
        %v5775 = vadd.f32 0.0, %v5774
        %5776 = vdwg.mxu0
        %v5777 = vadd.f32 %v5670, %v5737
        %v5778 = vadd.f32 %v5671, %v5766
        %v5779 = vadd.f32 %v5672, %v5740
        %v5780 = vadd.f32 %v5673, %v5769
        %v5781 = vadd.f32 %v5674, %v5743
        %v5782 = vadd.f32 %v5675, %v5772
        %v5783 = vadd.f32 %v5676, %v5746
        %v5784 = vadd.f32 %v5677, %v5775
        %5785 = vrot.lane.b32.xlu0 %v5366, 22
        %v5786 = vpop.permute.xlu0 %5785
        %5787 = vrot.lane.b32.xlu0 %v5368, 22
        %v5788 = vpop.permute.xlu0 %5787
        %5789 = vrot.lane.b32.xlu0 %v5370, 22
        %v5790 = vpop.permute.xlu0 %5789
        %5791 = vrot.lane.b32.xlu0 %v5372, 22
        %v5792 = vpop.permute.xlu0 %5791
        %5793 = vrot.lane.b32.xlu0 %v5367, 22
        %v5794 = vpop.permute.xlu0 %5793
        %5795 = vrot.lane.b32.xlu0 %v5369, 22
        %v5796 = vpop.permute.xlu0 %5795
        %5797 = vrot.lane.b32.xlu0 %v5371, 22
        %v5798 = vpop.permute.xlu0 %5797
        %5799 = vrot.lane.b32.xlu0 %v5373, 22
        %v5800 = vpop.permute.xlu0 %5799
        %v5801 = vsel %vm759, %v5786, %v5794
        %v5802 = vsel %vm759, %v5788, %v5796
        %v5803 = vsel %vm759, %v5790, %v5798
        %v5804 = vsel %vm759, %v5792, %v5800
        %v5805 = vsel %vm759, %v5794, %v5786
        %v5806 = vsel %vm759, %v5796, %v5788
        %v5807 = vsel %vm759, %v5798, %v5790
        %v5808 = vsel %vm759, %v5800, %v5792
        %s5809 = scalar_lea.vmem [#allocation2], 128
        %v5810 = vld [vmem:[%s5809] sm:$0xff]
        %v5811 = vld [vmem:[%s5809 + $0x8] sm:$0xff]
        %v5812 = vld [vmem:[%s5809 + $0x10] sm:$0xff]
        %v5813 = vld [vmem:[%s5809 + $0x18] sm:$0xff]
        %v5815 = vsel %vm2748, %v5810, 0
        %v5818 = vsel %vm2748, %v5811, 0
        %v5821 = vsel %vm2748, %v5812, 0
        %v5824 = vsel %vm2748, %v5813, 0
        %5826 = vmatpush.msra.mxu0 0.0
        %5827 = vmatpush.msra.mxu0 0.0
        %5828 = vmatpush.msra.mxu0 0.0
        %5829 = vmatpush.msra.mxu0 0.0
        %5830 = vmatpush.msra.mxu0 0.0
        %5831 = vmatpush.msra.mxu0 0.0
        %5832 = vmatpush.msra.mxu0 0.0
        %5833 = vmatpush.msra.mxu0 0.0
        %5834 = vmatpush.msra.mxu0 0.0
        %5835 = vmatpush.msra.mxu0 0.0
        %5836 = vmatpush.msra.mxu0 0.0
        %5837 = vmatpush.msra.mxu0 0.0
        %5838 = vmatpush.msra.mxu0 %v5808
        %5839 = vmatpush.msra.mxu0 %v5807
        %5840 = vmatpush.msra.mxu0 %v5806
        %5841 = vmatpush.msra.mxu0 %v5805
        %5842 = vmatmul.f32.gmra.mxu0 %v5815
        %v5843 = vpop.f32.mrf.mxu0
        %v5844 = vadd.f32 0.0, %v5843
        %5845 = vmatmul.f32.gmra.mxu0 %v5818
        %v5846 = vpop.f32.mrf.mxu0
        %v5847 = vadd.f32 0.0, %v5846
        %5848 = vmatmul.f32.gmra.mxu0 %v5821
        %v5849 = vpop.f32.mrf.mxu0
        %v5850 = vadd.f32 0.0, %v5849
        %5851 = vmatmul.f32.gmra.mxu0 %v5824
        %v5852 = vpop.f32.mrf.mxu0
        %v5853 = vadd.f32 0.0, %v5852
        %5854 = vdwg.mxu0
        %5855 = vmatpush.msra.mxu0 0.0
        %5856 = vmatpush.msra.mxu0 0.0
        %5857 = vmatpush.msra.mxu0 0.0
        %5858 = vmatpush.msra.mxu0 0.0
        %5859 = vmatpush.msra.mxu0 0.0
        %5860 = vmatpush.msra.mxu0 0.0
        %5861 = vmatpush.msra.mxu0 0.0
        %5862 = vmatpush.msra.mxu0 0.0
        %5863 = vmatpush.msra.mxu0 0.0
        %5864 = vmatpush.msra.mxu0 0.0
        %5865 = vmatpush.msra.mxu0 0.0
        %5866 = vmatpush.msra.mxu0 0.0
        %5867 = vmatpush.msra.mxu0 %v5804
        %5868 = vmatpush.msra.mxu0 %v5803
        %5869 = vmatpush.msra.mxu0 %v5802
        %5870 = vmatpush.msra.mxu0 %v5801
        %5871 = vmatmul.f32.gmra.mxu0 %v5815
        %v5872 = vpop.f32.mrf.mxu0
        %v5873 = vadd.f32 0.0, %v5872
        %5874 = vmatmul.f32.gmra.mxu0 %v5818
        %v5875 = vpop.f32.mrf.mxu0
        %v5876 = vadd.f32 0.0, %v5875
        %5877 = vmatmul.f32.gmra.mxu0 %v5821
        %v5878 = vpop.f32.mrf.mxu0
        %v5879 = vadd.f32 0.0, %v5878
        %5880 = vmatmul.f32.gmra.mxu0 %v5824
        %v5881 = vpop.f32.mrf.mxu0
        %v5882 = vadd.f32 0.0, %v5881
        %5883 = vdwg.mxu0
        %v5884 = vadd.f32 %v5777, %v5844
        %v5885 = vadd.f32 %v5778, %v5873
        %v5886 = vadd.f32 %v5779, %v5847
        %v5887 = vadd.f32 %v5780, %v5876
        %v5888 = vadd.f32 %v5781, %v5850
        %v5889 = vadd.f32 %v5782, %v5879
        %v5890 = vadd.f32 %v5783, %v5853
        %v5891 = vadd.f32 %v5784, %v5882
        %5892 = vrot.lane.b32.xlu0 %v5366, 14
        %v5893 = vpop.permute.xlu0 %5892
        %5894 = vrot.lane.b32.xlu0 %v5368, 14
        %v5895 = vpop.permute.xlu0 %5894
        %5896 = vrot.lane.b32.xlu0 %v5370, 14
        %v5897 = vpop.permute.xlu0 %5896
        %5898 = vrot.lane.b32.xlu0 %v5372, 14
        %v5899 = vpop.permute.xlu0 %5898
        %5900 = vrot.lane.b32.xlu0 %v5367, 14
        %v5901 = vpop.permute.xlu0 %5900
        %5902 = vrot.lane.b32.xlu0 %v5369, 14
        %v5903 = vpop.permute.xlu0 %5902
        %5904 = vrot.lane.b32.xlu0 %v5371, 14
        %v5905 = vpop.permute.xlu0 %5904
        %5906 = vrot.lane.b32.xlu0 %v5373, 14
        %v5907 = vpop.permute.xlu0 %5906
        %v5908 = vsel %vm849, %v5893, %v5901
        %v5909 = vsel %vm849, %v5895, %v5903
        %v5910 = vsel %vm849, %v5897, %v5905
        %v5911 = vsel %vm849, %v5899, %v5907
        %v5912 = vsel %vm849, %v5901, %v5893
        %v5913 = vsel %vm849, %v5903, %v5895
        %v5914 = vsel %vm849, %v5905, %v5897
        %v5915 = vsel %vm849, %v5907, %v5899
        %s5916 = scalar_lea.vmem [#allocation2], 160
        %v5917 = vld [vmem:[%s5916] sm:$0xff]
        %v5918 = vld [vmem:[%s5916 + $0x8] sm:$0xff]
        %v5919 = vld [vmem:[%s5916 + $0x10] sm:$0xff]
        %v5920 = vld [vmem:[%s5916 + $0x18] sm:$0xff]
        %v5922 = vsel %vm2748, %v5917, 0
        %v5925 = vsel %vm2748, %v5918, 0
        %v5928 = vsel %vm2748, %v5919, 0
        %v5931 = vsel %vm2748, %v5920, 0
        %5933 = vmatpush.msra.mxu0 0.0
        %5934 = vmatpush.msra.mxu0 0.0
        %5935 = vmatpush.msra.mxu0 0.0
        %5936 = vmatpush.msra.mxu0 0.0
        %5937 = vmatpush.msra.mxu0 0.0
        %5938 = vmatpush.msra.mxu0 0.0
        %5939 = vmatpush.msra.mxu0 0.0
        %5940 = vmatpush.msra.mxu0 0.0
        %5941 = vmatpush.msra.mxu0 0.0
        %5942 = vmatpush.msra.mxu0 0.0
        %5943 = vmatpush.msra.mxu0 0.0
        %5944 = vmatpush.msra.mxu0 0.0
        %5945 = vmatpush.msra.mxu0 %v5915
        %5946 = vmatpush.msra.mxu0 %v5914
        %5947 = vmatpush.msra.mxu0 %v5913
        %5948 = vmatpush.msra.mxu0 %v5912
        %5949 = vmatmul.f32.gmra.mxu0 %v5922
        %v5950 = vpop.f32.mrf.mxu0
        %v5951 = vadd.f32 0.0, %v5950
        %5952 = vmatmul.f32.gmra.mxu0 %v5925
        %v5953 = vpop.f32.mrf.mxu0
        %v5954 = vadd.f32 0.0, %v5953
        %5955 = vmatmul.f32.gmra.mxu0 %v5928
        %v5956 = vpop.f32.mrf.mxu0
        %v5957 = vadd.f32 0.0, %v5956
        %5958 = vmatmul.f32.gmra.mxu0 %v5931
        %v5959 = vpop.f32.mrf.mxu0
        %v5960 = vadd.f32 0.0, %v5959
        %5961 = vdwg.mxu0
        %5962 = vmatpush.msra.mxu0 0.0
        %5963 = vmatpush.msra.mxu0 0.0
        %5964 = vmatpush.msra.mxu0 0.0
        %5965 = vmatpush.msra.mxu0 0.0
        %5966 = vmatpush.msra.mxu0 0.0
        %5967 = vmatpush.msra.mxu0 0.0
        %5968 = vmatpush.msra.mxu0 0.0
        %5969 = vmatpush.msra.mxu0 0.0
        %5970 = vmatpush.msra.mxu0 0.0
        %5971 = vmatpush.msra.mxu0 0.0
        %5972 = vmatpush.msra.mxu0 0.0
        %5973 = vmatpush.msra.mxu0 0.0
        %5974 = vmatpush.msra.mxu0 %v5911
        %5975 = vmatpush.msra.mxu0 %v5910
        %5976 = vmatpush.msra.mxu0 %v5909
        %5977 = vmatpush.msra.mxu0 %v5908
        %5978 = vmatmul.f32.gmra.mxu0 %v5922
        %v5979 = vpop.f32.mrf.mxu0
        %v5980 = vadd.f32 0.0, %v5979
        %5981 = vmatmul.f32.gmra.mxu0 %v5925
        %v5982 = vpop.f32.mrf.mxu0
        %v5983 = vadd.f32 0.0, %v5982
        %5984 = vmatmul.f32.gmra.mxu0 %v5928
        %v5985 = vpop.f32.mrf.mxu0
        %v5986 = vadd.f32 0.0, %v5985
        %5987 = vmatmul.f32.gmra.mxu0 %v5931
        %v5988 = vpop.f32.mrf.mxu0
        %v5989 = vadd.f32 0.0, %v5988
        %5990 = vdwg.mxu0
        %v5991 = vadd.f32 %v5884, %v5951
        %v5992 = vadd.f32 %v5885, %v5980
        %v5993 = vadd.f32 %v5886, %v5954
        %v5994 = vadd.f32 %v5887, %v5983
        %v5995 = vadd.f32 %v5888, %v5957
        %v5996 = vadd.f32 %v5889, %v5986
        %v5997 = vadd.f32 %v5890, %v5960
        %v5998 = vadd.f32 %v5891, %v5989
        %5999 = vrot.lane.b32.xlu0 %v5366, 13
        %v6000 = vpop.permute.xlu0 %5999
        %6001 = vrot.lane.b32.xlu0 %v5368, 13
        %v6002 = vpop.permute.xlu0 %6001
        %6003 = vrot.lane.b32.xlu0 %v5370, 13
        %v6004 = vpop.permute.xlu0 %6003
        %6005 = vrot.lane.b32.xlu0 %v5372, 13
        %v6006 = vpop.permute.xlu0 %6005
        %6007 = vrot.lane.b32.xlu0 %v5367, 13
        %v6008 = vpop.permute.xlu0 %6007
        %6009 = vrot.lane.b32.xlu0 %v5369, 13
        %v6010 = vpop.permute.xlu0 %6009
        %6011 = vrot.lane.b32.xlu0 %v5371, 13
        %v6012 = vpop.permute.xlu0 %6011
        %6013 = vrot.lane.b32.xlu0 %v5373, 13
        %v6014 = vpop.permute.xlu0 %6013
        %v6015 = vsel %vm939, %v6000, %v6008
        %v6016 = vsel %vm939, %v6002, %v6010
        %v6017 = vsel %vm939, %v6004, %v6012
        %v6018 = vsel %vm939, %v6006, %v6014
        %v6019 = vsel %vm939, %v6008, %v6000
        %v6020 = vsel %vm939, %v6010, %v6002
        %v6021 = vsel %vm939, %v6012, %v6004
        %v6022 = vsel %vm939, %v6014, %v6006
        %s6023 = scalar_lea.vmem [#allocation2], 192
        %v6024 = vld [vmem:[%s6023] sm:$0xff]
        %v6025 = vld [vmem:[%s6023 + $0x8] sm:$0xff]
        %v6026 = vld [vmem:[%s6023 + $0x10] sm:$0xff]
        %v6027 = vld [vmem:[%s6023 + $0x18] sm:$0xff]
        %v6029 = vsel %vm2748, %v6024, 0
        %v6032 = vsel %vm2748, %v6025, 0
        %v6035 = vsel %vm2748, %v6026, 0
        %v6038 = vsel %vm2748, %v6027, 0
        %6040 = vmatpush.msra.mxu0 0.0
        %6041 = vmatpush.msra.mxu0 0.0
        %6042 = vmatpush.msra.mxu0 0.0
        %6043 = vmatpush.msra.mxu0 0.0
        %6044 = vmatpush.msra.mxu0 0.0
        %6045 = vmatpush.msra.mxu0 0.0
        %6046 = vmatpush.msra.mxu0 0.0
        %6047 = vmatpush.msra.mxu0 0.0
        %6048 = vmatpush.msra.mxu0 0.0
        %6049 = vmatpush.msra.mxu0 0.0
        %6050 = vmatpush.msra.mxu0 0.0
        %6051 = vmatpush.msra.mxu0 0.0
        %6052 = vmatpush.msra.mxu0 %v6022
        %6053 = vmatpush.msra.mxu0 %v6021
        %6054 = vmatpush.msra.mxu0 %v6020
        %6055 = vmatpush.msra.mxu0 %v6019
        %6056 = vmatmul.f32.gmra.mxu0 %v6029
        %v6057 = vpop.f32.mrf.mxu0
        %v6058 = vadd.f32 0.0, %v6057
        %6059 = vmatmul.f32.gmra.mxu0 %v6032
        %v6060 = vpop.f32.mrf.mxu0
        %v6061 = vadd.f32 0.0, %v6060
        %6062 = vmatmul.f32.gmra.mxu0 %v6035
        %v6063 = vpop.f32.mrf.mxu0
        %v6064 = vadd.f32 0.0, %v6063
        %6065 = vmatmul.f32.gmra.mxu0 %v6038
        %v6066 = vpop.f32.mrf.mxu0
        %v6067 = vadd.f32 0.0, %v6066
        %6068 = vdwg.mxu0
        %6069 = vmatpush.msra.mxu0 0.0
        %6070 = vmatpush.msra.mxu0 0.0
        %6071 = vmatpush.msra.mxu0 0.0
        %6072 = vmatpush.msra.mxu0 0.0
        %6073 = vmatpush.msra.mxu0 0.0
        %6074 = vmatpush.msra.mxu0 0.0
        %6075 = vmatpush.msra.mxu0 0.0
        %6076 = vmatpush.msra.mxu0 0.0
        %6077 = vmatpush.msra.mxu0 0.0
        %6078 = vmatpush.msra.mxu0 0.0
        %6079 = vmatpush.msra.mxu0 0.0
        %6080 = vmatpush.msra.mxu0 0.0
        %6081 = vmatpush.msra.mxu0 %v6018
        %6082 = vmatpush.msra.mxu0 %v6017
        %6083 = vmatpush.msra.mxu0 %v6016
        %6084 = vmatpush.msra.mxu0 %v6015
        %6085 = vmatmul.f32.gmra.mxu0 %v6029
        %v6086 = vpop.f32.mrf.mxu0
        %v6087 = vadd.f32 0.0, %v6086
        %6088 = vmatmul.f32.gmra.mxu0 %v6032
        %v6089 = vpop.f32.mrf.mxu0
        %v6090 = vadd.f32 0.0, %v6089
        %6091 = vmatmul.f32.gmra.mxu0 %v6035
        %v6092 = vpop.f32.mrf.mxu0
        %v6093 = vadd.f32 0.0, %v6092
        %6094 = vmatmul.f32.gmra.mxu0 %v6038
        %v6095 = vpop.f32.mrf.mxu0
        %v6096 = vadd.f32 0.0, %v6095
        %6097 = vdwg.mxu0
        %v6098 = vadd.f32 %v5991, %v6058
        %v6099 = vadd.f32 %v5992, %v6087
        %v6100 = vadd.f32 %v5993, %v6061
        %v6101 = vadd.f32 %v5994, %v6090
        %v6102 = vadd.f32 %v5995, %v6064
        %v6103 = vadd.f32 %v5996, %v6093
        %v6104 = vadd.f32 %v5997, %v6067
        %v6105 = vadd.f32 %v5998, %v6096
        %6106 = vrot.lane.b32.xlu0 %v5366, 12
        %v6107 = vpop.permute.xlu0 %6106
        %6108 = vrot.lane.b32.xlu0 %v5368, 12
        %v6109 = vpop.permute.xlu0 %6108
        %6110 = vrot.lane.b32.xlu0 %v5370, 12
        %v6111 = vpop.permute.xlu0 %6110
        %6112 = vrot.lane.b32.xlu0 %v5372, 12
        %v6113 = vpop.permute.xlu0 %6112
        %6114 = vrot.lane.b32.xlu0 %v5367, 12
        %v6115 = vpop.permute.xlu0 %6114
        %6116 = vrot.lane.b32.xlu0 %v5369, 12
        %v6117 = vpop.permute.xlu0 %6116
        %6118 = vrot.lane.b32.xlu0 %v5371, 12
        %v6119 = vpop.permute.xlu0 %6118
        %6120 = vrot.lane.b32.xlu0 %v5373, 12
        %v6121 = vpop.permute.xlu0 %6120
        %v6122 = vsel %vm1029, %v6107, %v6115
        %v6123 = vsel %vm1029, %v6109, %v6117
        %v6124 = vsel %vm1029, %v6111, %v6119
        %v6125 = vsel %vm1029, %v6113, %v6121
        %v6126 = vsel %vm1029, %v6115, %v6107
        %v6127 = vsel %vm1029, %v6117, %v6109
        %v6128 = vsel %vm1029, %v6119, %v6111
        %v6129 = vsel %vm1029, %v6121, %v6113
        %s6130 = scalar_lea.vmem [#allocation2], 224
        %v6131 = vld [vmem:[%s6130] sm:$0xff]
        %v6132 = vld [vmem:[%s6130 + $0x8] sm:$0xff]
        %v6133 = vld [vmem:[%s6130 + $0x10] sm:$0xff]
        %v6134 = vld [vmem:[%s6130 + $0x18] sm:$0xff]
        %v6136 = vsel %vm2748, %v6131, 0
        %v6139 = vsel %vm2748, %v6132, 0
        %v6142 = vsel %vm2748, %v6133, 0
        %v6145 = vsel %vm2748, %v6134, 0
        %6147 = vmatpush.msra.mxu0 0.0
        %6148 = vmatpush.msra.mxu0 0.0
        %6149 = vmatpush.msra.mxu0 0.0
        %6150 = vmatpush.msra.mxu0 0.0
        %6151 = vmatpush.msra.mxu0 0.0
        %6152 = vmatpush.msra.mxu0 0.0
        %6153 = vmatpush.msra.mxu0 0.0
        %6154 = vmatpush.msra.mxu0 0.0
        %6155 = vmatpush.msra.mxu0 0.0
        %6156 = vmatpush.msra.mxu0 0.0
        %6157 = vmatpush.msra.mxu0 0.0
        %6158 = vmatpush.msra.mxu0 0.0
        %6159 = vmatpush.msra.mxu0 %v6129
        %6160 = vmatpush.msra.mxu0 %v6128
        %6161 = vmatpush.msra.mxu0 %v6127
        %6162 = vmatpush.msra.mxu0 %v6126
        %6163 = vmatmul.f32.gmra.mxu0 %v6136
        %v6164 = vpop.f32.mrf.mxu0
        %v6165 = vadd.f32 0.0, %v6164
        %6166 = vmatmul.f32.gmra.mxu0 %v6139
        %v6167 = vpop.f32.mrf.mxu0
        %v6168 = vadd.f32 0.0, %v6167
        %6169 = vmatmul.f32.gmra.mxu0 %v6142
        %v6170 = vpop.f32.mrf.mxu0
        %v6171 = vadd.f32 0.0, %v6170
        %6172 = vmatmul.f32.gmra.mxu0 %v6145
        %v6173 = vpop.f32.mrf.mxu0
        %v6174 = vadd.f32 0.0, %v6173
        %6175 = vdwg.mxu0
        %6176 = vmatpush.msra.mxu0 0.0
        %6177 = vmatpush.msra.mxu0 0.0
        %6178 = vmatpush.msra.mxu0 0.0
        %6179 = vmatpush.msra.mxu0 0.0
        %6180 = vmatpush.msra.mxu0 0.0
        %6181 = vmatpush.msra.mxu0 0.0
        %6182 = vmatpush.msra.mxu0 0.0
        %6183 = vmatpush.msra.mxu0 0.0
        %6184 = vmatpush.msra.mxu0 0.0
        %6185 = vmatpush.msra.mxu0 0.0
        %6186 = vmatpush.msra.mxu0 0.0
        %6187 = vmatpush.msra.mxu0 0.0
        %6188 = vmatpush.msra.mxu0 %v6125
        %6189 = vmatpush.msra.mxu0 %v6124
        %6190 = vmatpush.msra.mxu0 %v6123
        %6191 = vmatpush.msra.mxu0 %v6122
        %6192 = vmatmul.f32.gmra.mxu0 %v6136
        %v6193 = vpop.f32.mrf.mxu0
        %v6194 = vadd.f32 0.0, %v6193
        %6195 = vmatmul.f32.gmra.mxu0 %v6139
        %v6196 = vpop.f32.mrf.mxu0
        %v6197 = vadd.f32 0.0, %v6196
        %6198 = vmatmul.f32.gmra.mxu0 %v6142
        %v6199 = vpop.f32.mrf.mxu0
        %v6200 = vadd.f32 0.0, %v6199
        %6201 = vmatmul.f32.gmra.mxu0 %v6145
        %v6202 = vpop.f32.mrf.mxu0
        %v6203 = vadd.f32 0.0, %v6202
        %6204 = vdwg.mxu0
        %v6205 = vadd.f32 %v6098, %v6165
        %v6206 = vadd.f32 %v6099, %v6194
        %v6207 = vadd.f32 %v6100, %v6168
        %v6208 = vadd.f32 %v6101, %v6197
        %v6209 = vadd.f32 %v6102, %v6171
        %v6210 = vadd.f32 %v6103, %v6200
        %v6211 = vadd.f32 %v6104, %v6174
        %v6212 = vadd.f32 %v6105, %v6203
        %6213 = vrot.lane.b32.xlu0 %v5366, 11
        %v6214 = vpop.permute.xlu0 %6213
        %6215 = vrot.lane.b32.xlu0 %v5368, 11
        %v6216 = vpop.permute.xlu0 %6215
        %6217 = vrot.lane.b32.xlu0 %v5370, 11
        %v6218 = vpop.permute.xlu0 %6217
        %6219 = vrot.lane.b32.xlu0 %v5372, 11
        %v6220 = vpop.permute.xlu0 %6219
        %6221 = vrot.lane.b32.xlu0 %v5367, 11
        %v6222 = vpop.permute.xlu0 %6221
        %6223 = vrot.lane.b32.xlu0 %v5369, 11
        %v6224 = vpop.permute.xlu0 %6223
        %6225 = vrot.lane.b32.xlu0 %v5371, 11
        %v6226 = vpop.permute.xlu0 %6225
        %6227 = vrot.lane.b32.xlu0 %v5373, 11
        %v6228 = vpop.permute.xlu0 %6227
        %v6229 = vsel %vm1119, %v6214, %v6222
        %v6230 = vsel %vm1119, %v6216, %v6224
        %v6231 = vsel %vm1119, %v6218, %v6226
        %v6232 = vsel %vm1119, %v6220, %v6228
        %v6233 = vsel %vm1119, %v6222, %v6214
        %v6234 = vsel %vm1119, %v6224, %v6216
        %v6235 = vsel %vm1119, %v6226, %v6218
        %v6236 = vsel %vm1119, %v6228, %v6220
        %s6237 = scalar_lea.vmem [#allocation2], 256
        %v6238 = vld [vmem:[%s6237] sm:$0xff]
        %v6239 = vld [vmem:[%s6237 + $0x8] sm:$0xff]
        %v6240 = vld [vmem:[%s6237 + $0x10] sm:$0xff]
        %v6241 = vld [vmem:[%s6237 + $0x18] sm:$0xff]
        %v6243 = vsel %vm2748, %v6238, 0
        %v6246 = vsel %vm2748, %v6239, 0
        %v6249 = vsel %vm2748, %v6240, 0
        %v6252 = vsel %vm2748, %v6241, 0
        %6254 = vmatpush.msra.mxu0 0.0
        %6255 = vmatpush.msra.mxu0 0.0
        %6256 = vmatpush.msra.mxu0 0.0
        %6257 = vmatpush.msra.mxu0 0.0
        %6258 = vmatpush.msra.mxu0 0.0
        %6259 = vmatpush.msra.mxu0 0.0
        %6260 = vmatpush.msra.mxu0 0.0
        %6261 = vmatpush.msra.mxu0 0.0
        %6262 = vmatpush.msra.mxu0 0.0
        %6263 = vmatpush.msra.mxu0 0.0
        %6264 = vmatpush.msra.mxu0 0.0
        %6265 = vmatpush.msra.mxu0 0.0
        %6266 = vmatpush.msra.mxu0 %v6236
        %6267 = vmatpush.msra.mxu0 %v6235
        %6268 = vmatpush.msra.mxu0 %v6234
        %6269 = vmatpush.msra.mxu0 %v6233
        %6270 = vmatmul.f32.gmra.mxu0 %v6243
        %v6271 = vpop.f32.mrf.mxu0
        %v6272 = vadd.f32 0.0, %v6271
        %6273 = vmatmul.f32.gmra.mxu0 %v6246
        %v6274 = vpop.f32.mrf.mxu0
        %v6275 = vadd.f32 0.0, %v6274
        %6276 = vmatmul.f32.gmra.mxu0 %v6249
        %v6277 = vpop.f32.mrf.mxu0
        %v6278 = vadd.f32 0.0, %v6277
        %6279 = vmatmul.f32.gmra.mxu0 %v6252
        %v6280 = vpop.f32.mrf.mxu0
        %v6281 = vadd.f32 0.0, %v6280
        %6282 = vdwg.mxu0
        %6283 = vmatpush.msra.mxu0 0.0
        %6284 = vmatpush.msra.mxu0 0.0
        %6285 = vmatpush.msra.mxu0 0.0
        %6286 = vmatpush.msra.mxu0 0.0
        %6287 = vmatpush.msra.mxu0 0.0
        %6288 = vmatpush.msra.mxu0 0.0
        %6289 = vmatpush.msra.mxu0 0.0
        %6290 = vmatpush.msra.mxu0 0.0
        %6291 = vmatpush.msra.mxu0 0.0
        %6292 = vmatpush.msra.mxu0 0.0
        %6293 = vmatpush.msra.mxu0 0.0
        %6294 = vmatpush.msra.mxu0 0.0
        %6295 = vmatpush.msra.mxu0 %v6232
        %6296 = vmatpush.msra.mxu0 %v6231
        %6297 = vmatpush.msra.mxu0 %v6230
        %6298 = vmatpush.msra.mxu0 %v6229
        %6299 = vmatmul.f32.gmra.mxu0 %v6243
        %v6300 = vpop.f32.mrf.mxu0
        %v6301 = vadd.f32 0.0, %v6300
        %6302 = vmatmul.f32.gmra.mxu0 %v6246
        %v6303 = vpop.f32.mrf.mxu0
        %v6304 = vadd.f32 0.0, %v6303
        %6305 = vmatmul.f32.gmra.mxu0 %v6249
        %v6306 = vpop.f32.mrf.mxu0
        %v6307 = vadd.f32 0.0, %v6306
        %6308 = vmatmul.f32.gmra.mxu0 %v6252
        %v6309 = vpop.f32.mrf.mxu0
        %v6310 = vadd.f32 0.0, %v6309
        %6311 = vdwg.mxu0
        %v6312 = vadd.f32 %v6205, %v6272
        %v6313 = vadd.f32 %v6206, %v6301
        %v6314 = vadd.f32 %v6207, %v6275
        %v6315 = vadd.f32 %v6208, %v6304
        %v6316 = vadd.f32 %v6209, %v6278
        %v6317 = vadd.f32 %v6210, %v6307
        %v6318 = vadd.f32 %v6211, %v6281
        %v6319 = vadd.f32 %v6212, %v6310
        %6320 = vrot.lane.b32.xlu0 %v5366, 10
        %v6321 = vpop.permute.xlu0 %6320
        %6322 = vrot.lane.b32.xlu0 %v5368, 10
        %v6323 = vpop.permute.xlu0 %6322
        %6324 = vrot.lane.b32.xlu0 %v5370, 10
        %v6325 = vpop.permute.xlu0 %6324
        %6326 = vrot.lane.b32.xlu0 %v5372, 10
        %v6327 = vpop.permute.xlu0 %6326
        %6328 = vrot.lane.b32.xlu0 %v5367, 10
        %v6329 = vpop.permute.xlu0 %6328
        %6330 = vrot.lane.b32.xlu0 %v5369, 10
        %v6331 = vpop.permute.xlu0 %6330
        %6332 = vrot.lane.b32.xlu0 %v5371, 10
        %v6333 = vpop.permute.xlu0 %6332
        %6334 = vrot.lane.b32.xlu0 %v5373, 10
        %v6335 = vpop.permute.xlu0 %6334
        %v6336 = vsel %vm1209, %v6321, %v6329
        %v6337 = vsel %vm1209, %v6323, %v6331
        %v6338 = vsel %vm1209, %v6325, %v6333
        %v6339 = vsel %vm1209, %v6327, %v6335
        %v6340 = vsel %vm1209, %v6329, %v6321
        %v6341 = vsel %vm1209, %v6331, %v6323
        %v6342 = vsel %vm1209, %v6333, %v6325
        %v6343 = vsel %vm1209, %v6335, %v6327
        %s6344 = scalar_lea.vmem [#allocation2], 288
        %v6345 = vld [vmem:[%s6344] sm:$0xff]
        %v6346 = vld [vmem:[%s6344 + $0x8] sm:$0xff]
        %v6347 = vld [vmem:[%s6344 + $0x10] sm:$0xff]
        %v6348 = vld [vmem:[%s6344 + $0x18] sm:$0xff]
        %v6350 = vsel %vm2748, %v6345, 0
        %v6353 = vsel %vm2748, %v6346, 0
        %v6356 = vsel %vm2748, %v6347, 0
        %v6359 = vsel %vm2748, %v6348, 0
        %6361 = vmatpush.msra.mxu0 0.0
        %6362 = vmatpush.msra.mxu0 0.0
        %6363 = vmatpush.msra.mxu0 0.0
        %6364 = vmatpush.msra.mxu0 0.0
        %6365 = vmatpush.msra.mxu0 0.0
        %6366 = vmatpush.msra.mxu0 0.0
        %6367 = vmatpush.msra.mxu0 0.0
        %6368 = vmatpush.msra.mxu0 0.0
        %6369 = vmatpush.msra.mxu0 0.0
        %6370 = vmatpush.msra.mxu0 0.0
        %6371 = vmatpush.msra.mxu0 0.0
        %6372 = vmatpush.msra.mxu0 0.0
        %6373 = vmatpush.msra.mxu0 %v6343
        %6374 = vmatpush.msra.mxu0 %v6342
        %6375 = vmatpush.msra.mxu0 %v6341
        %6376 = vmatpush.msra.mxu0 %v6340
        %6377 = vmatmul.f32.gmra.mxu0 %v6350
        %v6378 = vpop.f32.mrf.mxu0
        %v6379 = vadd.f32 0.0, %v6378
        %6380 = vmatmul.f32.gmra.mxu0 %v6353
        %v6381 = vpop.f32.mrf.mxu0
        %v6382 = vadd.f32 0.0, %v6381
        %6383 = vmatmul.f32.gmra.mxu0 %v6356
        %v6384 = vpop.f32.mrf.mxu0
        %v6385 = vadd.f32 0.0, %v6384
        %6386 = vmatmul.f32.gmra.mxu0 %v6359
        %v6387 = vpop.f32.mrf.mxu0
        %v6388 = vadd.f32 0.0, %v6387
        %6389 = vdwg.mxu0
        %6390 = vmatpush.msra.mxu0 0.0
        %6391 = vmatpush.msra.mxu0 0.0
        %6392 = vmatpush.msra.mxu0 0.0
        %6393 = vmatpush.msra.mxu0 0.0
        %6394 = vmatpush.msra.mxu0 0.0
        %6395 = vmatpush.msra.mxu0 0.0
        %6396 = vmatpush.msra.mxu0 0.0
        %6397 = vmatpush.msra.mxu0 0.0
        %6398 = vmatpush.msra.mxu0 0.0
        %6399 = vmatpush.msra.mxu0 0.0
        %6400 = vmatpush.msra.mxu0 0.0
        %6401 = vmatpush.msra.mxu0 0.0
        %6402 = vmatpush.msra.mxu0 %v6339
        %6403 = vmatpush.msra.mxu0 %v6338
        %6404 = vmatpush.msra.mxu0 %v6337
        %6405 = vmatpush.msra.mxu0 %v6336
        %6406 = vmatmul.f32.gmra.mxu0 %v6350
        %v6407 = vpop.f32.mrf.mxu0
        %v6408 = vadd.f32 0.0, %v6407
        %6409 = vmatmul.f32.gmra.mxu0 %v6353
        %v6410 = vpop.f32.mrf.mxu0
        %v6411 = vadd.f32 0.0, %v6410
        %6412 = vmatmul.f32.gmra.mxu0 %v6356
        %v6413 = vpop.f32.mrf.mxu0
        %v6414 = vadd.f32 0.0, %v6413
        %6415 = vmatmul.f32.gmra.mxu0 %v6359
        %v6416 = vpop.f32.mrf.mxu0
        %v6417 = vadd.f32 0.0, %v6416
        %6418 = vdwg.mxu0
        %v6419 = vadd.f32 %v6312, %v6379
        %v6420 = vadd.f32 %v6313, %v6408
        %v6421 = vadd.f32 %v6314, %v6382
        %v6422 = vadd.f32 %v6315, %v6411
        %v6423 = vadd.f32 %v6316, %v6385
        %v6424 = vadd.f32 %v6317, %v6414
        %v6425 = vadd.f32 %v6318, %v6388
        %v6426 = vadd.f32 %v6319, %v6417
        %6427 = vrot.lane.b32.xlu0 %v5366, 2
        %v6428 = vpop.permute.xlu0 %6427
        %6429 = vrot.lane.b32.xlu0 %v5368, 2
        %v6430 = vpop.permute.xlu0 %6429
        %6431 = vrot.lane.b32.xlu0 %v5370, 2
        %v6432 = vpop.permute.xlu0 %6431
        %6433 = vrot.lane.b32.xlu0 %v5372, 2
        %v6434 = vpop.permute.xlu0 %6433
        %6435 = vrot.lane.b32.xlu0 %v5367, 2
        %v6436 = vpop.permute.xlu0 %6435
        %6437 = vrot.lane.b32.xlu0 %v5369, 2
        %v6438 = vpop.permute.xlu0 %6437
        %6439 = vrot.lane.b32.xlu0 %v5371, 2
        %v6440 = vpop.permute.xlu0 %6439
        %6441 = vrot.lane.b32.xlu0 %v5373, 2
        %v6442 = vpop.permute.xlu0 %6441
        %v6443 = vsel %vm1299, %v6428, %v6436
        %v6444 = vsel %vm1299, %v6430, %v6438
        %v6445 = vsel %vm1299, %v6432, %v6440
        %v6446 = vsel %vm1299, %v6434, %v6442
        %v6447 = vsel %vm1299, %v6436, %v6428
        %v6448 = vsel %vm1299, %v6438, %v6430
        %v6449 = vsel %vm1299, %v6440, %v6432
        %v6450 = vsel %vm1299, %v6442, %v6434
        %s6451 = scalar_lea.vmem [#allocation2], 320
        %v6452 = vld [vmem:[%s6451] sm:$0xff]
        %v6453 = vld [vmem:[%s6451 + $0x8] sm:$0xff]
        %v6454 = vld [vmem:[%s6451 + $0x10] sm:$0xff]
        %v6455 = vld [vmem:[%s6451 + $0x18] sm:$0xff]
        %v6457 = vsel %vm2748, %v6452, 0
        %v6460 = vsel %vm2748, %v6453, 0
        %v6463 = vsel %vm2748, %v6454, 0
        %v6466 = vsel %vm2748, %v6455, 0
        %6468 = vmatpush.msra.mxu0 0.0
        %6469 = vmatpush.msra.mxu0 0.0
        %6470 = vmatpush.msra.mxu0 0.0
        %6471 = vmatpush.msra.mxu0 0.0
        %6472 = vmatpush.msra.mxu0 0.0
        %6473 = vmatpush.msra.mxu0 0.0
        %6474 = vmatpush.msra.mxu0 0.0
        %6475 = vmatpush.msra.mxu0 0.0
        %6476 = vmatpush.msra.mxu0 0.0
        %6477 = vmatpush.msra.mxu0 0.0
        %6478 = vmatpush.msra.mxu0 0.0
        %6479 = vmatpush.msra.mxu0 0.0
        %6480 = vmatpush.msra.mxu0 %v6450
        %6481 = vmatpush.msra.mxu0 %v6449
        %6482 = vmatpush.msra.mxu0 %v6448
        %6483 = vmatpush.msra.mxu0 %v6447
        %6484 = vmatmul.f32.gmra.mxu0 %v6457
        %v6485 = vpop.f32.mrf.mxu0
        %v6486 = vadd.f32 0.0, %v6485
        %6487 = vmatmul.f32.gmra.mxu0 %v6460
        %v6488 = vpop.f32.mrf.mxu0
        %v6489 = vadd.f32 0.0, %v6488
        %6490 = vmatmul.f32.gmra.mxu0 %v6463
        %v6491 = vpop.f32.mrf.mxu0
        %v6492 = vadd.f32 0.0, %v6491
        %6493 = vmatmul.f32.gmra.mxu0 %v6466
        %v6494 = vpop.f32.mrf.mxu0
        %v6495 = vadd.f32 0.0, %v6494
        %6496 = vdwg.mxu0
        %6497 = vmatpush.msra.mxu0 0.0
        %6498 = vmatpush.msra.mxu0 0.0
        %6499 = vmatpush.msra.mxu0 0.0
        %6500 = vmatpush.msra.mxu0 0.0
        %6501 = vmatpush.msra.mxu0 0.0
        %6502 = vmatpush.msra.mxu0 0.0
        %6503 = vmatpush.msra.mxu0 0.0
        %6504 = vmatpush.msra.mxu0 0.0
        %6505 = vmatpush.msra.mxu0 0.0
        %6506 = vmatpush.msra.mxu0 0.0
        %6507 = vmatpush.msra.mxu0 0.0
        %6508 = vmatpush.msra.mxu0 0.0
        %6509 = vmatpush.msra.mxu0 %v6446
        %6510 = vmatpush.msra.mxu0 %v6445
        %6511 = vmatpush.msra.mxu0 %v6444
        %6512 = vmatpush.msra.mxu0 %v6443
        %6513 = vmatmul.f32.gmra.mxu0 %v6457
        %v6514 = vpop.f32.mrf.mxu0
        %v6515 = vadd.f32 0.0, %v6514
        %6516 = vmatmul.f32.gmra.mxu0 %v6460
        %v6517 = vpop.f32.mrf.mxu0
        %v6518 = vadd.f32 0.0, %v6517
        %6519 = vmatmul.f32.gmra.mxu0 %v6463
        %v6520 = vpop.f32.mrf.mxu0
        %v6521 = vadd.f32 0.0, %v6520
        %6522 = vmatmul.f32.gmra.mxu0 %v6466
        %v6523 = vpop.f32.mrf.mxu0
        %v6524 = vadd.f32 0.0, %v6523
        %6525 = vdwg.mxu0
        %v6526 = vadd.f32 %v6419, %v6486
        %v6527 = vadd.f32 %v6420, %v6515
        %v6528 = vadd.f32 %v6421, %v6489
        %v6529 = vadd.f32 %v6422, %v6518
        %v6530 = vadd.f32 %v6423, %v6492
        %v6531 = vadd.f32 %v6424, %v6521
        %v6532 = vadd.f32 %v6425, %v6495
        %v6533 = vadd.f32 %v6426, %v6524
        %6534 = vrot.lane.b32.xlu0 %v5366, 1
        %v6535 = vpop.permute.xlu0 %6534
        %6536 = vrot.lane.b32.xlu0 %v5368, 1
        %v6537 = vpop.permute.xlu0 %6536
        %6538 = vrot.lane.b32.xlu0 %v5370, 1
        %v6539 = vpop.permute.xlu0 %6538
        %6540 = vrot.lane.b32.xlu0 %v5372, 1
        %v6541 = vpop.permute.xlu0 %6540
        %6542 = vrot.lane.b32.xlu0 %v5367, 1
        %v6543 = vpop.permute.xlu0 %6542
        %6544 = vrot.lane.b32.xlu0 %v5369, 1
        %v6545 = vpop.permute.xlu0 %6544
        %6546 = vrot.lane.b32.xlu0 %v5371, 1
        %v6547 = vpop.permute.xlu0 %6546
        %6548 = vrot.lane.b32.xlu0 %v5373, 1
        %v6549 = vpop.permute.xlu0 %6548
        %v6550 = vsel %vm1389, %v6535, %v6543
        %v6551 = vsel %vm1389, %v6537, %v6545
        %v6552 = vsel %vm1389, %v6539, %v6547
        %v6553 = vsel %vm1389, %v6541, %v6549
        %v6554 = vsel %vm1389, %v6543, %v6535
        %v6555 = vsel %vm1389, %v6545, %v6537
        %v6556 = vsel %vm1389, %v6547, %v6539
        %v6557 = vsel %vm1389, %v6549, %v6541
        %s6558 = scalar_lea.vmem [#allocation2], 352
        %v6559 = vld [vmem:[%s6558] sm:$0xff]
        %v6560 = vld [vmem:[%s6558 + $0x8] sm:$0xff]
        %v6561 = vld [vmem:[%s6558 + $0x10] sm:$0xff]
        %v6562 = vld [vmem:[%s6558 + $0x18] sm:$0xff]
        %v6564 = vsel %vm2748, %v6559, 0
        %v6567 = vsel %vm2748, %v6560, 0
        %v6570 = vsel %vm2748, %v6561, 0
        %v6573 = vsel %vm2748, %v6562, 0
        %6575 = vmatpush.msra.mxu0 0.0
        %6576 = vmatpush.msra.mxu0 0.0
        %6577 = vmatpush.msra.mxu0 0.0
        %6578 = vmatpush.msra.mxu0 0.0
        %6579 = vmatpush.msra.mxu0 0.0
        %6580 = vmatpush.msra.mxu0 0.0
        %6581 = vmatpush.msra.mxu0 0.0
        %6582 = vmatpush.msra.mxu0 0.0
        %6583 = vmatpush.msra.mxu0 0.0
        %6584 = vmatpush.msra.mxu0 0.0
        %6585 = vmatpush.msra.mxu0 0.0
        %6586 = vmatpush.msra.mxu0 0.0
        %6587 = vmatpush.msra.mxu0 %v6557
        %6588 = vmatpush.msra.mxu0 %v6556
        %6589 = vmatpush.msra.mxu0 %v6555
        %6590 = vmatpush.msra.mxu0 %v6554
        %6591 = vmatmul.f32.gmra.mxu0 %v6564
        %v6592 = vpop.f32.mrf.mxu0
        %v6593 = vadd.f32 0.0, %v6592
        %6594 = vmatmul.f32.gmra.mxu0 %v6567
        %v6595 = vpop.f32.mrf.mxu0
        %v6596 = vadd.f32 0.0, %v6595
        %6597 = vmatmul.f32.gmra.mxu0 %v6570
        %v6598 = vpop.f32.mrf.mxu0
        %v6599 = vadd.f32 0.0, %v6598
        %6600 = vmatmul.f32.gmra.mxu0 %v6573
        %v6601 = vpop.f32.mrf.mxu0
        %v6602 = vadd.f32 0.0, %v6601
        %6603 = vdwg.mxu0
        %6604 = vmatpush.msra.mxu0 0.0
        %6605 = vmatpush.msra.mxu0 0.0
        %6606 = vmatpush.msra.mxu0 0.0
        %6607 = vmatpush.msra.mxu0 0.0
        %6608 = vmatpush.msra.mxu0 0.0
        %6609 = vmatpush.msra.mxu0 0.0
        %6610 = vmatpush.msra.mxu0 0.0
        %6611 = vmatpush.msra.mxu0 0.0
        %6612 = vmatpush.msra.mxu0 0.0
        %6613 = vmatpush.msra.mxu0 0.0
        %6614 = vmatpush.msra.mxu0 0.0
        %6615 = vmatpush.msra.mxu0 0.0
        %6616 = vmatpush.msra.mxu0 %v6553
        %6617 = vmatpush.msra.mxu0 %v6552
        %6618 = vmatpush.msra.mxu0 %v6551
        %6619 = vmatpush.msra.mxu0 %v6550
        %6620 = vmatmul.f32.gmra.mxu0 %v6564
        %v6621 = vpop.f32.mrf.mxu0
        %v6622 = vadd.f32 0.0, %v6621
        %6623 = vmatmul.f32.gmra.mxu0 %v6567
        %v6624 = vpop.f32.mrf.mxu0
        %v6625 = vadd.f32 0.0, %v6624
        %6626 = vmatmul.f32.gmra.mxu0 %v6570
        %v6627 = vpop.f32.mrf.mxu0
        %v6628 = vadd.f32 0.0, %v6627
        %6629 = vmatmul.f32.gmra.mxu0 %v6573
        %v6630 = vpop.f32.mrf.mxu0
        %v6631 = vadd.f32 0.0, %v6630
        %6632 = vdwg.mxu0
        %v6633 = vadd.f32 %v6526, %v6593
        %v6634 = vadd.f32 %v6527, %v6622
        %v6635 = vadd.f32 %v6528, %v6596
        %v6636 = vadd.f32 %v6529, %v6625
        %v6637 = vadd.f32 %v6530, %v6599
        %v6638 = vadd.f32 %v6531, %v6628
        %v6639 = vadd.f32 %v6532, %v6602
        %v6640 = vadd.f32 %v6533, %v6631
        %s6641 = scalar_lea.vmem [#allocation2], 384
        %v6642 = vld [vmem:[%s6641] sm:$0xff]
        %v6643 = vld [vmem:[%s6641 + $0x8] sm:$0xff]
        %v6644 = vld [vmem:[%s6641 + $0x10] sm:$0xff]
        %v6645 = vld [vmem:[%s6641 + $0x18] sm:$0xff]
        %v6647 = vsel %vm2748, %v6642, 0
        %v6650 = vsel %vm2748, %v6643, 0
        %v6653 = vsel %vm2748, %v6644, 0
        %v6656 = vsel %vm2748, %v6645, 0
        %6658 = vmatpush.msra.mxu0 0.0
        %6659 = vmatpush.msra.mxu0 0.0
        %6660 = vmatpush.msra.mxu0 0.0
        %6661 = vmatpush.msra.mxu0 0.0
        %6662 = vmatpush.msra.mxu0 0.0
        %6663 = vmatpush.msra.mxu0 0.0
        %6664 = vmatpush.msra.mxu0 0.0
        %6665 = vmatpush.msra.mxu0 0.0
        %6666 = vmatpush.msra.mxu0 0.0
        %6667 = vmatpush.msra.mxu0 0.0
        %6668 = vmatpush.msra.mxu0 0.0
        %6669 = vmatpush.msra.mxu0 0.0
        %6670 = vmatpush.msra.mxu0 %v5372
        %6671 = vmatpush.msra.mxu0 %v5370
        %6672 = vmatpush.msra.mxu0 %v5368
        %6673 = vmatpush.msra.mxu0 %v5366
        %6674 = vmatmul.f32.gmra.mxu0 %v6647
        %v6675 = vpop.f32.mrf.mxu0
        %v6676 = vadd.f32 0.0, %v6675
        %6677 = vmatmul.f32.gmra.mxu0 %v6650
        %v6678 = vpop.f32.mrf.mxu0
        %v6679 = vadd.f32 0.0, %v6678
        %6680 = vmatmul.f32.gmra.mxu0 %v6653
        %v6681 = vpop.f32.mrf.mxu0
        %v6682 = vadd.f32 0.0, %v6681
        %6683 = vmatmul.f32.gmra.mxu0 %v6656
        %v6684 = vpop.f32.mrf.mxu0
        %v6685 = vadd.f32 0.0, %v6684
        %6686 = vdwg.mxu0
        %6687 = vmatpush.msra.mxu0 0.0
        %6688 = vmatpush.msra.mxu0 0.0
        %6689 = vmatpush.msra.mxu0 0.0
        %6690 = vmatpush.msra.mxu0 0.0
        %6691 = vmatpush.msra.mxu0 0.0
        %6692 = vmatpush.msra.mxu0 0.0
        %6693 = vmatpush.msra.mxu0 0.0
        %6694 = vmatpush.msra.mxu0 0.0
        %6695 = vmatpush.msra.mxu0 0.0
        %6696 = vmatpush.msra.mxu0 0.0
        %6697 = vmatpush.msra.mxu0 0.0
        %6698 = vmatpush.msra.mxu0 0.0
        %6699 = vmatpush.msra.mxu0 %v5373
        %6700 = vmatpush.msra.mxu0 %v5371
        %6701 = vmatpush.msra.mxu0 %v5369
        %6702 = vmatpush.msra.mxu0 %v5367
        %6703 = vmatmul.f32.gmra.mxu0 %v6647
        %v6704 = vpop.f32.mrf.mxu0
        %v6705 = vadd.f32 0.0, %v6704
        %6706 = vmatmul.f32.gmra.mxu0 %v6650
        %v6707 = vpop.f32.mrf.mxu0
        %v6708 = vadd.f32 0.0, %v6707
        %6709 = vmatmul.f32.gmra.mxu0 %v6653
        %v6710 = vpop.f32.mrf.mxu0
        %v6711 = vadd.f32 0.0, %v6710
        %6712 = vmatmul.f32.gmra.mxu0 %v6656
        %v6713 = vpop.f32.mrf.mxu0
        %v6714 = vadd.f32 0.0, %v6713
        %6715 = vdwg.mxu0
        %v6716 = vadd.f32 %v6633, %v6676
        %v6717 = vadd.f32 %v6634, %v6705
        %v6718 = vadd.f32 %v6635, %v6679
        %v6719 = vadd.f32 %v6636, %v6708
        %v6720 = vadd.f32 %v6637, %v6682
        %v6721 = vadd.f32 %v6638, %v6711
        %v6722 = vadd.f32 %v6639, %v6685
        %v6723 = vadd.f32 %v6640, %v6714
        %6724 = vrot.lane.b32.xlu0 %v5366, 127
        %v6725 = vpop.permute.xlu0 %6724
        %6726 = vrot.lane.b32.xlu0 %v5368, 127
        %v6727 = vpop.permute.xlu0 %6726
        %6728 = vrot.lane.b32.xlu0 %v5370, 127
        %v6729 = vpop.permute.xlu0 %6728
        %6730 = vrot.lane.b32.xlu0 %v5372, 127
        %v6731 = vpop.permute.xlu0 %6730
        %6732 = vrot.lane.b32.xlu0 %v5367, 127
        %v6733 = vpop.permute.xlu0 %6732
        %6734 = vrot.lane.b32.xlu0 %v5369, 127
        %v6735 = vpop.permute.xlu0 %6734
        %6736 = vrot.lane.b32.xlu0 %v5371, 127
        %v6737 = vpop.permute.xlu0 %6736
        %6738 = vrot.lane.b32.xlu0 %v5373, 127
        %v6739 = vpop.permute.xlu0 %6738
        %v6740 = vsel %vm1562, %v6725, %v6733
        %v6741 = vsel %vm1562, %v6727, %v6735
        %v6742 = vsel %vm1562, %v6729, %v6737
        %v6743 = vsel %vm1562, %v6731, %v6739
        %v6744 = vsel %vm1562, %v6733, %v6725
        %v6745 = vsel %vm1562, %v6735, %v6727
        %v6746 = vsel %vm1562, %v6737, %v6729
        %v6747 = vsel %vm1562, %v6739, %v6731
        %s6748 = scalar_lea.vmem [#allocation2], 416
        %v6749 = vld [vmem:[%s6748] sm:$0xff]
        %v6750 = vld [vmem:[%s6748 + $0x8] sm:$0xff]
        %v6751 = vld [vmem:[%s6748 + $0x10] sm:$0xff]
        %v6752 = vld [vmem:[%s6748 + $0x18] sm:$0xff]
        %v6754 = vsel %vm2748, %v6749, 0
        %v6757 = vsel %vm2748, %v6750, 0
        %v6760 = vsel %vm2748, %v6751, 0
        %v6763 = vsel %vm2748, %v6752, 0
        %6765 = vmatpush.msra.mxu0 0.0
        %6766 = vmatpush.msra.mxu0 0.0
        %6767 = vmatpush.msra.mxu0 0.0
        %6768 = vmatpush.msra.mxu0 0.0
        %6769 = vmatpush.msra.mxu0 0.0
        %6770 = vmatpush.msra.mxu0 0.0
        %6771 = vmatpush.msra.mxu0 0.0
        %6772 = vmatpush.msra.mxu0 0.0
        %6773 = vmatpush.msra.mxu0 0.0
        %6774 = vmatpush.msra.mxu0 0.0
        %6775 = vmatpush.msra.mxu0 0.0
        %6776 = vmatpush.msra.mxu0 0.0
        %6777 = vmatpush.msra.mxu0 %v6743
        %6778 = vmatpush.msra.mxu0 %v6742
        %6779 = vmatpush.msra.mxu0 %v6741
        %6780 = vmatpush.msra.mxu0 %v6740
        %6781 = vmatmul.f32.gmra.mxu0 %v6754
        %v6782 = vpop.f32.mrf.mxu0
        %v6783 = vadd.f32 0.0, %v6782
        %6784 = vmatmul.f32.gmra.mxu0 %v6757
        %v6785 = vpop.f32.mrf.mxu0
        %v6786 = vadd.f32 0.0, %v6785
        %6787 = vmatmul.f32.gmra.mxu0 %v6760
        %v6788 = vpop.f32.mrf.mxu0
        %v6789 = vadd.f32 0.0, %v6788
        %6790 = vmatmul.f32.gmra.mxu0 %v6763
        %v6791 = vpop.f32.mrf.mxu0
        %v6792 = vadd.f32 0.0, %v6791
        %6793 = vdwg.mxu0
        %6794 = vmatpush.msra.mxu0 0.0
        %6795 = vmatpush.msra.mxu0 0.0
        %6796 = vmatpush.msra.mxu0 0.0
        %6797 = vmatpush.msra.mxu0 0.0
        %6798 = vmatpush.msra.mxu0 0.0
        %6799 = vmatpush.msra.mxu0 0.0
        %6800 = vmatpush.msra.mxu0 0.0
        %6801 = vmatpush.msra.mxu0 0.0
        %6802 = vmatpush.msra.mxu0 0.0
        %6803 = vmatpush.msra.mxu0 0.0
        %6804 = vmatpush.msra.mxu0 0.0
        %6805 = vmatpush.msra.mxu0 0.0
        %6806 = vmatpush.msra.mxu0 %v6747
        %6807 = vmatpush.msra.mxu0 %v6746
        %6808 = vmatpush.msra.mxu0 %v6745
        %6809 = vmatpush.msra.mxu0 %v6744
        %6810 = vmatmul.f32.gmra.mxu0 %v6754
        %v6811 = vpop.f32.mrf.mxu0
        %v6812 = vadd.f32 0.0, %v6811
        %6813 = vmatmul.f32.gmra.mxu0 %v6757
        %v6814 = vpop.f32.mrf.mxu0
        %v6815 = vadd.f32 0.0, %v6814
        %6816 = vmatmul.f32.gmra.mxu0 %v6760
        %v6817 = vpop.f32.mrf.mxu0
        %v6818 = vadd.f32 0.0, %v6817
        %6819 = vmatmul.f32.gmra.mxu0 %v6763
        %v6820 = vpop.f32.mrf.mxu0
        %v6821 = vadd.f32 0.0, %v6820
        %6822 = vdwg.mxu0
        %v6823 = vadd.f32 %v6716, %v6783
        %v6824 = vadd.f32 %v6717, %v6812
        %v6825 = vadd.f32 %v6718, %v6786
        %v6826 = vadd.f32 %v6719, %v6815
        %v6827 = vadd.f32 %v6720, %v6789
        %v6828 = vadd.f32 %v6721, %v6818
        %v6829 = vadd.f32 %v6722, %v6792
        %v6830 = vadd.f32 %v6723, %v6821
        %6831 = vrot.lane.b32.xlu0 %v5366, 126
        %v6832 = vpop.permute.xlu0 %6831
        %6833 = vrot.lane.b32.xlu0 %v5368, 126
        %v6834 = vpop.permute.xlu0 %6833
        %6835 = vrot.lane.b32.xlu0 %v5370, 126
        %v6836 = vpop.permute.xlu0 %6835
        %6837 = vrot.lane.b32.xlu0 %v5372, 126
        %v6838 = vpop.permute.xlu0 %6837
        %6839 = vrot.lane.b32.xlu0 %v5367, 126
        %v6840 = vpop.permute.xlu0 %6839
        %6841 = vrot.lane.b32.xlu0 %v5369, 126
        %v6842 = vpop.permute.xlu0 %6841
        %6843 = vrot.lane.b32.xlu0 %v5371, 126
        %v6844 = vpop.permute.xlu0 %6843
        %6845 = vrot.lane.b32.xlu0 %v5373, 126
        %v6846 = vpop.permute.xlu0 %6845
        %v6847 = vsel %vm1652, %v6832, %v6840
        %v6848 = vsel %vm1652, %v6834, %v6842
        %v6849 = vsel %vm1652, %v6836, %v6844
        %v6850 = vsel %vm1652, %v6838, %v6846
        %v6851 = vsel %vm1652, %v6840, %v6832
        %v6852 = vsel %vm1652, %v6842, %v6834
        %v6853 = vsel %vm1652, %v6844, %v6836
        %v6854 = vsel %vm1652, %v6846, %v6838
        %s6855 = scalar_lea.vmem [#allocation2], 448
        %v6856 = vld [vmem:[%s6855] sm:$0xff]
        %v6857 = vld [vmem:[%s6855 + $0x8] sm:$0xff]
        %v6858 = vld [vmem:[%s6855 + $0x10] sm:$0xff]
        %v6859 = vld [vmem:[%s6855 + $0x18] sm:$0xff]
        %v6861 = vsel %vm2748, %v6856, 0
        %v6864 = vsel %vm2748, %v6857, 0
        %v6867 = vsel %vm2748, %v6858, 0
        %v6870 = vsel %vm2748, %v6859, 0
        %6872 = vmatpush.msra.mxu0 0.0
        %6873 = vmatpush.msra.mxu0 0.0
        %6874 = vmatpush.msra.mxu0 0.0
        %6875 = vmatpush.msra.mxu0 0.0
        %6876 = vmatpush.msra.mxu0 0.0
        %6877 = vmatpush.msra.mxu0 0.0
        %6878 = vmatpush.msra.mxu0 0.0
        %6879 = vmatpush.msra.mxu0 0.0
        %6880 = vmatpush.msra.mxu0 0.0
        %6881 = vmatpush.msra.mxu0 0.0
        %6882 = vmatpush.msra.mxu0 0.0
        %6883 = vmatpush.msra.mxu0 0.0
        %6884 = vmatpush.msra.mxu0 %v6850
        %6885 = vmatpush.msra.mxu0 %v6849
        %6886 = vmatpush.msra.mxu0 %v6848
        %6887 = vmatpush.msra.mxu0 %v6847
        %6888 = vmatmul.f32.gmra.mxu0 %v6861
        %v6889 = vpop.f32.mrf.mxu0
        %v6890 = vadd.f32 0.0, %v6889
        %6891 = vmatmul.f32.gmra.mxu0 %v6864
        %v6892 = vpop.f32.mrf.mxu0
        %v6893 = vadd.f32 0.0, %v6892
        %6894 = vmatmul.f32.gmra.mxu0 %v6867
        %v6895 = vpop.f32.mrf.mxu0
        %v6896 = vadd.f32 0.0, %v6895
        %6897 = vmatmul.f32.gmra.mxu0 %v6870
        %v6898 = vpop.f32.mrf.mxu0
        %v6899 = vadd.f32 0.0, %v6898
        %6900 = vdwg.mxu0
        %6901 = vmatpush.msra.mxu0 0.0
        %6902 = vmatpush.msra.mxu0 0.0
        %6903 = vmatpush.msra.mxu0 0.0
        %6904 = vmatpush.msra.mxu0 0.0
        %6905 = vmatpush.msra.mxu0 0.0
        %6906 = vmatpush.msra.mxu0 0.0
        %6907 = vmatpush.msra.mxu0 0.0
        %6908 = vmatpush.msra.mxu0 0.0
        %6909 = vmatpush.msra.mxu0 0.0
        %6910 = vmatpush.msra.mxu0 0.0
        %6911 = vmatpush.msra.mxu0 0.0
        %6912 = vmatpush.msra.mxu0 0.0
        %6913 = vmatpush.msra.mxu0 %v6854
        %6914 = vmatpush.msra.mxu0 %v6853
        %6915 = vmatpush.msra.mxu0 %v6852
        %6916 = vmatpush.msra.mxu0 %v6851
        %6917 = vmatmul.f32.gmra.mxu0 %v6861
        %v6918 = vpop.f32.mrf.mxu0
        %v6919 = vadd.f32 0.0, %v6918
        %6920 = vmatmul.f32.gmra.mxu0 %v6864
        %v6921 = vpop.f32.mrf.mxu0
        %v6922 = vadd.f32 0.0, %v6921
        %6923 = vmatmul.f32.gmra.mxu0 %v6867
        %v6924 = vpop.f32.mrf.mxu0
        %v6925 = vadd.f32 0.0, %v6924
        %6926 = vmatmul.f32.gmra.mxu0 %v6870
        %v6927 = vpop.f32.mrf.mxu0
        %v6928 = vadd.f32 0.0, %v6927
        %6929 = vdwg.mxu0
        %v6930 = vadd.f32 %v6823, %v6890
        %v6931 = vadd.f32 %v6824, %v6919
        %v6932 = vadd.f32 %v6825, %v6893
        %v6933 = vadd.f32 %v6826, %v6922
        %v6934 = vadd.f32 %v6827, %v6896
        %v6935 = vadd.f32 %v6828, %v6925
        %v6936 = vadd.f32 %v6829, %v6899
        %v6937 = vadd.f32 %v6830, %v6928
        %6938 = vrot.lane.b32.xlu0 %v5366, 118
        %v6939 = vpop.permute.xlu0 %6938
        %6940 = vrot.lane.b32.xlu0 %v5368, 118
        %v6941 = vpop.permute.xlu0 %6940
        %6942 = vrot.lane.b32.xlu0 %v5370, 118
        %v6943 = vpop.permute.xlu0 %6942
        %6944 = vrot.lane.b32.xlu0 %v5372, 118
        %v6945 = vpop.permute.xlu0 %6944
        %6946 = vrot.lane.b32.xlu0 %v5367, 118
        %v6947 = vpop.permute.xlu0 %6946
        %6948 = vrot.lane.b32.xlu0 %v5369, 118
        %v6949 = vpop.permute.xlu0 %6948
        %6950 = vrot.lane.b32.xlu0 %v5371, 118
        %v6951 = vpop.permute.xlu0 %6950
        %6952 = vrot.lane.b32.xlu0 %v5373, 118
        %v6953 = vpop.permute.xlu0 %6952
        %v6954 = vsel %vm1742, %v6939, %v6947
        %v6955 = vsel %vm1742, %v6941, %v6949
        %v6956 = vsel %vm1742, %v6943, %v6951
        %v6957 = vsel %vm1742, %v6945, %v6953
        %v6958 = vsel %vm1742, %v6947, %v6939
        %v6959 = vsel %vm1742, %v6949, %v6941
        %v6960 = vsel %vm1742, %v6951, %v6943
        %v6961 = vsel %vm1742, %v6953, %v6945
        %s6962 = scalar_lea.vmem [#allocation2], 480
        %v6963 = vld [vmem:[%s6962] sm:$0xff]
        %v6964 = vld [vmem:[%s6962 + $0x8] sm:$0xff]
        %v6965 = vld [vmem:[%s6962 + $0x10] sm:$0xff]
        %v6966 = vld [vmem:[%s6962 + $0x18] sm:$0xff]
        %v6968 = vsel %vm2748, %v6963, 0
        %v6971 = vsel %vm2748, %v6964, 0
        %v6974 = vsel %vm2748, %v6965, 0
        %v6977 = vsel %vm2748, %v6966, 0
        %6979 = vmatpush.msra.mxu0 0.0
        %6980 = vmatpush.msra.mxu0 0.0
        %6981 = vmatpush.msra.mxu0 0.0
        %6982 = vmatpush.msra.mxu0 0.0
        %6983 = vmatpush.msra.mxu0 0.0
        %6984 = vmatpush.msra.mxu0 0.0
        %6985 = vmatpush.msra.mxu0 0.0
        %6986 = vmatpush.msra.mxu0 0.0
        %6987 = vmatpush.msra.mxu0 0.0
        %6988 = vmatpush.msra.mxu0 0.0
        %6989 = vmatpush.msra.mxu0 0.0
        %6990 = vmatpush.msra.mxu0 0.0
        %6991 = vmatpush.msra.mxu0 %v6957
        %6992 = vmatpush.msra.mxu0 %v6956
        %6993 = vmatpush.msra.mxu0 %v6955
        %6994 = vmatpush.msra.mxu0 %v6954
        %6995 = vmatmul.f32.gmra.mxu0 %v6968
        %v6996 = vpop.f32.mrf.mxu0
        %v6997 = vadd.f32 0.0, %v6996
        %6998 = vmatmul.f32.gmra.mxu0 %v6971
        %v6999 = vpop.f32.mrf.mxu0
        %v7000 = vadd.f32 0.0, %v6999
        %7001 = vmatmul.f32.gmra.mxu0 %v6974
        %v7002 = vpop.f32.mrf.mxu0
        %v7003 = vadd.f32 0.0, %v7002
        %7004 = vmatmul.f32.gmra.mxu0 %v6977
        %v7005 = vpop.f32.mrf.mxu0
        %v7006 = vadd.f32 0.0, %v7005
        %7007 = vdwg.mxu0
        %7008 = vmatpush.msra.mxu0 0.0
        %7009 = vmatpush.msra.mxu0 0.0
        %7010 = vmatpush.msra.mxu0 0.0
        %7011 = vmatpush.msra.mxu0 0.0
        %7012 = vmatpush.msra.mxu0 0.0
        %7013 = vmatpush.msra.mxu0 0.0
        %7014 = vmatpush.msra.mxu0 0.0
        %7015 = vmatpush.msra.mxu0 0.0
        %7016 = vmatpush.msra.mxu0 0.0
        %7017 = vmatpush.msra.mxu0 0.0
        %7018 = vmatpush.msra.mxu0 0.0
        %7019 = vmatpush.msra.mxu0 0.0
        %7020 = vmatpush.msra.mxu0 %v6961
        %7021 = vmatpush.msra.mxu0 %v6960
        %7022 = vmatpush.msra.mxu0 %v6959
        %7023 = vmatpush.msra.mxu0 %v6958
        %7024 = vmatmul.f32.gmra.mxu0 %v6968
        %v7025 = vpop.f32.mrf.mxu0
        %v7026 = vadd.f32 0.0, %v7025
        %7027 = vmatmul.f32.gmra.mxu0 %v6971
        %v7028 = vpop.f32.mrf.mxu0
        %v7029 = vadd.f32 0.0, %v7028
        %7030 = vmatmul.f32.gmra.mxu0 %v6974
        %v7031 = vpop.f32.mrf.mxu0
        %v7032 = vadd.f32 0.0, %v7031
        %7033 = vmatmul.f32.gmra.mxu0 %v6977
        %v7034 = vpop.f32.mrf.mxu0
        %v7035 = vadd.f32 0.0, %v7034
        %7036 = vdwg.mxu0
        %v7037 = vadd.f32 %v6930, %v6997
        %v7038 = vadd.f32 %v6931, %v7026
        %v7039 = vadd.f32 %v6932, %v7000
        %v7040 = vadd.f32 %v6933, %v7029
        %v7041 = vadd.f32 %v6934, %v7003
        %v7042 = vadd.f32 %v6935, %v7032
        %v7043 = vadd.f32 %v6936, %v7006
        %v7044 = vadd.f32 %v6937, %v7035
        %7045 = vrot.lane.b32.xlu0 %v5366, 117
        %v7046 = vpop.permute.xlu0 %7045
        %7047 = vrot.lane.b32.xlu0 %v5368, 117
        %v7048 = vpop.permute.xlu0 %7047
        %7049 = vrot.lane.b32.xlu0 %v5370, 117
        %v7050 = vpop.permute.xlu0 %7049
        %7051 = vrot.lane.b32.xlu0 %v5372, 117
        %v7052 = vpop.permute.xlu0 %7051
        %7053 = vrot.lane.b32.xlu0 %v5367, 117
        %v7054 = vpop.permute.xlu0 %7053
        %7055 = vrot.lane.b32.xlu0 %v5369, 117
        %v7056 = vpop.permute.xlu0 %7055
        %7057 = vrot.lane.b32.xlu0 %v5371, 117
        %v7058 = vpop.permute.xlu0 %7057
        %7059 = vrot.lane.b32.xlu0 %v5373, 117
        %v7060 = vpop.permute.xlu0 %7059
        %v7061 = vsel %vm1832, %v7046, %v7054
        %v7062 = vsel %vm1832, %v7048, %v7056
        %v7063 = vsel %vm1832, %v7050, %v7058
        %v7064 = vsel %vm1832, %v7052, %v7060
        %v7065 = vsel %vm1832, %v7054, %v7046
        %v7066 = vsel %vm1832, %v7056, %v7048
        %v7067 = vsel %vm1832, %v7058, %v7050
        %v7068 = vsel %vm1832, %v7060, %v7052
        %s7069 = scalar_lea.vmem [#allocation2], 512
        %v7070 = vld [vmem:[%s7069] sm:$0xff]
        %v7071 = vld [vmem:[%s7069 + $0x8] sm:$0xff]
        %v7072 = vld [vmem:[%s7069 + $0x10] sm:$0xff]
        %v7073 = vld [vmem:[%s7069 + $0x18] sm:$0xff]
        %v7075 = vsel %vm2748, %v7070, 0
        %v7078 = vsel %vm2748, %v7071, 0
        %v7081 = vsel %vm2748, %v7072, 0
        %v7084 = vsel %vm2748, %v7073, 0
        %7086 = vmatpush.msra.mxu0 0.0
        %7087 = vmatpush.msra.mxu0 0.0
        %7088 = vmatpush.msra.mxu0 0.0
        %7089 = vmatpush.msra.mxu0 0.0
        %7090 = vmatpush.msra.mxu0 0.0
        %7091 = vmatpush.msra.mxu0 0.0
        %7092 = vmatpush.msra.mxu0 0.0
        %7093 = vmatpush.msra.mxu0 0.0
        %7094 = vmatpush.msra.mxu0 0.0
        %7095 = vmatpush.msra.mxu0 0.0
        %7096 = vmatpush.msra.mxu0 0.0
        %7097 = vmatpush.msra.mxu0 0.0
        %7098 = vmatpush.msra.mxu0 %v7064
        %7099 = vmatpush.msra.mxu0 %v7063
        %7100 = vmatpush.msra.mxu0 %v7062
        %7101 = vmatpush.msra.mxu0 %v7061
        %7102 = vmatmul.f32.gmra.mxu0 %v7075
        %v7103 = vpop.f32.mrf.mxu0
        %v7104 = vadd.f32 0.0, %v7103
        %7105 = vmatmul.f32.gmra.mxu0 %v7078
        %v7106 = vpop.f32.mrf.mxu0
        %v7107 = vadd.f32 0.0, %v7106
        %7108 = vmatmul.f32.gmra.mxu0 %v7081
        %v7109 = vpop.f32.mrf.mxu0
        %v7110 = vadd.f32 0.0, %v7109
        %7111 = vmatmul.f32.gmra.mxu0 %v7084
        %v7112 = vpop.f32.mrf.mxu0
        %v7113 = vadd.f32 0.0, %v7112
        %7114 = vdwg.mxu0
        %7115 = vmatpush.msra.mxu0 0.0
        %7116 = vmatpush.msra.mxu0 0.0
        %7117 = vmatpush.msra.mxu0 0.0
        %7118 = vmatpush.msra.mxu0 0.0
        %7119 = vmatpush.msra.mxu0 0.0
        %7120 = vmatpush.msra.mxu0 0.0
        %7121 = vmatpush.msra.mxu0 0.0
        %7122 = vmatpush.msra.mxu0 0.0
        %7123 = vmatpush.msra.mxu0 0.0
        %7124 = vmatpush.msra.mxu0 0.0
        %7125 = vmatpush.msra.mxu0 0.0
        %7126 = vmatpush.msra.mxu0 0.0
        %7127 = vmatpush.msra.mxu0 %v7068
        %7128 = vmatpush.msra.mxu0 %v7067
        %7129 = vmatpush.msra.mxu0 %v7066
        %7130 = vmatpush.msra.mxu0 %v7065
        %7131 = vmatmul.f32.gmra.mxu0 %v7075
        %v7132 = vpop.f32.mrf.mxu0
        %v7133 = vadd.f32 0.0, %v7132
        %7134 = vmatmul.f32.gmra.mxu0 %v7078
        %v7135 = vpop.f32.mrf.mxu0
        %v7136 = vadd.f32 0.0, %v7135
        %7137 = vmatmul.f32.gmra.mxu0 %v7081
        %v7138 = vpop.f32.mrf.mxu0
        %v7139 = vadd.f32 0.0, %v7138
        %7140 = vmatmul.f32.gmra.mxu0 %v7084
        %v7141 = vpop.f32.mrf.mxu0
        %v7142 = vadd.f32 0.0, %v7141
        %7143 = vdwg.mxu0
        %v7144 = vadd.f32 %v7037, %v7104
        %v7145 = vadd.f32 %v7038, %v7133
        %v7146 = vadd.f32 %v7039, %v7107
        %v7147 = vadd.f32 %v7040, %v7136
        %v7148 = vadd.f32 %v7041, %v7110
        %v7149 = vadd.f32 %v7042, %v7139
        %v7150 = vadd.f32 %v7043, %v7113
        %v7151 = vadd.f32 %v7044, %v7142
        %7152 = vrot.lane.b32.xlu0 %v5366, 116
        %v7153 = vpop.permute.xlu0 %7152
        %7154 = vrot.lane.b32.xlu0 %v5368, 116
        %v7155 = vpop.permute.xlu0 %7154
        %7156 = vrot.lane.b32.xlu0 %v5370, 116
        %v7157 = vpop.permute.xlu0 %7156
        %7158 = vrot.lane.b32.xlu0 %v5372, 116
        %v7159 = vpop.permute.xlu0 %7158
        %7160 = vrot.lane.b32.xlu0 %v5367, 116
        %v7161 = vpop.permute.xlu0 %7160
        %7162 = vrot.lane.b32.xlu0 %v5369, 116
        %v7163 = vpop.permute.xlu0 %7162
        %7164 = vrot.lane.b32.xlu0 %v5371, 116
        %v7165 = vpop.permute.xlu0 %7164
        %7166 = vrot.lane.b32.xlu0 %v5373, 116
        %v7167 = vpop.permute.xlu0 %7166
        %v7168 = vsel %vm1922, %v7153, %v7161
        %v7169 = vsel %vm1922, %v7155, %v7163
        %v7170 = vsel %vm1922, %v7157, %v7165
        %v7171 = vsel %vm1922, %v7159, %v7167
        %v7172 = vsel %vm1922, %v7161, %v7153
        %v7173 = vsel %vm1922, %v7163, %v7155
        %v7174 = vsel %vm1922, %v7165, %v7157
        %v7175 = vsel %vm1922, %v7167, %v7159
        %s7176 = scalar_lea.vmem [#allocation2], 544
        %v7177 = vld [vmem:[%s7176] sm:$0xff]
        %v7178 = vld [vmem:[%s7176 + $0x8] sm:$0xff]
        %v7179 = vld [vmem:[%s7176 + $0x10] sm:$0xff]
        %v7180 = vld [vmem:[%s7176 + $0x18] sm:$0xff]
        %v7182 = vsel %vm2748, %v7177, 0
        %v7185 = vsel %vm2748, %v7178, 0
        %v7188 = vsel %vm2748, %v7179, 0
        %v7191 = vsel %vm2748, %v7180, 0
        %7193 = vmatpush.msra.mxu0 0.0
        %7194 = vmatpush.msra.mxu0 0.0
        %7195 = vmatpush.msra.mxu0 0.0
        %7196 = vmatpush.msra.mxu0 0.0
        %7197 = vmatpush.msra.mxu0 0.0
        %7198 = vmatpush.msra.mxu0 0.0
        %7199 = vmatpush.msra.mxu0 0.0
        %7200 = vmatpush.msra.mxu0 0.0
        %7201 = vmatpush.msra.mxu0 0.0
        %7202 = vmatpush.msra.mxu0 0.0
        %7203 = vmatpush.msra.mxu0 0.0
        %7204 = vmatpush.msra.mxu0 0.0
        %7205 = vmatpush.msra.mxu0 %v7171
        %7206 = vmatpush.msra.mxu0 %v7170
        %7207 = vmatpush.msra.mxu0 %v7169
        %7208 = vmatpush.msra.mxu0 %v7168
        %7209 = vmatmul.f32.gmra.mxu0 %v7182
        %v7210 = vpop.f32.mrf.mxu0
        %v7211 = vadd.f32 0.0, %v7210
        %7212 = vmatmul.f32.gmra.mxu0 %v7185
        %v7213 = vpop.f32.mrf.mxu0
        %v7214 = vadd.f32 0.0, %v7213
        %7215 = vmatmul.f32.gmra.mxu0 %v7188
        %v7216 = vpop.f32.mrf.mxu0
        %v7217 = vadd.f32 0.0, %v7216
        %7218 = vmatmul.f32.gmra.mxu0 %v7191
        %v7219 = vpop.f32.mrf.mxu0
        %v7220 = vadd.f32 0.0, %v7219
        %7221 = vdwg.mxu0
        %7222 = vmatpush.msra.mxu0 0.0
        %7223 = vmatpush.msra.mxu0 0.0
        %7224 = vmatpush.msra.mxu0 0.0
        %7225 = vmatpush.msra.mxu0 0.0
        %7226 = vmatpush.msra.mxu0 0.0
        %7227 = vmatpush.msra.mxu0 0.0
        %7228 = vmatpush.msra.mxu0 0.0
        %7229 = vmatpush.msra.mxu0 0.0
        %7230 = vmatpush.msra.mxu0 0.0
        %7231 = vmatpush.msra.mxu0 0.0
        %7232 = vmatpush.msra.mxu0 0.0
        %7233 = vmatpush.msra.mxu0 0.0
        %7234 = vmatpush.msra.mxu0 %v7175
        %7235 = vmatpush.msra.mxu0 %v7174
        %7236 = vmatpush.msra.mxu0 %v7173
        %7237 = vmatpush.msra.mxu0 %v7172
        %7238 = vmatmul.f32.gmra.mxu0 %v7182
        %v7239 = vpop.f32.mrf.mxu0
        %v7240 = vadd.f32 0.0, %v7239
        %7241 = vmatmul.f32.gmra.mxu0 %v7185
        %v7242 = vpop.f32.mrf.mxu0
        %v7243 = vadd.f32 0.0, %v7242
        %7244 = vmatmul.f32.gmra.mxu0 %v7188
        %v7245 = vpop.f32.mrf.mxu0
        %v7246 = vadd.f32 0.0, %v7245
        %7247 = vmatmul.f32.gmra.mxu0 %v7191
        %v7248 = vpop.f32.mrf.mxu0
        %v7249 = vadd.f32 0.0, %v7248
        %7250 = vdwg.mxu0
        %v7251 = vadd.f32 %v7144, %v7211
        %v7252 = vadd.f32 %v7145, %v7240
        %v7253 = vadd.f32 %v7146, %v7214
        %v7254 = vadd.f32 %v7147, %v7243
        %v7255 = vadd.f32 %v7148, %v7217
        %v7256 = vadd.f32 %v7149, %v7246
        %v7257 = vadd.f32 %v7150, %v7220
        %v7258 = vadd.f32 %v7151, %v7249
        %7259 = vrot.lane.b32.xlu0 %v5366, 115
        %v7260 = vpop.permute.xlu0 %7259
        %7261 = vrot.lane.b32.xlu0 %v5368, 115
        %v7262 = vpop.permute.xlu0 %7261
        %7263 = vrot.lane.b32.xlu0 %v5370, 115
        %v7264 = vpop.permute.xlu0 %7263
        %7265 = vrot.lane.b32.xlu0 %v5372, 115
        %v7266 = vpop.permute.xlu0 %7265
        %7267 = vrot.lane.b32.xlu0 %v5367, 115
        %v7268 = vpop.permute.xlu0 %7267
        %7269 = vrot.lane.b32.xlu0 %v5369, 115
        %v7270 = vpop.permute.xlu0 %7269
        %7271 = vrot.lane.b32.xlu0 %v5371, 115
        %v7272 = vpop.permute.xlu0 %7271
        %7273 = vrot.lane.b32.xlu0 %v5373, 115
        %v7274 = vpop.permute.xlu0 %7273
        %v7275 = vsel %vm2012, %v7260, %v7268
        %v7276 = vsel %vm2012, %v7262, %v7270
        %v7277 = vsel %vm2012, %v7264, %v7272
        %v7278 = vsel %vm2012, %v7266, %v7274
        %v7279 = vsel %vm2012, %v7268, %v7260
        %v7280 = vsel %vm2012, %v7270, %v7262
        %v7281 = vsel %vm2012, %v7272, %v7264
        %v7282 = vsel %vm2012, %v7274, %v7266
        %s7283 = scalar_lea.vmem [#allocation2], 576
        %v7284 = vld [vmem:[%s7283] sm:$0xff]
        %v7285 = vld [vmem:[%s7283 + $0x8] sm:$0xff]
        %v7286 = vld [vmem:[%s7283 + $0x10] sm:$0xff]
        %v7287 = vld [vmem:[%s7283 + $0x18] sm:$0xff]
        %v7289 = vsel %vm2748, %v7284, 0
        %v7292 = vsel %vm2748, %v7285, 0
        %v7295 = vsel %vm2748, %v7286, 0
        %v7298 = vsel %vm2748, %v7287, 0
        %7300 = vmatpush.msra.mxu0 0.0
        %7301 = vmatpush.msra.mxu0 0.0
        %7302 = vmatpush.msra.mxu0 0.0
        %7303 = vmatpush.msra.mxu0 0.0
        %7304 = vmatpush.msra.mxu0 0.0
        %7305 = vmatpush.msra.mxu0 0.0
        %7306 = vmatpush.msra.mxu0 0.0
        %7307 = vmatpush.msra.mxu0 0.0
        %7308 = vmatpush.msra.mxu0 0.0
        %7309 = vmatpush.msra.mxu0 0.0
        %7310 = vmatpush.msra.mxu0 0.0
        %7311 = vmatpush.msra.mxu0 0.0
        %7312 = vmatpush.msra.mxu0 %v7278
        %7313 = vmatpush.msra.mxu0 %v7277
        %7314 = vmatpush.msra.mxu0 %v7276
        %7315 = vmatpush.msra.mxu0 %v7275
        %7316 = vmatmul.f32.gmra.mxu0 %v7289
        %v7317 = vpop.f32.mrf.mxu0
        %v7318 = vadd.f32 0.0, %v7317
        %7319 = vmatmul.f32.gmra.mxu0 %v7292
        %v7320 = vpop.f32.mrf.mxu0
        %v7321 = vadd.f32 0.0, %v7320
        %7322 = vmatmul.f32.gmra.mxu0 %v7295
        %v7323 = vpop.f32.mrf.mxu0
        %v7324 = vadd.f32 0.0, %v7323
        %7325 = vmatmul.f32.gmra.mxu0 %v7298
        %v7326 = vpop.f32.mrf.mxu0
        %v7327 = vadd.f32 0.0, %v7326
        %7328 = vdwg.mxu0
        %7329 = vmatpush.msra.mxu0 0.0
        %7330 = vmatpush.msra.mxu0 0.0
        %7331 = vmatpush.msra.mxu0 0.0
        %7332 = vmatpush.msra.mxu0 0.0
        %7333 = vmatpush.msra.mxu0 0.0
        %7334 = vmatpush.msra.mxu0 0.0
        %7335 = vmatpush.msra.mxu0 0.0
        %7336 = vmatpush.msra.mxu0 0.0
        %7337 = vmatpush.msra.mxu0 0.0
        %7338 = vmatpush.msra.mxu0 0.0
        %7339 = vmatpush.msra.mxu0 0.0
        %7340 = vmatpush.msra.mxu0 0.0
        %7341 = vmatpush.msra.mxu0 %v7282
        %7342 = vmatpush.msra.mxu0 %v7281
        %7343 = vmatpush.msra.mxu0 %v7280
        %7344 = vmatpush.msra.mxu0 %v7279
        %7345 = vmatmul.f32.gmra.mxu0 %v7289
        %v7346 = vpop.f32.mrf.mxu0
        %v7347 = vadd.f32 0.0, %v7346
        %7348 = vmatmul.f32.gmra.mxu0 %v7292
        %v7349 = vpop.f32.mrf.mxu0
        %v7350 = vadd.f32 0.0, %v7349
        %7351 = vmatmul.f32.gmra.mxu0 %v7295
        %v7352 = vpop.f32.mrf.mxu0
        %v7353 = vadd.f32 0.0, %v7352
        %7354 = vmatmul.f32.gmra.mxu0 %v7298
        %v7355 = vpop.f32.mrf.mxu0
        %v7356 = vadd.f32 0.0, %v7355
        %7357 = vdwg.mxu0
        %v7358 = vadd.f32 %v7251, %v7318
        %v7359 = vadd.f32 %v7252, %v7347
        %v7360 = vadd.f32 %v7253, %v7321
        %v7361 = vadd.f32 %v7254, %v7350
        %v7362 = vadd.f32 %v7255, %v7324
        %v7363 = vadd.f32 %v7256, %v7353
        %v7364 = vadd.f32 %v7257, %v7327
        %v7365 = vadd.f32 %v7258, %v7356
        %7366 = vrot.lane.b32.xlu0 %v5366, 114
        %v7367 = vpop.permute.xlu0 %7366
        %7368 = vrot.lane.b32.xlu0 %v5368, 114
        %v7369 = vpop.permute.xlu0 %7368
        %7370 = vrot.lane.b32.xlu0 %v5370, 114
        %v7371 = vpop.permute.xlu0 %7370
        %7372 = vrot.lane.b32.xlu0 %v5372, 114
        %v7373 = vpop.permute.xlu0 %7372
        %7374 = vrot.lane.b32.xlu0 %v5367, 114
        %v7375 = vpop.permute.xlu0 %7374
        %7376 = vrot.lane.b32.xlu0 %v5369, 114
        %v7377 = vpop.permute.xlu0 %7376
        %7378 = vrot.lane.b32.xlu0 %v5371, 114
        %v7379 = vpop.permute.xlu0 %7378
        %7380 = vrot.lane.b32.xlu0 %v5373, 114
        %v7381 = vpop.permute.xlu0 %7380
        %v7382 = vsel %vm2102, %v7367, %v7375
        %v7383 = vsel %vm2102, %v7369, %v7377
        %v7384 = vsel %vm2102, %v7371, %v7379
        %v7385 = vsel %vm2102, %v7373, %v7381
        %v7386 = vsel %vm2102, %v7375, %v7367
        %v7387 = vsel %vm2102, %v7377, %v7369
        %v7388 = vsel %vm2102, %v7379, %v7371
        %v7389 = vsel %vm2102, %v7381, %v7373
        %s7390 = scalar_lea.vmem [#allocation2], 608
        %v7391 = vld [vmem:[%s7390] sm:$0xff]
        %v7392 = vld [vmem:[%s7390 + $0x8] sm:$0xff]
        %v7393 = vld [vmem:[%s7390 + $0x10] sm:$0xff]
        %v7394 = vld [vmem:[%s7390 + $0x18] sm:$0xff]
        %v7396 = vsel %vm2748, %v7391, 0
        %v7399 = vsel %vm2748, %v7392, 0
        %v7402 = vsel %vm2748, %v7393, 0
        %v7405 = vsel %vm2748, %v7394, 0
        %7407 = vmatpush.msra.mxu0 0.0
        %7408 = vmatpush.msra.mxu0 0.0
        %7409 = vmatpush.msra.mxu0 0.0
        %7410 = vmatpush.msra.mxu0 0.0
        %7411 = vmatpush.msra.mxu0 0.0
        %7412 = vmatpush.msra.mxu0 0.0
        %7413 = vmatpush.msra.mxu0 0.0
        %7414 = vmatpush.msra.mxu0 0.0
        %7415 = vmatpush.msra.mxu0 0.0
        %7416 = vmatpush.msra.mxu0 0.0
        %7417 = vmatpush.msra.mxu0 0.0
        %7418 = vmatpush.msra.mxu0 0.0
        %7419 = vmatpush.msra.mxu0 %v7385
        %7420 = vmatpush.msra.mxu0 %v7384
        %7421 = vmatpush.msra.mxu0 %v7383
        %7422 = vmatpush.msra.mxu0 %v7382
        %7423 = vmatmul.f32.gmra.mxu0 %v7396
        %v7424 = vpop.f32.mrf.mxu0
        %v7425 = vadd.f32 0.0, %v7424
        %7426 = vmatmul.f32.gmra.mxu0 %v7399
        %v7427 = vpop.f32.mrf.mxu0
        %v7428 = vadd.f32 0.0, %v7427
        %7429 = vmatmul.f32.gmra.mxu0 %v7402
        %v7430 = vpop.f32.mrf.mxu0
        %v7431 = vadd.f32 0.0, %v7430
        %7432 = vmatmul.f32.gmra.mxu0 %v7405
        %v7433 = vpop.f32.mrf.mxu0
        %v7434 = vadd.f32 0.0, %v7433
        %7435 = vdwg.mxu0
        %7436 = vmatpush.msra.mxu0 0.0
        %7437 = vmatpush.msra.mxu0 0.0
        %7438 = vmatpush.msra.mxu0 0.0
        %7439 = vmatpush.msra.mxu0 0.0
        %7440 = vmatpush.msra.mxu0 0.0
        %7441 = vmatpush.msra.mxu0 0.0
        %7442 = vmatpush.msra.mxu0 0.0
        %7443 = vmatpush.msra.mxu0 0.0
        %7444 = vmatpush.msra.mxu0 0.0
        %7445 = vmatpush.msra.mxu0 0.0
        %7446 = vmatpush.msra.mxu0 0.0
        %7447 = vmatpush.msra.mxu0 0.0
        %7448 = vmatpush.msra.mxu0 %v7389
        %7449 = vmatpush.msra.mxu0 %v7388
        %7450 = vmatpush.msra.mxu0 %v7387
        %7451 = vmatpush.msra.mxu0 %v7386
        %7452 = vmatmul.f32.gmra.mxu0 %v7396
        %v7453 = vpop.f32.mrf.mxu0
        %v7454 = vadd.f32 0.0, %v7453
        %7455 = vmatmul.f32.gmra.mxu0 %v7399
        %v7456 = vpop.f32.mrf.mxu0
        %v7457 = vadd.f32 0.0, %v7456
        %7458 = vmatmul.f32.gmra.mxu0 %v7402
        %v7459 = vpop.f32.mrf.mxu0
        %v7460 = vadd.f32 0.0, %v7459
        %7461 = vmatmul.f32.gmra.mxu0 %v7405
        %v7462 = vpop.f32.mrf.mxu0
        %v7463 = vadd.f32 0.0, %v7462
        %7464 = vdwg.mxu0
        %v7465 = vadd.f32 %v7358, %v7425
        %v7466 = vadd.f32 %v7359, %v7454
        %v7467 = vadd.f32 %v7360, %v7428
        %v7468 = vadd.f32 %v7361, %v7457
        %v7469 = vadd.f32 %v7362, %v7431
        %v7470 = vadd.f32 %v7363, %v7460
        %v7471 = vadd.f32 %v7364, %v7434
        %v7472 = vadd.f32 %v7365, %v7463
        %7473 = vrot.lane.b32.xlu0 %v5366, 106
        %v7474 = vpop.permute.xlu0 %7473
        %7475 = vrot.lane.b32.xlu0 %v5368, 106
        %v7476 = vpop.permute.xlu0 %7475
        %7477 = vrot.lane.b32.xlu0 %v5370, 106
        %v7478 = vpop.permute.xlu0 %7477
        %7479 = vrot.lane.b32.xlu0 %v5372, 106
        %v7480 = vpop.permute.xlu0 %7479
        %7481 = vrot.lane.b32.xlu0 %v5367, 106
        %v7482 = vpop.permute.xlu0 %7481
        %7483 = vrot.lane.b32.xlu0 %v5369, 106
        %v7484 = vpop.permute.xlu0 %7483
        %7485 = vrot.lane.b32.xlu0 %v5371, 106
        %v7486 = vpop.permute.xlu0 %7485
        %7487 = vrot.lane.b32.xlu0 %v5373, 106
        %v7488 = vpop.permute.xlu0 %7487
        %v7489 = vsel %vm2192, %v7474, %v7482
        %v7490 = vsel %vm2192, %v7476, %v7484
        %v7491 = vsel %vm2192, %v7478, %v7486
        %v7492 = vsel %vm2192, %v7480, %v7488
        %v7493 = vsel %vm2192, %v7482, %v7474
        %v7494 = vsel %vm2192, %v7484, %v7476
        %v7495 = vsel %vm2192, %v7486, %v7478
        %v7496 = vsel %vm2192, %v7488, %v7480
        %s7497 = scalar_lea.vmem [#allocation2], 640
        %v7498 = vld [vmem:[%s7497] sm:$0xff]
        %v7499 = vld [vmem:[%s7497 + $0x8] sm:$0xff]
        %v7500 = vld [vmem:[%s7497 + $0x10] sm:$0xff]
        %v7501 = vld [vmem:[%s7497 + $0x18] sm:$0xff]
        %v7503 = vsel %vm2748, %v7498, 0
        %v7506 = vsel %vm2748, %v7499, 0
        %v7509 = vsel %vm2748, %v7500, 0
        %v7512 = vsel %vm2748, %v7501, 0
        %7514 = vmatpush.msra.mxu0 0.0
        %7515 = vmatpush.msra.mxu0 0.0
        %7516 = vmatpush.msra.mxu0 0.0
        %7517 = vmatpush.msra.mxu0 0.0
        %7518 = vmatpush.msra.mxu0 0.0
        %7519 = vmatpush.msra.mxu0 0.0
        %7520 = vmatpush.msra.mxu0 0.0
        %7521 = vmatpush.msra.mxu0 0.0
        %7522 = vmatpush.msra.mxu0 0.0
        %7523 = vmatpush.msra.mxu0 0.0
        %7524 = vmatpush.msra.mxu0 0.0
        %7525 = vmatpush.msra.mxu0 0.0
        %7526 = vmatpush.msra.mxu0 %v7492
        %7527 = vmatpush.msra.mxu0 %v7491
        %7528 = vmatpush.msra.mxu0 %v7490
        %7529 = vmatpush.msra.mxu0 %v7489
        %7530 = vmatmul.f32.gmra.mxu0 %v7503
        %v7531 = vpop.f32.mrf.mxu0
        %v7532 = vadd.f32 0.0, %v7531
        %7533 = vmatmul.f32.gmra.mxu0 %v7506
        %v7534 = vpop.f32.mrf.mxu0
        %v7535 = vadd.f32 0.0, %v7534
        %7536 = vmatmul.f32.gmra.mxu0 %v7509
        %v7537 = vpop.f32.mrf.mxu0
        %v7538 = vadd.f32 0.0, %v7537
        %7539 = vmatmul.f32.gmra.mxu0 %v7512
        %v7540 = vpop.f32.mrf.mxu0
        %v7541 = vadd.f32 0.0, %v7540
        %7542 = vdwg.mxu0
        %7543 = vmatpush.msra.mxu0 0.0
        %7544 = vmatpush.msra.mxu0 0.0
        %7545 = vmatpush.msra.mxu0 0.0
        %7546 = vmatpush.msra.mxu0 0.0
        %7547 = vmatpush.msra.mxu0 0.0
        %7548 = vmatpush.msra.mxu0 0.0
        %7549 = vmatpush.msra.mxu0 0.0
        %7550 = vmatpush.msra.mxu0 0.0
        %7551 = vmatpush.msra.mxu0 0.0
        %7552 = vmatpush.msra.mxu0 0.0
        %7553 = vmatpush.msra.mxu0 0.0
        %7554 = vmatpush.msra.mxu0 0.0
        %7555 = vmatpush.msra.mxu0 %v7496
        %7556 = vmatpush.msra.mxu0 %v7495
        %7557 = vmatpush.msra.mxu0 %v7494
        %7558 = vmatpush.msra.mxu0 %v7493
        %7559 = vmatmul.f32.gmra.mxu0 %v7503
        %v7560 = vpop.f32.mrf.mxu0
        %v7561 = vadd.f32 0.0, %v7560
        %7562 = vmatmul.f32.gmra.mxu0 %v7506
        %v7563 = vpop.f32.mrf.mxu0
        %v7564 = vadd.f32 0.0, %v7563
        %7565 = vmatmul.f32.gmra.mxu0 %v7509
        %v7566 = vpop.f32.mrf.mxu0
        %v7567 = vadd.f32 0.0, %v7566
        %7568 = vmatmul.f32.gmra.mxu0 %v7512
        %v7569 = vpop.f32.mrf.mxu0
        %v7570 = vadd.f32 0.0, %v7569
        %7571 = vdwg.mxu0
        %v7572 = vadd.f32 %v7465, %v7532
        %v7573 = vadd.f32 %v7466, %v7561
        %v7574 = vadd.f32 %v7467, %v7535
        %v7575 = vadd.f32 %v7468, %v7564
        %v7576 = vadd.f32 %v7469, %v7538
        %v7577 = vadd.f32 %v7470, %v7567
        %v7578 = vadd.f32 %v7471, %v7541
        %v7579 = vadd.f32 %v7472, %v7570
        %7580 = vrot.lane.b32.xlu0 %v5366, 105
        %v7581 = vpop.permute.xlu0 %7580
        %7582 = vrot.lane.b32.xlu0 %v5368, 105
        %v7583 = vpop.permute.xlu0 %7582
        %7584 = vrot.lane.b32.xlu0 %v5370, 105
        %v7585 = vpop.permute.xlu0 %7584
        %7586 = vrot.lane.b32.xlu0 %v5372, 105
        %v7587 = vpop.permute.xlu0 %7586
        %7588 = vrot.lane.b32.xlu0 %v5367, 105
        %v7589 = vpop.permute.xlu0 %7588
        %7590 = vrot.lane.b32.xlu0 %v5369, 105
        %v7591 = vpop.permute.xlu0 %7590
        %7592 = vrot.lane.b32.xlu0 %v5371, 105
        %v7593 = vpop.permute.xlu0 %7592
        %7594 = vrot.lane.b32.xlu0 %v5373, 105
        %v7595 = vpop.permute.xlu0 %7594
        %v7596 = vsel %vm2282, %v7581, %v7589
        %v7597 = vsel %vm2282, %v7583, %v7591
        %v7598 = vsel %vm2282, %v7585, %v7593
        %v7599 = vsel %vm2282, %v7587, %v7595
        %v7600 = vsel %vm2282, %v7589, %v7581
        %v7601 = vsel %vm2282, %v7591, %v7583
        %v7602 = vsel %vm2282, %v7593, %v7585
        %v7603 = vsel %vm2282, %v7595, %v7587
        %s7604 = scalar_lea.vmem [#allocation2], 672
        %v7605 = vld [vmem:[%s7604] sm:$0xff]
        %v7606 = vld [vmem:[%s7604 + $0x8] sm:$0xff]
        %v7607 = vld [vmem:[%s7604 + $0x10] sm:$0xff]
        %v7608 = vld [vmem:[%s7604 + $0x18] sm:$0xff]
        %v7610 = vsel %vm2748, %v7605, 0
        %v7613 = vsel %vm2748, %v7606, 0
        %v7616 = vsel %vm2748, %v7607, 0
        %v7619 = vsel %vm2748, %v7608, 0
        %7621 = vmatpush.msra.mxu0 0.0
        %7622 = vmatpush.msra.mxu0 0.0
        %7623 = vmatpush.msra.mxu0 0.0
        %7624 = vmatpush.msra.mxu0 0.0
        %7625 = vmatpush.msra.mxu0 0.0
        %7626 = vmatpush.msra.mxu0 0.0
        %7627 = vmatpush.msra.mxu0 0.0
        %7628 = vmatpush.msra.mxu0 0.0
        %7629 = vmatpush.msra.mxu0 0.0
        %7630 = vmatpush.msra.mxu0 0.0
        %7631 = vmatpush.msra.mxu0 0.0
        %7632 = vmatpush.msra.mxu0 0.0
        %7633 = vmatpush.msra.mxu0 %v7599
        %7634 = vmatpush.msra.mxu0 %v7598
        %7635 = vmatpush.msra.mxu0 %v7597
        %7636 = vmatpush.msra.mxu0 %v7596
        %7637 = vmatmul.f32.gmra.mxu0 %v7610
        %v7638 = vpop.f32.mrf.mxu0
        %v7639 = vadd.f32 0.0, %v7638
        %7640 = vmatmul.f32.gmra.mxu0 %v7613
        %v7641 = vpop.f32.mrf.mxu0
        %v7642 = vadd.f32 0.0, %v7641
        %7643 = vmatmul.f32.gmra.mxu0 %v7616
        %v7644 = vpop.f32.mrf.mxu0
        %v7645 = vadd.f32 0.0, %v7644
        %7646 = vmatmul.f32.gmra.mxu0 %v7619
        %v7647 = vpop.f32.mrf.mxu0
        %v7648 = vadd.f32 0.0, %v7647
        %7649 = vdwg.mxu0
        %7650 = vmatpush.msra.mxu0 0.0
        %7651 = vmatpush.msra.mxu0 0.0
        %7652 = vmatpush.msra.mxu0 0.0
        %7653 = vmatpush.msra.mxu0 0.0
        %7654 = vmatpush.msra.mxu0 0.0
        %7655 = vmatpush.msra.mxu0 0.0
        %7656 = vmatpush.msra.mxu0 0.0
        %7657 = vmatpush.msra.mxu0 0.0
        %7658 = vmatpush.msra.mxu0 0.0
        %7659 = vmatpush.msra.mxu0 0.0
        %7660 = vmatpush.msra.mxu0 0.0
        %7661 = vmatpush.msra.mxu0 0.0
        %7662 = vmatpush.msra.mxu0 %v7603
        %7663 = vmatpush.msra.mxu0 %v7602
        %7664 = vmatpush.msra.mxu0 %v7601
        %7665 = vmatpush.msra.mxu0 %v7600
        %7666 = vmatmul.f32.gmra.mxu0 %v7610
        %v7667 = vpop.f32.mrf.mxu0
        %v7668 = vadd.f32 0.0, %v7667
        %7669 = vmatmul.f32.gmra.mxu0 %v7613
        %v7670 = vpop.f32.mrf.mxu0
        %v7671 = vadd.f32 0.0, %v7670
        %7672 = vmatmul.f32.gmra.mxu0 %v7616
        %v7673 = vpop.f32.mrf.mxu0
        %v7674 = vadd.f32 0.0, %v7673
        %7675 = vmatmul.f32.gmra.mxu0 %v7619
        %v7676 = vpop.f32.mrf.mxu0
        %v7677 = vadd.f32 0.0, %v7676
        %7678 = vdwg.mxu0
        %v7679 = vadd.f32 %v7572, %v7639
        %v7680 = vadd.f32 %v7573, %v7668
        %v7681 = vadd.f32 %v7574, %v7642
        %v7682 = vadd.f32 %v7575, %v7671
        %v7683 = vadd.f32 %v7576, %v7645
        %v7684 = vadd.f32 %v7577, %v7674
        %v7685 = vadd.f32 %v7578, %v7648
        %v7686 = vadd.f32 %v7579, %v7677
        %7687 = vrot.lane.b32.xlu0 %v5366, 104
        %v7688 = vpop.permute.xlu0 %7687
        %7689 = vrot.lane.b32.xlu0 %v5368, 104
        %v7690 = vpop.permute.xlu0 %7689
        %7691 = vrot.lane.b32.xlu0 %v5370, 104
        %v7692 = vpop.permute.xlu0 %7691
        %7693 = vrot.lane.b32.xlu0 %v5372, 104
        %v7694 = vpop.permute.xlu0 %7693
        %7695 = vrot.lane.b32.xlu0 %v5367, 104
        %v7696 = vpop.permute.xlu0 %7695
        %7697 = vrot.lane.b32.xlu0 %v5369, 104
        %v7698 = vpop.permute.xlu0 %7697
        %7699 = vrot.lane.b32.xlu0 %v5371, 104
        %v7700 = vpop.permute.xlu0 %7699
        %7701 = vrot.lane.b32.xlu0 %v5373, 104
        %v7702 = vpop.permute.xlu0 %7701
        %v7703 = vsel %vm2372, %v7688, %v7696
        %v7704 = vsel %vm2372, %v7690, %v7698
        %v7705 = vsel %vm2372, %v7692, %v7700
        %v7706 = vsel %vm2372, %v7694, %v7702
        %v7707 = vsel %vm2372, %v7696, %v7688
        %v7708 = vsel %vm2372, %v7698, %v7690
        %v7709 = vsel %vm2372, %v7700, %v7692
        %v7710 = vsel %vm2372, %v7702, %v7694
        %s7711 = scalar_lea.vmem [#allocation2], 704
        %v7712 = vld [vmem:[%s7711] sm:$0xff]
        %v7713 = vld [vmem:[%s7711 + $0x8] sm:$0xff]
        %v7714 = vld [vmem:[%s7711 + $0x10] sm:$0xff]
        %v7715 = vld [vmem:[%s7711 + $0x18] sm:$0xff]
        %v7717 = vsel %vm2748, %v7712, 0
        %v7720 = vsel %vm2748, %v7713, 0
        %v7723 = vsel %vm2748, %v7714, 0
        %v7726 = vsel %vm2748, %v7715, 0
        %7728 = vmatpush.msra.mxu0 0.0
        %7729 = vmatpush.msra.mxu0 0.0
        %7730 = vmatpush.msra.mxu0 0.0
        %7731 = vmatpush.msra.mxu0 0.0
        %7732 = vmatpush.msra.mxu0 0.0
        %7733 = vmatpush.msra.mxu0 0.0
        %7734 = vmatpush.msra.mxu0 0.0
        %7735 = vmatpush.msra.mxu0 0.0
        %7736 = vmatpush.msra.mxu0 0.0
        %7737 = vmatpush.msra.mxu0 0.0
        %7738 = vmatpush.msra.mxu0 0.0
        %7739 = vmatpush.msra.mxu0 0.0
        %7740 = vmatpush.msra.mxu0 %v7706
        %7741 = vmatpush.msra.mxu0 %v7705
        %7742 = vmatpush.msra.mxu0 %v7704
        %7743 = vmatpush.msra.mxu0 %v7703
        %7744 = vmatmul.f32.gmra.mxu0 %v7717
        %v7745 = vpop.f32.mrf.mxu0
        %v7746 = vadd.f32 0.0, %v7745
        %7747 = vmatmul.f32.gmra.mxu0 %v7720
        %v7748 = vpop.f32.mrf.mxu0
        %v7749 = vadd.f32 0.0, %v7748
        %7750 = vmatmul.f32.gmra.mxu0 %v7723
        %v7751 = vpop.f32.mrf.mxu0
        %v7752 = vadd.f32 0.0, %v7751
        %7753 = vmatmul.f32.gmra.mxu0 %v7726
        %v7754 = vpop.f32.mrf.mxu0
        %v7755 = vadd.f32 0.0, %v7754
        %7756 = vdwg.mxu0
        %7757 = vmatpush.msra.mxu0 0.0
        %7758 = vmatpush.msra.mxu0 0.0
        %7759 = vmatpush.msra.mxu0 0.0
        %7760 = vmatpush.msra.mxu0 0.0
        %7761 = vmatpush.msra.mxu0 0.0
        %7762 = vmatpush.msra.mxu0 0.0
        %7763 = vmatpush.msra.mxu0 0.0
        %7764 = vmatpush.msra.mxu0 0.0
        %7765 = vmatpush.msra.mxu0 0.0
        %7766 = vmatpush.msra.mxu0 0.0
        %7767 = vmatpush.msra.mxu0 0.0
        %7768 = vmatpush.msra.mxu0 0.0
        %7769 = vmatpush.msra.mxu0 %v7710
        %7770 = vmatpush.msra.mxu0 %v7709
        %7771 = vmatpush.msra.mxu0 %v7708
        %7772 = vmatpush.msra.mxu0 %v7707
        %7773 = vmatmul.f32.gmra.mxu0 %v7717
        %v7774 = vpop.f32.mrf.mxu0
        %v7775 = vadd.f32 0.0, %v7774
        %7776 = vmatmul.f32.gmra.mxu0 %v7720
        %v7777 = vpop.f32.mrf.mxu0
        %v7778 = vadd.f32 0.0, %v7777
        %7779 = vmatmul.f32.gmra.mxu0 %v7723
        %v7780 = vpop.f32.mrf.mxu0
        %v7781 = vadd.f32 0.0, %v7780
        %7782 = vmatmul.f32.gmra.mxu0 %v7726
        %v7783 = vpop.f32.mrf.mxu0
        %v7784 = vadd.f32 0.0, %v7783
        %7785 = vdwg.mxu0
        %v7786 = vadd.f32 %v7679, %v7746
        %v7787 = vadd.f32 %v7680, %v7775
        %v7788 = vadd.f32 %v7681, %v7749
        %v7789 = vadd.f32 %v7682, %v7778
        %v7790 = vadd.f32 %v7683, %v7752
        %v7791 = vadd.f32 %v7684, %v7781
        %v7792 = vadd.f32 %v7685, %v7755
        %v7793 = vadd.f32 %v7686, %v7784
        %7794 = vrot.lane.b32.xlu0 %v5366, 103
        %v7795 = vpop.permute.xlu0 %7794
        %7796 = vrot.lane.b32.xlu0 %v5368, 103
        %v7797 = vpop.permute.xlu0 %7796
        %7798 = vrot.lane.b32.xlu0 %v5370, 103
        %v7799 = vpop.permute.xlu0 %7798
        %7800 = vrot.lane.b32.xlu0 %v5372, 103
        %v7801 = vpop.permute.xlu0 %7800
        %7802 = vrot.lane.b32.xlu0 %v5367, 103
        %v7803 = vpop.permute.xlu0 %7802
        %7804 = vrot.lane.b32.xlu0 %v5369, 103
        %v7805 = vpop.permute.xlu0 %7804
        %7806 = vrot.lane.b32.xlu0 %v5371, 103
        %v7807 = vpop.permute.xlu0 %7806
        %7808 = vrot.lane.b32.xlu0 %v5373, 103
        %v7809 = vpop.permute.xlu0 %7808
        %v7810 = vsel %vm2462, %v7795, %v7803
        %v7811 = vsel %vm2462, %v7797, %v7805
        %v7812 = vsel %vm2462, %v7799, %v7807
        %v7813 = vsel %vm2462, %v7801, %v7809
        %v7814 = vsel %vm2462, %v7803, %v7795
        %v7815 = vsel %vm2462, %v7805, %v7797
        %v7816 = vsel %vm2462, %v7807, %v7799
        %v7817 = vsel %vm2462, %v7809, %v7801
        %s7818 = scalar_lea.vmem [#allocation2], 736
        %v7819 = vld [vmem:[%s7818] sm:$0xff]
        %v7820 = vld [vmem:[%s7818 + $0x8] sm:$0xff]
        %v7821 = vld [vmem:[%s7818 + $0x10] sm:$0xff]
        %v7822 = vld [vmem:[%s7818 + $0x18] sm:$0xff]
        %v7824 = vsel %vm2748, %v7819, 0
        %v7827 = vsel %vm2748, %v7820, 0
        %v7830 = vsel %vm2748, %v7821, 0
        %v7833 = vsel %vm2748, %v7822, 0
        %7835 = vmatpush.msra.mxu0 0.0
        %7836 = vmatpush.msra.mxu0 0.0
        %7837 = vmatpush.msra.mxu0 0.0
        %7838 = vmatpush.msra.mxu0 0.0
        %7839 = vmatpush.msra.mxu0 0.0
        %7840 = vmatpush.msra.mxu0 0.0
        %7841 = vmatpush.msra.mxu0 0.0
        %7842 = vmatpush.msra.mxu0 0.0
        %7843 = vmatpush.msra.mxu0 0.0
        %7844 = vmatpush.msra.mxu0 0.0
        %7845 = vmatpush.msra.mxu0 0.0
        %7846 = vmatpush.msra.mxu0 0.0
        %7847 = vmatpush.msra.mxu0 %v7813
        %7848 = vmatpush.msra.mxu0 %v7812
        %7849 = vmatpush.msra.mxu0 %v7811
        %7850 = vmatpush.msra.mxu0 %v7810
        %7851 = vmatmul.f32.gmra.mxu0 %v7824
        %v7852 = vpop.f32.mrf.mxu0
        %v7853 = vadd.f32 0.0, %v7852
        %7854 = vmatmul.f32.gmra.mxu0 %v7827
        %v7855 = vpop.f32.mrf.mxu0
        %v7856 = vadd.f32 0.0, %v7855
        %7857 = vmatmul.f32.gmra.mxu0 %v7830
        %v7858 = vpop.f32.mrf.mxu0
        %v7859 = vadd.f32 0.0, %v7858
        %7860 = vmatmul.f32.gmra.mxu0 %v7833
        %v7861 = vpop.f32.mrf.mxu0
        %v7862 = vadd.f32 0.0, %v7861
        %7863 = vdwg.mxu0
        %7864 = vmatpush.msra.mxu0 0.0
        %7865 = vmatpush.msra.mxu0 0.0
        %7866 = vmatpush.msra.mxu0 0.0
        %7867 = vmatpush.msra.mxu0 0.0
        %7868 = vmatpush.msra.mxu0 0.0
        %7869 = vmatpush.msra.mxu0 0.0
        %7870 = vmatpush.msra.mxu0 0.0
        %7871 = vmatpush.msra.mxu0 0.0
        %7872 = vmatpush.msra.mxu0 0.0
        %7873 = vmatpush.msra.mxu0 0.0
        %7874 = vmatpush.msra.mxu0 0.0
        %7875 = vmatpush.msra.mxu0 0.0
        %7876 = vmatpush.msra.mxu0 %v7817
        %7877 = vmatpush.msra.mxu0 %v7816
        %7878 = vmatpush.msra.mxu0 %v7815
        %7879 = vmatpush.msra.mxu0 %v7814
        %7880 = vmatmul.f32.gmra.mxu0 %v7824
        %v7881 = vpop.f32.mrf.mxu0
        %v7882 = vadd.f32 0.0, %v7881
        %7883 = vmatmul.f32.gmra.mxu0 %v7827
        %v7884 = vpop.f32.mrf.mxu0
        %v7885 = vadd.f32 0.0, %v7884
        %7886 = vmatmul.f32.gmra.mxu0 %v7830
        %v7887 = vpop.f32.mrf.mxu0
        %v7888 = vadd.f32 0.0, %v7887
        %7889 = vmatmul.f32.gmra.mxu0 %v7833
        %v7890 = vpop.f32.mrf.mxu0
        %v7891 = vadd.f32 0.0, %v7890
        %7892 = vdwg.mxu0
        %v7893 = vadd.f32 %v7786, %v7853
        %v7894 = vadd.f32 %v7787, %v7882
        %v7895 = vadd.f32 %v7788, %v7856
        %v7896 = vadd.f32 %v7789, %v7885
        %v7897 = vadd.f32 %v7790, %v7859
        %v7898 = vadd.f32 %v7791, %v7888
        %v7899 = vadd.f32 %v7792, %v7862
        %v7900 = vadd.f32 %v7793, %v7891
        %7901 = vrot.lane.b32.xlu0 %v5366, 102
        %v7902 = vpop.permute.xlu0 %7901
        %7903 = vrot.lane.b32.xlu0 %v5368, 102
        %v7904 = vpop.permute.xlu0 %7903
        %7905 = vrot.lane.b32.xlu0 %v5370, 102
        %v7906 = vpop.permute.xlu0 %7905
        %7907 = vrot.lane.b32.xlu0 %v5372, 102
        %v7908 = vpop.permute.xlu0 %7907
        %7909 = vrot.lane.b32.xlu0 %v5367, 102
        %v7910 = vpop.permute.xlu0 %7909
        %7911 = vrot.lane.b32.xlu0 %v5369, 102
        %v7912 = vpop.permute.xlu0 %7911
        %7913 = vrot.lane.b32.xlu0 %v5371, 102
        %v7914 = vpop.permute.xlu0 %7913
        %7915 = vrot.lane.b32.xlu0 %v5373, 102
        %v7916 = vpop.permute.xlu0 %7915
        %v7917 = vsel %vm2552, %v7902, %v7910
        %v7918 = vsel %vm2552, %v7904, %v7912
        %v7919 = vsel %vm2552, %v7906, %v7914
        %v7920 = vsel %vm2552, %v7908, %v7916
        %v7921 = vsel %vm2552, %v7910, %v7902
        %v7922 = vsel %vm2552, %v7912, %v7904
        %v7923 = vsel %vm2552, %v7914, %v7906
        %v7924 = vsel %vm2552, %v7916, %v7908
        %s7925 = scalar_lea.vmem [#allocation2], 768
        %v7926 = vld [vmem:[%s7925] sm:$0xff]
        %v7927 = vld [vmem:[%s7925 + $0x8] sm:$0xff]
        %v7928 = vld [vmem:[%s7925 + $0x10] sm:$0xff]
        %v7929 = vld [vmem:[%s7925 + $0x18] sm:$0xff]
        %v7931 = vsel %vm2748, %v7926, 0
        %v7934 = vsel %vm2748, %v7927, 0
        %v7937 = vsel %vm2748, %v7928, 0
        %v7940 = vsel %vm2748, %v7929, 0
        %7942 = vmatpush.msra.mxu0 0.0
        %7943 = vmatpush.msra.mxu0 0.0
        %7944 = vmatpush.msra.mxu0 0.0
        %7945 = vmatpush.msra.mxu0 0.0
        %7946 = vmatpush.msra.mxu0 0.0
        %7947 = vmatpush.msra.mxu0 0.0
        %7948 = vmatpush.msra.mxu0 0.0
        %7949 = vmatpush.msra.mxu0 0.0
        %7950 = vmatpush.msra.mxu0 0.0
        %7951 = vmatpush.msra.mxu0 0.0
        %7952 = vmatpush.msra.mxu0 0.0
        %7953 = vmatpush.msra.mxu0 0.0
        %7954 = vmatpush.msra.mxu0 %v7920
        %7955 = vmatpush.msra.mxu0 %v7919
        %7956 = vmatpush.msra.mxu0 %v7918
        %7957 = vmatpush.msra.mxu0 %v7917
        %7958 = vmatmul.f32.gmra.mxu0 %v7931
        %v7959 = vpop.f32.mrf.mxu0
        %v7960 = vadd.f32 0.0, %v7959
        %7961 = vmatmul.f32.gmra.mxu0 %v7934
        %v7962 = vpop.f32.mrf.mxu0
        %v7963 = vadd.f32 0.0, %v7962
        %7964 = vmatmul.f32.gmra.mxu0 %v7937
        %v7965 = vpop.f32.mrf.mxu0
        %v7966 = vadd.f32 0.0, %v7965
        %7967 = vmatmul.f32.gmra.mxu0 %v7940
        %v7968 = vpop.f32.mrf.mxu0
        %v7969 = vadd.f32 0.0, %v7968
        %7970 = vdwg.mxu0
        %7971 = vmatpush.msra.mxu0 0.0
        %7972 = vmatpush.msra.mxu0 0.0
        %7973 = vmatpush.msra.mxu0 0.0
        %7974 = vmatpush.msra.mxu0 0.0
        %7975 = vmatpush.msra.mxu0 0.0
        %7976 = vmatpush.msra.mxu0 0.0
        %7977 = vmatpush.msra.mxu0 0.0
        %7978 = vmatpush.msra.mxu0 0.0
        %7979 = vmatpush.msra.mxu0 0.0
        %7980 = vmatpush.msra.mxu0 0.0
        %7981 = vmatpush.msra.mxu0 0.0
        %7982 = vmatpush.msra.mxu0 0.0
        %7983 = vmatpush.msra.mxu0 %v7924
        %7984 = vmatpush.msra.mxu0 %v7923
        %7985 = vmatpush.msra.mxu0 %v7922
        %7986 = vmatpush.msra.mxu0 %v7921
        %7987 = vmatmul.f32.gmra.mxu0 %v7931
        %v7988 = vpop.f32.mrf.mxu0
        %v7989 = vadd.f32 0.0, %v7988
        %7990 = vmatmul.f32.gmra.mxu0 %v7934
        %v7991 = vpop.f32.mrf.mxu0
        %v7992 = vadd.f32 0.0, %v7991
        %7993 = vmatmul.f32.gmra.mxu0 %v7937
        %v7994 = vpop.f32.mrf.mxu0
        %v7995 = vadd.f32 0.0, %v7994
        %7996 = vmatmul.f32.gmra.mxu0 %v7940
        %v7997 = vpop.f32.mrf.mxu0
        %v7998 = vadd.f32 0.0, %v7997
        %7999 = vdwg.mxu0
        %v8000 = vadd.f32 %v7893, %v7960
        %v8001 = vadd.f32 %v7894, %v7989
        %v8002 = vadd.f32 %v7895, %v7963
        %v8003 = vadd.f32 %v7896, %v7992
        %v8004 = vadd.f32 %v7897, %v7966
        %v8005 = vadd.f32 %v7898, %v7995
        %v8006 = vadd.f32 %v7899, %v7969
        %v8007 = vadd.f32 %v7900, %v7998
        %v8008 = vld [vmem:[%s8] sm:$0xff]
        %v8009 = vld [vmem:[%s8 + $0x8] sm:$0xff]
        %v8010 = vld [vmem:[%s8 + $0x10] sm:$0xff]
        %v8011 = vld [vmem:[%s8 + $0x18] sm:$0xff]
        %8013 = vset.pattern.permute.xlu0 0
        %8014 = vperm.xlu0 %8013, %v8008
        %v8015 = vpop.permute.xlu0 %8014
        %8018 = vset.pattern.permute.xlu0 0
        %8019 = vperm.xlu0 %8018, %v8009
        %v8020 = vpop.permute.xlu0 %8019
        %8023 = vset.pattern.permute.xlu0 0
        %8024 = vperm.xlu0 %8023, %v8010
        %v8025 = vpop.permute.xlu0 %8024
        %8028 = vset.pattern.permute.xlu0 0
        %8029 = vperm.xlu0 %8028, %v8011
        %v8030 = vpop.permute.xlu0 %8029
        %v8032 = vadd.f32 %v8000, %v8015
        %v8033 = vadd.f32 %v8001, %v8015
        %v8034 = vadd.f32 %v8002, %v8020
        %v8035 = vadd.f32 %v8003, %v8020
        %v8036 = vadd.f32 %v8004, %v8025
        %v8037 = vadd.f32 %v8005, %v8025
        %v8038 = vadd.f32 %v8006, %v8030
        %v8039 = vadd.f32 %v8007, %v8030
        %v8040 = vmax.f32 %v8032, 0.0
        %v8041 = vmax.f32 %v8033, 0.0
        %v8042 = vmax.f32 %v8034, 0.0
        %v8043 = vmax.f32 %v8035, 0.0
        %v8044 = vmax.f32 %v8036, 0.0
        %v8045 = vmax.f32 %v8037, 0.0
        %v8046 = vmax.f32 %v8038, 0.0
        %v8047 = vmax.f32 %v8039, 0.0
        %v8048 = vmul.f32 %v8040, %v2679
        %v8049 = vmul.f32 %v8041, %v2680
        %v8050 = vmul.f32 %v8042, %v2679
        %v8051 = vmul.f32 %v8043, %v2680
        %v8052 = vmul.f32 %v8044, %v2679
        %v8053 = vmul.f32 %v8045, %v2680
        %v8054 = vmul.f32 %v8046, %v2679
        %v8055 = vmul.f32 %v8047, %v2680
        %8056 = vrot.lane.b32.xlu0 %v8048, 13
        %v8057 = vpop.permute.xlu0 %8056
        %8058 = vrot.lane.b32.xlu0 %v8050, 13
        %v8059 = vpop.permute.xlu0 %8058
        %8060 = vrot.lane.b32.xlu0 %v8052, 13
        %v8061 = vpop.permute.xlu0 %8060
        %8062 = vrot.lane.b32.xlu0 %v8054, 13
        %v8063 = vpop.permute.xlu0 %8062
        %8064 = vrot.lane.b32.xlu0 %v8049, 13
        %v8065 = vpop.permute.xlu0 %8064
        %8066 = vrot.lane.b32.xlu0 %v8051, 13
        %v8067 = vpop.permute.xlu0 %8066
        %8068 = vrot.lane.b32.xlu0 %v8053, 13
        %v8069 = vpop.permute.xlu0 %8068
        %8070 = vrot.lane.b32.xlu0 %v8055, 13
        %v8071 = vpop.permute.xlu0 %8070
        %v8072 = vsel %vm939, %v8057, %v8065
        %v8073 = vsel %vm939, %v8059, %v8067
        %v8074 = vsel %vm939, %v8061, %v8069
        %v8075 = vsel %vm939, %v8063, %v8071
        %v8076 = vsel %vm939, %v8065, %v8057
        %v8077 = vsel %vm939, %v8067, %v8059
        %v8078 = vsel %vm939, %v8069, %v8061
        %v8079 = vsel %vm939, %v8071, %v8063
        %v8080 = vld [vmem:[%s9] sm:$0xff]
        %8081 = vrot.lane.b32.xlu0 %v8048, 12
        %v8082 = vpop.permute.xlu0 %8081
        %8083 = vrot.lane.b32.xlu0 %v8050, 12
        %v8084 = vpop.permute.xlu0 %8083
        %8085 = vrot.lane.b32.xlu0 %v8052, 12
        %v8086 = vpop.permute.xlu0 %8085
        %8087 = vrot.lane.b32.xlu0 %v8054, 12
        %v8088 = vpop.permute.xlu0 %8087
        %8089 = vrot.lane.b32.xlu0 %v8049, 12
        %v8090 = vpop.permute.xlu0 %8089
        %8091 = vrot.lane.b32.xlu0 %v8051, 12
        %v8092 = vpop.permute.xlu0 %8091
        %8093 = vrot.lane.b32.xlu0 %v8053, 12
        %v8094 = vpop.permute.xlu0 %8093
        %8095 = vrot.lane.b32.xlu0 %v8055, 12
        %v8096 = vpop.permute.xlu0 %8095
        %v8097 = vsel %vm1029, %v8082, %v8090
        %v8098 = vsel %vm1029, %v8084, %v8092
        %v8099 = vsel %vm1029, %v8086, %v8094
        %v8100 = vsel %vm1029, %v8088, %v8096
        %v8101 = vsel %vm1029, %v8090, %v8082
        %v8102 = vsel %vm1029, %v8092, %v8084
        %v8103 = vsel %vm1029, %v8094, %v8086
        %v8104 = vsel %vm1029, %v8096, %v8088
        %s8105 = scalar_lea.vmem %s9, 8
        %v8106 = vld [vmem:[%s8105] sm:$0xff]
        %v8108 = vsel %vm2748, %v8106, 0
        %8110 = vmatpush.msra.mxu0 0.0
        %8111 = vmatpush.msra.mxu0 0.0
        %8112 = vmatpush.msra.mxu0 0.0
        %8113 = vmatpush.msra.mxu0 0.0
        %8114 = vmatpush.msra.mxu0 0.0
        %8115 = vmatpush.msra.mxu0 0.0
        %8116 = vmatpush.msra.mxu0 0.0
        %8117 = vmatpush.msra.mxu0 0.0
        %8118 = vmatpush.msra.mxu0 0.0
        %8119 = vmatpush.msra.mxu0 0.0
        %8120 = vmatpush.msra.mxu0 0.0
        %8121 = vmatpush.msra.mxu0 0.0
        %8122 = vmatpush.msra.mxu0 %v8104
        %8123 = vmatpush.msra.mxu0 %v8103
        %8124 = vmatpush.msra.mxu0 %v8102
        %8125 = vmatpush.msra.mxu0 %v8101
        %8126 = vmatmul.f32.gmra.mxu0 %v8108
        %v8127 = vpop.f32.mrf.mxu0
        %v8128 = vadd.f32 0.0, %v8127
        %8129 = vdwg.mxu0
        %8130 = vmatpush.msra.mxu0 0.0
        %8131 = vmatpush.msra.mxu0 0.0
        %8132 = vmatpush.msra.mxu0 0.0
        %8133 = vmatpush.msra.mxu0 0.0
        %8134 = vmatpush.msra.mxu0 0.0
        %8135 = vmatpush.msra.mxu0 0.0
        %8136 = vmatpush.msra.mxu0 0.0
        %8137 = vmatpush.msra.mxu0 0.0
        %8138 = vmatpush.msra.mxu0 0.0
        %8139 = vmatpush.msra.mxu0 0.0
        %8140 = vmatpush.msra.mxu0 0.0
        %8141 = vmatpush.msra.mxu0 0.0
        %8142 = vmatpush.msra.mxu0 %v8100
        %8143 = vmatpush.msra.mxu0 %v8099
        %8144 = vmatpush.msra.mxu0 %v8098
        %8145 = vmatpush.msra.mxu0 %v8097
        %8146 = vmatmul.f32.gmra.mxu0 %v8108
        %v8147 = vpop.f32.mrf.mxu0
        %v8148 = vadd.f32 0.0, %v8147
        %8149 = vdwg.mxu0
        %v8151 = vsel %vm2748, %v8080, 0
        %8153 = vmatpush.msra.mxu0 0.0
        %8154 = vmatpush.msra.mxu0 0.0
        %8155 = vmatpush.msra.mxu0 0.0
        %8156 = vmatpush.msra.mxu0 0.0
        %8157 = vmatpush.msra.mxu0 0.0
        %8158 = vmatpush.msra.mxu0 0.0
        %8159 = vmatpush.msra.mxu0 0.0
        %8160 = vmatpush.msra.mxu0 0.0
        %8161 = vmatpush.msra.mxu0 0.0
        %8162 = vmatpush.msra.mxu0 0.0
        %8163 = vmatpush.msra.mxu0 0.0
        %8164 = vmatpush.msra.mxu0 0.0
        %8165 = vmatpush.msra.mxu0 %v8079
        %8166 = vmatpush.msra.mxu0 %v8078
        %8167 = vmatpush.msra.mxu0 %v8077
        %8168 = vmatpush.msra.mxu0 %v8076
        %8169 = vmatmul.f32.gmra.mxu0 %v8151
        %v8170 = vpop.f32.mrf.mxu0
        %v8171 = vadd.f32 %v8128, %v8170
        %8172 = vdwg.mxu0
        %8173 = vmatpush.msra.mxu0 0.0
        %8174 = vmatpush.msra.mxu0 0.0
        %8175 = vmatpush.msra.mxu0 0.0
        %8176 = vmatpush.msra.mxu0 0.0
        %8177 = vmatpush.msra.mxu0 0.0
        %8178 = vmatpush.msra.mxu0 0.0
        %8179 = vmatpush.msra.mxu0 0.0
        %8180 = vmatpush.msra.mxu0 0.0
        %8181 = vmatpush.msra.mxu0 0.0
        %8182 = vmatpush.msra.mxu0 0.0
        %8183 = vmatpush.msra.mxu0 0.0
        %8184 = vmatpush.msra.mxu0 0.0
        %8185 = vmatpush.msra.mxu0 %v8075
        %8186 = vmatpush.msra.mxu0 %v8074
        %8187 = vmatpush.msra.mxu0 %v8073
        %8188 = vmatpush.msra.mxu0 %v8072
        %8189 = vmatmul.f32.gmra.mxu0 %v8151
        %v8190 = vpop.f32.mrf.mxu0
        %v8191 = vadd.f32 %v8148, %v8190
        %8192 = vdwg.mxu0
        %8193 = vrot.lane.b32.xlu0 %v8048, 11
        %v8194 = vpop.permute.xlu0 %8193
        %8195 = vrot.lane.b32.xlu0 %v8050, 11
        %v8196 = vpop.permute.xlu0 %8195
        %8197 = vrot.lane.b32.xlu0 %v8052, 11
        %v8198 = vpop.permute.xlu0 %8197
        %8199 = vrot.lane.b32.xlu0 %v8054, 11
        %v8200 = vpop.permute.xlu0 %8199
        %8201 = vrot.lane.b32.xlu0 %v8049, 11
        %v8202 = vpop.permute.xlu0 %8201
        %8203 = vrot.lane.b32.xlu0 %v8051, 11
        %v8204 = vpop.permute.xlu0 %8203
        %8205 = vrot.lane.b32.xlu0 %v8053, 11
        %v8206 = vpop.permute.xlu0 %8205
        %8207 = vrot.lane.b32.xlu0 %v8055, 11
        %v8208 = vpop.permute.xlu0 %8207
        %v8209 = vsel %vm1119, %v8194, %v8202
        %v8210 = vsel %vm1119, %v8196, %v8204
        %v8211 = vsel %vm1119, %v8198, %v8206
        %v8212 = vsel %vm1119, %v8200, %v8208
        %v8213 = vsel %vm1119, %v8202, %v8194
        %v8214 = vsel %vm1119, %v8204, %v8196
        %v8215 = vsel %vm1119, %v8206, %v8198
        %v8216 = vsel %vm1119, %v8208, %v8200
        %s8217 = scalar_lea.vmem %s9, 16
        %v8218 = vld [vmem:[%s8217] sm:$0xff]
        %v8220 = vsel %vm2748, %v8218, 0
        %8222 = vmatpush.msra.mxu0 0.0
        %8223 = vmatpush.msra.mxu0 0.0
        %8224 = vmatpush.msra.mxu0 0.0
        %8225 = vmatpush.msra.mxu0 0.0
        %8226 = vmatpush.msra.mxu0 0.0
        %8227 = vmatpush.msra.mxu0 0.0
        %8228 = vmatpush.msra.mxu0 0.0
        %8229 = vmatpush.msra.mxu0 0.0
        %8230 = vmatpush.msra.mxu0 0.0
        %8231 = vmatpush.msra.mxu0 0.0
        %8232 = vmatpush.msra.mxu0 0.0
        %8233 = vmatpush.msra.mxu0 0.0
        %8234 = vmatpush.msra.mxu0 %v8216
        %8235 = vmatpush.msra.mxu0 %v8215
        %8236 = vmatpush.msra.mxu0 %v8214
        %8237 = vmatpush.msra.mxu0 %v8213
        %8238 = vmatmul.f32.gmra.mxu0 %v8220
        %v8239 = vpop.f32.mrf.mxu0
        %v8240 = vadd.f32 0.0, %v8239
        %8241 = vdwg.mxu0
        %8242 = vmatpush.msra.mxu0 0.0
        %8243 = vmatpush.msra.mxu0 0.0
        %8244 = vmatpush.msra.mxu0 0.0
        %8245 = vmatpush.msra.mxu0 0.0
        %8246 = vmatpush.msra.mxu0 0.0
        %8247 = vmatpush.msra.mxu0 0.0
        %8248 = vmatpush.msra.mxu0 0.0
        %8249 = vmatpush.msra.mxu0 0.0
        %8250 = vmatpush.msra.mxu0 0.0
        %8251 = vmatpush.msra.mxu0 0.0
        %8252 = vmatpush.msra.mxu0 0.0
        %8253 = vmatpush.msra.mxu0 0.0
        %8254 = vmatpush.msra.mxu0 %v8212
        %8255 = vmatpush.msra.mxu0 %v8211
        %8256 = vmatpush.msra.mxu0 %v8210
        %8257 = vmatpush.msra.mxu0 %v8209
        %8258 = vmatmul.f32.gmra.mxu0 %v8220
        %v8259 = vpop.f32.mrf.mxu0
        %v8260 = vadd.f32 0.0, %v8259
        %8261 = vdwg.mxu0
        %v8262 = vadd.f32 %v8171, %v8240
        %v8263 = vadd.f32 %v8191, %v8260
        %8264 = vrot.lane.b32.xlu0 %v8048, 1
        %v8265 = vpop.permute.xlu0 %8264
        %8266 = vrot.lane.b32.xlu0 %v8050, 1
        %v8267 = vpop.permute.xlu0 %8266
        %8268 = vrot.lane.b32.xlu0 %v8052, 1
        %v8269 = vpop.permute.xlu0 %8268
        %8270 = vrot.lane.b32.xlu0 %v8054, 1
        %v8271 = vpop.permute.xlu0 %8270
        %8272 = vrot.lane.b32.xlu0 %v8049, 1
        %v8273 = vpop.permute.xlu0 %8272
        %8274 = vrot.lane.b32.xlu0 %v8051, 1
        %v8275 = vpop.permute.xlu0 %8274
        %8276 = vrot.lane.b32.xlu0 %v8053, 1
        %v8277 = vpop.permute.xlu0 %8276
        %8278 = vrot.lane.b32.xlu0 %v8055, 1
        %v8279 = vpop.permute.xlu0 %8278
        %v8280 = vsel %vm1389, %v8265, %v8273
        %v8281 = vsel %vm1389, %v8267, %v8275
        %v8282 = vsel %vm1389, %v8269, %v8277
        %v8283 = vsel %vm1389, %v8271, %v8279
        %v8284 = vsel %vm1389, %v8273, %v8265
        %v8285 = vsel %vm1389, %v8275, %v8267
        %v8286 = vsel %vm1389, %v8277, %v8269
        %v8287 = vsel %vm1389, %v8279, %v8271
        %s8288 = scalar_lea.vmem %s9, 24
        %v8289 = vld [vmem:[%s8288] sm:$0xff]
        %v8291 = vsel %vm2748, %v8289, 0
        %8293 = vmatpush.msra.mxu0 0.0
        %8294 = vmatpush.msra.mxu0 0.0
        %8295 = vmatpush.msra.mxu0 0.0
        %8296 = vmatpush.msra.mxu0 0.0
        %8297 = vmatpush.msra.mxu0 0.0
        %8298 = vmatpush.msra.mxu0 0.0
        %8299 = vmatpush.msra.mxu0 0.0
        %8300 = vmatpush.msra.mxu0 0.0
        %8301 = vmatpush.msra.mxu0 0.0
        %8302 = vmatpush.msra.mxu0 0.0
        %8303 = vmatpush.msra.mxu0 0.0
        %8304 = vmatpush.msra.mxu0 0.0
        %8305 = vmatpush.msra.mxu0 %v8287
        %8306 = vmatpush.msra.mxu0 %v8286
        %8307 = vmatpush.msra.mxu0 %v8285
        %8308 = vmatpush.msra.mxu0 %v8284
        %8309 = vmatmul.f32.gmra.mxu0 %v8291
        %v8310 = vpop.f32.mrf.mxu0
        %v8311 = vadd.f32 0.0, %v8310
        %8312 = vdwg.mxu0
        %8313 = vmatpush.msra.mxu0 0.0
        %8314 = vmatpush.msra.mxu0 0.0
        %8315 = vmatpush.msra.mxu0 0.0
        %8316 = vmatpush.msra.mxu0 0.0
        %8317 = vmatpush.msra.mxu0 0.0
        %8318 = vmatpush.msra.mxu0 0.0
        %8319 = vmatpush.msra.mxu0 0.0
        %8320 = vmatpush.msra.mxu0 0.0
        %8321 = vmatpush.msra.mxu0 0.0
        %8322 = vmatpush.msra.mxu0 0.0
        %8323 = vmatpush.msra.mxu0 0.0
        %8324 = vmatpush.msra.mxu0 0.0
        %8325 = vmatpush.msra.mxu0 %v8283
        %8326 = vmatpush.msra.mxu0 %v8282
        %8327 = vmatpush.msra.mxu0 %v8281
        %8328 = vmatpush.msra.mxu0 %v8280
        %8329 = vmatmul.f32.gmra.mxu0 %v8291
        %v8330 = vpop.f32.mrf.mxu0
        %v8331 = vadd.f32 0.0, %v8330
        %8332 = vdwg.mxu0
        %v8333 = vadd.f32 %v8262, %v8311
        %v8334 = vadd.f32 %v8263, %v8331
        %s8335 = scalar_lea.vmem %s9, 32
        %v8336 = vld [vmem:[%s8335] sm:$0xff]
        %v8338 = vsel %vm2748, %v8336, 0
        %8340 = vmatpush.msra.mxu0 0.0
        %8341 = vmatpush.msra.mxu0 0.0
        %8342 = vmatpush.msra.mxu0 0.0
        %8343 = vmatpush.msra.mxu0 0.0
        %8344 = vmatpush.msra.mxu0 0.0
        %8345 = vmatpush.msra.mxu0 0.0
        %8346 = vmatpush.msra.mxu0 0.0
        %8347 = vmatpush.msra.mxu0 0.0
        %8348 = vmatpush.msra.mxu0 0.0
        %8349 = vmatpush.msra.mxu0 0.0
        %8350 = vmatpush.msra.mxu0 0.0
        %8351 = vmatpush.msra.mxu0 0.0
        %8352 = vmatpush.msra.mxu0 %v8054
        %8353 = vmatpush.msra.mxu0 %v8052
        %8354 = vmatpush.msra.mxu0 %v8050
        %8355 = vmatpush.msra.mxu0 %v8048
        %8356 = vmatmul.f32.gmra.mxu0 %v8338
        %v8357 = vpop.f32.mrf.mxu0
        %v8358 = vadd.f32 0.0, %v8357
        %8359 = vdwg.mxu0
        %8360 = vmatpush.msra.mxu0 0.0
        %8361 = vmatpush.msra.mxu0 0.0
        %8362 = vmatpush.msra.mxu0 0.0
        %8363 = vmatpush.msra.mxu0 0.0
        %8364 = vmatpush.msra.mxu0 0.0
        %8365 = vmatpush.msra.mxu0 0.0
        %8366 = vmatpush.msra.mxu0 0.0
        %8367 = vmatpush.msra.mxu0 0.0
        %8368 = vmatpush.msra.mxu0 0.0
        %8369 = vmatpush.msra.mxu0 0.0
        %8370 = vmatpush.msra.mxu0 0.0
        %8371 = vmatpush.msra.mxu0 0.0
        %8372 = vmatpush.msra.mxu0 %v8055
        %8373 = vmatpush.msra.mxu0 %v8053
        %8374 = vmatpush.msra.mxu0 %v8051
        %8375 = vmatpush.msra.mxu0 %v8049
        %8376 = vmatmul.f32.gmra.mxu0 %v8338
        %v8377 = vpop.f32.mrf.mxu0
        %v8378 = vadd.f32 0.0, %v8377
        %8379 = vdwg.mxu0
        %v8380 = vadd.f32 %v8333, %v8358
        %v8381 = vadd.f32 %v8334, %v8378
        %8382 = vrot.lane.b32.xlu0 %v8048, 127
        %v8383 = vpop.permute.xlu0 %8382
        %8384 = vrot.lane.b32.xlu0 %v8050, 127
        %v8385 = vpop.permute.xlu0 %8384
        %8386 = vrot.lane.b32.xlu0 %v8052, 127
        %v8387 = vpop.permute.xlu0 %8386
        %8388 = vrot.lane.b32.xlu0 %v8054, 127
        %v8389 = vpop.permute.xlu0 %8388
        %8390 = vrot.lane.b32.xlu0 %v8049, 127
        %v8391 = vpop.permute.xlu0 %8390
        %8392 = vrot.lane.b32.xlu0 %v8051, 127
        %v8393 = vpop.permute.xlu0 %8392
        %8394 = vrot.lane.b32.xlu0 %v8053, 127
        %v8395 = vpop.permute.xlu0 %8394
        %8396 = vrot.lane.b32.xlu0 %v8055, 127
        %v8397 = vpop.permute.xlu0 %8396
        %v8398 = vsel %vm1562, %v8383, %v8391
        %v8399 = vsel %vm1562, %v8385, %v8393
        %v8400 = vsel %vm1562, %v8387, %v8395
        %v8401 = vsel %vm1562, %v8389, %v8397
        %v8402 = vsel %vm1562, %v8391, %v8383
        %v8403 = vsel %vm1562, %v8393, %v8385
        %v8404 = vsel %vm1562, %v8395, %v8387
        %v8405 = vsel %vm1562, %v8397, %v8389
        %s8406 = scalar_lea.vmem %s9, 40
        %v8407 = vld [vmem:[%s8406] sm:$0xff]
        %v8409 = vsel %vm2748, %v8407, 0
        %8411 = vmatpush.msra.mxu0 0.0
        %8412 = vmatpush.msra.mxu0 0.0
        %8413 = vmatpush.msra.mxu0 0.0
        %8414 = vmatpush.msra.mxu0 0.0
        %8415 = vmatpush.msra.mxu0 0.0
        %8416 = vmatpush.msra.mxu0 0.0
        %8417 = vmatpush.msra.mxu0 0.0
        %8418 = vmatpush.msra.mxu0 0.0
        %8419 = vmatpush.msra.mxu0 0.0
        %8420 = vmatpush.msra.mxu0 0.0
        %8421 = vmatpush.msra.mxu0 0.0
        %8422 = vmatpush.msra.mxu0 0.0
        %8423 = vmatpush.msra.mxu0 %v8401
        %8424 = vmatpush.msra.mxu0 %v8400
        %8425 = vmatpush.msra.mxu0 %v8399
        %8426 = vmatpush.msra.mxu0 %v8398
        %8427 = vmatmul.f32.gmra.mxu0 %v8409
        %v8428 = vpop.f32.mrf.mxu0
        %v8429 = vadd.f32 0.0, %v8428
        %8430 = vdwg.mxu0
        %8431 = vmatpush.msra.mxu0 0.0
        %8432 = vmatpush.msra.mxu0 0.0
        %8433 = vmatpush.msra.mxu0 0.0
        %8434 = vmatpush.msra.mxu0 0.0
        %8435 = vmatpush.msra.mxu0 0.0
        %8436 = vmatpush.msra.mxu0 0.0
        %8437 = vmatpush.msra.mxu0 0.0
        %8438 = vmatpush.msra.mxu0 0.0
        %8439 = vmatpush.msra.mxu0 0.0
        %8440 = vmatpush.msra.mxu0 0.0
        %8441 = vmatpush.msra.mxu0 0.0
        %8442 = vmatpush.msra.mxu0 0.0
        %8443 = vmatpush.msra.mxu0 %v8405
        %8444 = vmatpush.msra.mxu0 %v8404
        %8445 = vmatpush.msra.mxu0 %v8403
        %8446 = vmatpush.msra.mxu0 %v8402
        %8447 = vmatmul.f32.gmra.mxu0 %v8409
        %v8448 = vpop.f32.mrf.mxu0
        %v8449 = vadd.f32 0.0, %v8448
        %8450 = vdwg.mxu0
        %v8451 = vadd.f32 %v8380, %v8429
        %v8452 = vadd.f32 %v8381, %v8449
        %8453 = vrot.lane.b32.xlu0 %v8048, 117
        %v8454 = vpop.permute.xlu0 %8453
        %8455 = vrot.lane.b32.xlu0 %v8050, 117
        %v8456 = vpop.permute.xlu0 %8455
        %8457 = vrot.lane.b32.xlu0 %v8052, 117
        %v8458 = vpop.permute.xlu0 %8457
        %8459 = vrot.lane.b32.xlu0 %v8054, 117
        %v8460 = vpop.permute.xlu0 %8459
        %8461 = vrot.lane.b32.xlu0 %v8049, 117
        %v8462 = vpop.permute.xlu0 %8461
        %8463 = vrot.lane.b32.xlu0 %v8051, 117
        %v8464 = vpop.permute.xlu0 %8463
        %8465 = vrot.lane.b32.xlu0 %v8053, 117
        %v8466 = vpop.permute.xlu0 %8465
        %8467 = vrot.lane.b32.xlu0 %v8055, 117
        %v8468 = vpop.permute.xlu0 %8467
        %v8469 = vsel %vm1832, %v8454, %v8462
        %v8470 = vsel %vm1832, %v8456, %v8464
        %v8471 = vsel %vm1832, %v8458, %v8466
        %v8472 = vsel %vm1832, %v8460, %v8468
        %v8473 = vsel %vm1832, %v8462, %v8454
        %v8474 = vsel %vm1832, %v8464, %v8456
        %v8475 = vsel %vm1832, %v8466, %v8458
        %v8476 = vsel %vm1832, %v8468, %v8460
        %s8477 = scalar_lea.vmem %s9, 48
        %v8478 = vld [vmem:[%s8477] sm:$0xff]
        %v8480 = vsel %vm2748, %v8478, 0
        %8482 = vmatpush.msra.mxu0 0.0
        %8483 = vmatpush.msra.mxu0 0.0
        %8484 = vmatpush.msra.mxu0 0.0
        %8485 = vmatpush.msra.mxu0 0.0
        %8486 = vmatpush.msra.mxu0 0.0
        %8487 = vmatpush.msra.mxu0 0.0
        %8488 = vmatpush.msra.mxu0 0.0
        %8489 = vmatpush.msra.mxu0 0.0
        %8490 = vmatpush.msra.mxu0 0.0
        %8491 = vmatpush.msra.mxu0 0.0
        %8492 = vmatpush.msra.mxu0 0.0
        %8493 = vmatpush.msra.mxu0 0.0
        %8494 = vmatpush.msra.mxu0 %v8472
        %8495 = vmatpush.msra.mxu0 %v8471
        %8496 = vmatpush.msra.mxu0 %v8470
        %8497 = vmatpush.msra.mxu0 %v8469
        %8498 = vmatmul.f32.gmra.mxu0 %v8480
        %v8499 = vpop.f32.mrf.mxu0
        %v8500 = vadd.f32 0.0, %v8499
        %8501 = vdwg.mxu0
        %8502 = vmatpush.msra.mxu0 0.0
        %8503 = vmatpush.msra.mxu0 0.0
        %8504 = vmatpush.msra.mxu0 0.0
        %8505 = vmatpush.msra.mxu0 0.0
        %8506 = vmatpush.msra.mxu0 0.0
        %8507 = vmatpush.msra.mxu0 0.0
        %8508 = vmatpush.msra.mxu0 0.0
        %8509 = vmatpush.msra.mxu0 0.0
        %8510 = vmatpush.msra.mxu0 0.0
        %8511 = vmatpush.msra.mxu0 0.0
        %8512 = vmatpush.msra.mxu0 0.0
        %8513 = vmatpush.msra.mxu0 0.0
        %8514 = vmatpush.msra.mxu0 %v8476
        %8515 = vmatpush.msra.mxu0 %v8475
        %8516 = vmatpush.msra.mxu0 %v8474
        %8517 = vmatpush.msra.mxu0 %v8473
        %8518 = vmatmul.f32.gmra.mxu0 %v8480
        %v8519 = vpop.f32.mrf.mxu0
        %v8520 = vadd.f32 0.0, %v8519
        %8521 = vdwg.mxu0
        %v8522 = vadd.f32 %v8451, %v8500
        %v8523 = vadd.f32 %v8452, %v8520
        %8524 = vrot.lane.b32.xlu0 %v8048, 116
        %v8525 = vpop.permute.xlu0 %8524
        %8526 = vrot.lane.b32.xlu0 %v8050, 116
        %v8527 = vpop.permute.xlu0 %8526
        %8528 = vrot.lane.b32.xlu0 %v8052, 116
        %v8529 = vpop.permute.xlu0 %8528
        %8530 = vrot.lane.b32.xlu0 %v8054, 116
        %v8531 = vpop.permute.xlu0 %8530
        %8532 = vrot.lane.b32.xlu0 %v8049, 116
        %v8533 = vpop.permute.xlu0 %8532
        %8534 = vrot.lane.b32.xlu0 %v8051, 116
        %v8535 = vpop.permute.xlu0 %8534
        %8536 = vrot.lane.b32.xlu0 %v8053, 116
        %v8537 = vpop.permute.xlu0 %8536
        %8538 = vrot.lane.b32.xlu0 %v8055, 116
        %v8539 = vpop.permute.xlu0 %8538
        %v8540 = vsel %vm1922, %v8525, %v8533
        %v8541 = vsel %vm1922, %v8527, %v8535
        %v8542 = vsel %vm1922, %v8529, %v8537
        %v8543 = vsel %vm1922, %v8531, %v8539
        %v8544 = vsel %vm1922, %v8533, %v8525
        %v8545 = vsel %vm1922, %v8535, %v8527
        %v8546 = vsel %vm1922, %v8537, %v8529
        %v8547 = vsel %vm1922, %v8539, %v8531
        %s8548 = scalar_lea.vmem %s9, 56
        %v8549 = vld [vmem:[%s8548] sm:$0xff]
        %v8551 = vsel %vm2748, %v8549, 0
        %8553 = vmatpush.msra.mxu0 0.0
        %8554 = vmatpush.msra.mxu0 0.0
        %8555 = vmatpush.msra.mxu0 0.0
        %8556 = vmatpush.msra.mxu0 0.0
        %8557 = vmatpush.msra.mxu0 0.0
        %8558 = vmatpush.msra.mxu0 0.0
        %8559 = vmatpush.msra.mxu0 0.0
        %8560 = vmatpush.msra.mxu0 0.0
        %8561 = vmatpush.msra.mxu0 0.0
        %8562 = vmatpush.msra.mxu0 0.0
        %8563 = vmatpush.msra.mxu0 0.0
        %8564 = vmatpush.msra.mxu0 0.0
        %8565 = vmatpush.msra.mxu0 %v8543
        %8566 = vmatpush.msra.mxu0 %v8542
        %8567 = vmatpush.msra.mxu0 %v8541
        %8568 = vmatpush.msra.mxu0 %v8540
        %8569 = vmatmul.f32.gmra.mxu0 %v8551
        %v8570 = vpop.f32.mrf.mxu0
        %v8571 = vadd.f32 0.0, %v8570
        %8572 = vdwg.mxu0
        %8573 = vmatpush.msra.mxu0 0.0
        %8574 = vmatpush.msra.mxu0 0.0
        %8575 = vmatpush.msra.mxu0 0.0
        %8576 = vmatpush.msra.mxu0 0.0
        %8577 = vmatpush.msra.mxu0 0.0
        %8578 = vmatpush.msra.mxu0 0.0
        %8579 = vmatpush.msra.mxu0 0.0
        %8580 = vmatpush.msra.mxu0 0.0
        %8581 = vmatpush.msra.mxu0 0.0
        %8582 = vmatpush.msra.mxu0 0.0
        %8583 = vmatpush.msra.mxu0 0.0
        %8584 = vmatpush.msra.mxu0 0.0
        %8585 = vmatpush.msra.mxu0 %v8547
        %8586 = vmatpush.msra.mxu0 %v8546
        %8587 = vmatpush.msra.mxu0 %v8545
        %8588 = vmatpush.msra.mxu0 %v8544
        %8589 = vmatmul.f32.gmra.mxu0 %v8551
        %v8590 = vpop.f32.mrf.mxu0
        %v8591 = vadd.f32 0.0, %v8590
        %8592 = vdwg.mxu0
        %v8593 = vadd.f32 %v8522, %v8571
        %v8594 = vadd.f32 %v8523, %v8591
        %8595 = vrot.lane.b32.xlu0 %v8048, 115
        %v8596 = vpop.permute.xlu0 %8595
        %8597 = vrot.lane.b32.xlu0 %v8050, 115
        %v8598 = vpop.permute.xlu0 %8597
        %8599 = vrot.lane.b32.xlu0 %v8052, 115
        %v8600 = vpop.permute.xlu0 %8599
        %8601 = vrot.lane.b32.xlu0 %v8054, 115
        %v8602 = vpop.permute.xlu0 %8601
        %8603 = vrot.lane.b32.xlu0 %v8049, 115
        %v8604 = vpop.permute.xlu0 %8603
        %8605 = vrot.lane.b32.xlu0 %v8051, 115
        %v8606 = vpop.permute.xlu0 %8605
        %8607 = vrot.lane.b32.xlu0 %v8053, 115
        %v8608 = vpop.permute.xlu0 %8607
        %8609 = vrot.lane.b32.xlu0 %v8055, 115
        %v8610 = vpop.permute.xlu0 %8609
        %v8611 = vsel %vm2012, %v8596, %v8604
        %v8612 = vsel %vm2012, %v8598, %v8606
        %v8613 = vsel %vm2012, %v8600, %v8608
        %v8614 = vsel %vm2012, %v8602, %v8610
        %v8615 = vsel %vm2012, %v8604, %v8596
        %v8616 = vsel %vm2012, %v8606, %v8598
        %v8617 = vsel %vm2012, %v8608, %v8600
        %v8618 = vsel %vm2012, %v8610, %v8602
        %s8619 = scalar_lea.vmem %s9, 64
        %v8620 = vld [vmem:[%s8619] sm:$0xff]
        %v8622 = vsel %vm2748, %v8620, 0
        %8624 = vmatpush.msra.mxu0 0.0
        %8625 = vmatpush.msra.mxu0 0.0
        %8626 = vmatpush.msra.mxu0 0.0
        %8627 = vmatpush.msra.mxu0 0.0
        %8628 = vmatpush.msra.mxu0 0.0
        %8629 = vmatpush.msra.mxu0 0.0
        %8630 = vmatpush.msra.mxu0 0.0
        %8631 = vmatpush.msra.mxu0 0.0
        %8632 = vmatpush.msra.mxu0 0.0
        %8633 = vmatpush.msra.mxu0 0.0
        %8634 = vmatpush.msra.mxu0 0.0
        %8635 = vmatpush.msra.mxu0 0.0
        %8636 = vmatpush.msra.mxu0 %v8614
        %8637 = vmatpush.msra.mxu0 %v8613
        %8638 = vmatpush.msra.mxu0 %v8612
        %8639 = vmatpush.msra.mxu0 %v8611
        %8640 = vmatmul.f32.gmra.mxu0 %v8622
        %v8641 = vpop.f32.mrf.mxu0
        %v8642 = vadd.f32 0.0, %v8641
        %8643 = vdwg.mxu0
        %8644 = vmatpush.msra.mxu0 0.0
        %8645 = vmatpush.msra.mxu0 0.0
        %8646 = vmatpush.msra.mxu0 0.0
        %8647 = vmatpush.msra.mxu0 0.0
        %8648 = vmatpush.msra.mxu0 0.0
        %8649 = vmatpush.msra.mxu0 0.0
        %8650 = vmatpush.msra.mxu0 0.0
        %8651 = vmatpush.msra.mxu0 0.0
        %8652 = vmatpush.msra.mxu0 0.0
        %8653 = vmatpush.msra.mxu0 0.0
        %8654 = vmatpush.msra.mxu0 0.0
        %8655 = vmatpush.msra.mxu0 0.0
        %8656 = vmatpush.msra.mxu0 %v8618
        %8657 = vmatpush.msra.mxu0 %v8617
        %8658 = vmatpush.msra.mxu0 %v8616
        %8659 = vmatpush.msra.mxu0 %v8615
        %8660 = vmatmul.f32.gmra.mxu0 %v8622
        %v8661 = vpop.f32.mrf.mxu0
        %v8662 = vadd.f32 0.0, %v8661
        %8663 = vdwg.mxu0
        %v8664 = vadd.f32 %v8593, %v8642
        %v8665 = vadd.f32 %v8594, %v8662
        %v8666 = vld [vmem:[%s10] sm:$0xff]
        %8668 = vset.pattern.permute.xlu0 0
        %8669 = vperm.xlu0 %8668, %v8666
        %v8670 = vpop.permute.xlu0 %8669
        %v8672 = vadd.f32 %v8664, %v8670
        %v8673 = vadd.f32 %v8665, %v8670
        %8674 = vst [vmem:[%s396] sm:$0xff] %v8672
        %8675 = vst [vmem:[%s396 + $0x8] sm:$0xff] %v8673
        %s8676 = sand.u32 %s270, 1
        %s8677 = scalar_lea.sflag [#allocation4], %s8676
        %s8678 = sand.u32 %s270, 1
        %s8679 = smul.addr %s8678, 16
        %s8680 = scalar_lea.vmem [#allocation5], %s8679
        // Predicated region
        $region69: #{tpu_custom_call.1} parent=63 // pred_check
          %p8681 = pneg %p280
        $region70: #{tpu_custom_call.1} parent=63 // pred_check_branch
          %8683 = sbr.rel (%p8681) target = $region72
        $region71: #{tpu_custom_call.1} parent=63 // pred_region
          %8685 = vsyncadd %s8677, 0
          %s8686 = smul.addr %s26, 2
          %s8687 = smul.addr %s8686, 8
          %s8688 = scalar_lea.hbm %s11, %s8687
          %s8690 = sshll.u32 %s8680, 4
          %s8691 = int_to_ptr.vmem [resolvable:$true] %s8690
          %s8692 = sshll.u32 %s8688, 4
          %s8693 = int_to_ptr.hbm [resolvable:$true] %s8692
          %8695 = dma.vmem_to_hbm [thread:$0]  %s8691, 256, %s8693, %s8677
        $region72: #{tpu_custom_call.1} parent=63 // pred_fallthru
          _
      $region64: #{tpu_custom_call.1} parent=5 // pred_fallthru
        _
      %p8696 = scmp.le.s32.totalorder 2, %s21
      // Predicated region
      $region73: #{tpu_custom_call.1} parent=5 // pred_check
        %p8697 = pneg %p8696
      $region74: #{tpu_custom_call.1} parent=5 // pred_check_branch
        %8699 = sbr.rel (%p8697) target = $region76
      $region75: #{tpu_custom_call.1} parent=5 // pred_region
        %s8700 = ssub.s32 %s21, 2
        // Predicated region
        $region77: #{tpu_custom_call.1} parent=75 // pred_check
          %p8701 = pneg %p286
        $region78: #{tpu_custom_call.1} parent=75 // pred_check_branch
          %8703 = sbr.rel (%p8701) target = $region80
        $region79: #{tpu_custom_call.1} parent=75 // pred_region
          %s8704 = sand.u32 %s271, 1
          %s8705 = scalar_lea.sflag [#allocation4], %s8704
          %s8706 = sand.u32 %s271, 1
          %s8707 = smul.addr %s8706, 16
          %s8708 = scalar_lea.vmem [#allocation5], %s8707
          %8710 = dma.done %s8705, 256
        $region80: #{tpu_custom_call.1} parent=75 // pred_fallthru
          _
      $region76: #{tpu_custom_call.1} parent=5 // pred_fallthru
        _
    $region6: #{tpu_custom_call.1} parent=1 // loop_footer
      %s25 = sadd.s32 1, %s21
    $region7: #{tpu_custom_call.1} parent=1 // loop_footer_branch
      %20 = sbr.rel target = $region3
    $region8: #{tpu_custom_call.1} parent=1 // loop_exit
      _
    %8711 = vsyncpa [#allocation3], 1
    %s8712 = scalar_lea.sflag [#allocation3], 1
    %8713 = vsyncpa %s8712, 1
    %8714 = vsyncpa [#allocation4], 1
    %s8715 = scalar_lea.sflag [#allocation4], 1
    %8716 = vsyncpa %s8715, 1

</llo_original>
